<compile_context>
chip_gen: v7x
topology: tpu7x:2x2x1
jax: 0.10.0
libtpu: 0.0.40
codegen_flags: <defaults>
</compile_context>

<pallas_src>
import functools

import jax
import jax.numpy as jnp
from jax.experimental import pallas as pl
from jax.experimental.pallas import tpu as pltpu

NUM_LAYERS = 3
BATCH_PAD = 8  # sublane padding of the batch dimension


# ---------------------------------------------------------------------------
# Fused kernel body: one grid step == one GRU layer (the last step also runs the tower).
# ---------------------------------------------------------------------------
def _gru_tower_kernel(
    x_ref, h0_ref,
    wih_ref, whh_ref, bih_ref, bhh_ref,
    w1_ref, b1_ref, w2_ref, b2_ref,
    y_ref, hn_ref,
    gx_scr, seq_scr,
    *, seq_len, batch_pad, hidden,
):
    l = pl.program_id(0)
    T, Bp, H = seq_len, batch_pad, hidden

    # Layer 0 reads x; later layers read the previous layer's outputs which are already
    # resident in seq_scr (scratch persists across grid steps).  Copy x in once so the
    # rest of the body is uniform across layers.
    @pl.when(l == 0)
    def _():
        seq_scr[...] = x_ref[...]

    # Hoisted input projection for ALL timesteps: (T*Bp, H) @ (H, 3H), bf16 -> f32 acc.
    in_seq = seq_scr[...].astype(jnp.bfloat16)
    gx_scr[...] = (
        jnp.dot(in_seq, wih_ref[0], preferred_element_type=jnp.float32)
        + bih_ref[0]
    )

    whh = whh_ref[0]          # (H, 3H) bf16, streamed from the double-buffered block
    bhh = bhh_ref[0]          # (1, 3H) f32
    h = h0_ref[0]             # (Bp, H) f32

    # TODO(synk): a layer wavefront (layer0 t=s, layer1 t=s-1, layer2 t=s-2) would hide
    # gate math under another layer's MXU streaming, but it is incompatible with the
    # per-layer grid used here for weight-DMA overlap; revisit if bundle dumps show the
    # serial h@W_hh chain is still the binding cost.
    for t in range(T):
        g = gx_scr[pl.ds(t * Bp, Bp), :]                       # (Bp, 3H) full tiles
        gh = jnp.dot(h.astype(jnp.bfloat16), whh,
                     preferred_element_type=jnp.float32) + bhh  # (Bp, 3H)
        r = jax.nn.sigmoid(g[:, :H] + gh[:, :H])
        z = jax.nn.sigmoid(g[:, H:2 * H] + gh[:, H:2 * H])
        n = jnp.tanh(g[:, 2 * H:] + r * gh[:, 2 * H:])
        h = (1.0 - z) * n + z * h
        seq_scr[pl.ds(t * Bp, Bp), :] = h                      # full-tile store

    hn_ref[0] = h

    # Tower head (Linear -> ReLU -> Linear -> Sigmoid) only after the last GRU layer.
    @pl.when(l == pl.num_programs(0) - 1)
    def _():
        feats = seq_scr[...].astype(jnp.bfloat16)              # (T*Bp, H)
        hid = jnp.maximum(
            jnp.dot(feats, w1_ref[...], preferred_element_type=jnp.float32)
            + b1_ref[...], 0.0)
        y_ref[...] = jax.nn.sigmoid(
            jnp.dot(hid.astype(jnp.bfloat16), w2_ref[...],
                    preferred_element_type=jnp.float32) + b2_ref[...])


# ---------------------------------------------------------------------------
# Host wrapper: one pallas_call, grid over layers.
# ---------------------------------------------------------------------------
def rnn_spp_contain_rever_forward(params, x, h_state, *, hidden, hidden_pad,
                                  batch_pad=BATCH_PAD):
    """x: (B, T, I) batch_first, h_state: (L, B, hidden). Returns (r_out1, h_n)."""
    B, T, I = x.shape
    L = h_state.shape[0]
    Hp, Bp = hidden_pad, batch_pad
    assert B <= Bp and I <= Hp and hidden <= Hp

    # Time-major rows, padded to 8 sublanes (batch) and 384 lanes (features).
    x_tm = jnp.transpose(x, (1, 0, 2))                                   # (T, B, I)
    x_flat = jnp.pad(x_tm, ((0, 0), (0, Bp - B), (0, Hp - I))).reshape(T * Bp, Hp)
    # Zero-padding h0 keeps the padded lanes inert through the whole recurrence.
    h0 = jnp.pad(h_state, ((0, 0), (0, Bp - B), (0, Hp - hidden)))

    wih, whh, bih, bhh = params["rnn"]          # (L,Hp,3Hp) bf16, (L,1,3Hp) f32
    w1, b1, w2, b2 = params["tower1"]           # (Hp,Hp) bf16, (1,Hp) f32

    kernel = functools.partial(_gru_tower_kernel,
                               seq_len=T, batch_pad=Bp, hidden=Hp)

    y_flat, h_n = pl.pallas_call(
        kernel,
        grid=(L,),
        in_specs=[
            pl.BlockSpec((T * Bp, Hp), lambda l: (0, 0)),          # x (loaded once)
            pl.BlockSpec((1, Bp, Hp), lambda l: (l, 0, 0)),        # h0, per layer
            pl.BlockSpec((1, Hp, 3 * Hp), lambda l: (l, 0, 0)),    # W_ih, per layer
            pl.BlockSpec((1, Hp, 3 * Hp), lambda l: (l, 0, 0)),    # W_hh, per layer
            pl.BlockSpec((1, 1, 3 * Hp), lambda l: (l, 0, 0)),     # b_ih, per layer
            pl.BlockSpec((1, 1, 3 * Hp), lambda l: (l, 0, 0)),     # b_hh, per layer
            pl.BlockSpec((Hp, Hp), lambda l: (0, 0)),              # tower W1
            pl.BlockSpec((1, Hp), lambda l: (0, 0)),               # tower b1
            pl.BlockSpec((Hp, Hp), lambda l: (0, 0)),              # tower W2
            pl.BlockSpec((1, Hp), lambda l: (0, 0)),               # tower b2
        ],
        out_specs=(
            pl.BlockSpec((T * Bp, Hp), lambda l: (0, 0)),          # tower output
            pl.BlockSpec((1, Bp, Hp), lambda l: (l, 0, 0)),        # final hidden / layer
        ),
        out_shape=(
            jax.ShapeDtypeStruct((T * Bp, Hp), jnp.float32),
            jax.ShapeDtypeStruct((L, Bp, Hp), jnp.float32),
        ),
        scratch_shapes=[
            pltpu.VMEM((T * Bp, 3 * Hp), jnp.float32),  # hoisted gate projections
            pltpu.VMEM((T * Bp, Hp), jnp.float32),      # layer input/output sequence
        ],
        compiler_params=pltpu.CompilerParams(
            dimension_semantics=("arbitrary",),
            vmem_limit_bytes=32 * 1024 * 1024,
        ),
    )(x_flat, h0, wih, whh, bih, bhh, w1, b1, w2, b2)

    y = y_flat.reshape(T, Bp, Hp)[:, :B, :hidden]
    r_out1 = jnp.transpose(y, (1, 0, 2))
    return r_out1, h_n[:, :B, :hidden]


# ---------------------------------------------------------------------------
# Parameter construction (PyTorch-style init, gates fused as [r|z|n], zero-padded,
# weights stored in bf16 for the MXU; biases kept in f32).
# ---------------------------------------------------------------------------
def _pad_axis(a, axis, new_size):
    pad = [(0, 0)] * a.ndim
    pad[axis] = (0, new_size - a.shape[axis])
    return jnp.pad(a, pad)


def init_gru_params(key, input_size, hidden, hidden_pad, num_layers):
    Hp = hidden_pad
    bound = hidden ** -0.5
    wihs, whhs, bihs, bhhs = [], [], [], []
    for layer in range(num_layers):
        in_real = input_size if layer == 0 else hidden
        key, k1, k2, k3, k4 = jax.random.split(key, 5)
        wih = jax.random.uniform(k1, (3, in_real, hidden), jnp.float32, -bound, bound)
        whh = jax.random.uniform(k2, (3, hidden, hidden), jnp.float32, -bound, bound)
        bih = jax.random.uniform(k3, (3, hidden), jnp.float32, -bound, bound)
        bhh = jax.random.uniform(k4, (3, hidden), jnp.float32, -bound, bound)
        # zero-pad to lane/sublane-aligned sizes (padded lanes stay inert), fuse gates
        wih = _pad_axis(_pad_axis(wih, 2, Hp), 1, Hp)
        whh = _pad_axis(_pad_axis(whh, 2, Hp), 1, Hp)
        bih = _pad_axis(bih, 1, Hp)
        bhh = _pad_axis(bhh, 1, Hp)
        wihs.append(jnp.concatenate([wih[0], wih[1], wih[2]], axis=1))  # (Hp, 3Hp)
        whhs.append(jnp.concatenate([whh[0], whh[1], whh[2]], axis=1))  # (Hp, 3Hp)
        bihs.append(bih.reshape(1, 3 * Hp))
        bhhs.append(bhh.reshape(1, 3 * Hp))
    rnn = (jnp.stack(wihs).astype(jnp.bfloat16),   # (L, Hp, 3Hp) bf16
           jnp.stack(whhs).astype(jnp.bfloat16),   # (L, Hp, 3Hp) bf16
           jnp.stack(bihs),                        # (L, 1, 3Hp) f32
           jnp.stack(bhhs))                        # (L, 1, 3Hp) f32
    return key, rnn


def init_linear_params(key, in_f, out_f, in_pad, out_pad):
    bound = in_f ** -0.5
    key, k1, k2 = jax.random.split(key, 3)
    w = jax.random.uniform(k1, (in_f, out_f), jnp.float32, -bound, bound)
    b = jax.random.uniform(k2, (out_f,), jnp.float32, -bound, bound)
    w = _pad_axis(_pad_axis(w, 1, out_pad), 0, in_pad).astype(jnp.bfloat16)
    b = _pad_axis(b, 0, out_pad).reshape(1, out_pad)
    return key, w, b


# ---------------------------------------------------------------------------
# Pure-JAX reference of the same math (same bf16 operand quantization, f32 accumulate).
# ---------------------------------------------------------------------------
def reference_forward(params, x, h_state, *, hidden, hidden_pad):
    prec = jax.lax.Precision.HIGHEST

    def qdot(a, w_bf16):   # mimic MXU bf16 x bf16 -> f32 accumulate
        a = a.astype(jnp.bfloat16).astype(jnp.float32)
        return jnp.dot(a, w_bf16.astype(jnp.float32), precision=prec)

    B, T, I = x.shape
    hp = hidden_pad
    wih_s, whh_s, bih_s, bhh_s = params["rnn"]
    w1, b1, w2, b2 = params["tower1"]

    cur = jnp.transpose(x, (1, 0, 2))                              # (T, B, I)
    cur = jnp.pad(cur, ((0, 0), (0, 0), (0, hp - I)))              # feature pad like kernel
    h_layers = jnp.pad(h_state, ((0, 0), (0, 0), (0, hp - hidden)))
    h_finals = []
    L = h_state.shape[0]
    for layer in range(L):
        wih, whh = wih_s[layer], whh_s[layer]
        bih, bhh = bih_s[layer], bhh_s[layer]
        gx = qdot(cur.reshape(T * B, hp), wih).reshape(T, B, 3 * hp) + bih
        h = h_layers[layer]
        outs = []
        for t in range(T):
            gh = qdot(h, whh) + bhh
            g = gx[t]
            r = jax.nn.sigmoid(g[:, :hp] + gh[:, :hp])
            z = jax.nn.sigmoid(g[:, hp:2 * hp] + gh[:, hp:2 * hp])
            n = jnp.tanh(g[:, 2 * hp:] + r * gh[:, 2 * hp:])
            h = (1.0 - z) * n + z * h
            outs.append(h)
        cur = jnp.stack(outs, axis=0)
        h_finals.append(h)
    hid = jnp.maximum(qdot(cur.reshape(T * B, hp), w1).reshape(T, B, hp) + b1, 0.0)
    y = jax.nn.sigmoid(qdot(hid.reshape(T * B, hp), w2).reshape(T, B, hp) + b2)
    r_out1 = jnp.transpose(y, (1, 0, 2))[:, :, :hidden]
    h_n = jnp.stack(h_finals, axis=0)[:, :, :hidden]
    return r_out1, h_n


if __name__ == "__main__":
    INPUT_SIZE = 16
    HIDDEN = 43 * 8        # 344, as in the PyTorch module
    HIDDEN_PAD = 384       # padded to a multiple of 128 lanes
    B, T = 2, 8

    key = jax.random.PRNGKey(0)
    key, rnn_params = init_gru_params(key, INPUT_SIZE, HIDDEN, HIDDEN_PAD, NUM_LAYERS)
    key, w1, b1 = init_linear_params(key, HIDDEN, HIDDEN, HIDDEN_PAD, HIDDEN_PAD)
    key, w2, b2 = init_linear_params(key, HIDDEN, HIDDEN, HIDDEN_PAD, HIDDEN_PAD)
    params = {"rnn": rnn_params, "tower1": (w1, b1, w2, b2)}

    key, kx, kh = jax.random.split(key, 3)
    x = jax.random.normal(kx, (B, T, INPUT_SIZE), jnp.float32)
    h_state = jax.random.normal(kh, (NUM_LAYERS, B, HIDDEN), jnp.float32)

    fwd = jax.jit(functools.partial(
        rnn_spp_contain_rever_forward, hidden=HIDDEN, hidden_pad=HIDDEN_PAD))
    r_out1, h_n = jax.block_until_ready(fwd(params, x, h_state))

    assert r_out1.shape == (B, T, HIDDEN)
    assert h_n.shape == (NUM_LAYERS, B, HIDDEN)

    # Correctness sanity check against the pure-JAX reference.
    r_ref, h_ref = reference_forward(params, x, h_state,
                                     hidden=HIDDEN, hidden_pad=HIDDEN_PAD)
    assert float(jnp.max(jnp.abs(r_out1 - r_ref))) < 2e-3
    assert float(jnp.max(jnp.abs(h_n - h_ref))) < 2e-3

    print("KERNEL_OK")
</pallas_src>

<mosaic_0001>
module attributes {stable_mosaic.version = 11 : i64} {
  func.func @_gru_tower_kernel(%arg0: i32, %arg1: memref<64x384xf32, #tpu.memory_space<vmem>>, %arg2: memref<1x8x384xf32, #tpu.memory_space<vmem>>, %arg3: memref<1x384x1152xbf16, #tpu.memory_space<vmem>>, %arg4: memref<1x384x1152xbf16, #tpu.memory_space<vmem>>, %arg5: memref<1x1x1152xf32, #tpu.memory_space<vmem>>, %arg6: memref<1x1x1152xf32, #tpu.memory_space<vmem>>, %arg7: memref<384x384xbf16, #tpu.memory_space<vmem>>, %arg8: memref<1x384xf32, #tpu.memory_space<vmem>>, %arg9: memref<384x384xbf16, #tpu.memory_space<vmem>>, %arg10: memref<1x384xf32, #tpu.memory_space<vmem>>, %arg11: memref<64x384xf32, #tpu.memory_space<vmem>>, %arg12: memref<1x8x384xf32, #tpu.memory_space<vmem>>, %arg13: memref<64x1152xf32, #tpu.memory_space<vmem>>, %arg14: memref<64x384xf32, #tpu.memory_space<vmem>>) attributes {dimension_semantics = [#tpu.dimension_semantics<arbitrary>], iteration_bounds = array<i64: 3>, scalar_prefetch = 0 : i64, scratch_operands = 2 : i64, tpu.core_type = #tpu.core_type<tc>, window_params = [{pipeline_mode = #tpu.pipeline_mode<synchronous>, transform_indices = @transform_0, window_bounds = array<i64: 64, 384>}, {transform_indices = @transform_1, window_bounds = array<i64: 1, 8, 384>}, {transform_indices = @transform_2, window_bounds = array<i64: 1, 384, 1152>}, {transform_indices = @transform_3, window_bounds = array<i64: 1, 384, 1152>}, {transform_indices = @transform_4, window_bounds = array<i64: 1, 1, 1152>}, {transform_indices = @transform_5, window_bounds = array<i64: 1, 1, 1152>}, {pipeline_mode = #tpu.pipeline_mode<synchronous>, transform_indices = @transform_6, window_bounds = array<i64: 384, 384>}, {pipeline_mode = #tpu.pipeline_mode<synchronous>, transform_indices = @transform_7, window_bounds = array<i64: 1, 384>}, {pipeline_mode = #tpu.pipeline_mode<synchronous>, transform_indices = @transform_8, window_bounds = array<i64: 384, 384>}, {pipeline_mode = #tpu.pipeline_mode<synchronous>, transform_indices = @transform_9, window_bounds = array<i64: 1, 384>}, {pipeline_mode = #tpu.pipeline_mode<synchronous>, transform_indices = @transform_10, window_bounds = array<i64: 64, 384>}, {transform_indices = @transform_11, window_bounds = array<i64: 1, 8, 384>}]} {
    %c0_i32 = arith.constant 0 : i32
    %0 = arith.cmpi eq, %arg0, %c0_i32 : i32
    %1 = arith.extui %0 : i1 to i32
    %c0_i32_0 = arith.constant 0 : i32
    %2 = arith.cmpi ne, %1, %c0_i32_0 : i32
    scf.if %2 {
      %c0_80 = arith.constant 0 : index
      %c0_81 = arith.constant 0 : index
      %281 = vector.load %arg1[%c0_80, %c0_81] : memref<64x384xf32, #tpu.memory_space<vmem>>, vector<64x384xf32>
      %c0_82 = arith.constant 0 : index
      %c0_83 = arith.constant 0 : index
      %282 = vector.load %arg14[%c0_82, %c0_83] : memref<64x384xf32, #tpu.memory_space<vmem>>, vector<64x384xf32>
      tpu.vector_store %arg14[%c0_82, %c0_83], %281 {strides = array<i32>} : memref<64x384xf32, #tpu.memory_space<vmem>>, vector<64x384xf32>,
    } else {
    }
    %c0 = arith.constant 0 : index
    %c0_1 = arith.constant 0 : index
    %3 = vector.load %arg14[%c0, %c0_1] : memref<64x384xf32, #tpu.memory_space<vmem>>, vector<64x384xf32>
    %4 = arith.truncf %3 : vector<64x384xf32> to vector<64x384xbf16>
    %c0_2 = arith.constant 0 : index
    %c0_3 = arith.constant 0 : index
    %c0_4 = arith.constant 0 : index
    %5 = vector.load %arg3[%c0_2, %c0_3, %c0_4] : memref<1x384x1152xbf16, #tpu.memory_space<vmem>>, vector<1x384x1152xbf16>
    %6 = vector.shape_cast %5 : vector<1x384x1152xbf16> to vector<384x1152xbf16>
    %cst = arith.constant dense<0.000000e+00> : vector<64x1152xf32>
    %7 = tpu.matmul %4, %6, %cst {dimension_numbers = #tpu.dot_dimension_numbers<[1], [0], [0], [1], [0, 0, 1, 1], [], []>} : vector<64x384xbf16>, vector<384x1152xbf16>, vector<64x1152xf32> -> vector<64x1152xf32>
    %c0_5 = arith.constant 0 : index
    %c0_6 = arith.constant 0 : index
    %c0_7 = arith.constant 0 : index
    %8 = vector.load %arg5[%c0_5, %c0_6, %c0_7] : memref<1x1x1152xf32, #tpu.memory_space<vmem>>, vector<1x1x1152xf32>
    %9 = vector.shape_cast %8 : vector<1x1x1152xf32> to vector<1x1152xf32>
    %10 = vector.broadcast %9 : vector<1x1152xf32> to vector<64x1152xf32>
    %11 = arith.addf %7, %10 : vector<64x1152xf32>
    %c0_8 = arith.constant 0 : index
    %c0_9 = arith.constant 0 : index
    %12 = vector.load %arg13[%c0_8, %c0_9] : memref<64x1152xf32, #tpu.memory_space<vmem>>, vector<64x1152xf32>
    tpu.vector_store %arg13[%c0_8, %c0_9], %11 {strides = array<i32>} : memref<64x1152xf32, #tpu.memory_space<vmem>>, vector<64x1152xf32>,
    %c0_10 = arith.constant 0 : index
    %c0_11 = arith.constant 0 : index
    %c0_12 = arith.constant 0 : index
    %13 = vector.load %arg4[%c0_10, %c0_11, %c0_12] : memref<1x384x1152xbf16, #tpu.memory_space<vmem>>, vector<1x384x1152xbf16>
    %14 = vector.shape_cast %13 : vector<1x384x1152xbf16> to vector<384x1152xbf16>
    %c0_13 = arith.constant 0 : index
    %c0_14 = arith.constant 0 : index
    %c0_15 = arith.constant 0 : index
    %15 = vector.load %arg6[%c0_13, %c0_14, %c0_15] : memref<1x1x1152xf32, #tpu.memory_space<vmem>>, vector<1x1x1152xf32>
    %16 = vector.shape_cast %15 : vector<1x1x1152xf32> to vector<1x1152xf32>
    %c0_16 = arith.constant 0 : index
    %c0_17 = arith.constant 0 : index
    %c0_18 = arith.constant 0 : index
    %17 = vector.load %arg2[%c0_16, %c0_17, %c0_18] : memref<1x8x384xf32, #tpu.memory_space<vmem>>, vector<1x8x384xf32>
    %18 = vector.shape_cast %17 : vector<1x8x384xf32> to vector<8x384xf32>
    %c0_19 = arith.constant 0 : index
    %c0_20 = arith.constant 0 : index
    %19 = vector.load %arg13[%c0_19, %c0_20] : memref<64x1152xf32, #tpu.memory_space<vmem>>, vector<8x1152xf32>
    %20 = arith.truncf %18 : vector<8x384xf32> to vector<8x384xbf16>
    %cst_21 = arith.constant dense<0.000000e+00> : vector<8x1152xf32>
    %21 = tpu.matmul %20, %14, %cst_21 {dimension_numbers = #tpu.dot_dimension_numbers<[1], [0], [0], [1], [0, 0, 1, 1], [], []>} : vector<8x384xbf16>, vector<384x1152xbf16>, vector<8x1152xf32> -> vector<8x1152xf32>
    %22 = vector.broadcast %16 : vector<1x1152xf32> to vector<8x1152xf32>
    %23 = arith.addf %21, %22 : vector<8x1152xf32>
    %24 = vector.extract_strided_slice %19 {offsets = [0, 0], sizes = [8, 384], strides = [1, 1]} : vector<8x1152xf32> to vector<8x384xf32>
    %25 = vector.extract_strided_slice %23 {offsets = [0, 0], sizes = [8, 384], strides = [1, 1]} : vector<8x1152xf32> to vector<8x384xf32>
    %26 = arith.addf %24, %25 : vector<8x384xf32>
    %27 = arith.negf %26 : vector<8x384xf32>
    %28 = math.exp %27 : vector<8x384xf32>
    %cst_22 = arith.constant 1.000000e+00 : f32
    %29 = vector.broadcast %cst_22 : f32 to vector<8x384xf32>
    %30 = arith.addf %29, %28 : vector<8x384xf32>
    %31 = arith.divf %29, %30 : vector<8x384xf32>
    %32 = vector.extract_strided_slice %19 {offsets = [0, 384], sizes = [8, 384], strides = [1, 1]} : vector<8x1152xf32> to vector<8x384xf32>
    %33 = vector.extract_strided_slice %23 {offsets = [0, 384], sizes = [8, 384], strides = [1, 1]} : vector<8x1152xf32> to vector<8x384xf32>
    %34 = arith.addf %32, %33 : vector<8x384xf32>
    %35 = arith.negf %34 : vector<8x384xf32>
    %36 = math.exp %35 : vector<8x384xf32>
    %cst_23 = arith.constant 1.000000e+00 : f32
    %37 = vector.broadcast %cst_23 : f32 to vector<8x384xf32>
    %38 = arith.addf %37, %36 : vector<8x384xf32>
    %39 = arith.divf %37, %38 : vector<8x384xf32>
    %40 = vector.extract_strided_slice %19 {offsets = [0, 768], sizes = [8, 384], strides = [1, 1]} : vector<8x1152xf32> to vector<8x384xf32>
    %41 = vector.extract_strided_slice %23 {offsets = [0, 768], sizes = [8, 384], strides = [1, 1]} : vector<8x1152xf32> to vector<8x384xf32>
    %42 = arith.mulf %31, %41 : vector<8x384xf32>
    %43 = arith.addf %40, %42 : vector<8x384xf32>
    %44 = math.tanh %43 : vector<8x384xf32>
    %cst_24 = arith.constant 1.000000e+00 : f32
    %45 = vector.broadcast %cst_24 : f32 to vector<8x384xf32>
    %46 = arith.subf %45, %39 : vector<8x384xf32>
    %47 = arith.mulf %46, %44 : vector<8x384xf32>
    %48 = arith.mulf %39, %18 : vector<8x384xf32>
    %49 = arith.addf %47, %48 : vector<8x384xf32>
    %c0_25 = arith.constant 0 : index
    %c0_26 = arith.constant 0 : index
    %50 = vector.load %arg14[%c0_25, %c0_26] : memref<64x384xf32, #tpu.memory_space<vmem>>, vector<8x384xf32>
    tpu.vector_store %arg14[%c0_25, %c0_26], %49 {strides = array<i32>} : memref<64x384xf32, #tpu.memory_space<vmem>>, vector<8x384xf32>,
    %c8 = arith.constant 8 : index
    %c0_27 = arith.constant 0 : index
    %51 = vector.load %arg13[%c8, %c0_27] : memref<64x1152xf32, #tpu.memory_space<vmem>>, vector<8x1152xf32>
    %52 = arith.truncf %49 : vector<8x384xf32> to vector<8x384xbf16>
    %cst_28 = arith.constant dense<0.000000e+00> : vector<8x1152xf32>
    %53 = tpu.matmul %52, %14, %cst_28 {dimension_numbers = #tpu.dot_dimension_numbers<[1], [0], [0], [1], [0, 0, 1, 1], [], []>} : vector<8x384xbf16>, vector<384x1152xbf16>, vector<8x1152xf32> -> vector<8x1152xf32>
    %54 = vector.broadcast %16 : vector<1x1152xf32> to vector<8x1152xf32>
    %55 = arith.addf %53, %54 : vector<8x1152xf32>
    %56 = vector.extract_strided_slice %51 {offsets = [0, 0], sizes = [8, 384], strides = [1, 1]} : vector<8x1152xf32> to vector<8x384xf32>
    %57 = vector.extract_strided_slice %55 {offsets = [0, 0], sizes = [8, 384], strides = [1, 1]} : vector<8x1152xf32> to vector<8x384xf32>
    %58 = arith.addf %56, %57 : vector<8x384xf32>
    %59 = arith.negf %58 : vector<8x384xf32>
    %60 = math.exp %59 : vector<8x384xf32>
    %cst_29 = arith.constant 1.000000e+00 : f32
    %61 = vector.broadcast %cst_29 : f32 to vector<8x384xf32>
    %62 = arith.addf %61, %60 : vector<8x384xf32>
    %63 = arith.divf %61, %62 : vector<8x384xf32>
    %64 = vector.extract_strided_slice %51 {offsets = [0, 384], sizes = [8, 384], strides = [1, 1]} : vector<8x1152xf32> to vector<8x384xf32>
    %65 = vector.extract_strided_slice %55 {offsets = [0, 384], sizes = [8, 384], strides = [1, 1]} : vector<8x1152xf32> to vector<8x384xf32>
    %66 = arith.addf %64, %65 : vector<8x384xf32>
    %67 = arith.negf %66 : vector<8x384xf32>
    %68 = math.exp %67 : vector<8x384xf32>
    %cst_30 = arith.constant 1.000000e+00 : f32
    %69 = vector.broadcast %cst_30 : f32 to vector<8x384xf32>
    %70 = arith.addf %69, %68 : vector<8x384xf32>
    %71 = arith.divf %69, %70 : vector<8x384xf32>
    %72 = vector.extract_strided_slice %51 {offsets = [0, 768], sizes = [8, 384], strides = [1, 1]} : vector<8x1152xf32> to vector<8x384xf32>
    %73 = vector.extract_strided_slice %55 {offsets = [0, 768], sizes = [8, 384], strides = [1, 1]} : vector<8x1152xf32> to vector<8x384xf32>
    %74 = arith.mulf %63, %73 : vector<8x384xf32>
    %75 = arith.addf %72, %74 : vector<8x384xf32>
    %76 = math.tanh %75 : vector<8x384xf32>
    %cst_31 = arith.constant 1.000000e+00 : f32
    %77 = vector.broadcast %cst_31 : f32 to vector<8x384xf32>
    %78 = arith.subf %77, %71 : vector<8x384xf32>
    %79 = arith.mulf %78, %76 : vector<8x384xf32>
    %80 = arith.mulf %71, %49 : vector<8x384xf32>
    %81 = arith.addf %79, %80 : vector<8x384xf32>
    %c8_32 = arith.constant 8 : index
    %c0_33 = arith.constant 0 : index
    %82 = vector.load %arg14[%c8_32, %c0_33] : memref<64x384xf32, #tpu.memory_space<vmem>>, vector<8x384xf32>
    tpu.vector_store %arg14[%c8_32, %c0_33], %81 {strides = array<i32>} : memref<64x384xf32, #tpu.memory_space<vmem>>, vector<8x384xf32>,
    %c16 = arith.constant 16 : index
    %c0_34 = arith.constant 0 : index
    %83 = vector.load %arg13[%c16, %c0_34] : memref<64x1152xf32, #tpu.memory_space<vmem>>, vector<8x1152xf32>
    %84 = arith.truncf %81 : vector<8x384xf32> to vector<8x384xbf16>
    %cst_35 = arith.constant dense<0.000000e+00> : vector<8x1152xf32>
    %85 = tpu.matmul %84, %14, %cst_35 {dimension_numbers = #tpu.dot_dimension_numbers<[1], [0], [0], [1], [0, 0, 1, 1], [], []>} : vector<8x384xbf16>, vector<384x1152xbf16>, vector<8x1152xf32> -> vector<8x1152xf32>
    %86 = vector.broadcast %16 : vector<1x1152xf32> to vector<8x1152xf32>
    %87 = arith.addf %85, %86 : vector<8x1152xf32>
    %88 = vector.extract_strided_slice %83 {offsets = [0, 0], sizes = [8, 384], strides = [1, 1]} : vector<8x1152xf32> to vector<8x384xf32>
    %89 = vector.extract_strided_slice %87 {offsets = [0, 0], sizes = [8, 384], strides = [1, 1]} : vector<8x1152xf32> to vector<8x384xf32>
    %90 = arith.addf %88, %89 : vector<8x384xf32>
    %91 = arith.negf %90 : vector<8x384xf32>
    %92 = math.exp %91 : vector<8x384xf32>
    %cst_36 = arith.constant 1.000000e+00 : f32
    %93 = vector.broadcast %cst_36 : f32 to vector<8x384xf32>
    %94 = arith.addf %93, %92 : vector<8x384xf32>
    %95 = arith.divf %93, %94 : vector<8x384xf32>
    %96 = vector.extract_strided_slice %83 {offsets = [0, 384], sizes = [8, 384], strides = [1, 1]} : vector<8x1152xf32> to vector<8x384xf32>
    %97 = vector.extract_strided_slice %87 {offsets = [0, 384], sizes = [8, 384], strides = [1, 1]} : vector<8x1152xf32> to vector<8x384xf32>
    %98 = arith.addf %96, %97 : vector<8x384xf32>
    %99 = arith.negf %98 : vector<8x384xf32>
    %100 = math.exp %99 : vector<8x384xf32>
    %cst_37 = arith.constant 1.000000e+00 : f32
    %101 = vector.broadcast %cst_37 : f32 to vector<8x384xf32>
    %102 = arith.addf %101, %100 : vector<8x384xf32>
    %103 = arith.divf %101, %102 : vector<8x384xf32>
    %104 = vector.extract_strided_slice %83 {offsets = [0, 768], sizes = [8, 384], strides = [1, 1]} : vector<8x1152xf32> to vector<8x384xf32>
    %105 = vector.extract_strided_slice %87 {offsets = [0, 768], sizes = [8, 384], strides = [1, 1]} : vector<8x1152xf32> to vector<8x384xf32>
    %106 = arith.mulf %95, %105 : vector<8x384xf32>
    %107 = arith.addf %104, %106 : vector<8x384xf32>
    %108 = math.tanh %107 : vector<8x384xf32>
    %cst_38 = arith.constant 1.000000e+00 : f32
    %109 = vector.broadcast %cst_38 : f32 to vector<8x384xf32>
    %110 = arith.subf %109, %103 : vector<8x384xf32>
    %111 = arith.mulf %110, %108 : vector<8x384xf32>
    %112 = arith.mulf %103, %81 : vector<8x384xf32>
    %113 = arith.addf %111, %112 : vector<8x384xf32>
    %c16_39 = arith.constant 16 : index
    %c0_40 = arith.constant 0 : index
    %114 = vector.load %arg14[%c16_39, %c0_40] : memref<64x384xf32, #tpu.memory_space<vmem>>, vector<8x384xf32>
    tpu.vector_store %arg14[%c16_39, %c0_40], %113 {strides = array<i32>} : memref<64x384xf32, #tpu.memory_space<vmem>>, vector<8x384xf32>,
    %c24 = arith.constant 24 : index
    %c0_41 = arith.constant 0 : index
    %115 = vector.load %arg13[%c24, %c0_41] : memref<64x1152xf32, #tpu.memory_space<vmem>>, vector<8x1152xf32>
    %116 = arith.truncf %113 : vector<8x384xf32> to vector<8x384xbf16>
    %cst_42 = arith.constant dense<0.000000e+00> : vector<8x1152xf32>
    %117 = tpu.matmul %116, %14, %cst_42 {dimension_numbers = #tpu.dot_dimension_numbers<[1], [0], [0], [1], [0, 0, 1, 1], [], []>} : vector<8x384xbf16>, vector<384x1152xbf16>, vector<8x1152xf32> -> vector<8x1152xf32>
    %118 = vector.broadcast %16 : vector<1x1152xf32> to vector<8x1152xf32>
    %119 = arith.addf %117, %118 : vector<8x1152xf32>
    %120 = vector.extract_strided_slice %115 {offsets = [0, 0], sizes = [8, 384], strides = [1, 1]} : vector<8x1152xf32> to vector<8x384xf32>
    %121 = vector.extract_strided_slice %119 {offsets = [0, 0], sizes = [8, 384], strides = [1, 1]} : vector<8x1152xf32> to vector<8x384xf32>
    %122 = arith.addf %120, %121 : vector<8x384xf32>
    %123 = arith.negf %122 : vector<8x384xf32>
    %124 = math.exp %123 : vector<8x384xf32>
    %cst_43 = arith.constant 1.000000e+00 : f32
    %125 = vector.broadcast %cst_43 : f32 to vector<8x384xf32>
    %126 = arith.addf %125, %124 : vector<8x384xf32>
    %127 = arith.divf %125, %126 : vector<8x384xf32>
    %128 = vector.extract_strided_slice %115 {offsets = [0, 384], sizes = [8, 384], strides = [1, 1]} : vector<8x1152xf32> to vector<8x384xf32>
    %129 = vector.extract_strided_slice %119 {offsets = [0, 384], sizes = [8, 384], strides = [1, 1]} : vector<8x1152xf32> to vector<8x384xf32>
    %130 = arith.addf %128, %129 : vector<8x384xf32>
    %131 = arith.negf %130 : vector<8x384xf32>
    %132 = math.exp %131 : vector<8x384xf32>
    %cst_44 = arith.constant 1.000000e+00 : f32
    %133 = vector.broadcast %cst_44 : f32 to vector<8x384xf32>
    %134 = arith.addf %133, %132 : vector<8x384xf32>
    %135 = arith.divf %133, %134 : vector<8x384xf32>
    %136 = vector.extract_strided_slice %115 {offsets = [0, 768], sizes = [8, 384], strides = [1, 1]} : vector<8x1152xf32> to vector<8x384xf32>
    %137 = vector.extract_strided_slice %119 {offsets = [0, 768], sizes = [8, 384], strides = [1, 1]} : vector<8x1152xf32> to vector<8x384xf32>
    %138 = arith.mulf %127, %137 : vector<8x384xf32>
    %139 = arith.addf %136, %138 : vector<8x384xf32>
    %140 = math.tanh %139 : vector<8x384xf32>
    %cst_45 = arith.constant 1.000000e+00 : f32
    %141 = vector.broadcast %cst_45 : f32 to vector<8x384xf32>
    %142 = arith.subf %141, %135 : vector<8x384xf32>
    %143 = arith.mulf %142, %140 : vector<8x384xf32>
    %144 = arith.mulf %135, %113 : vector<8x384xf32>
    %145 = arith.addf %143, %144 : vector<8x384xf32>
    %c24_46 = arith.constant 24 : index
    %c0_47 = arith.constant 0 : index
    %146 = vector.load %arg14[%c24_46, %c0_47] : memref<64x384xf32, #tpu.memory_space<vmem>>, vector<8x384xf32>
    tpu.vector_store %arg14[%c24_46, %c0_47], %145 {strides = array<i32>} : memref<64x384xf32, #tpu.memory_space<vmem>>, vector<8x384xf32>,
    %c32 = arith.constant 32 : index
    %c0_48 = arith.constant 0 : index
    %147 = vector.load %arg13[%c32, %c0_48] : memref<64x1152xf32, #tpu.memory_space<vmem>>, vector<8x1152xf32>
    %148 = arith.truncf %145 : vector<8x384xf32> to vector<8x384xbf16>
    %cst_49 = arith.constant dense<0.000000e+00> : vector<8x1152xf32>
    %149 = tpu.matmul %148, %14, %cst_49 {dimension_numbers = #tpu.dot_dimension_numbers<[1], [0], [0], [1], [0, 0, 1, 1], [], []>} : vector<8x384xbf16>, vector<384x1152xbf16>, vector<8x1152xf32> -> vector<8x1152xf32>
    %150 = vector.broadcast %16 : vector<1x1152xf32> to vector<8x1152xf32>
    %151 = arith.addf %149, %150 : vector<8x1152xf32>
    %152 = vector.extract_strided_slice %147 {offsets = [0, 0], sizes = [8, 384], strides = [1, 1]} : vector<8x1152xf32> to vector<8x384xf32>
    %153 = vector.extract_strided_slice %151 {offsets = [0, 0], sizes = [8, 384], strides = [1, 1]} : vector<8x1152xf32> to vector<8x384xf32>
    %154 = arith.addf %152, %153 : vector<8x384xf32>
    %155 = arith.negf %154 : vector<8x384xf32>
    %156 = math.exp %155 : vector<8x384xf32>
    %cst_50 = arith.constant 1.000000e+00 : f32
    %157 = vector.broadcast %cst_50 : f32 to vector<8x384xf32>
    %158 = arith.addf %157, %156 : vector<8x384xf32>
    %159 = arith.divf %157, %158 : vector<8x384xf32>
    %160 = vector.extract_strided_slice %147 {offsets = [0, 384], sizes = [8, 384], strides = [1, 1]} : vector<8x1152xf32> to vector<8x384xf32>
    %161 = vector.extract_strided_slice %151 {offsets = [0, 384], sizes = [8, 384], strides = [1, 1]} : vector<8x1152xf32> to vector<8x384xf32>
    %162 = arith.addf %160, %161 : vector<8x384xf32>
    %163 = arith.negf %162 : vector<8x384xf32>
    %164 = math.exp %163 : vector<8x384xf32>
    %cst_51 = arith.constant 1.000000e+00 : f32
    %165 = vector.broadcast %cst_51 : f32 to vector<8x384xf32>
    %166 = arith.addf %165, %164 : vector<8x384xf32>
    %167 = arith.divf %165, %166 : vector<8x384xf32>
    %168 = vector.extract_strided_slice %147 {offsets = [0, 768], sizes = [8, 384], strides = [1, 1]} : vector<8x1152xf32> to vector<8x384xf32>
    %169 = vector.extract_strided_slice %151 {offsets = [0, 768], sizes = [8, 384], strides = [1, 1]} : vector<8x1152xf32> to vector<8x384xf32>
    %170 = arith.mulf %159, %169 : vector<8x384xf32>
    %171 = arith.addf %168, %170 : vector<8x384xf32>
    %172 = math.tanh %171 : vector<8x384xf32>
    %cst_52 = arith.constant 1.000000e+00 : f32
    %173 = vector.broadcast %cst_52 : f32 to vector<8x384xf32>
    %174 = arith.subf %173, %167 : vector<8x384xf32>
    %175 = arith.mulf %174, %172 : vector<8x384xf32>
    %176 = arith.mulf %167, %145 : vector<8x384xf32>
    %177 = arith.addf %175, %176 : vector<8x384xf32>
    %c32_53 = arith.constant 32 : index
    %c0_54 = arith.constant 0 : index
    %178 = vector.load %arg14[%c32_53, %c0_54] : memref<64x384xf32, #tpu.memory_space<vmem>>, vector<8x384xf32>
    tpu.vector_store %arg14[%c32_53, %c0_54], %177 {strides = array<i32>} : memref<64x384xf32, #tpu.memory_space<vmem>>, vector<8x384xf32>,
    %c40 = arith.constant 40 : index
    %c0_55 = arith.constant 0 : index
    %179 = vector.load %arg13[%c40, %c0_55] : memref<64x1152xf32, #tpu.memory_space<vmem>>, vector<8x1152xf32>
    %180 = arith.truncf %177 : vector<8x384xf32> to vector<8x384xbf16>
    %cst_56 = arith.constant dense<0.000000e+00> : vector<8x1152xf32>
    %181 = tpu.matmul %180, %14, %cst_56 {dimension_numbers = #tpu.dot_dimension_numbers<[1], [0], [0], [1], [0, 0, 1, 1], [], []>} : vector<8x384xbf16>, vector<384x1152xbf16>, vector<8x1152xf32> -> vector<8x1152xf32>
    %182 = vector.broadcast %16 : vector<1x1152xf32> to vector<8x1152xf32>
    %183 = arith.addf %181, %182 : vector<8x1152xf32>
    %184 = vector.extract_strided_slice %179 {offsets = [0, 0], sizes = [8, 384], strides = [1, 1]} : vector<8x1152xf32> to vector<8x384xf32>
    %185 = vector.extract_strided_slice %183 {offsets = [0, 0], sizes = [8, 384], strides = [1, 1]} : vector<8x1152xf32> to vector<8x384xf32>
    %186 = arith.addf %184, %185 : vector<8x384xf32>
    %187 = arith.negf %186 : vector<8x384xf32>
    %188 = math.exp %187 : vector<8x384xf32>
    %cst_57 = arith.constant 1.000000e+00 : f32
    %189 = vector.broadcast %cst_57 : f32 to vector<8x384xf32>
    %190 = arith.addf %189, %188 : vector<8x384xf32>
    %191 = arith.divf %189, %190 : vector<8x384xf32>
    %192 = vector.extract_strided_slice %179 {offsets = [0, 384], sizes = [8, 384], strides = [1, 1]} : vector<8x1152xf32> to vector<8x384xf32>
    %193 = vector.extract_strided_slice %183 {offsets = [0, 384], sizes = [8, 384], strides = [1, 1]} : vector<8x1152xf32> to vector<8x384xf32>
    %194 = arith.addf %192, %193 : vector<8x384xf32>
    %195 = arith.negf %194 : vector<8x384xf32>
    %196 = math.exp %195 : vector<8x384xf32>
    %cst_58 = arith.constant 1.000000e+00 : f32
    %197 = vector.broadcast %cst_58 : f32 to vector<8x384xf32>
    %198 = arith.addf %197, %196 : vector<8x384xf32>
    %199 = arith.divf %197, %198 : vector<8x384xf32>
    %200 = vector.extract_strided_slice %179 {offsets = [0, 768], sizes = [8, 384], strides = [1, 1]} : vector<8x1152xf32> to vector<8x384xf32>
    %201 = vector.extract_strided_slice %183 {offsets = [0, 768], sizes = [8, 384], strides = [1, 1]} : vector<8x1152xf32> to vector<8x384xf32>
    %202 = arith.mulf %191, %201 : vector<8x384xf32>
    %203 = arith.addf %200, %202 : vector<8x384xf32>
    %204 = math.tanh %203 : vector<8x384xf32>
    %cst_59 = arith.constant 1.000000e+00 : f32
    %205 = vector.broadcast %cst_59 : f32 to vector<8x384xf32>
    %206 = arith.subf %205, %199 : vector<8x384xf32>
    %207 = arith.mulf %206, %204 : vector<8x384xf32>
    %208 = arith.mulf %199, %177 : vector<8x384xf32>
    %209 = arith.addf %207, %208 : vector<8x384xf32>
    %c40_60 = arith.constant 40 : index
    %c0_61 = arith.constant 0 : index
    %210 = vector.load %arg14[%c40_60, %c0_61] : memref<64x384xf32, #tpu.memory_space<vmem>>, vector<8x384xf32>
    tpu.vector_store %arg14[%c40_60, %c0_61], %209 {strides = array<i32>} : memref<64x384xf32, #tpu.memory_space<vmem>>, vector<8x384xf32>,
    %c48 = arith.constant 48 : index
    %c0_62 = arith.constant 0 : index
    %211 = vector.load %arg13[%c48, %c0_62] : memref<64x1152xf32, #tpu.memory_space<vmem>>, vector<8x1152xf32>
    %212 = arith.truncf %209 : vector<8x384xf32> to vector<8x384xbf16>
    %cst_63 = arith.constant dense<0.000000e+00> : vector<8x1152xf32>
    %213 = tpu.matmul %212, %14, %cst_63 {dimension_numbers = #tpu.dot_dimension_numbers<[1], [0], [0], [1], [0, 0, 1, 1], [], []>} : vector<8x384xbf16>, vector<384x1152xbf16>, vector<8x1152xf32> -> vector<8x1152xf32>
    %214 = vector.broadcast %16 : vector<1x1152xf32> to vector<8x1152xf32>
    %215 = arith.addf %213, %214 : vector<8x1152xf32>
    %216 = vector.extract_strided_slice %211 {offsets = [0, 0], sizes = [8, 384], strides = [1, 1]} : vector<8x1152xf32> to vector<8x384xf32>
    %217 = vector.extract_strided_slice %215 {offsets = [0, 0], sizes = [8, 384], strides = [1, 1]} : vector<8x1152xf32> to vector<8x384xf32>
    %218 = arith.addf %216, %217 : vector<8x384xf32>
    %219 = arith.negf %218 : vector<8x384xf32>
    %220 = math.exp %219 : vector<8x384xf32>
    %cst_64 = arith.constant 1.000000e+00 : f32
    %221 = vector.broadcast %cst_64 : f32 to vector<8x384xf32>
    %222 = arith.addf %221, %220 : vector<8x384xf32>
    %223 = arith.divf %221, %222 : vector<8x384xf32>
    %224 = vector.extract_strided_slice %211 {offsets = [0, 384], sizes = [8, 384], strides = [1, 1]} : vector<8x1152xf32> to vector<8x384xf32>
    %225 = vector.extract_strided_slice %215 {offsets = [0, 384], sizes = [8, 384], strides = [1, 1]} : vector<8x1152xf32> to vector<8x384xf32>
    %226 = arith.addf %224, %225 : vector<8x384xf32>
    %227 = arith.negf %226 : vector<8x384xf32>
    %228 = math.exp %227 : vector<8x384xf32>
    %cst_65 = arith.constant 1.000000e+00 : f32
    %229 = vector.broadcast %cst_65 : f32 to vector<8x384xf32>
    %230 = arith.addf %229, %228 : vector<8x384xf32>
    %231 = arith.divf %229, %230 : vector<8x384xf32>
    %232 = vector.extract_strided_slice %211 {offsets = [0, 768], sizes = [8, 384], strides = [1, 1]} : vector<8x1152xf32> to vector<8x384xf32>
    %233 = vector.extract_strided_slice %215 {offsets = [0, 768], sizes = [8, 384], strides = [1, 1]} : vector<8x1152xf32> to vector<8x384xf32>
    %234 = arith.mulf %223, %233 : vector<8x384xf32>
    %235 = arith.addf %232, %234 : vector<8x384xf32>
    %236 = math.tanh %235 : vector<8x384xf32>
    %cst_66 = arith.constant 1.000000e+00 : f32
    %237 = vector.broadcast %cst_66 : f32 to vector<8x384xf32>
    %238 = arith.subf %237, %231 : vector<8x384xf32>
    %239 = arith.mulf %238, %236 : vector<8x384xf32>
    %240 = arith.mulf %231, %209 : vector<8x384xf32>
    %241 = arith.addf %239, %240 : vector<8x384xf32>
    %c48_67 = arith.constant 48 : index
    %c0_68 = arith.constant 0 : index
    %242 = vector.load %arg14[%c48_67, %c0_68] : memref<64x384xf32, #tpu.memory_space<vmem>>, vector<8x384xf32>
    tpu.vector_store %arg14[%c48_67, %c0_68], %241 {strides = array<i32>} : memref<64x384xf32, #tpu.memory_space<vmem>>, vector<8x384xf32>,
    %c56 = arith.constant 56 : index
    %c0_69 = arith.constant 0 : index
    %243 = vector.load %arg13[%c56, %c0_69] : memref<64x1152xf32, #tpu.memory_space<vmem>>, vector<8x1152xf32>
    %244 = arith.truncf %241 : vector<8x384xf32> to vector<8x384xbf16>
    %cst_70 = arith.constant dense<0.000000e+00> : vector<8x1152xf32>
    %245 = tpu.matmul %244, %14, %cst_70 {dimension_numbers = #tpu.dot_dimension_numbers<[1], [0], [0], [1], [0, 0, 1, 1], [], []>} : vector<8x384xbf16>, vector<384x1152xbf16>, vector<8x1152xf32> -> vector<8x1152xf32>
    %246 = vector.broadcast %16 : vector<1x1152xf32> to vector<8x1152xf32>
    %247 = arith.addf %245, %246 : vector<8x1152xf32>
    %248 = vector.extract_strided_slice %243 {offsets = [0, 0], sizes = [8, 384], strides = [1, 1]} : vector<8x1152xf32> to vector<8x384xf32>
    %249 = vector.extract_strided_slice %247 {offsets = [0, 0], sizes = [8, 384], strides = [1, 1]} : vector<8x1152xf32> to vector<8x384xf32>
    %250 = arith.addf %248, %249 : vector<8x384xf32>
    %251 = arith.negf %250 : vector<8x384xf32>
    %252 = math.exp %251 : vector<8x384xf32>
    %cst_71 = arith.constant 1.000000e+00 : f32
    %253 = vector.broadcast %cst_71 : f32 to vector<8x384xf32>
    %254 = arith.addf %253, %252 : vector<8x384xf32>
    %255 = arith.divf %253, %254 : vector<8x384xf32>
    %256 = vector.extract_strided_slice %243 {offsets = [0, 384], sizes = [8, 384], strides = [1, 1]} : vector<8x1152xf32> to vector<8x384xf32>
    %257 = vector.extract_strided_slice %247 {offsets = [0, 384], sizes = [8, 384], strides = [1, 1]} : vector<8x1152xf32> to vector<8x384xf32>
    %258 = arith.addf %256, %257 : vector<8x384xf32>
    %259 = arith.negf %258 : vector<8x384xf32>
    %260 = math.exp %259 : vector<8x384xf32>
    %cst_72 = arith.constant 1.000000e+00 : f32
    %261 = vector.broadcast %cst_72 : f32 to vector<8x384xf32>
    %262 = arith.addf %261, %260 : vector<8x384xf32>
    %263 = arith.divf %261, %262 : vector<8x384xf32>
    %264 = vector.extract_strided_slice %243 {offsets = [0, 768], sizes = [8, 384], strides = [1, 1]} : vector<8x1152xf32> to vector<8x384xf32>
    %265 = vector.extract_strided_slice %247 {offsets = [0, 768], sizes = [8, 384], strides = [1, 1]} : vector<8x1152xf32> to vector<8x384xf32>
    %266 = arith.mulf %255, %265 : vector<8x384xf32>
    %267 = arith.addf %264, %266 : vector<8x384xf32>
    %268 = math.tanh %267 : vector<8x384xf32>
    %cst_73 = arith.constant 1.000000e+00 : f32
    %269 = vector.broadcast %cst_73 : f32 to vector<8x384xf32>
    %270 = arith.subf %269, %263 : vector<8x384xf32>
    %271 = arith.mulf %270, %268 : vector<8x384xf32>
    %272 = arith.mulf %263, %241 : vector<8x384xf32>
    %273 = arith.addf %271, %272 : vector<8x384xf32>
    %c56_74 = arith.constant 56 : index
    %c0_75 = arith.constant 0 : index
    %274 = vector.load %arg14[%c56_74, %c0_75] : memref<64x384xf32, #tpu.memory_space<vmem>>, vector<8x384xf32>
    tpu.vector_store %arg14[%c56_74, %c0_75], %273 {strides = array<i32>} : memref<64x384xf32, #tpu.memory_space<vmem>>, vector<8x384xf32>,
    %c0_76 = arith.constant 0 : index
    %c0_77 = arith.constant 0 : index
    %c0_78 = arith.constant 0 : index
    %275 = vector.load %arg12[%c0_76, %c0_77, %c0_78] : memref<1x8x384xf32, #tpu.memory_space<vmem>>, vector<1x8x384xf32>
    %276 = vector.shape_cast %275 : vector<1x8x384xf32> to vector<8x384xf32>
    %277 = vector.shape_cast %273 : vector<8x384xf32> to vector<1x8x384xf32>
    tpu.vector_store %arg12[%c0_76, %c0_77, %c0_78], %277 {strides = array<i32>} : memref<1x8x384xf32, #tpu.memory_space<vmem>>, vector<1x8x384xf32>,
    %c2_i32 = arith.constant 2 : i32
    %278 = arith.cmpi eq, %arg0, %c2_i32 : i32
    %279 = arith.extui %278 : i1 to i32
    %c0_i32_79 = arith.constant 0 : i32
    %280 = arith.cmpi ne, %279, %c0_i32_79 : i32
    scf.if %280 {
      %c0_80 = arith.constant 0 : index
      %c0_81 = arith.constant 0 : index
      %281 = vector.load %arg14[%c0_80, %c0_81] : memref<64x384xf32, #tpu.memory_space<vmem>>, vector<64x384xf32>
      %282 = arith.truncf %281 : vector<64x384xf32> to vector<64x384xbf16>
      %c0_82 = arith.constant 0 : index
      %c0_83 = arith.constant 0 : index
      %283 = vector.load %arg7[%c0_82, %c0_83] : memref<384x384xbf16, #tpu.memory_space<vmem>>, vector<384x384xbf16>
      %cst_84 = arith.constant dense<0.000000e+00> : vector<64x384xf32>
      %284 = tpu.matmul %282, %283, %cst_84 {dimension_numbers = #tpu.dot_dimension_numbers<[1], [0], [0], [1], [0, 0, 1, 1], [], []>} : vector<64x384xbf16>, vector<384x384xbf16>, vector<64x384xf32> -> vector<64x384xf32>
      %c0_85 = arith.constant 0 : index
      %c0_86 = arith.constant 0 : index
      %285 = vector.load %arg8[%c0_85, %c0_86] : memref<1x384xf32, #tpu.memory_space<vmem>>, vector<1x384xf32>
      %286 = vector.broadcast %285 : vector<1x384xf32> to vector<64x384xf32>
      %287 = arith.addf %284, %286 : vector<64x384xf32>
      %cst_87 = arith.constant 0.000000e+00 : f32
      %288 = vector.broadcast %cst_87 : f32 to vector<64x384xf32>
      %289 = arith.maximumf %287, %288 : vector<64x384xf32>
      %290 = arith.truncf %289 : vector<64x384xf32> to vector<64x384xbf16>
      %c0_88 = arith.constant 0 : index
      %c0_89 = arith.constant 0 : index
      %291 = vector.load %arg9[%c0_88, %c0_89] : memref<384x384xbf16, #tpu.memory_space<vmem>>, vector<384x384xbf16>
      %cst_90 = arith.constant dense<0.000000e+00> : vector<64x384xf32>
      %292 = tpu.matmul %290, %291, %cst_90 {dimension_numbers = #tpu.dot_dimension_numbers<[1], [0], [0], [1], [0, 0, 1, 1], [], []>} : vector<64x384xbf16>, vector<384x384xbf16>, vector<64x384xf32> -> vector<64x384xf32>
      %c0_91 = arith.constant 0 : index
      %c0_92 = arith.constant 0 : index
      %293 = vector.load %arg10[%c0_91, %c0_92] : memref<1x384xf32, #tpu.memory_space<vmem>>, vector<1x384xf32>
      %294 = vector.broadcast %293 : vector<1x384xf32> to vector<64x384xf32>
      %295 = arith.addf %292, %294 : vector<64x384xf32>
      %296 = arith.negf %295 : vector<64x384xf32>
      %297 = math.exp %296 : vector<64x384xf32>
      %cst_93 = arith.constant 1.000000e+00 : f32
      %298 = vector.broadcast %cst_93 : f32 to vector<64x384xf32>
      %299 = arith.addf %298, %297 : vector<64x384xf32>
      %300 = arith.divf %298, %299 : vector<64x384xf32>
      %c0_94 = arith.constant 0 : index
      %c0_95 = arith.constant 0 : index
      %301 = vector.load %arg11[%c0_94, %c0_95] : memref<64x384xf32, #tpu.memory_space<vmem>>, vector<64x384xf32>
      tpu.vector_store %arg11[%c0_94, %c0_95], %300 {strides = array<i32>} : memref<64x384xf32, #tpu.memory_space<vmem>>, vector<64x384xf32>,
    } else {
    }
    return
  }
  func.func @transform_0(%arg0: i32) -> (i32, i32) {
    %c0_i32 = arith.constant 0 : i32
    %c0_i32_0 = arith.constant 0 : i32
    %c0_i32_1 = arith.constant 0 : i32
    return %c0_i32, %c0_i32_0 : i32, i32
  }
  func.func @transform_1(%arg0: i32) -> (i32, i32, i32) {
    %c0_i32 = arith.constant 0 : i32
    %c0_i32_0 = arith.constant 0 : i32
    %c0_i32_1 = arith.constant 0 : i32
    return %arg0, %c0_i32, %c0_i32_0 : i32, i32, i32
  }
  func.func @transform_2(%arg0: i32) -> (i32, i32, i32) {
    %c0_i32 = arith.constant 0 : i32
    %c0_i32_0 = arith.constant 0 : i32
    %c0_i32_1 = arith.constant 0 : i32
    return %arg0, %c0_i32, %c0_i32_0 : i32, i32, i32
  }
  func.func @transform_3(%arg0: i32) -> (i32, i32, i32) {
    %c0_i32 = arith.constant 0 : i32
    %c0_i32_0 = arith.constant 0 : i32
    %c0_i32_1 = arith.constant 0 : i32
    return %arg0, %c0_i32, %c0_i32_0 : i32, i32, i32
  }
  func.func @transform_4(%arg0: i32) -> (i32, i32, i32) {
    %c0_i32 = arith.constant 0 : i32
    %c0_i32_0 = arith.constant 0 : i32
    %c0_i32_1 = arith.constant 0 : i32
    return %arg0, %c0_i32, %c0_i32_0 : i32, i32, i32
  }
  func.func @transform_5(%arg0: i32) -> (i32, i32, i32) {
    %c0_i32 = arith.constant 0 : i32
    %c0_i32_0 = arith.constant 0 : i32
    %c0_i32_1 = arith.constant 0 : i32
    return %arg0, %c0_i32, %c0_i32_0 : i32, i32, i32
  }
  func.func @transform_6(%arg0: i32) -> (i32, i32) {
    %c0_i32 = arith.constant 0 : i32
    %c0_i32_0 = arith.constant 0 : i32
    %c0_i32_1 = arith.constant 0 : i32
    return %c0_i32, %c0_i32_0 : i32, i32
  }
  func.func @transform_7(%arg0: i32) -> (i32, i32) {
    %c0_i32 = arith.constant 0 : i32
    %c0_i32_0 = arith.constant 0 : i32
    %c0_i32_1 = arith.constant 0 : i32
    return %c0_i32, %c0_i32_0 : i32, i32
  }
  func.func @transform_8(%arg0: i32) -> (i32, i32) {
    %c0_i32 = arith.constant 0 : i32
    %c0_i32_0 = arith.constant 0 : i32
    %c0_i32_1 = arith.constant 0 : i32
    return %c0_i32, %c0_i32_0 : i32, i32
  }
  func.func @transform_9(%arg0: i32) -> (i32, i32) {
    %c0_i32 = arith.constant 0 : i32
    %c0_i32_0 = arith.constant 0 : i32
    %c0_i32_1 = arith.constant 0 : i32
    return %c0_i32, %c0_i32_0 : i32, i32
  }
  func.func @transform_10(%arg0: i32) -> (i32, i32) {
    %c0_i32 = arith.constant 0 : i32
    %c0_i32_0 = arith.constant 0 : i32
    %c0_i32_1 = arith.constant 0 : i32
    return %c0_i32, %c0_i32_0 : i32, i32
  }
  func.func @transform_11(%arg0: i32) -> (i32, i32, i32) {
    %c0_i32 = arith.constant 0 : i32
    %c0_i32_0 = arith.constant 0 : i32
    %c0_i32_1 = arith.constant 0 : i32
    return %arg0, %c0_i32, %c0_i32_0 : i32, i32, i32
  }
}

</mosaic_0001>

<llo_original>
// kernel: rnn_spp_contain_rever_forward.1
$region0: #{rnn_spp_contain_rever_forward.1}
  #allocation0 [shape = 'u32[]', space=smem, size = 0x4, offset = 0x4, fixed_abs, tag = 'smem constant byte address 0x4 - core index']
  #allocation1 [shape = 'u32[144,128]{1,0:T(1,128)}', space=vmem, size = 0x12000, scoped, tag = 'internal scratch']
  #allocation2 [shape = 'f32[64,1152]{1,0:T(8,128)}', space=vmem, size = 0x48000, scoped, tag = 'scratch operand']
  #allocation3 [shape = 'f32[64,384]{1,0:T(8,128)}', space=vmem, size = 0x18000, scoped, tag = 'scratch operand']
  %s0 = inlined_call_operand.vmem [shape: f32[64,384], index: 0, kind: input, shape index: {}]
  %s1 = inlined_call_operand.vmem [shape: f32[3,8,384], index: 1, kind: input, shape index: {}]
  %s2 = inlined_call_operand.hbm [shape: bf16[3,384,1152], index: 2, kind: input, shape index: {}]
  %s3 = inlined_call_operand.hbm [shape: bf16[3,384,1152], index: 3, kind: input, shape index: {}]
  %s4 = inlined_call_operand.hbm [shape: f32[3,1,1152], index: 4, kind: input, shape index: {}]
  %s5 = inlined_call_operand.hbm [shape: f32[3,1,1152], index: 5, kind: input, shape index: {}]
  %s6 = inlined_call_operand.hbm [shape: bf16[384,384], index: 6, kind: input, shape index: {}]
  %s7 = inlined_call_operand.hbm [shape: f32[1,384], index: 7, kind: input, shape index: {}]
  %s8 = inlined_call_operand.hbm [shape: bf16[384,384], index: 8, kind: input, shape index: {}]
  %s9 = inlined_call_operand.hbm [shape: f32[1,384], index: 9, kind: input, shape index: {}]
  %s10 = inlined_call_operand.vmem [shape: f32[64,384], index: 10, kind: output, shape index: {0}]
  %s11 = inlined_call_operand.vmem [shape: f32[3,8,384], index: 11, kind: output, shape index: {1}]
  %12 = xla_tuple %s10, %s11
  %s13 = sld [smem:[#allocation0]]
  $region121: #{rnn_spp_contain_rever_forward.1} parent=0
    _
  %s15 = ssub.s32 1, %s13
  %s16 = scalar_select 0, %s15, %s13
  $region1: #{rnn_spp_contain_rever_forward.1} parent=0
    #allocation4 [shape = 'u8[1769472]{0}', space=vmem, size = 0x1b0000, scoped, tag = 'input window, operand 2']
    #allocation5 [shape = 's32[2]{0}', space=sflag, size = 0x8, scoped, tag = 'scoped memory for rnn_spp_contain_rever_forward.1']
    #allocation6 [shape = 'u8[1769472]{0}', space=vmem, size = 0x1b0000, scoped, tag = 'input window, operand 3']
    #allocation7 [shape = 's32[2]{0}', space=sflag, size = 0x8, scoped, tag = 'scoped memory for rnn_spp_contain_rever_forward.1']
    #allocation8 [shape = 'u8[9216]{0}', space=vmem, size = 0x2400, scoped, tag = 'input window, operand 4']
    #allocation9 [shape = 'u8[9216]{0}', space=vmem, size = 0x2400, scoped, tag = 'input window, operand 5']
    #allocation10 [shape = 's32[2]{0}', space=sflag, size = 0x8, scoped, tag = 'scoped memory for rnn_spp_contain_rever_forward.1']
    #allocation11 [shape = 'u8[294912]{0}', space=vmem, size = 0x48000, scoped, tag = 'input window, operand 6, single buffered']
    #allocation12 [shape = 'u8[1536]{0}', space=vmem, size = 0x800, scoped, tag = 'input window, operand 7, single buffered']
    #allocation13 [shape = 's32[1]{0}', space=sflag, size = 0x4, scoped, tag = 'scoped memory for rnn_spp_contain_rever_forward.1']
    #allocation14 [shape = 'u8[294912]{0}', space=vmem, size = 0x48000, scoped, tag = 'input window, operand 8, single buffered']
    #allocation15 [shape = 'u8[1536]{0}', space=vmem, size = 0x800, scoped, tag = 'input window, operand 9, single buffered']
    #allocation16 [shape = 's32[1]{0}', space=sflag, size = 0x4, scoped, tag = 'scoped memory for rnn_spp_contain_rever_forward.1']
    %17 = vsyncpa [#allocation5], 0
    %s18 = scalar_lea.sflag [#allocation5], 1
    %19 = vsyncpa %s18, 0
    %20 = vsyncpa [#allocation7], 0
    %s21 = scalar_lea.sflag [#allocation7], 1
    %22 = vsyncpa %s21, 0
    %23 = vsyncpa [#allocation10], 0
    %s24 = scalar_lea.sflag [#allocation10], 1
    %25 = vsyncpa %s24, 0
    %26 = vsyncpa [#allocation13], 0
    %27 = vsyncpa [#allocation16], 0
    loop: start=0, step=1, limit=5
    $region2: #{rnn_spp_contain_rever_forward.1} parent=1 // loop_pre_header
      _
    $region3: #{rnn_spp_contain_rever_forward.1} parent=1 // loop_header
      %s29 = sphi 0, %s33
      %p30 = scmp.ge.s32.totalorder %s29, 5
      %s37 = sphi 0, %s37
      %s39 = sphi 0, %s37
      %s40 = sphi 0, %s39
      %s54 = sphi 0, %s40
      %s60 = sphi 0, %s62
      %s63 = sphi 0, %s60
      %s64 = sphi 0, %s63
      %s80 = sphi 0, %s64
      %s86 = sphi 0, %s88
      %s89 = sphi 0, %s86
      %s90 = sphi 0, %s89
      %s106 = sphi 0, %s90
      %s112 = sphi 0, %s114
      %s115 = sphi 0, %s112
      %s116 = sphi 0, %s115
      %s132 = sphi 0, %s116
      %s138 = sphi 0, %s140
      %s141 = sphi 0, %s138
      %s142 = sphi 0, %s141
      %s158 = sphi 0, %s142
      %s164 = sphi 0, %s166
      %s167 = sphi 0, %s164
      %s168 = sphi 0, %s167
      %s184 = sphi 0, %s168
      %s188 = sphi 0, %s188
      %s190 = sphi 0, %s188
      %s191 = sphi 0, %s190
      %s205 = sphi 0, %s191
      %s209 = sphi 0, %s209
      %s211 = sphi 0, %s209
      %s212 = sphi 0, %s211
      %s226 = sphi 0, %s212
      %s230 = sphi 0, %s230
      %s232 = sphi 0, %s230
      %s233 = sphi 0, %s232
      %s247 = sphi 0, %s233
      %s251 = sphi 0, %s251
      %s253 = sphi 0, %s251
      %s254 = sphi 0, %s253
      %s268 = sphi 0, %s254
      %s272 = sphi 0, %s272
      %s274 = sphi 0, %s272
      %s275 = sphi 0, %s274
      %s289 = sphi 0, %s275
      %s295 = sphi 0, %s297
      %s298 = sphi 0, %s295
      %s299 = sphi 0, %s298
      %s315 = sphi 0, %s299
    $region4: #{rnn_spp_contain_rever_forward.1} parent=1 // loop_header_branch
      %32 = sbr.rel (%p30) target = $region8
    $region5: #{rnn_spp_contain_rever_forward.1} parent=1 // loop_body
      %s34 = ssub.s32 %s29, 1
      %s35 = ssub.s32 %s29, 2
      %s36 = sadd.s32 %s29, 1
      %s38 = sadd.s32 %s37, 1
      %p41 = scmp.eq.s32.totalorder %s29, 2
      %p42 = scmp.ne.s32.totalorder %s37, %s39
      %p43 = scmp.eq.s32.totalorder %s29, 0
      %p44 = por %p42, %p43
      %p45 = scmp.ne.s32.totalorder %s37, %s39
      %p46 = scmp.eq.s32.totalorder %s34, 2
      %p47 = por %p45, %p46
      %p48 = scmp.ne.s32.totalorder %s39, %s40
      %p49 = scmp.eq.s32.totalorder %s34, 0
      %p50 = por %p48, %p49
      %p51 = scmp.ne.s32.totalorder %s39, %s40
      %p52 = scmp.eq.s32.totalorder %s35, 2
      %p53 = por %p51, %p52
      %p55 = scmp.ne.s32.totalorder %s40, %s54
      %p56 = scmp.eq.s32.totalorder %s35, 0
      %p57 = por %p55, %p56
      %s58 = ssub.s32 %s29, %s36
      %p59 = scmp.eq.s32.totalorder %s58, 0
      %s61 = sadd.s32 %s60, 1
      %s62 = scalar_select %p59, %s60, %s61
      %p65 = pneg %p59
      %p66 = scmp.eq.s32.totalorder %s29, 2
      %p67 = por %p65, %p66
      %p68 = scmp.ne.s32.totalorder %s60, %s63
      %p69 = scmp.eq.s32.totalorder %s29, 0
      %p70 = por %p68, %p69
      %p71 = scmp.ne.s32.totalorder %s60, %s63
      %p72 = scmp.eq.s32.totalorder %s34, 2
      %p73 = por %p71, %p72
      %p74 = scmp.ne.s32.totalorder %s63, %s64
      %p75 = scmp.eq.s32.totalorder %s34, 0
      %p76 = por %p74, %p75
      %p77 = scmp.ne.s32.totalorder %s63, %s64
      %p78 = scmp.eq.s32.totalorder %s35, 2
      %p79 = por %p77, %p78
      %p81 = scmp.ne.s32.totalorder %s64, %s80
      %p82 = scmp.eq.s32.totalorder %s35, 0
      %p83 = por %p81, %p82
      %s84 = ssub.s32 %s29, %s36
      %p85 = scmp.eq.s32.totalorder %s84, 0
      %s87 = sadd.s32 %s86, 1
      %s88 = scalar_select %p85, %s86, %s87
      %p91 = pneg %p85
      %p92 = scmp.eq.s32.totalorder %s29, 2
      %p93 = por %p91, %p92
      %p94 = scmp.ne.s32.totalorder %s86, %s89
      %p95 = scmp.eq.s32.totalorder %s29, 0
      %p96 = por %p94, %p95
      %p97 = scmp.ne.s32.totalorder %s86, %s89
      %p98 = scmp.eq.s32.totalorder %s34, 2
      %p99 = por %p97, %p98
      %p100 = scmp.ne.s32.totalorder %s89, %s90
      %p101 = scmp.eq.s32.totalorder %s34, 0
      %p102 = por %p100, %p101
      %p103 = scmp.ne.s32.totalorder %s89, %s90
      %p104 = scmp.eq.s32.totalorder %s35, 2
      %p105 = por %p103, %p104
      %p107 = scmp.ne.s32.totalorder %s90, %s106
      %p108 = scmp.eq.s32.totalorder %s35, 0
      %p109 = por %p107, %p108
      %s110 = ssub.s32 %s29, %s36
      %p111 = scmp.eq.s32.totalorder %s110, 0
      %s113 = sadd.s32 %s112, 1
      %s114 = scalar_select %p111, %s112, %s113
      %p117 = pneg %p111
      %p118 = scmp.eq.s32.totalorder %s29, 2
      %p119 = por %p117, %p118
      %p120 = scmp.ne.s32.totalorder %s112, %s115
      %p121 = scmp.eq.s32.totalorder %s29, 0
      %p122 = por %p120, %p121
      %p123 = scmp.ne.s32.totalorder %s112, %s115
      %p124 = scmp.eq.s32.totalorder %s34, 2
      %p125 = por %p123, %p124
      %p126 = scmp.ne.s32.totalorder %s115, %s116
      %p127 = scmp.eq.s32.totalorder %s34, 0
      %p128 = por %p126, %p127
      %p129 = scmp.ne.s32.totalorder %s115, %s116
      %p130 = scmp.eq.s32.totalorder %s35, 2
      %p131 = por %p129, %p130
      %p133 = scmp.ne.s32.totalorder %s116, %s132
      %p134 = scmp.eq.s32.totalorder %s35, 0
      %p135 = por %p133, %p134
      %s136 = ssub.s32 %s29, %s36
      %p137 = scmp.eq.s32.totalorder %s136, 0
      %s139 = sadd.s32 %s138, 1
      %s140 = scalar_select %p137, %s138, %s139
      %p143 = pneg %p137
      %p144 = scmp.eq.s32.totalorder %s29, 2
      %p145 = por %p143, %p144
      %p146 = scmp.ne.s32.totalorder %s138, %s141
      %p147 = scmp.eq.s32.totalorder %s29, 0
      %p148 = por %p146, %p147
      %p149 = scmp.ne.s32.totalorder %s138, %s141
      %p150 = scmp.eq.s32.totalorder %s34, 2
      %p151 = por %p149, %p150
      %p152 = scmp.ne.s32.totalorder %s141, %s142
      %p153 = scmp.eq.s32.totalorder %s34, 0
      %p154 = por %p152, %p153
      %p155 = scmp.ne.s32.totalorder %s141, %s142
      %p156 = scmp.eq.s32.totalorder %s35, 2
      %p157 = por %p155, %p156
      %p159 = scmp.ne.s32.totalorder %s142, %s158
      %p160 = scmp.eq.s32.totalorder %s35, 0
      %p161 = por %p159, %p160
      %s162 = ssub.s32 %s29, %s36
      %p163 = scmp.eq.s32.totalorder %s162, 0
      %s165 = sadd.s32 %s164, 1
      %s166 = scalar_select %p163, %s164, %s165
      %p169 = pneg %p163
      %p170 = scmp.eq.s32.totalorder %s29, 2
      %p171 = por %p169, %p170
      %p172 = scmp.ne.s32.totalorder %s164, %s167
      %p173 = scmp.eq.s32.totalorder %s29, 0
      %p174 = por %p172, %p173
      %p175 = scmp.ne.s32.totalorder %s164, %s167
      %p176 = scmp.eq.s32.totalorder %s34, 2
      %p177 = por %p175, %p176
      %p178 = scmp.ne.s32.totalorder %s167, %s168
      %p179 = scmp.eq.s32.totalorder %s34, 0
      %p180 = por %p178, %p179
      %p181 = scmp.ne.s32.totalorder %s167, %s168
      %p182 = scmp.eq.s32.totalorder %s35, 2
      %p183 = por %p181, %p182
      %p185 = scmp.ne.s32.totalorder %s168, %s184
      %p186 = scmp.eq.s32.totalorder %s35, 0
      %p187 = por %p185, %p186
      %s189 = sadd.s32 %s188, 1
      %p192 = scmp.eq.s32.totalorder %s29, 2
      %p193 = scmp.ne.s32.totalorder %s188, %s190
      %p194 = scmp.eq.s32.totalorder %s29, 0
      %p195 = por %p193, %p194
      %p196 = scmp.ne.s32.totalorder %s188, %s190
      %p197 = scmp.eq.s32.totalorder %s34, 2
      %p198 = por %p196, %p197
      %p199 = scmp.ne.s32.totalorder %s190, %s191
      %p200 = scmp.eq.s32.totalorder %s34, 0
      %p201 = por %p199, %p200
      %p202 = scmp.ne.s32.totalorder %s190, %s191
      %p203 = scmp.eq.s32.totalorder %s35, 2
      %p204 = por %p202, %p203
      %p206 = scmp.ne.s32.totalorder %s191, %s205
      %p207 = scmp.eq.s32.totalorder %s35, 0
      %p208 = por %p206, %p207
      %s210 = sadd.s32 %s209, 1
      %p213 = scmp.eq.s32.totalorder %s29, 2
      %p214 = scmp.ne.s32.totalorder %s209, %s211
      %p215 = scmp.eq.s32.totalorder %s29, 0
      %p216 = por %p214, %p215
      %p217 = scmp.ne.s32.totalorder %s209, %s211
      %p218 = scmp.eq.s32.totalorder %s34, 2
      %p219 = por %p217, %p218
      %p220 = scmp.ne.s32.totalorder %s211, %s212
      %p221 = scmp.eq.s32.totalorder %s34, 0
      %p222 = por %p220, %p221
      %p223 = scmp.ne.s32.totalorder %s211, %s212
      %p224 = scmp.eq.s32.totalorder %s35, 2
      %p225 = por %p223, %p224
      %p227 = scmp.ne.s32.totalorder %s212, %s226
      %p228 = scmp.eq.s32.totalorder %s35, 0
      %p229 = por %p227, %p228
      %s231 = sadd.s32 %s230, 1
      %p234 = scmp.eq.s32.totalorder %s29, 2
      %p235 = scmp.ne.s32.totalorder %s230, %s232
      %p236 = scmp.eq.s32.totalorder %s29, 0
      %p237 = por %p235, %p236
      %p238 = scmp.ne.s32.totalorder %s230, %s232
      %p239 = scmp.eq.s32.totalorder %s34, 2
      %p240 = por %p238, %p239
      %p241 = scmp.ne.s32.totalorder %s232, %s233
      %p242 = scmp.eq.s32.totalorder %s34, 0
      %p243 = por %p241, %p242
      %p244 = scmp.ne.s32.totalorder %s232, %s233
      %p245 = scmp.eq.s32.totalorder %s35, 2
      %p246 = por %p244, %p245
      %p248 = scmp.ne.s32.totalorder %s233, %s247
      %p249 = scmp.eq.s32.totalorder %s35, 0
      %p250 = por %p248, %p249
      %s252 = sadd.s32 %s251, 1
      %p255 = scmp.eq.s32.totalorder %s29, 2
      %p256 = scmp.ne.s32.totalorder %s251, %s253
      %p257 = scmp.eq.s32.totalorder %s29, 0
      %p258 = por %p256, %p257
      %p259 = scmp.ne.s32.totalorder %s251, %s253
      %p260 = scmp.eq.s32.totalorder %s34, 2
      %p261 = por %p259, %p260
      %p262 = scmp.ne.s32.totalorder %s253, %s254
      %p263 = scmp.eq.s32.totalorder %s34, 0
      %p264 = por %p262, %p263
      %p265 = scmp.ne.s32.totalorder %s253, %s254
      %p266 = scmp.eq.s32.totalorder %s35, 2
      %p267 = por %p265, %p266
      %p269 = scmp.ne.s32.totalorder %s254, %s268
      %p270 = scmp.eq.s32.totalorder %s35, 0
      %p271 = por %p269, %p270
      %s273 = sadd.s32 %s272, 1
      %p276 = scmp.eq.s32.totalorder %s29, 2
      %p277 = scmp.ne.s32.totalorder %s272, %s274
      %p278 = scmp.eq.s32.totalorder %s29, 0
      %p279 = por %p277, %p278
      %p280 = scmp.ne.s32.totalorder %s272, %s274
      %p281 = scmp.eq.s32.totalorder %s34, 2
      %p282 = por %p280, %p281
      %p283 = scmp.ne.s32.totalorder %s274, %s275
      %p284 = scmp.eq.s32.totalorder %s34, 0
      %p285 = por %p283, %p284
      %p286 = scmp.ne.s32.totalorder %s274, %s275
      %p287 = scmp.eq.s32.totalorder %s35, 2
      %p288 = por %p286, %p287
      %p290 = scmp.ne.s32.totalorder %s275, %s289
      %p291 = scmp.eq.s32.totalorder %s35, 0
      %p292 = por %p290, %p291
      %s293 = ssub.s32 %s29, %s36
      %p294 = scmp.eq.s32.totalorder %s293, 0
      %s296 = sadd.s32 %s295, 1
      %s297 = scalar_select %p294, %s295, %s296
      %p300 = pneg %p294
      %p301 = scmp.eq.s32.totalorder %s29, 2
      %p302 = por %p300, %p301
      %p303 = scmp.ne.s32.totalorder %s295, %s298
      %p304 = scmp.eq.s32.totalorder %s29, 0
      %p305 = por %p303, %p304
      %p306 = scmp.ne.s32.totalorder %s295, %s298
      %p307 = scmp.eq.s32.totalorder %s34, 2
      %p308 = por %p306, %p307
      %p309 = scmp.ne.s32.totalorder %s298, %s299
      %p310 = scmp.eq.s32.totalorder %s34, 0
      %p311 = por %p309, %p310
      %p312 = scmp.ne.s32.totalorder %s298, %s299
      %p313 = scmp.eq.s32.totalorder %s35, 2
      %p314 = por %p312, %p313
      %p316 = scmp.ne.s32.totalorder %s299, %s315
      %p317 = scmp.eq.s32.totalorder %s35, 0
      %p318 = por %p316, %p317
      %p319 = scmp.le.s32.totalorder 1, %s29
      %p320 = scmp.lt.s32.totalorder %s29, 4
      %p321 = pnand %p319, %p320
      %p322 = pneg %p321
      // Predicated region
      $region9: #{rnn_spp_contain_rever_forward.1} parent=5 // pred_check
        _
      $region10: #{rnn_spp_contain_rever_forward.1} parent=5 // pred_check_branch
        %324 = sbr.rel (%p321) target = $region12
      $region11: #{rnn_spp_contain_rever_forward.1} parent=5 // pred_region
        %s325 = ssub.s32 %s29, 1
        // Predicated region
        $region13: #{rnn_spp_contain_rever_forward.1} parent=11 // pred_check
          %p326 = pneg %p50
        $region14: #{rnn_spp_contain_rever_forward.1} parent=11 // pred_check_branch
          %328 = sbr.rel (%p326) target = $region16
        $region15: #{rnn_spp_contain_rever_forward.1} parent=11 // pred_region
          _
        $region16: #{rnn_spp_contain_rever_forward.1} parent=11 // pred_fallthru
          _
        // Predicated region
        $region17: #{rnn_spp_contain_rever_forward.1} parent=11 // pred_check
          %p329 = pneg %p201
        $region18: #{rnn_spp_contain_rever_forward.1} parent=11 // pred_check_branch
          %331 = sbr.rel (%p329) target = $region20
        $region19: #{rnn_spp_contain_rever_forward.1} parent=11 // pred_region
          %s333 = ssub.s32 9216, 9216
          %334 = vsyncadd [#allocation10], %s333
          %s335 = sshll.u32 [#allocation11], 4
          %s336 = int_to_ptr.vmem [resolvable:$true] %s335
          %341 = dma.hbm_to_vmem [thread:$0]  %s6, 9216, %s336, [#allocation10], 192, 192, 12
        $region20: #{rnn_spp_contain_rever_forward.1} parent=11 // pred_fallthru
          _
        // Predicated region
        $region21: #{rnn_spp_contain_rever_forward.1} parent=11 // pred_check
          %p342 = pneg %p222
        $region22: #{rnn_spp_contain_rever_forward.1} parent=11 // pred_check_branch
          %344 = sbr.rel (%p342) target = $region24
        $region23: #{rnn_spp_contain_rever_forward.1} parent=11 // pred_region
          %s346 = ssub.s32 48, 48
          %347 = vsyncadd [#allocation13], %s346
          %s349 = sshll.u32 [#allocation12], 4
          %s350 = int_to_ptr.vmem [resolvable:$true] %s349
          %352 = dma.hbm_to_vmem [thread:$0]  %s7, 48, %s350, [#allocation13]
        $region24: #{rnn_spp_contain_rever_forward.1} parent=11 // pred_fallthru
          _
        // Predicated region
        $region25: #{rnn_spp_contain_rever_forward.1} parent=11 // pred_check
          %p353 = pneg %p243
        $region26: #{rnn_spp_contain_rever_forward.1} parent=11 // pred_check_branch
          %355 = sbr.rel (%p353) target = $region28
        $region27: #{rnn_spp_contain_rever_forward.1} parent=11 // pred_region
          %s357 = ssub.s32 9216, 9216
          %358 = vsyncadd [#allocation13], %s357
          %s359 = sshll.u32 [#allocation14], 4
          %s360 = int_to_ptr.vmem [resolvable:$true] %s359
          %365 = dma.hbm_to_vmem [thread:$0]  %s8, 9216, %s360, [#allocation13], 192, 192, 12
        $region28: #{rnn_spp_contain_rever_forward.1} parent=11 // pred_fallthru
          _
        // Predicated region
        $region29: #{rnn_spp_contain_rever_forward.1} parent=11 // pred_check
          %p366 = pneg %p264
        $region30: #{rnn_spp_contain_rever_forward.1} parent=11 // pred_check_branch
          %368 = sbr.rel (%p366) target = $region32
        $region31: #{rnn_spp_contain_rever_forward.1} parent=11 // pred_region
          %s370 = ssub.s32 48, 48
          %371 = vsyncadd [#allocation16], %s370
          %s373 = sshll.u32 [#allocation15], 4
          %s374 = int_to_ptr.vmem [resolvable:$true] %s373
          %376 = dma.hbm_to_vmem [thread:$0]  %s9, 48, %s374, [#allocation16]
        $region32: #{rnn_spp_contain_rever_forward.1} parent=11 // pred_fallthru
          _
      $region12: #{rnn_spp_contain_rever_forward.1} parent=5 // pred_fallthru
        _
      %p377 = scmp.lt.s32.totalorder %s29, 3
      // Predicated region
      $region33: #{rnn_spp_contain_rever_forward.1} parent=5 // pred_check
        %p378 = pneg %p377
      $region34: #{rnn_spp_contain_rever_forward.1} parent=5 // pred_check_branch
        %380 = sbr.rel (%p378) target = $region36
      $region35: #{rnn_spp_contain_rever_forward.1} parent=5 // pred_region
        // Predicated region
        $region37: #{rnn_spp_contain_rever_forward.1} parent=35 // pred_check
          %p381 = pneg %p70
        $region38: #{rnn_spp_contain_rever_forward.1} parent=35 // pred_check_branch
          %383 = sbr.rel (%p381) target = $region40
        $region39: #{rnn_spp_contain_rever_forward.1} parent=35 // pred_region
          %p384 = scmp.lt.s32.totalorder %s29, 2
          %s385 = scalar_select %p384, %s29, 2
          %s386 = smul.addr %s385, 3
          %s387 = smul.addr %s386, 8
          %s388 = scalar_lea.vmem %s1, %s387
        $region40: #{rnn_spp_contain_rever_forward.1} parent=35 // pred_fallthru
          _
        // Predicated region
        $region41: #{rnn_spp_contain_rever_forward.1} parent=35 // pred_check
          %p389 = pneg %p96
        $region42: #{rnn_spp_contain_rever_forward.1} parent=35 // pred_check_branch
          %391 = sbr.rel (%p389) target = $region44
        $region43: #{rnn_spp_contain_rever_forward.1} parent=35 // pred_region
          %s392 = sand.u32 %s86, 1
          %s393 = scalar_lea.sflag [#allocation5], %s392
          %s394 = sand.u32 %s86, 1
          %s395 = smul.addr %s394, 1728
          %s396 = scalar_lea.vmem [#allocation4], %s395
          %s398 = ssub.s32 27648, 27648
          %399 = vsyncadd %s393, %s398
          %s400 = smul.addr %s29, 432
          %s401 = smul.addr %s400, 64
          %s402 = scalar_lea.hbm %s2, %s401
          %s403 = sshll.u32 %s396, 4
          %s404 = int_to_ptr.vmem [resolvable:$true] %s403
          %409 = dma.hbm_to_vmem [thread:$0]  %s402, 27648, %s404, %s393, 576, 576, 36
        $region44: #{rnn_spp_contain_rever_forward.1} parent=35 // pred_fallthru
          _
        // Predicated region
        $region45: #{rnn_spp_contain_rever_forward.1} parent=35 // pred_check
          %p410 = pneg %p122
        $region46: #{rnn_spp_contain_rever_forward.1} parent=35 // pred_check_branch
          %412 = sbr.rel (%p410) target = $region48
        $region47: #{rnn_spp_contain_rever_forward.1} parent=35 // pred_region
          %s413 = sand.u32 %s29, 1
          %s414 = scalar_lea.sflag [#allocation7], %s413
          %s415 = sand.u32 %s112, 1
          %s416 = smul.addr %s415, 1728
          %s417 = scalar_lea.vmem [#allocation6], %s416
          %s419 = ssub.s32 27648, 27648
          %420 = vsyncadd %s414, %s419
          %s421 = smul.addr %s29, 432
          %s422 = smul.addr %s421, 64
          %s423 = scalar_lea.hbm %s3, %s422
          %s424 = sshll.u32 %s417, 4
          %s425 = int_to_ptr.vmem [resolvable:$true] %s424
          %430 = dma.hbm_to_vmem [thread:$0]  %s423, 27648, %s425, %s414, 576, 576, 36
        $region48: #{rnn_spp_contain_rever_forward.1} parent=35 // pred_fallthru
          _
        // Predicated region
        $region49: #{rnn_spp_contain_rever_forward.1} parent=35 // pred_check
          %p431 = pneg %p148
        $region50: #{rnn_spp_contain_rever_forward.1} parent=35 // pred_check_branch
          %433 = sbr.rel (%p431) target = $region52
        $region51: #{rnn_spp_contain_rever_forward.1} parent=35 // pred_region
          %s434 = sand.u32 %s29, 1
          %s435 = scalar_lea.sflag [#allocation7], %s434
          %s436 = sand.u32 %s138, 1
          %s437 = smul.addr %s436, 9
          %s438 = scalar_lea.vmem [#allocation8], %s437
          %s440 = ssub.s32 144, 144
          %441 = vsyncadd %s435, %s440
          %s442 = smul.addr %s29, 9
          %s443 = smul.addr %s442, 16
          %s444 = scalar_lea.hbm %s4, %s443
          %s446 = sshll.u32 %s438, 4
          %s447 = int_to_ptr.vmem [resolvable:$true] %s446
          %449 = dma.hbm_to_vmem [thread:$0]  %s444, 144, %s447, %s435
        $region52: #{rnn_spp_contain_rever_forward.1} parent=35 // pred_fallthru
          _
        // Predicated region
        $region53: #{rnn_spp_contain_rever_forward.1} parent=35 // pred_check
          %p450 = pneg %p174
        $region54: #{rnn_spp_contain_rever_forward.1} parent=35 // pred_check_branch
          %452 = sbr.rel (%p450) target = $region56
        $region55: #{rnn_spp_contain_rever_forward.1} parent=35 // pred_region
          %s453 = sand.u32 %s29, 1
          %s454 = scalar_lea.sflag [#allocation10], %s453
          %s455 = sand.u32 %s164, 1
          %s456 = smul.addr %s455, 9
          %s457 = scalar_lea.vmem [#allocation9], %s456
          %s459 = ssub.s32 144, 144
          %460 = vsyncadd %s454, %s459
          %s461 = smul.addr %s29, 9
          %s462 = smul.addr %s461, 16
          %s463 = scalar_lea.hbm %s5, %s462
          %s465 = sshll.u32 %s457, 4
          %s466 = int_to_ptr.vmem [resolvable:$true] %s465
          %468 = dma.hbm_to_vmem [thread:$0]  %s463, 144, %s466, %s454
        $region56: #{rnn_spp_contain_rever_forward.1} parent=35 // pred_fallthru
          _
      $region36: #{rnn_spp_contain_rever_forward.1} parent=5 // pred_fallthru
        _
      %p469 = scmp.le.s32.totalorder 1, %s29
      %p470 = scmp.lt.s32.totalorder %s29, 4
      %p471 = pnand %p469, %p470
      %p472 = pneg %p471
      // Predicated region
      $region57: #{rnn_spp_contain_rever_forward.1} parent=5 // pred_check
        _
      $region58: #{rnn_spp_contain_rever_forward.1} parent=5 // pred_check_branch
        %474 = sbr.rel (%p471) target = $region60
      $region59: #{rnn_spp_contain_rever_forward.1} parent=5 // pred_region
        %s475 = ssub.s32 %s29, 1
        %s476 = sand.u32 %s89, 1
        %s477 = scalar_lea.sflag [#allocation5], %s476
        %s478 = sand.u32 %s89, 1
        %s479 = smul.addr %s478, 1728
        %s480 = scalar_lea.vmem [#allocation4], %s479
        // Predicated region
        $region61: #{rnn_spp_contain_rever_forward.1} parent=59 // pred_check
          %p481 = pneg %p102
        $region62: #{rnn_spp_contain_rever_forward.1} parent=59 // pred_check_branch
          %483 = sbr.rel (%p481) target = $region64
        $region63: #{rnn_spp_contain_rever_forward.1} parent=59 // pred_region
          %484 = dma.done %s477, 27648
        $region64: #{rnn_spp_contain_rever_forward.1} parent=59 // pred_fallthru
          _
        %s485 = sand.u32 %s34, 1
        %s486 = scalar_lea.sflag [#allocation7], %s485
        %s487 = sand.u32 %s115, 1
        %s488 = smul.addr %s487, 1728
        %s489 = scalar_lea.vmem [#allocation6], %s488
        // Predicated region
        $region65: #{rnn_spp_contain_rever_forward.1} parent=59 // pred_check
          %p490 = pneg %p128
        $region66: #{rnn_spp_contain_rever_forward.1} parent=59 // pred_check_branch
          %492 = sbr.rel (%p490) target = $region68
        $region67: #{rnn_spp_contain_rever_forward.1} parent=59 // pred_region
          %493 = dma.done %s486, 27648
        $region68: #{rnn_spp_contain_rever_forward.1} parent=59 // pred_fallthru
          _
        %s494 = sand.u32 %s34, 1
        %s495 = scalar_lea.sflag [#allocation7], %s494
        %s496 = sand.u32 %s141, 1
        %s497 = smul.addr %s496, 9
        %s498 = scalar_lea.vmem [#allocation8], %s497
        // Predicated region
        $region69: #{rnn_spp_contain_rever_forward.1} parent=59 // pred_check
          %p499 = pneg %p154
        $region70: #{rnn_spp_contain_rever_forward.1} parent=59 // pred_check_branch
          %501 = sbr.rel (%p499) target = $region72
        $region71: #{rnn_spp_contain_rever_forward.1} parent=59 // pred_region
          %502 = dma.done %s495, 144
        $region72: #{rnn_spp_contain_rever_forward.1} parent=59 // pred_fallthru
          _
        %s503 = sand.u32 %s34, 1
        %s504 = scalar_lea.sflag [#allocation10], %s503
        %s505 = sand.u32 %s167, 1
        %s506 = smul.addr %s505, 9
        %s507 = scalar_lea.vmem [#allocation9], %s506
        // Predicated region
        $region73: #{rnn_spp_contain_rever_forward.1} parent=59 // pred_check
          %p508 = pneg %p180
        $region74: #{rnn_spp_contain_rever_forward.1} parent=59 // pred_check_branch
          %510 = sbr.rel (%p508) target = $region76
        $region75: #{rnn_spp_contain_rever_forward.1} parent=59 // pred_region
          %511 = dma.done %s504, 144
        $region76: #{rnn_spp_contain_rever_forward.1} parent=59 // pred_fallthru
          _
        // Predicated region
        $region77: #{rnn_spp_contain_rever_forward.1} parent=59 // pred_check
          %p512 = pneg %p201
        $region78: #{rnn_spp_contain_rever_forward.1} parent=59 // pred_check_branch
          %514 = sbr.rel (%p512) target = $region80
        $region79: #{rnn_spp_contain_rever_forward.1} parent=59 // pred_region
          %515 = dma.done [#allocation10], 9216
        $region80: #{rnn_spp_contain_rever_forward.1} parent=59 // pred_fallthru
          _
        // Predicated region
        $region81: #{rnn_spp_contain_rever_forward.1} parent=59 // pred_check
          %p516 = pneg %p222
        $region82: #{rnn_spp_contain_rever_forward.1} parent=59 // pred_check_branch
          %518 = sbr.rel (%p516) target = $region84
        $region83: #{rnn_spp_contain_rever_forward.1} parent=59 // pred_region
          %519 = dma.done [#allocation13], 48
        $region84: #{rnn_spp_contain_rever_forward.1} parent=59 // pred_fallthru
          _
        // Predicated region
        $region85: #{rnn_spp_contain_rever_forward.1} parent=59 // pred_check
          %p520 = pneg %p243
        $region86: #{rnn_spp_contain_rever_forward.1} parent=59 // pred_check_branch
          %522 = sbr.rel (%p520) target = $region88
        $region87: #{rnn_spp_contain_rever_forward.1} parent=59 // pred_region
          %523 = dma.done [#allocation13], 9216
        $region88: #{rnn_spp_contain_rever_forward.1} parent=59 // pred_fallthru
          _
        // Predicated region
        $region89: #{rnn_spp_contain_rever_forward.1} parent=59 // pred_check
          %p524 = pneg %p264
        $region90: #{rnn_spp_contain_rever_forward.1} parent=59 // pred_check_branch
          %526 = sbr.rel (%p524) target = $region92
        $region91: #{rnn_spp_contain_rever_forward.1} parent=59 // pred_region
          %527 = dma.done [#allocation16], 48
        $region92: #{rnn_spp_contain_rever_forward.1} parent=59 // pred_fallthru
          _
        %p528 = pneg %p50
        %p529 = pneg %p47
        %p530 = scmp.lt.s32.totalorder %s34, 2
        %s531 = scalar_select %p530, %s34, 2
        %s532 = smul.addr %s531, 3
        %s533 = smul.addr %s532, 8
        %s534 = scalar_lea.vmem %s1, %s533
        %p535 = pneg %p76
        %p536 = pneg %p73
        %s537 = sand.u32 %s89, 1
        %s538 = scalar_lea.sflag [#allocation5], %s537
        %s539 = sand.u32 %s89, 1
        %s540 = smul.addr %s539, 1728
        %s541 = scalar_lea.vmem [#allocation4], %s540
        %p542 = pneg %p102
        %p543 = pneg %p99
        %s544 = sand.u32 %s34, 1
        %s545 = scalar_lea.sflag [#allocation7], %s544
        %s546 = sand.u32 %s115, 1
        %s547 = smul.addr %s546, 1728
        %s548 = scalar_lea.vmem [#allocation6], %s547
        %p549 = pneg %p128
        %p550 = pneg %p125
        %s551 = sand.u32 %s34, 1
        %s552 = scalar_lea.sflag [#allocation7], %s551
        %s553 = sand.u32 %s141, 1
        %s554 = smul.addr %s553, 9
        %s555 = scalar_lea.vmem [#allocation8], %s554
        %p556 = pneg %p154
        %p557 = pneg %p151
        %s558 = sand.u32 %s34, 1
        %s559 = scalar_lea.sflag [#allocation10], %s558
        %s560 = sand.u32 %s167, 1
        %s561 = smul.addr %s560, 9
        %s562 = scalar_lea.vmem [#allocation9], %s561
        %p563 = pneg %p180
        %p564 = pneg %p177
        %p565 = pneg %p201
        %p566 = pneg %p198
        %p567 = pneg %p222
        %p568 = pneg %p219
        %p569 = pneg %p243
        %p570 = pneg %p240
        %p571 = pneg %p264
        %p572 = pneg %p261
        %p573 = pneg %p285
        %p574 = pneg %p282
        %p575 = pneg %p311
        %p576 = pneg %p308
        %p577 = scmp.lt.s32.totalorder %s34, 2
        %s578 = scalar_select %p577, %s34, 2
        %s579 = smul.addr %s578, 3
        %s580 = smul.addr %s579, 8
        %s581 = scalar_lea.vmem %s11, %s580
        %p582 = scmp.lt.s32.totalorder %s34, 2
        %s583 = scalar_select %p582, %s34, 2
        %s584 = smul.addr %s583, 3
        %s585 = smul.addr %s584, 8
        %s586 = scalar_lea.vmem %s1, %s585
        %p587 = scmp.lt.s32.totalorder %s34, 2
        %s588 = scalar_select %p587, %s34, 2
        %s589 = smul.addr %s588, 3
        %s590 = smul.addr %s589, 8
        %s591 = scalar_lea.vmem %s11, %s590
        %p593 = scmp.eq.s32.totalorder %s34, 0
        // Predicated region
        $region93: #{rnn_spp_contain_rever_forward.1} parent=59 // pred_check
          %p594 = pneg %p593
        $region94: #{rnn_spp_contain_rever_forward.1} parent=59 // pred_check_branch
          %596 = sbr.rel (%p594) target = $region96
        $region95: #{rnn_spp_contain_rever_forward.1} parent=59 // pred_region
          %v597 = vld [vmem:[%s0] sm:$0xff]
          %v598 = vld [vmem:[%s0 + $0x8] sm:$0xff]
          %v599 = vld [vmem:[%s0 + $0x10] sm:$0xff]
          %v600 = vld [vmem:[%s0 + $0x18] sm:$0xff]
          %v601 = vld [vmem:[%s0 + $0x20] sm:$0xff]
          %v602 = vld [vmem:[%s0 + $0x28] sm:$0xff]
          %v603 = vld [vmem:[%s0 + $0x30] sm:$0xff]
          %v604 = vld [vmem:[%s0 + $0x38] sm:$0xff]
          %v605 = vld [vmem:[%s0 + $0x40] sm:$0xff]
          %v606 = vld [vmem:[%s0 + $0x48] sm:$0xff]
          %v607 = vld [vmem:[%s0 + $0x50] sm:$0xff]
          %v608 = vld [vmem:[%s0 + $0x58] sm:$0xff]
          %v609 = vld [vmem:[%s0 + $0x60] sm:$0xff]
          %v610 = vld [vmem:[%s0 + $0x68] sm:$0xff]
          %v611 = vld [vmem:[%s0 + $0x70] sm:$0xff]
          %v612 = vld [vmem:[%s0 + $0x78] sm:$0xff]
          %v613 = vld [vmem:[%s0 + $0x80] sm:$0xff]
          %v614 = vld [vmem:[%s0 + $0x88] sm:$0xff]
          %v615 = vld [vmem:[%s0 + $0x90] sm:$0xff]
          %v616 = vld [vmem:[%s0 + $0x98] sm:$0xff]
          %v617 = vld [vmem:[%s0 + $0xa0] sm:$0xff]
          %v618 = vld [vmem:[%s0 + $0xa8] sm:$0xff]
          %v619 = vld [vmem:[%s0 + $0xb0] sm:$0xff]
          %v620 = vld [vmem:[%s0 + $0xb8] sm:$0xff]
          %621 = vst [vmem:[#allocation3] sm:$0xff] %v597
          %622 = vst [vmem:[#allocation3 + $0x8] sm:$0xff] %v598
          %623 = vst [vmem:[#allocation3 + $0x10] sm:$0xff] %v599
          %624 = vst [vmem:[#allocation3 + $0x18] sm:$0xff] %v600
          %625 = vst [vmem:[#allocation3 + $0x20] sm:$0xff] %v601
          %626 = vst [vmem:[#allocation3 + $0x28] sm:$0xff] %v602
          %627 = vst [vmem:[#allocation3 + $0x30] sm:$0xff] %v603
          %628 = vst [vmem:[#allocation3 + $0x38] sm:$0xff] %v604
          %629 = vst [vmem:[#allocation3 + $0x40] sm:$0xff] %v605
          %630 = vst [vmem:[#allocation3 + $0x48] sm:$0xff] %v606
          %631 = vst [vmem:[#allocation3 + $0x50] sm:$0xff] %v607
          %632 = vst [vmem:[#allocation3 + $0x58] sm:$0xff] %v608
          %633 = vst [vmem:[#allocation3 + $0x60] sm:$0xff] %v609
          %634 = vst [vmem:[#allocation3 + $0x68] sm:$0xff] %v610
          %635 = vst [vmem:[#allocation3 + $0x70] sm:$0xff] %v611
          %636 = vst [vmem:[#allocation3 + $0x78] sm:$0xff] %v612
          %637 = vst [vmem:[#allocation3 + $0x80] sm:$0xff] %v613
          %638 = vst [vmem:[#allocation3 + $0x88] sm:$0xff] %v614
          %639 = vst [vmem:[#allocation3 + $0x90] sm:$0xff] %v615
          %640 = vst [vmem:[#allocation3 + $0x98] sm:$0xff] %v616
          %641 = vst [vmem:[#allocation3 + $0xa0] sm:$0xff] %v617
          %642 = vst [vmem:[#allocation3 + $0xa8] sm:$0xff] %v618
          %643 = vst [vmem:[#allocation3 + $0xb0] sm:$0xff] %v619
          %644 = vst [vmem:[#allocation3 + $0xb8] sm:$0xff] %v620
        $region96: #{rnn_spp_contain_rever_forward.1} parent=59 // pred_fallthru
          _
        %v645 = vld [vmem:[#allocation3] sm:$0xff]
        %v646 = vld [vmem:[#allocation3 + $0x8] sm:$0xff]
        %v647 = vld [vmem:[#allocation3 + $0x10] sm:$0xff]
        %v648 = vld [vmem:[#allocation3 + $0x18] sm:$0xff]
        %v649 = vld [vmem:[#allocation3 + $0x20] sm:$0xff]
        %v650 = vld [vmem:[#allocation3 + $0x28] sm:$0xff]
        %v651 = vld [vmem:[#allocation3 + $0x30] sm:$0xff]
        %v652 = vld [vmem:[#allocation3 + $0x38] sm:$0xff]
        %v653 = vld [vmem:[#allocation3 + $0x40] sm:$0xff]
        %v654 = vld [vmem:[#allocation3 + $0x48] sm:$0xff]
        %v655 = vld [vmem:[#allocation3 + $0x50] sm:$0xff]
        %v656 = vld [vmem:[#allocation3 + $0x58] sm:$0xff]
        %v657 = vld [vmem:[#allocation3 + $0x60] sm:$0xff]
        %v658 = vld [vmem:[#allocation3 + $0x68] sm:$0xff]
        %v659 = vld [vmem:[#allocation3 + $0x70] sm:$0xff]
        %v660 = vld [vmem:[#allocation3 + $0x78] sm:$0xff]
        %v661 = vld [vmem:[#allocation3 + $0x80] sm:$0xff]
        %v662 = vld [vmem:[#allocation3 + $0x88] sm:$0xff]
        %v663 = vld [vmem:[#allocation3 + $0x90] sm:$0xff]
        %v664 = vld [vmem:[#allocation3 + $0x98] sm:$0xff]
        %v665 = vld [vmem:[#allocation3 + $0xa0] sm:$0xff]
        %v666 = vld [vmem:[#allocation3 + $0xa8] sm:$0xff]
        %v667 = vld [vmem:[#allocation3 + $0xb0] sm:$0xff]
        %v668 = vld [vmem:[#allocation3 + $0xb8] sm:$0xff]
        %v669 = vpack.c.bf16 %v648, %v645
        %v670 = vpack.c.bf16 %v649, %v646
        %v671 = vpack.c.bf16 %v650, %v647
        %v672 = vpack.c.bf16 %v654, %v651
        %v673 = vpack.c.bf16 %v655, %v652
        %v674 = vpack.c.bf16 %v656, %v653
        %v675 = vpack.c.bf16 %v660, %v657
        %v676 = vpack.c.bf16 %v661, %v658
        %v677 = vpack.c.bf16 %v662, %v659
        %v678 = vpack.c.bf16 %v666, %v663
        %v679 = vpack.c.bf16 %v667, %v664
        %v680 = vpack.c.bf16 %v668, %v665
        %v681 = vld [vmem:[%s480] sm:$0xff]
        %v682 = vld [vmem:[%s480 + $0x8] sm:$0xff]
        %v683 = vld [vmem:[%s480 + $0x10] sm:$0xff]
        %v684 = vld [vmem:[%s480 + $0x18] sm:$0xff]
        %v685 = vld [vmem:[%s480 + $0x20] sm:$0xf]
        %v686 = vld [vmem:[%s480 + $0x24] sm:$0xff]
        %v687 = vld [vmem:[%s480 + $0x2c] sm:$0xff]
        %v688 = vld [vmem:[%s480 + $0x34] sm:$0xff]
        %v689 = vld [vmem:[%s480 + $0x3c] sm:$0xff]
        %v690 = vld [vmem:[%s480 + $0x44] sm:$0xf]
        %v691 = vld [vmem:[%s480 + $0x48] sm:$0xff]
        %v692 = vld [vmem:[%s480 + $0x50] sm:$0xff]
        %v693 = vld [vmem:[%s480 + $0x58] sm:$0xff]
        %v694 = vld [vmem:[%s480 + $0x60] sm:$0xff]
        %v695 = vld [vmem:[%s480 + $0x68] sm:$0xf]
        %v696 = vld [vmem:[%s480 + $0x6c] sm:$0xff]
        %v697 = vld [vmem:[%s480 + $0x74] sm:$0xff]
        %v698 = vld [vmem:[%s480 + $0x7c] sm:$0xff]
        %v699 = vld [vmem:[%s480 + $0x84] sm:$0xff]
        %v700 = vld [vmem:[%s480 + $0x8c] sm:$0xf]
        %v701 = vld [vmem:[%s480 + $0x90] sm:$0xff]
        %v702 = vld [vmem:[%s480 + $0x98] sm:$0xff]
        %v703 = vld [vmem:[%s480 + $0xa0] sm:$0xff]
        %v704 = vld [vmem:[%s480 + $0xa8] sm:$0xff]
        %v705 = vld [vmem:[%s480 + $0xb0] sm:$0xf]
        %v706 = vld [vmem:[%s480 + $0xb4] sm:$0xff]
        %v707 = vld [vmem:[%s480 + $0xbc] sm:$0xff]
        %v708 = vld [vmem:[%s480 + $0xc4] sm:$0xff]
        %v709 = vld [vmem:[%s480 + $0xcc] sm:$0xff]
        %v710 = vld [vmem:[%s480 + $0xd4] sm:$0xf]
        %v711 = vld [vmem:[%s480 + $0xd8] sm:$0xff]
        %v712 = vld [vmem:[%s480 + $0xe0] sm:$0xff]
        %v713 = vld [vmem:[%s480 + $0xe8] sm:$0xff]
        %v714 = vld [vmem:[%s480 + $0xf0] sm:$0xff]
        %v715 = vld [vmem:[%s480 + $0xf8] sm:$0xf]
        %v716 = vld [vmem:[%s480 + $0xfc] sm:$0xff]
        %v717 = vld [vmem:[%s480 + $0x104] sm:$0xff]
        %v718 = vld [vmem:[%s480 + $0x10c] sm:$0xff]
        %v719 = vld [vmem:[%s480 + $0x114] sm:$0xff]
        %v720 = vld [vmem:[%s480 + $0x11c] sm:$0xf]
        %v721 = vld [vmem:[%s480 + $0x120] sm:$0xff]
        %v722 = vld [vmem:[%s480 + $0x128] sm:$0xff]
        %v723 = vld [vmem:[%s480 + $0x130] sm:$0xff]
        %v724 = vld [vmem:[%s480 + $0x138] sm:$0xff]
        %v725 = vld [vmem:[%s480 + $0x140] sm:$0xf]
        %v726 = vld [vmem:[%s480 + $0x144] sm:$0xff]
        %v727 = vld [vmem:[%s480 + $0x14c] sm:$0xff]
        %v728 = vld [vmem:[%s480 + $0x154] sm:$0xff]
        %v729 = vld [vmem:[%s480 + $0x15c] sm:$0xff]
        %v730 = vld [vmem:[%s480 + $0x164] sm:$0xf]
        %v731 = vld [vmem:[%s480 + $0x168] sm:$0xff]
        %v732 = vld [vmem:[%s480 + $0x170] sm:$0xff]
        %v733 = vld [vmem:[%s480 + $0x178] sm:$0xff]
        %v734 = vld [vmem:[%s480 + $0x180] sm:$0xff]
        %v735 = vld [vmem:[%s480 + $0x188] sm:$0xf]
        %v736 = vld [vmem:[%s480 + $0x18c] sm:$0xff]
        %v737 = vld [vmem:[%s480 + $0x194] sm:$0xff]
        %v738 = vld [vmem:[%s480 + $0x19c] sm:$0xff]
        %v739 = vld [vmem:[%s480 + $0x1a4] sm:$0xff]
        %v740 = vld [vmem:[%s480 + $0x1ac] sm:$0xf]
        %v741 = vld [vmem:[%s480 + $0x1b0] sm:$0xff]
        %v742 = vld [vmem:[%s480 + $0x1b8] sm:$0xff]
        %v743 = vld [vmem:[%s480 + $0x1c0] sm:$0xff]
        %v744 = vld [vmem:[%s480 + $0x1c8] sm:$0xff]
        %v745 = vld [vmem:[%s480 + $0x1d0] sm:$0xf]
        %v746 = vld [vmem:[%s480 + $0x1d4] sm:$0xff]
        %v747 = vld [vmem:[%s480 + $0x1dc] sm:$0xff]
        %v748 = vld [vmem:[%s480 + $0x1e4] sm:$0xff]
        %v749 = vld [vmem:[%s480 + $0x1ec] sm:$0xff]
        %v750 = vld [vmem:[%s480 + $0x1f4] sm:$0xf]
        %v751 = vld [vmem:[%s480 + $0x1f8] sm:$0xff]
        %v752 = vld [vmem:[%s480 + $0x200] sm:$0xff]
        %v753 = vld [vmem:[%s480 + $0x208] sm:$0xff]
        %v754 = vld [vmem:[%s480 + $0x210] sm:$0xff]
        %v755 = vld [vmem:[%s480 + $0x218] sm:$0xf]
        %v756 = vld [vmem:[%s480 + $0x21c] sm:$0xff]
        %v757 = vld [vmem:[%s480 + $0x224] sm:$0xff]
        %v758 = vld [vmem:[%s480 + $0x22c] sm:$0xff]
        %v759 = vld [vmem:[%s480 + $0x234] sm:$0xff]
        %v760 = vld [vmem:[%s480 + $0x23c] sm:$0xf]
        %v761 = vld [vmem:[%s480 + $0x240] sm:$0xff]
        %v762 = vld [vmem:[%s480 + $0x248] sm:$0xff]
        %v763 = vld [vmem:[%s480 + $0x250] sm:$0xff]
        %v764 = vld [vmem:[%s480 + $0x258] sm:$0xff]
        %v765 = vld [vmem:[%s480 + $0x260] sm:$0xf]
        %v766 = vld [vmem:[%s480 + $0x264] sm:$0xff]
        %v767 = vld [vmem:[%s480 + $0x26c] sm:$0xff]
        %v768 = vld [vmem:[%s480 + $0x274] sm:$0xff]
        %v769 = vld [vmem:[%s480 + $0x27c] sm:$0xff]
        %v770 = vld [vmem:[%s480 + $0x284] sm:$0xf]
        %v771 = vld [vmem:[%s480 + $0x288] sm:$0xff]
        %v772 = vld [vmem:[%s480 + $0x290] sm:$0xff]
        %v773 = vld [vmem:[%s480 + $0x298] sm:$0xff]
        %v774 = vld [vmem:[%s480 + $0x2a0] sm:$0xff]
        %v775 = vld [vmem:[%s480 + $0x2a8] sm:$0xf]
        %v776 = vld [vmem:[%s480 + $0x2ac] sm:$0xff]
        %v777 = vld [vmem:[%s480 + $0x2b4] sm:$0xff]
        %v778 = vld [vmem:[%s480 + $0x2bc] sm:$0xff]
        %v779 = vld [vmem:[%s480 + $0x2c4] sm:$0xff]
        %v780 = vld [vmem:[%s480 + $0x2cc] sm:$0xf]
        %v781 = vld [vmem:[%s480 + $0x2d0] sm:$0xff]
        %v782 = vld [vmem:[%s480 + $0x2d8] sm:$0xff]
        %v783 = vld [vmem:[%s480 + $0x2e0] sm:$0xff]
        %v784 = vld [vmem:[%s480 + $0x2e8] sm:$0xff]
        %v785 = vld [vmem:[%s480 + $0x2f0] sm:$0xf]
        %v786 = vld [vmem:[%s480 + $0x2f4] sm:$0xff]
        %v787 = vld [vmem:[%s480 + $0x2fc] sm:$0xff]
        %v788 = vld [vmem:[%s480 + $0x304] sm:$0xff]
        %v789 = vld [vmem:[%s480 + $0x30c] sm:$0xff]
        %v790 = vld [vmem:[%s480 + $0x314] sm:$0xf]
        %v791 = vld [vmem:[%s480 + $0x318] sm:$0xff]
        %v792 = vld [vmem:[%s480 + $0x320] sm:$0xff]
        %v793 = vld [vmem:[%s480 + $0x328] sm:$0xff]
        %v794 = vld [vmem:[%s480 + $0x330] sm:$0xff]
        %v795 = vld [vmem:[%s480 + $0x338] sm:$0xf]
        %v796 = vld [vmem:[%s480 + $0x33c] sm:$0xff]
        %v797 = vld [vmem:[%s480 + $0x344] sm:$0xff]
        %v798 = vld [vmem:[%s480 + $0x34c] sm:$0xff]
        %v799 = vld [vmem:[%s480 + $0x354] sm:$0xff]
        %v800 = vld [vmem:[%s480 + $0x35c] sm:$0xf]
        %v801 = vld [vmem:[%s480 + $0x360] sm:$0xff]
        %v802 = vld [vmem:[%s480 + $0x368] sm:$0xff]
        %v803 = vld [vmem:[%s480 + $0x370] sm:$0xff]
        %v804 = vld [vmem:[%s480 + $0x378] sm:$0xff]
        %v805 = vld [vmem:[%s480 + $0x380] sm:$0xf]
        %v806 = vld [vmem:[%s480 + $0x384] sm:$0xff]
        %v807 = vld [vmem:[%s480 + $0x38c] sm:$0xff]
        %v808 = vld [vmem:[%s480 + $0x394] sm:$0xff]
        %v809 = vld [vmem:[%s480 + $0x39c] sm:$0xff]
        %v810 = vld [vmem:[%s480 + $0x3a4] sm:$0xf]
        %v811 = vld [vmem:[%s480 + $0x3a8] sm:$0xff]
        %v812 = vld [vmem:[%s480 + $0x3b0] sm:$0xff]
        %v813 = vld [vmem:[%s480 + $0x3b8] sm:$0xff]
        %v814 = vld [vmem:[%s480 + $0x3c0] sm:$0xff]
        %v815 = vld [vmem:[%s480 + $0x3c8] sm:$0xf]
        %v816 = vld [vmem:[%s480 + $0x3cc] sm:$0xff]
        %v817 = vld [vmem:[%s480 + $0x3d4] sm:$0xff]
        %v818 = vld [vmem:[%s480 + $0x3dc] sm:$0xff]
        %v819 = vld [vmem:[%s480 + $0x3e4] sm:$0xff]
        %v820 = vld [vmem:[%s480 + $0x3ec] sm:$0xf]
        %v821 = vld [vmem:[%s480 + $0x3f0] sm:$0xff]
        %v822 = vld [vmem:[%s480 + $0x3f8] sm:$0xff]
        %v823 = vld [vmem:[%s480 + $0x400] sm:$0xff]
        %v824 = vld [vmem:[%s480 + $0x408] sm:$0xff]
        %v825 = vld [vmem:[%s480 + $0x410] sm:$0xf]
        %v826 = vld [vmem:[%s480 + $0x414] sm:$0xff]
        %v827 = vld [vmem:[%s480 + $0x41c] sm:$0xff]
        %v828 = vld [vmem:[%s480 + $0x424] sm:$0xff]
        %v829 = vld [vmem:[%s480 + $0x42c] sm:$0xff]
        %v830 = vld [vmem:[%s480 + $0x434] sm:$0xf]
        %v831 = vld [vmem:[%s480 + $0x438] sm:$0xff]
        %v832 = vld [vmem:[%s480 + $0x440] sm:$0xff]
        %v833 = vld [vmem:[%s480 + $0x448] sm:$0xff]
        %v834 = vld [vmem:[%s480 + $0x450] sm:$0xff]
        %v835 = vld [vmem:[%s480 + $0x458] sm:$0xf]
        %v836 = vld [vmem:[%s480 + $0x45c] sm:$0xff]
        %v837 = vld [vmem:[%s480 + $0x464] sm:$0xff]
        %v838 = vld [vmem:[%s480 + $0x46c] sm:$0xff]
        %v839 = vld [vmem:[%s480 + $0x474] sm:$0xff]
        %v840 = vld [vmem:[%s480 + $0x47c] sm:$0xf]
        %v841 = vld [vmem:[%s480 + $0x480] sm:$0xff]
        %v842 = vld [vmem:[%s480 + $0x488] sm:$0xff]
        %v843 = vld [vmem:[%s480 + $0x490] sm:$0xff]
        %v844 = vld [vmem:[%s480 + $0x498] sm:$0xff]
        %v845 = vld [vmem:[%s480 + $0x4a0] sm:$0xf]
        %v846 = vld [vmem:[%s480 + $0x4a4] sm:$0xff]
        %v847 = vld [vmem:[%s480 + $0x4ac] sm:$0xff]
        %v848 = vld [vmem:[%s480 + $0x4b4] sm:$0xff]
        %v849 = vld [vmem:[%s480 + $0x4bc] sm:$0xff]
        %v850 = vld [vmem:[%s480 + $0x4c4] sm:$0xf]
        %v851 = vld [vmem:[%s480 + $0x4c8] sm:$0xff]
        %v852 = vld [vmem:[%s480 + $0x4d0] sm:$0xff]
        %v853 = vld [vmem:[%s480 + $0x4d8] sm:$0xff]
        %v854 = vld [vmem:[%s480 + $0x4e0] sm:$0xff]
        %v855 = vld [vmem:[%s480 + $0x4e8] sm:$0xf]
        %v856 = vld [vmem:[%s480 + $0x4ec] sm:$0xff]
        %v857 = vld [vmem:[%s480 + $0x4f4] sm:$0xff]
        %v858 = vld [vmem:[%s480 + $0x4fc] sm:$0xff]
        %v859 = vld [vmem:[%s480 + $0x504] sm:$0xff]
        %v860 = vld [vmem:[%s480 + $0x50c] sm:$0xf]
        %v861 = vld [vmem:[%s480 + $0x510] sm:$0xff]
        %v862 = vld [vmem:[%s480 + $0x518] sm:$0xff]
        %v863 = vld [vmem:[%s480 + $0x520] sm:$0xff]
        %v864 = vld [vmem:[%s480 + $0x528] sm:$0xff]
        %v865 = vld [vmem:[%s480 + $0x530] sm:$0xf]
        %v866 = vld [vmem:[%s480 + $0x534] sm:$0xff]
        %v867 = vld [vmem:[%s480 + $0x53c] sm:$0xff]
        %v868 = vld [vmem:[%s480 + $0x544] sm:$0xff]
        %v869 = vld [vmem:[%s480 + $0x54c] sm:$0xff]
        %v870 = vld [vmem:[%s480 + $0x554] sm:$0xf]
        %v871 = vld [vmem:[%s480 + $0x558] sm:$0xff]
        %v872 = vld [vmem:[%s480 + $0x560] sm:$0xff]
        %v873 = vld [vmem:[%s480 + $0x568] sm:$0xff]
        %v874 = vld [vmem:[%s480 + $0x570] sm:$0xff]
        %v875 = vld [vmem:[%s480 + $0x578] sm:$0xf]
        %v876 = vld [vmem:[%s480 + $0x57c] sm:$0xff]
        %v877 = vld [vmem:[%s480 + $0x584] sm:$0xff]
        %v878 = vld [vmem:[%s480 + $0x58c] sm:$0xff]
        %v879 = vld [vmem:[%s480 + $0x594] sm:$0xff]
        %v880 = vld [vmem:[%s480 + $0x59c] sm:$0xf]
        %v881 = vld [vmem:[%s480 + $0x5a0] sm:$0xff]
        %v882 = vld [vmem:[%s480 + $0x5a8] sm:$0xff]
        %v883 = vld [vmem:[%s480 + $0x5b0] sm:$0xff]
        %v884 = vld [vmem:[%s480 + $0x5b8] sm:$0xff]
        %v885 = vld [vmem:[%s480 + $0x5c0] sm:$0xf]
        %v886 = vld [vmem:[%s480 + $0x5c4] sm:$0xff]
        %v887 = vld [vmem:[%s480 + $0x5cc] sm:$0xff]
        %v888 = vld [vmem:[%s480 + $0x5d4] sm:$0xff]
        %v889 = vld [vmem:[%s480 + $0x5dc] sm:$0xff]
        %v890 = vld [vmem:[%s480 + $0x5e4] sm:$0xf]
        %v891 = vld [vmem:[%s480 + $0x5e8] sm:$0xff]
        %v892 = vld [vmem:[%s480 + $0x5f0] sm:$0xff]
        %v893 = vld [vmem:[%s480 + $0x5f8] sm:$0xff]
        %v894 = vld [vmem:[%s480 + $0x600] sm:$0xff]
        %v895 = vld [vmem:[%s480 + $0x608] sm:$0xf]
        %v896 = vld [vmem:[%s480 + $0x60c] sm:$0xff]
        %v897 = vld [vmem:[%s480 + $0x614] sm:$0xff]
        %v898 = vld [vmem:[%s480 + $0x61c] sm:$0xff]
        %v899 = vld [vmem:[%s480 + $0x624] sm:$0xff]
        %v900 = vld [vmem:[%s480 + $0x62c] sm:$0xf]
        %v901 = vld [vmem:[%s480 + $0x630] sm:$0xff]
        %v902 = vld [vmem:[%s480 + $0x638] sm:$0xff]
        %v903 = vld [vmem:[%s480 + $0x640] sm:$0xff]
        %v904 = vld [vmem:[%s480 + $0x648] sm:$0xff]
        %v905 = vld [vmem:[%s480 + $0x650] sm:$0xf]
        %v906 = vld [vmem:[%s480 + $0x654] sm:$0xff]
        %v907 = vld [vmem:[%s480 + $0x65c] sm:$0xff]
        %v908 = vld [vmem:[%s480 + $0x664] sm:$0xff]
        %v909 = vld [vmem:[%s480 + $0x66c] sm:$0xff]
        %v910 = vld [vmem:[%s480 + $0x674] sm:$0xf]
        %v911 = vld [vmem:[%s480 + $0x678] sm:$0xff]
        %v912 = vld [vmem:[%s480 + $0x680] sm:$0xff]
        %v913 = vld [vmem:[%s480 + $0x688] sm:$0xff]
        %v914 = vld [vmem:[%s480 + $0x690] sm:$0xff]
        %v915 = vld [vmem:[%s480 + $0x698] sm:$0xf]
        %v916 = vld [vmem:[%s480 + $0x69c] sm:$0xff]
        %v917 = vld [vmem:[%s480 + $0x6a4] sm:$0xff]
        %v918 = vld [vmem:[%s480 + $0x6ac] sm:$0xff]
        %v919 = vld [vmem:[%s480 + $0x6b4] sm:$0xff]
        %v920 = vld [vmem:[%s480 + $0x6bc] sm:$0xf]
        %v921 = vld [vmem:[%s498] sm:$0xff]
        %v922 = vld [vmem:[%s498 + $0x8] sm:$0x1]
        %v925 = vlaneseq
        %v926 = vshrl.u32 %v925, 7
        %v927 = vsub.s32 0, %v926
        %v928 = vrot.slane %v921, %v927
        %v929 = vlaneseq
        %v930 = vshrl.u32 %v929, 7
        %v931 = vsub.s32 1, %v930
        %v932 = vrot.slane %v921, %v931
        %v933 = vlaneseq
        %v934 = vshrl.u32 %v933, 7
        %v935 = vsub.s32 2, %v934
        %v936 = vrot.slane %v921, %v935
        %v937 = vlaneseq
        %v938 = vshrl.u32 %v937, 7
        %v939 = vsub.s32 3, %v938
        %v940 = vrot.slane %v921, %v939
        %v941 = vlaneseq
        %v942 = vshrl.u32 %v941, 7
        %v943 = vsub.s32 4, %v942
        %v944 = vrot.slane %v921, %v943
        %v945 = vlaneseq
        %v946 = vshrl.u32 %v945, 7
        %v947 = vsub.s32 5, %v946
        %v948 = vrot.slane %v921, %v947
        %v949 = vlaneseq
        %v950 = vshrl.u32 %v949, 7
        %v951 = vsub.s32 6, %v950
        %v952 = vrot.slane %v921, %v951
        %v953 = vlaneseq
        %v954 = vshrl.u32 %v953, 7
        %v955 = vsub.s32 7, %v954
        %v956 = vrot.slane %v921, %v955
        %v957 = vlaneseq
        %v958 = vshrl.u32 %v957, 7
        %v959 = vsub.s32 0, %v958
        %v960 = vrot.slane %v922, %v959
        %v1210 = vunpack.c.l.b16 %v681
        %v1211 = vunpack.c.h.b16 %v681
        %v1212 = vunpack.c.l.b16 %v682
        %v1213 = vunpack.c.h.b16 %v682
        %v1214 = vunpack.c.l.b16 %v683
        %v1215 = vunpack.c.h.b16 %v683
        %v1216 = vunpack.c.l.b16 %v684
        %v1217 = vunpack.c.h.b16 %v684
        %v1218 = vunpack.c.l.b16 %v685
        %v1219 = vunpack.c.l.b16 %v686
        %v1220 = vunpack.c.h.b16 %v686
        %v1221 = vunpack.c.l.b16 %v687
        %v1222 = vunpack.c.h.b16 %v687
        %v1223 = vunpack.c.l.b16 %v688
        %v1224 = vunpack.c.h.b16 %v688
        %v1225 = vunpack.c.l.b16 %v689
        %v1226 = vunpack.c.h.b16 %v689
        %v1227 = vunpack.c.l.b16 %v690
        %v1228 = vunpack.c.l.b16 %v691
        %v1229 = vunpack.c.h.b16 %v691
        %v1230 = vunpack.c.l.b16 %v692
        %v1231 = vunpack.c.h.b16 %v692
        %v1232 = vunpack.c.l.b16 %v693
        %v1233 = vunpack.c.h.b16 %v693
        %v1234 = vunpack.c.l.b16 %v694
        %v1235 = vunpack.c.h.b16 %v694
        %v1236 = vunpack.c.l.b16 %v695
        %v1237 = vunpack.c.l.b16 %v696
        %v1238 = vunpack.c.h.b16 %v696
        %v1239 = vunpack.c.l.b16 %v697
        %v1240 = vunpack.c.h.b16 %v697
        %v1241 = vunpack.c.l.b16 %v698
        %v1242 = vunpack.c.h.b16 %v698
        %v1243 = vunpack.c.l.b16 %v699
        %v1244 = vunpack.c.h.b16 %v699
        %v1245 = vunpack.c.l.b16 %v700
        %v1246 = vunpack.c.l.b16 %v701
        %v1247 = vunpack.c.h.b16 %v701
        %v1248 = vunpack.c.l.b16 %v702
        %v1249 = vunpack.c.h.b16 %v702
        %v1250 = vunpack.c.l.b16 %v703
        %v1251 = vunpack.c.h.b16 %v703
        %v1252 = vunpack.c.l.b16 %v704
        %v1253 = vunpack.c.h.b16 %v704
        %v1254 = vunpack.c.l.b16 %v705
        %v1255 = vunpack.c.l.b16 %v706
        %v1256 = vunpack.c.h.b16 %v706
        %v1257 = vunpack.c.l.b16 %v707
        %v1258 = vunpack.c.h.b16 %v707
        %v1259 = vunpack.c.l.b16 %v708
        %v1260 = vunpack.c.h.b16 %v708
        %v1261 = vunpack.c.l.b16 %v709
        %v1262 = vunpack.c.h.b16 %v709
        %v1263 = vunpack.c.l.b16 %v710
        %v1264 = vunpack.c.l.b16 %v711
        %v1265 = vunpack.c.h.b16 %v711
        %v1266 = vunpack.c.l.b16 %v712
        %v1267 = vunpack.c.h.b16 %v712
        %v1268 = vunpack.c.l.b16 %v713
        %v1269 = vunpack.c.h.b16 %v713
        %v1270 = vunpack.c.l.b16 %v714
        %v1271 = vunpack.c.h.b16 %v714
        %v1272 = vunpack.c.l.b16 %v715
        %v1273 = vunpack.c.l.b16 %v716
        %v1274 = vunpack.c.h.b16 %v716
        %v1275 = vunpack.c.l.b16 %v717
        %v1276 = vunpack.c.h.b16 %v717
        %v1277 = vunpack.c.l.b16 %v718
        %v1278 = vunpack.c.h.b16 %v718
        %v1279 = vunpack.c.l.b16 %v719
        %v1280 = vunpack.c.h.b16 %v719
        %v1281 = vunpack.c.l.b16 %v720
        %v1282 = vunpack.c.l.b16 %v721
        %v1283 = vunpack.c.h.b16 %v721
        %v1284 = vunpack.c.l.b16 %v722
        %v1285 = vunpack.c.h.b16 %v722
        %v1286 = vunpack.c.l.b16 %v723
        %v1287 = vunpack.c.h.b16 %v723
        %v1288 = vunpack.c.l.b16 %v724
        %v1289 = vunpack.c.h.b16 %v724
        %v1290 = vunpack.c.l.b16 %v725
        %v1291 = vunpack.c.l.b16 %v726
        %v1292 = vunpack.c.h.b16 %v726
        %v1293 = vunpack.c.l.b16 %v727
        %v1294 = vunpack.c.h.b16 %v727
        %v1295 = vunpack.c.l.b16 %v728
        %v1296 = vunpack.c.h.b16 %v728
        %v1297 = vunpack.c.l.b16 %v729
        %v1298 = vunpack.c.h.b16 %v729
        %v1299 = vunpack.c.l.b16 %v730
        %v1300 = vunpack.c.l.b16 %v731
        %v1301 = vunpack.c.h.b16 %v731
        %v1302 = vunpack.c.l.b16 %v732
        %v1303 = vunpack.c.h.b16 %v732
        %v1304 = vunpack.c.l.b16 %v733
        %v1305 = vunpack.c.h.b16 %v733
        %v1306 = vunpack.c.l.b16 %v734
        %v1307 = vunpack.c.h.b16 %v734
        %v1308 = vunpack.c.l.b16 %v735
        %v1309 = vunpack.c.l.b16 %v736
        %v1310 = vunpack.c.h.b16 %v736
        %v1311 = vunpack.c.l.b16 %v737
        %v1312 = vunpack.c.h.b16 %v737
        %v1313 = vunpack.c.l.b16 %v738
        %v1314 = vunpack.c.h.b16 %v738
        %v1315 = vunpack.c.l.b16 %v739
        %v1316 = vunpack.c.h.b16 %v739
        %v1317 = vunpack.c.l.b16 %v740
        %v1318 = vunpack.c.l.b16 %v741
        %v1319 = vunpack.c.h.b16 %v741
        %v1320 = vunpack.c.l.b16 %v742
        %v1321 = vunpack.c.h.b16 %v742
        %v1322 = vunpack.c.l.b16 %v743
        %v1323 = vunpack.c.h.b16 %v743
        %v1324 = vunpack.c.l.b16 %v744
        %v1325 = vunpack.c.h.b16 %v744
        %v1326 = vunpack.c.l.b16 %v745
        %v1327 = vunpack.c.l.b16 %v746
        %v1328 = vunpack.c.h.b16 %v746
        %v1329 = vunpack.c.l.b16 %v747
        %v1330 = vunpack.c.h.b16 %v747
        %v1331 = vunpack.c.l.b16 %v748
        %v1332 = vunpack.c.h.b16 %v748
        %v1333 = vunpack.c.l.b16 %v749
        %v1334 = vunpack.c.h.b16 %v749
        %v1335 = vunpack.c.l.b16 %v750
        %v1336 = vunpack.c.l.b16 %v751
        %v1337 = vunpack.c.h.b16 %v751
        %v1338 = vunpack.c.l.b16 %v752
        %v1339 = vunpack.c.h.b16 %v752
        %v1340 = vunpack.c.l.b16 %v753
        %v1341 = vunpack.c.h.b16 %v753
        %v1342 = vunpack.c.l.b16 %v754
        %v1343 = vunpack.c.h.b16 %v754
        %v1344 = vunpack.c.l.b16 %v755
        %v1345 = vunpack.c.l.b16 %v756
        %v1346 = vunpack.c.h.b16 %v756
        %v1347 = vunpack.c.l.b16 %v757
        %v1348 = vunpack.c.h.b16 %v757
        %v1349 = vunpack.c.l.b16 %v758
        %v1350 = vunpack.c.h.b16 %v758
        %v1351 = vunpack.c.l.b16 %v759
        %v1352 = vunpack.c.h.b16 %v759
        %v1353 = vunpack.c.l.b16 %v760
        %v1354 = vunpack.c.l.b16 %v761
        %v1355 = vunpack.c.h.b16 %v761
        %v1356 = vunpack.c.l.b16 %v762
        %v1357 = vunpack.c.h.b16 %v762
        %v1358 = vunpack.c.l.b16 %v763
        %v1359 = vunpack.c.h.b16 %v763
        %v1360 = vunpack.c.l.b16 %v764
        %v1361 = vunpack.c.h.b16 %v764
        %v1362 = vunpack.c.l.b16 %v765
        %v1363 = vunpack.c.l.b16 %v766
        %v1364 = vunpack.c.h.b16 %v766
        %v1365 = vunpack.c.l.b16 %v767
        %v1366 = vunpack.c.h.b16 %v767
        %v1367 = vunpack.c.l.b16 %v768
        %v1368 = vunpack.c.h.b16 %v768
        %v1369 = vunpack.c.l.b16 %v769
        %v1370 = vunpack.c.h.b16 %v769
        %v1371 = vunpack.c.l.b16 %v770
        %v1372 = vunpack.c.l.b16 %v771
        %v1373 = vunpack.c.h.b16 %v771
        %v1374 = vunpack.c.l.b16 %v772
        %v1375 = vunpack.c.h.b16 %v772
        %v1376 = vunpack.c.l.b16 %v773
        %v1377 = vunpack.c.h.b16 %v773
        %v1378 = vunpack.c.l.b16 %v774
        %v1379 = vunpack.c.h.b16 %v774
        %v1380 = vunpack.c.l.b16 %v775
        %v1381 = vunpack.c.l.b16 %v776
        %v1382 = vunpack.c.h.b16 %v776
        %v1383 = vunpack.c.l.b16 %v777
        %v1384 = vunpack.c.h.b16 %v777
        %v1385 = vunpack.c.l.b16 %v778
        %v1386 = vunpack.c.h.b16 %v778
        %v1387 = vunpack.c.l.b16 %v779
        %v1388 = vunpack.c.h.b16 %v779
        %v1389 = vunpack.c.l.b16 %v780
        %v1390 = vunpack.c.l.b16 %v781
        %v1391 = vunpack.c.h.b16 %v781
        %v1392 = vunpack.c.l.b16 %v782
        %v1393 = vunpack.c.h.b16 %v782
        %v1394 = vunpack.c.l.b16 %v783
        %v1395 = vunpack.c.h.b16 %v783
        %v1396 = vunpack.c.l.b16 %v784
        %v1397 = vunpack.c.h.b16 %v784
        %v1398 = vunpack.c.l.b16 %v785
        %v1399 = vunpack.c.l.b16 %v786
        %v1400 = vunpack.c.h.b16 %v786
        %v1401 = vunpack.c.l.b16 %v787
        %v1402 = vunpack.c.h.b16 %v787
        %v1403 = vunpack.c.l.b16 %v788
        %v1404 = vunpack.c.h.b16 %v788
        %v1405 = vunpack.c.l.b16 %v789
        %v1406 = vunpack.c.h.b16 %v789
        %v1407 = vunpack.c.l.b16 %v790
        %v1408 = vunpack.c.l.b16 %v791
        %v1409 = vunpack.c.h.b16 %v791
        %v1410 = vunpack.c.l.b16 %v792
        %v1411 = vunpack.c.h.b16 %v792
        %v1412 = vunpack.c.l.b16 %v793
        %v1413 = vunpack.c.h.b16 %v793
        %v1414 = vunpack.c.l.b16 %v794
        %v1415 = vunpack.c.h.b16 %v794
        %v1416 = vunpack.c.l.b16 %v795
        %v1417 = vunpack.c.l.b16 %v796
        %v1418 = vunpack.c.h.b16 %v796
        %v1419 = vunpack.c.l.b16 %v797
        %v1420 = vunpack.c.h.b16 %v797
        %v1421 = vunpack.c.l.b16 %v798
        %v1422 = vunpack.c.h.b16 %v798
        %v1423 = vunpack.c.l.b16 %v799
        %v1424 = vunpack.c.h.b16 %v799
        %v1425 = vunpack.c.l.b16 %v800
        %v1426 = vunpack.c.l.b16 %v801
        %v1427 = vunpack.c.h.b16 %v801
        %v1428 = vunpack.c.l.b16 %v802
        %v1429 = vunpack.c.h.b16 %v802
        %v1430 = vunpack.c.l.b16 %v803
        %v1431 = vunpack.c.h.b16 %v803
        %v1432 = vunpack.c.l.b16 %v804
        %v1433 = vunpack.c.h.b16 %v804
        %v1434 = vunpack.c.l.b16 %v805
        %v1435 = vunpack.c.l.b16 %v806
        %v1436 = vunpack.c.h.b16 %v806
        %v1437 = vunpack.c.l.b16 %v807
        %v1438 = vunpack.c.h.b16 %v807
        %v1439 = vunpack.c.l.b16 %v808
        %v1440 = vunpack.c.h.b16 %v808
        %v1441 = vunpack.c.l.b16 %v809
        %v1442 = vunpack.c.h.b16 %v809
        %v1443 = vunpack.c.l.b16 %v810
        %v1444 = vunpack.c.l.b16 %v811
        %v1445 = vunpack.c.h.b16 %v811
        %v1446 = vunpack.c.l.b16 %v812
        %v1447 = vunpack.c.h.b16 %v812
        %v1448 = vunpack.c.l.b16 %v813
        %v1449 = vunpack.c.h.b16 %v813
        %v1450 = vunpack.c.l.b16 %v814
        %v1451 = vunpack.c.h.b16 %v814
        %v1452 = vunpack.c.l.b16 %v815
        %v1453 = vunpack.c.l.b16 %v816
        %v1454 = vunpack.c.h.b16 %v816
        %v1455 = vunpack.c.l.b16 %v817
        %v1456 = vunpack.c.h.b16 %v817
        %v1457 = vunpack.c.l.b16 %v818
        %v1458 = vunpack.c.h.b16 %v818
        %v1459 = vunpack.c.l.b16 %v819
        %v1460 = vunpack.c.h.b16 %v819
        %v1461 = vunpack.c.l.b16 %v820
        %v1462 = vunpack.c.l.b16 %v821
        %v1463 = vunpack.c.h.b16 %v821
        %v1464 = vunpack.c.l.b16 %v822
        %v1465 = vunpack.c.h.b16 %v822
        %v1466 = vunpack.c.l.b16 %v823
        %v1467 = vunpack.c.h.b16 %v823
        %v1468 = vunpack.c.l.b16 %v824
        %v1469 = vunpack.c.h.b16 %v824
        %v1470 = vunpack.c.l.b16 %v825
        %v1471 = vunpack.c.l.b16 %v826
        %v1472 = vunpack.c.h.b16 %v826
        %v1473 = vunpack.c.l.b16 %v827
        %v1474 = vunpack.c.h.b16 %v827
        %v1475 = vunpack.c.l.b16 %v828
        %v1476 = vunpack.c.h.b16 %v828
        %v1477 = vunpack.c.l.b16 %v829
        %v1478 = vunpack.c.h.b16 %v829
        %v1479 = vunpack.c.l.b16 %v830
        %v1480 = vunpack.c.l.b16 %v831
        %v1481 = vunpack.c.h.b16 %v831
        %v1482 = vunpack.c.l.b16 %v832
        %v1483 = vunpack.c.h.b16 %v832
        %v1484 = vunpack.c.l.b16 %v833
        %v1485 = vunpack.c.h.b16 %v833
        %v1486 = vunpack.c.l.b16 %v834
        %v1487 = vunpack.c.h.b16 %v834
        %v1488 = vunpack.c.l.b16 %v835
        %v1489 = vunpack.c.l.b16 %v836
        %v1490 = vunpack.c.h.b16 %v836
        %v1491 = vunpack.c.l.b16 %v837
        %v1492 = vunpack.c.h.b16 %v837
        %v1493 = vunpack.c.l.b16 %v838
        %v1494 = vunpack.c.h.b16 %v838
        %v1495 = vunpack.c.l.b16 %v839
        %v1496 = vunpack.c.h.b16 %v839
        %v1497 = vunpack.c.l.b16 %v840
        %v1498 = vunpack.c.l.b16 %v841
        %v1499 = vunpack.c.h.b16 %v841
        %v1500 = vunpack.c.l.b16 %v842
        %v1501 = vunpack.c.h.b16 %v842
        %v1502 = vunpack.c.l.b16 %v843
        %v1503 = vunpack.c.h.b16 %v843
        %v1504 = vunpack.c.l.b16 %v844
        %v1505 = vunpack.c.h.b16 %v844
        %v1506 = vunpack.c.l.b16 %v845
        %v1507 = vunpack.c.l.b16 %v846
        %v1508 = vunpack.c.h.b16 %v846
        %v1509 = vunpack.c.l.b16 %v847
        %v1510 = vunpack.c.h.b16 %v847
        %v1511 = vunpack.c.l.b16 %v848
        %v1512 = vunpack.c.h.b16 %v848
        %v1513 = vunpack.c.l.b16 %v849
        %v1514 = vunpack.c.h.b16 %v849
        %v1515 = vunpack.c.l.b16 %v850
        %v1516 = vunpack.c.l.b16 %v851
        %v1517 = vunpack.c.h.b16 %v851
        %v1518 = vunpack.c.l.b16 %v852
        %v1519 = vunpack.c.h.b16 %v852
        %v1520 = vunpack.c.l.b16 %v853
        %v1521 = vunpack.c.h.b16 %v853
        %v1522 = vunpack.c.l.b16 %v854
        %v1523 = vunpack.c.h.b16 %v854
        %v1524 = vunpack.c.l.b16 %v855
        %v1525 = vunpack.c.l.b16 %v856
        %v1526 = vunpack.c.h.b16 %v856
        %v1527 = vunpack.c.l.b16 %v857
        %v1528 = vunpack.c.h.b16 %v857
        %v1529 = vunpack.c.l.b16 %v858
        %v1530 = vunpack.c.h.b16 %v858
        %v1531 = vunpack.c.l.b16 %v859
        %v1532 = vunpack.c.h.b16 %v859
        %v1533 = vunpack.c.l.b16 %v860
        %v1534 = vunpack.c.l.b16 %v861
        %v1535 = vunpack.c.h.b16 %v861
        %v1536 = vunpack.c.l.b16 %v862
        %v1537 = vunpack.c.h.b16 %v862
        %v1538 = vunpack.c.l.b16 %v863
        %v1539 = vunpack.c.h.b16 %v863
        %v1540 = vunpack.c.l.b16 %v864
        %v1541 = vunpack.c.h.b16 %v864
        %v1542 = vunpack.c.l.b16 %v865
        %v1543 = vunpack.c.l.b16 %v866
        %v1544 = vunpack.c.h.b16 %v866
        %v1545 = vunpack.c.l.b16 %v867
        %v1546 = vunpack.c.h.b16 %v867
        %v1547 = vunpack.c.l.b16 %v868
        %v1548 = vunpack.c.h.b16 %v868
        %v1549 = vunpack.c.l.b16 %v869
        %v1550 = vunpack.c.h.b16 %v869
        %v1551 = vunpack.c.l.b16 %v870
        %v1552 = vunpack.c.l.b16 %v871
        %v1553 = vunpack.c.h.b16 %v871
        %v1554 = vunpack.c.l.b16 %v872
        %v1555 = vunpack.c.h.b16 %v872
        %v1556 = vunpack.c.l.b16 %v873
        %v1557 = vunpack.c.h.b16 %v873
        %v1558 = vunpack.c.l.b16 %v874
        %v1559 = vunpack.c.h.b16 %v874
        %v1560 = vunpack.c.l.b16 %v875
        %v1561 = vunpack.c.l.b16 %v876
        %v1562 = vunpack.c.h.b16 %v876
        %v1563 = vunpack.c.l.b16 %v877
        %v1564 = vunpack.c.h.b16 %v877
        %v1565 = vunpack.c.l.b16 %v878
        %v1566 = vunpack.c.h.b16 %v878
        %v1567 = vunpack.c.l.b16 %v879
        %v1568 = vunpack.c.h.b16 %v879
        %v1569 = vunpack.c.l.b16 %v880
        %v1570 = vunpack.c.l.b16 %v881
        %v1571 = vunpack.c.h.b16 %v881
        %v1572 = vunpack.c.l.b16 %v882
        %v1573 = vunpack.c.h.b16 %v882
        %v1574 = vunpack.c.l.b16 %v883
        %v1575 = vunpack.c.h.b16 %v883
        %v1576 = vunpack.c.l.b16 %v884
        %v1577 = vunpack.c.h.b16 %v884
        %v1578 = vunpack.c.l.b16 %v885
        %v1579 = vunpack.c.l.b16 %v886
        %v1580 = vunpack.c.h.b16 %v886
        %v1581 = vunpack.c.l.b16 %v887
        %v1582 = vunpack.c.h.b16 %v887
        %v1583 = vunpack.c.l.b16 %v888
        %v1584 = vunpack.c.h.b16 %v888
        %v1585 = vunpack.c.l.b16 %v889
        %v1586 = vunpack.c.h.b16 %v889
        %v1587 = vunpack.c.l.b16 %v890
        %v1588 = vunpack.c.l.b16 %v891
        %v1589 = vunpack.c.h.b16 %v891
        %v1590 = vunpack.c.l.b16 %v892
        %v1591 = vunpack.c.h.b16 %v892
        %v1592 = vunpack.c.l.b16 %v893
        %v1593 = vunpack.c.h.b16 %v893
        %v1594 = vunpack.c.l.b16 %v894
        %v1595 = vunpack.c.h.b16 %v894
        %v1596 = vunpack.c.l.b16 %v895
        %v1597 = vunpack.c.l.b16 %v896
        %v1598 = vunpack.c.h.b16 %v896
        %v1599 = vunpack.c.l.b16 %v897
        %v1600 = vunpack.c.h.b16 %v897
        %v1601 = vunpack.c.l.b16 %v898
        %v1602 = vunpack.c.h.b16 %v898
        %v1603 = vunpack.c.l.b16 %v899
        %v1604 = vunpack.c.h.b16 %v899
        %v1605 = vunpack.c.l.b16 %v900
        %v1606 = vunpack.c.l.b16 %v901
        %v1607 = vunpack.c.h.b16 %v901
        %v1608 = vunpack.c.l.b16 %v902
        %v1609 = vunpack.c.h.b16 %v902
        %v1610 = vunpack.c.l.b16 %v903
        %v1611 = vunpack.c.h.b16 %v903
        %v1612 = vunpack.c.l.b16 %v904
        %v1613 = vunpack.c.h.b16 %v904
        %v1614 = vunpack.c.l.b16 %v905
        %v1615 = vunpack.c.l.b16 %v906
        %v1616 = vunpack.c.h.b16 %v906
        %v1617 = vunpack.c.l.b16 %v907
        %v1618 = vunpack.c.h.b16 %v907
        %v1619 = vunpack.c.l.b16 %v908
        %v1620 = vunpack.c.h.b16 %v908
        %v1621 = vunpack.c.l.b16 %v909
        %v1622 = vunpack.c.h.b16 %v909
        %v1623 = vunpack.c.l.b16 %v910
        %v1624 = vunpack.c.l.b16 %v911
        %v1625 = vunpack.c.h.b16 %v911
        %v1626 = vunpack.c.l.b16 %v912
        %v1627 = vunpack.c.h.b16 %v912
        %v1628 = vunpack.c.l.b16 %v913
        %v1629 = vunpack.c.h.b16 %v913
        %v1630 = vunpack.c.l.b16 %v914
        %v1631 = vunpack.c.h.b16 %v914
        %v1632 = vunpack.c.l.b16 %v915
        %v1633 = vunpack.c.l.b16 %v916
        %v1634 = vunpack.c.h.b16 %v916
        %v1635 = vunpack.c.l.b16 %v917
        %v1636 = vunpack.c.h.b16 %v917
        %v1637 = vunpack.c.l.b16 %v918
        %v1638 = vunpack.c.h.b16 %v918
        %v1639 = vunpack.c.l.b16 %v919
        %v1640 = vunpack.c.h.b16 %v919
        %v1641 = vunpack.c.l.b16 %v920
        %v1642 = vpack.c.b16 %v1219, %v1210
        %v1643 = vpack.c.b16 %v1220, %v1211
        %v1644 = vpack.c.b16 %v1221, %v1212
        %v1645 = vpack.c.b16 %v1222, %v1213
        %v1646 = vpack.c.b16 %v1223, %v1214
        %v1647 = vpack.c.b16 %v1224, %v1215
        %v1648 = vpack.c.b16 %v1225, %v1216
        %v1649 = vpack.c.b16 %v1226, %v1217
        %v1650 = vpack.c.b16 %v1227, %v1218
        %v1651 = vpack.c.b16 %v1237, %v1228
        %v1652 = vpack.c.b16 %v1238, %v1229
        %v1653 = vpack.c.b16 %v1239, %v1230
        %v1654 = vpack.c.b16 %v1240, %v1231
        %v1655 = vpack.c.b16 %v1241, %v1232
        %v1656 = vpack.c.b16 %v1242, %v1233
        %v1657 = vpack.c.b16 %v1243, %v1234
        %v1658 = vpack.c.b16 %v1244, %v1235
        %v1659 = vpack.c.b16 %v1245, %v1236
        %v1660 = vpack.c.b16 %v1255, %v1246
        %v1661 = vpack.c.b16 %v1256, %v1247
        %v1662 = vpack.c.b16 %v1257, %v1248
        %v1663 = vpack.c.b16 %v1258, %v1249
        %v1664 = vpack.c.b16 %v1259, %v1250
        %v1665 = vpack.c.b16 %v1260, %v1251
        %v1666 = vpack.c.b16 %v1261, %v1252
        %v1667 = vpack.c.b16 %v1262, %v1253
        %v1668 = vpack.c.b16 %v1263, %v1254
        %v1669 = vpack.c.b16 %v1273, %v1264
        %v1670 = vpack.c.b16 %v1274, %v1265
        %v1671 = vpack.c.b16 %v1275, %v1266
        %v1672 = vpack.c.b16 %v1276, %v1267
        %v1673 = vpack.c.b16 %v1277, %v1268
        %v1674 = vpack.c.b16 %v1278, %v1269
        %v1675 = vpack.c.b16 %v1279, %v1270
        %v1676 = vpack.c.b16 %v1280, %v1271
        %v1677 = vpack.c.b16 %v1281, %v1272
        %v1678 = vpack.c.b16 %v1291, %v1282
        %v1679 = vpack.c.b16 %v1292, %v1283
        %v1680 = vpack.c.b16 %v1293, %v1284
        %v1681 = vpack.c.b16 %v1294, %v1285
        %v1682 = vpack.c.b16 %v1295, %v1286
        %v1683 = vpack.c.b16 %v1296, %v1287
        %v1684 = vpack.c.b16 %v1297, %v1288
        %v1685 = vpack.c.b16 %v1298, %v1289
        %v1686 = vpack.c.b16 %v1299, %v1290
        %v1687 = vpack.c.b16 %v1309, %v1300
        %v1688 = vpack.c.b16 %v1310, %v1301
        %v1689 = vpack.c.b16 %v1311, %v1302
        %v1690 = vpack.c.b16 %v1312, %v1303
        %v1691 = vpack.c.b16 %v1313, %v1304
        %v1692 = vpack.c.b16 %v1314, %v1305
        %v1693 = vpack.c.b16 %v1315, %v1306
        %v1694 = vpack.c.b16 %v1316, %v1307
        %v1695 = vpack.c.b16 %v1317, %v1308
        %v1696 = vpack.c.b16 %v1327, %v1318
        %v1697 = vpack.c.b16 %v1328, %v1319
        %v1698 = vpack.c.b16 %v1329, %v1320
        %v1699 = vpack.c.b16 %v1330, %v1321
        %v1700 = vpack.c.b16 %v1331, %v1322
        %v1701 = vpack.c.b16 %v1332, %v1323
        %v1702 = vpack.c.b16 %v1333, %v1324
        %v1703 = vpack.c.b16 %v1334, %v1325
        %v1704 = vpack.c.b16 %v1335, %v1326
        %v1705 = vpack.c.b16 %v1345, %v1336
        %v1706 = vpack.c.b16 %v1346, %v1337
        %v1707 = vpack.c.b16 %v1347, %v1338
        %v1708 = vpack.c.b16 %v1348, %v1339
        %v1709 = vpack.c.b16 %v1349, %v1340
        %v1710 = vpack.c.b16 %v1350, %v1341
        %v1711 = vpack.c.b16 %v1351, %v1342
        %v1712 = vpack.c.b16 %v1352, %v1343
        %v1713 = vpack.c.b16 %v1353, %v1344
        %v1714 = vpack.c.b16 %v1363, %v1354
        %v1715 = vpack.c.b16 %v1364, %v1355
        %v1716 = vpack.c.b16 %v1365, %v1356
        %v1717 = vpack.c.b16 %v1366, %v1357
        %v1718 = vpack.c.b16 %v1367, %v1358
        %v1719 = vpack.c.b16 %v1368, %v1359
        %v1720 = vpack.c.b16 %v1369, %v1360
        %v1721 = vpack.c.b16 %v1370, %v1361
        %v1722 = vpack.c.b16 %v1371, %v1362
        %v1723 = vpack.c.b16 %v1381, %v1372
        %v1724 = vpack.c.b16 %v1382, %v1373
        %v1725 = vpack.c.b16 %v1383, %v1374
        %v1726 = vpack.c.b16 %v1384, %v1375
        %v1727 = vpack.c.b16 %v1385, %v1376
        %v1728 = vpack.c.b16 %v1386, %v1377
        %v1729 = vpack.c.b16 %v1387, %v1378
        %v1730 = vpack.c.b16 %v1388, %v1379
        %v1731 = vpack.c.b16 %v1389, %v1380
        %v1732 = vpack.c.b16 %v1399, %v1390
        %v1733 = vpack.c.b16 %v1400, %v1391
        %v1734 = vpack.c.b16 %v1401, %v1392
        %v1735 = vpack.c.b16 %v1402, %v1393
        %v1736 = vpack.c.b16 %v1403, %v1394
        %v1737 = vpack.c.b16 %v1404, %v1395
        %v1738 = vpack.c.b16 %v1405, %v1396
        %v1739 = vpack.c.b16 %v1406, %v1397
        %v1740 = vpack.c.b16 %v1407, %v1398
        %v1741 = vpack.c.b16 %v1417, %v1408
        %v1742 = vpack.c.b16 %v1418, %v1409
        %v1743 = vpack.c.b16 %v1419, %v1410
        %v1744 = vpack.c.b16 %v1420, %v1411
        %v1745 = vpack.c.b16 %v1421, %v1412
        %v1746 = vpack.c.b16 %v1422, %v1413
        %v1747 = vpack.c.b16 %v1423, %v1414
        %v1748 = vpack.c.b16 %v1424, %v1415
        %v1749 = vpack.c.b16 %v1425, %v1416
        %v1750 = vpack.c.b16 %v1435, %v1426
        %v1751 = vpack.c.b16 %v1436, %v1427
        %v1752 = vpack.c.b16 %v1437, %v1428
        %v1753 = vpack.c.b16 %v1438, %v1429
        %v1754 = vpack.c.b16 %v1439, %v1430
        %v1755 = vpack.c.b16 %v1440, %v1431
        %v1756 = vpack.c.b16 %v1441, %v1432
        %v1757 = vpack.c.b16 %v1442, %v1433
        %v1758 = vpack.c.b16 %v1443, %v1434
        %v1759 = vpack.c.b16 %v1453, %v1444
        %v1760 = vpack.c.b16 %v1454, %v1445
        %v1761 = vpack.c.b16 %v1455, %v1446
        %v1762 = vpack.c.b16 %v1456, %v1447
        %v1763 = vpack.c.b16 %v1457, %v1448
        %v1764 = vpack.c.b16 %v1458, %v1449
        %v1765 = vpack.c.b16 %v1459, %v1450
        %v1766 = vpack.c.b16 %v1460, %v1451
        %v1767 = vpack.c.b16 %v1461, %v1452
        %v1768 = vpack.c.b16 %v1471, %v1462
        %v1769 = vpack.c.b16 %v1472, %v1463
        %v1770 = vpack.c.b16 %v1473, %v1464
        %v1771 = vpack.c.b16 %v1474, %v1465
        %v1772 = vpack.c.b16 %v1475, %v1466
        %v1773 = vpack.c.b16 %v1476, %v1467
        %v1774 = vpack.c.b16 %v1477, %v1468
        %v1775 = vpack.c.b16 %v1478, %v1469
        %v1776 = vpack.c.b16 %v1479, %v1470
        %v1777 = vpack.c.b16 %v1489, %v1480
        %v1778 = vpack.c.b16 %v1490, %v1481
        %v1779 = vpack.c.b16 %v1491, %v1482
        %v1780 = vpack.c.b16 %v1492, %v1483
        %v1781 = vpack.c.b16 %v1493, %v1484
        %v1782 = vpack.c.b16 %v1494, %v1485
        %v1783 = vpack.c.b16 %v1495, %v1486
        %v1784 = vpack.c.b16 %v1496, %v1487
        %v1785 = vpack.c.b16 %v1497, %v1488
        %v1786 = vpack.c.b16 %v1507, %v1498
        %v1787 = vpack.c.b16 %v1508, %v1499
        %v1788 = vpack.c.b16 %v1509, %v1500
        %v1789 = vpack.c.b16 %v1510, %v1501
        %v1790 = vpack.c.b16 %v1511, %v1502
        %v1791 = vpack.c.b16 %v1512, %v1503
        %v1792 = vpack.c.b16 %v1513, %v1504
        %v1793 = vpack.c.b16 %v1514, %v1505
        %v1794 = vpack.c.b16 %v1515, %v1506
        %v1795 = vpack.c.b16 %v1525, %v1516
        %v1796 = vpack.c.b16 %v1526, %v1517
        %v1797 = vpack.c.b16 %v1527, %v1518
        %v1798 = vpack.c.b16 %v1528, %v1519
        %v1799 = vpack.c.b16 %v1529, %v1520
        %v1800 = vpack.c.b16 %v1530, %v1521
        %v1801 = vpack.c.b16 %v1531, %v1522
        %v1802 = vpack.c.b16 %v1532, %v1523
        %v1803 = vpack.c.b16 %v1533, %v1524
        %v1804 = vpack.c.b16 %v1543, %v1534
        %v1805 = vpack.c.b16 %v1544, %v1535
        %v1806 = vpack.c.b16 %v1545, %v1536
        %v1807 = vpack.c.b16 %v1546, %v1537
        %v1808 = vpack.c.b16 %v1547, %v1538
        %v1809 = vpack.c.b16 %v1548, %v1539
        %v1810 = vpack.c.b16 %v1549, %v1540
        %v1811 = vpack.c.b16 %v1550, %v1541
        %v1812 = vpack.c.b16 %v1551, %v1542
        %v1813 = vpack.c.b16 %v1561, %v1552
        %v1814 = vpack.c.b16 %v1562, %v1553
        %v1815 = vpack.c.b16 %v1563, %v1554
        %v1816 = vpack.c.b16 %v1564, %v1555
        %v1817 = vpack.c.b16 %v1565, %v1556
        %v1818 = vpack.c.b16 %v1566, %v1557
        %v1819 = vpack.c.b16 %v1567, %v1558
        %v1820 = vpack.c.b16 %v1568, %v1559
        %v1821 = vpack.c.b16 %v1569, %v1560
        %v1822 = vpack.c.b16 %v1579, %v1570
        %v1823 = vpack.c.b16 %v1580, %v1571
        %v1824 = vpack.c.b16 %v1581, %v1572
        %v1825 = vpack.c.b16 %v1582, %v1573
        %v1826 = vpack.c.b16 %v1583, %v1574
        %v1827 = vpack.c.b16 %v1584, %v1575
        %v1828 = vpack.c.b16 %v1585, %v1576
        %v1829 = vpack.c.b16 %v1586, %v1577
        %v1830 = vpack.c.b16 %v1587, %v1578
        %v1831 = vpack.c.b16 %v1597, %v1588
        %v1832 = vpack.c.b16 %v1598, %v1589
        %v1833 = vpack.c.b16 %v1599, %v1590
        %v1834 = vpack.c.b16 %v1600, %v1591
        %v1835 = vpack.c.b16 %v1601, %v1592
        %v1836 = vpack.c.b16 %v1602, %v1593
        %v1837 = vpack.c.b16 %v1603, %v1594
        %v1838 = vpack.c.b16 %v1604, %v1595
        %v1839 = vpack.c.b16 %v1605, %v1596
        %v1840 = vpack.c.b16 %v1615, %v1606
        %v1841 = vpack.c.b16 %v1616, %v1607
        %v1842 = vpack.c.b16 %v1617, %v1608
        %v1843 = vpack.c.b16 %v1618, %v1609
        %v1844 = vpack.c.b16 %v1619, %v1610
        %v1845 = vpack.c.b16 %v1620, %v1611
        %v1846 = vpack.c.b16 %v1621, %v1612
        %v1847 = vpack.c.b16 %v1622, %v1613
        %v1848 = vpack.c.b16 %v1623, %v1614
        %v1849 = vpack.c.b16 %v1633, %v1624
        %v1850 = vpack.c.b16 %v1634, %v1625
        %v1851 = vpack.c.b16 %v1635, %v1626
        %v1852 = vpack.c.b16 %v1636, %v1627
        %v1853 = vpack.c.b16 %v1637, %v1628
        %v1854 = vpack.c.b16 %v1638, %v1629
        %v1855 = vpack.c.b16 %v1639, %v1630
        %v1856 = vpack.c.b16 %v1640, %v1631
        %v1857 = vpack.c.b16 %v1641, %v1632
        %2074 = vmatprep.subr.bf16.mxu0 %v1643
        %2075 = vmatpush1.bf16.msra.mxu0 %v1642
        %2076 = vmatprep.subr.bf16.mxu0 %v1652
        %2077 = vmatpush1.bf16.msra.mxu0 %v1651
        %2078 = vmatprep.subr.bf16.mxu0 %v1661
        %2079 = vmatpush1.bf16.msra.mxu0 %v1660
        %2080 = vmatprep.subr.bf16.mxu0 %v1670
        %2081 = vmatpush1.bf16.msra.mxu0 %v1669
        %2082 = vmatprep.subr.bf16.mxu0 %v1679
        %2083 = vmatpush1.bf16.msra.mxu0 %v1678
        %2084 = vmatprep.subr.bf16.mxu0 %v1688
        %2085 = vmatpush1.bf16.msra.mxu0 %v1687
        %2086 = vmatprep.subr.bf16.mxu0 %v1697
        %2087 = vmatpush1.bf16.msra.mxu0 %v1696
        %2088 = vmatprep.subr.bf16.mxu0 %v1706
        %2089 = vmatpush1.bf16.msra.mxu0 %v1705
        %2090 = vmatprep.subr.bf16.mxu0 %v1715
        %2091 = vmatpush1.bf16.msra.mxu0 %v1714
        %2092 = vmatprep.subr.bf16.mxu0 %v1724
        %2093 = vmatpush1.bf16.msra.mxu0 %v1723
        %2094 = vmatprep.subr.bf16.mxu0 %v1733
        %2095 = vmatpush1.bf16.msra.mxu0 %v1732
        %2096 = vmatprep.subr.bf16.mxu0 %v1742
        %2097 = vmatpush1.bf16.msra.mxu0 %v1741
        %2098 = vmatprep.subr.bf16.mxu0 %v1751
        %2099 = vmatpush1.bf16.msra.mxu0 %v1750
        %2100 = vmatprep.subr.bf16.mxu0 %v1760
        %2101 = vmatpush1.bf16.msra.mxu0 %v1759
        %2102 = vmatprep.subr.bf16.mxu0 %v1769
        %2103 = vmatpush1.bf16.msra.mxu0 %v1768
        %2104 = vmatprep.subr.bf16.mxu0 %v1778
        %2105 = vmatpush1.bf16.msra.mxu0 %v1777
        %2106 = vmatprep.mubr.bf16.mxu0 %v670
        %2107 = vmatmul.mubr.bf16.gmra.mrb[0].mxu0 %v669
        %v2108 = vpop.f32.mrb[0].mxu0
        %v2109 = vadd.f32 %v928, %v2108
        %v2110 = vpop.f32.mrb[0].mxu0
        %v2111 = vadd.f32 %v932, %v2110
        %v2112 = vpop.f32.mrb[0].mxu0
        %v2113 = vadd.f32 %v928, %v2112
        %v2114 = vpop.f32.mrb[0].mxu0
        %v2115 = vadd.f32 %v932, %v2114
        %2116 = vmatprep.mubr.bf16.mxu0 %v673
        %2117 = vmatmul.mubr.bf16.gmra.mrb[0].mxu0 %v672
        %v2118 = vpop.f32.mrb[0].mxu0
        %v2119 = vadd.f32 %v928, %v2118
        %v2120 = vpop.f32.mrb[0].mxu0
        %v2121 = vadd.f32 %v932, %v2120
        %v2122 = vpop.f32.mrb[0].mxu0
        %v2123 = vadd.f32 %v928, %v2122
        %v2124 = vpop.f32.mrb[0].mxu0
        %v2125 = vadd.f32 %v932, %v2124
        %2126 = vmatprep.mubr.bf16.mxu0 %v676
        %2127 = vmatmul.mubr.bf16.gmra.mrb[0].mxu0 %v675
        %v2128 = vpop.f32.mrb[0].mxu0
        %v2129 = vadd.f32 %v928, %v2128
        %v2130 = vpop.f32.mrb[0].mxu0
        %v2131 = vadd.f32 %v932, %v2130
        %v2132 = vpop.f32.mrb[0].mxu0
        %v2133 = vadd.f32 %v928, %v2132
        %v2134 = vpop.f32.mrb[0].mxu0
        %v2135 = vadd.f32 %v932, %v2134
        %2136 = vmatprep.mubr.bf16.mxu0 %v679
        %2137 = vmatmul.mubr.bf16.gmra.mrb[0].mxu0 %v678
        %v2138 = vpop.f32.mrb[0].mxu0
        %v2139 = vadd.f32 %v928, %v2138
        %v2140 = vpop.f32.mrb[0].mxu0
        %v2141 = vadd.f32 %v932, %v2140
        %v2142 = vpop.f32.mrb[0].mxu0
        %v2143 = vadd.f32 %v928, %v2142
        %v2144 = vpop.f32.mrb[0].mxu0
        %v2145 = vadd.f32 %v932, %v2144
        %2146 = vdwg.mxu0
        %2147 = vmatprep.subr.bf16.mxu0 %v1787
        %2148 = vmatpush1.bf16.msra.mxu0 %v1786
        %2149 = vmatprep.subr.bf16.mxu0 %v1796
        %2150 = vmatpush1.bf16.msra.mxu0 %v1795
        %2151 = vmatprep.subr.bf16.mxu0 %v1805
        %2152 = vmatpush1.bf16.msra.mxu0 %v1804
        %2153 = vmatprep.subr.bf16.mxu0 %v1814
        %2154 = vmatpush1.bf16.msra.mxu0 %v1813
        %2155 = vmatprep.subr.bf16.mxu0 %v1823
        %2156 = vmatpush1.bf16.msra.mxu0 %v1822
        %2157 = vmatprep.subr.bf16.mxu0 %v1832
        %2158 = vmatpush1.bf16.msra.mxu0 %v1831
        %2159 = vmatprep.subr.bf16.mxu0 %v1841
        %2160 = vmatpush1.bf16.msra.mxu0 %v1840
        %2161 = vmatprep.subr.bf16.mxu0 %v1850
        %2162 = vmatpush1.bf16.msra.mxu0 %v1849
        %2163 = vmatprep.subr.bf16.mxu0 0
        %2164 = vmatpush1.bf16.msra.mxu0 0
        %2165 = vmatprep.subr.bf16.mxu0 0
        %2166 = vmatpush1.bf16.msra.mxu0 0
        %2167 = vmatprep.subr.bf16.mxu0 0
        %2168 = vmatpush1.bf16.msra.mxu0 0
        %2169 = vmatprep.subr.bf16.mxu0 0
        %2170 = vmatpush1.bf16.msra.mxu0 0
        %2171 = vmatprep.subr.bf16.mxu0 0
        %2172 = vmatpush1.bf16.msra.mxu0 0
        %2173 = vmatprep.subr.bf16.mxu0 0
        %2174 = vmatpush1.bf16.msra.mxu0 0
        %2175 = vmatprep.subr.bf16.mxu0 0
        %2176 = vmatpush1.bf16.msra.mxu0 0
        %2177 = vmatprep.subr.bf16.mxu0 0
        %2178 = vmatpush1.bf16.msra.mxu0 0
        %2179 = vmatprep.mubr.bf16.mxu0 0
        %2180 = vmatmul.mubr.bf16.gmra.mrb[0].mxu0 %v671
        %v2181 = vpop.f32.mrb[0].mxu0
        %v2182 = vadd.f32 %v2109, %v2181
        %v2183 = vpop.f32.mrb[0].mxu0
        %v2184 = vadd.f32 %v2111, %v2183
        %v2185 = vpop.f32.mrb[0].mxu0
        %v2186 = vadd.f32 %v2113, %v2185
        %v2187 = vpop.f32.mrb[0].mxu0
        %v2188 = vadd.f32 %v2115, %v2187
        %2189 = vmatprep.mubr.bf16.mxu0 0
        %2190 = vmatmul.mubr.bf16.gmra.mrb[0].mxu0 %v674
        %v2191 = vpop.f32.mrb[0].mxu0
        %v2192 = vadd.f32 %v2119, %v2191
        %v2193 = vpop.f32.mrb[0].mxu0
        %v2194 = vadd.f32 %v2121, %v2193
        %v2195 = vpop.f32.mrb[0].mxu0
        %v2196 = vadd.f32 %v2123, %v2195
        %v2197 = vpop.f32.mrb[0].mxu0
        %v2198 = vadd.f32 %v2125, %v2197
        %2199 = vmatprep.mubr.bf16.mxu0 0
        %2200 = vmatmul.mubr.bf16.gmra.mrb[0].mxu0 %v677
        %v2201 = vpop.f32.mrb[0].mxu0
        %v2202 = vadd.f32 %v2129, %v2201
        %v2203 = vpop.f32.mrb[0].mxu0
        %v2204 = vadd.f32 %v2131, %v2203
        %v2205 = vpop.f32.mrb[0].mxu0
        %v2206 = vadd.f32 %v2133, %v2205
        %v2207 = vpop.f32.mrb[0].mxu0
        %v2208 = vadd.f32 %v2135, %v2207
        %2209 = vmatprep.mubr.bf16.mxu0 0
        %2210 = vmatmul.mubr.bf16.gmra.mrb[0].mxu0 %v680
        %v2211 = vpop.f32.mrb[0].mxu0
        %v2212 = vadd.f32 %v2139, %v2211
        %v2213 = vpop.f32.mrb[0].mxu0
        %v2214 = vadd.f32 %v2141, %v2213
        %v2215 = vpop.f32.mrb[0].mxu0
        %v2216 = vadd.f32 %v2143, %v2215
        %v2217 = vpop.f32.mrb[0].mxu0
        %v2218 = vadd.f32 %v2145, %v2217
        %2219 = vdwg.mxu0
        %2220 = vmatprep.subr.bf16.mxu0 %v1645
        %2221 = vmatpush1.bf16.msra.mxu0 %v1644
        %2222 = vmatprep.subr.bf16.mxu0 %v1654
        %2223 = vmatpush1.bf16.msra.mxu0 %v1653
        %2224 = vmatprep.subr.bf16.mxu0 %v1663
        %2225 = vmatpush1.bf16.msra.mxu0 %v1662
        %2226 = vmatprep.subr.bf16.mxu0 %v1672
        %2227 = vmatpush1.bf16.msra.mxu0 %v1671
        %2228 = vmatprep.subr.bf16.mxu0 %v1681
        %2229 = vmatpush1.bf16.msra.mxu0 %v1680
        %2230 = vmatprep.subr.bf16.mxu0 %v1690
        %2231 = vmatpush1.bf16.msra.mxu0 %v1689
        %2232 = vmatprep.subr.bf16.mxu0 %v1699
        %2233 = vmatpush1.bf16.msra.mxu0 %v1698
        %2234 = vmatprep.subr.bf16.mxu0 %v1708
        %2235 = vmatpush1.bf16.msra.mxu0 %v1707
        %2236 = vmatprep.subr.bf16.mxu0 %v1717
        %2237 = vmatpush1.bf16.msra.mxu0 %v1716
        %2238 = vmatprep.subr.bf16.mxu0 %v1726
        %2239 = vmatpush1.bf16.msra.mxu0 %v1725
        %2240 = vmatprep.subr.bf16.mxu0 %v1735
        %2241 = vmatpush1.bf16.msra.mxu0 %v1734
        %2242 = vmatprep.subr.bf16.mxu0 %v1744
        %2243 = vmatpush1.bf16.msra.mxu0 %v1743
        %2244 = vmatprep.subr.bf16.mxu0 %v1753
        %2245 = vmatpush1.bf16.msra.mxu0 %v1752
        %2246 = vmatprep.subr.bf16.mxu0 %v1762
        %2247 = vmatpush1.bf16.msra.mxu0 %v1761
        %2248 = vmatprep.subr.bf16.mxu0 %v1771
        %2249 = vmatpush1.bf16.msra.mxu0 %v1770
        %2250 = vmatprep.subr.bf16.mxu0 %v1780
        %2251 = vmatpush1.bf16.msra.mxu0 %v1779
        %2252 = vmatprep.mubr.bf16.mxu0 %v670
        %2253 = vmatmul.mubr.bf16.gmra.mrb[0].mxu0 %v669
        %v2254 = vpop.f32.mrb[0].mxu0
        %v2255 = vadd.f32 %v936, %v2254
        %v2256 = vpop.f32.mrb[0].mxu0
        %v2257 = vadd.f32 %v940, %v2256
        %v2258 = vpop.f32.mrb[0].mxu0
        %v2259 = vadd.f32 %v936, %v2258
        %v2260 = vpop.f32.mrb[0].mxu0
        %v2261 = vadd.f32 %v940, %v2260
        %2262 = vmatprep.mubr.bf16.mxu0 %v673
        %2263 = vmatmul.mubr.bf16.gmra.mrb[0].mxu0 %v672
        %v2264 = vpop.f32.mrb[0].mxu0
        %v2265 = vadd.f32 %v936, %v2264
        %v2266 = vpop.f32.mrb[0].mxu0
        %v2267 = vadd.f32 %v940, %v2266
        %v2268 = vpop.f32.mrb[0].mxu0
        %v2269 = vadd.f32 %v936, %v2268
        %v2270 = vpop.f32.mrb[0].mxu0
        %v2271 = vadd.f32 %v940, %v2270
        %2272 = vmatprep.mubr.bf16.mxu0 %v676
        %2273 = vmatmul.mubr.bf16.gmra.mrb[0].mxu0 %v675
        %v2274 = vpop.f32.mrb[0].mxu0
        %v2275 = vadd.f32 %v936, %v2274
        %v2276 = vpop.f32.mrb[0].mxu0
        %v2277 = vadd.f32 %v940, %v2276
        %v2278 = vpop.f32.mrb[0].mxu0
        %v2279 = vadd.f32 %v936, %v2278
        %v2280 = vpop.f32.mrb[0].mxu0
        %v2281 = vadd.f32 %v940, %v2280
        %2282 = vmatprep.mubr.bf16.mxu0 %v679
        %2283 = vmatmul.mubr.bf16.gmra.mrb[0].mxu0 %v678
        %v2284 = vpop.f32.mrb[0].mxu0
        %v2285 = vadd.f32 %v936, %v2284
        %v2286 = vpop.f32.mrb[0].mxu0
        %v2287 = vadd.f32 %v940, %v2286
        %v2288 = vpop.f32.mrb[0].mxu0
        %v2289 = vadd.f32 %v936, %v2288
        %v2290 = vpop.f32.mrb[0].mxu0
        %v2291 = vadd.f32 %v940, %v2290
        %2292 = vdwg.mxu0
        %2293 = vmatprep.subr.bf16.mxu0 %v1789
        %2294 = vmatpush1.bf16.msra.mxu0 %v1788
        %2295 = vmatprep.subr.bf16.mxu0 %v1798
        %2296 = vmatpush1.bf16.msra.mxu0 %v1797
        %2297 = vmatprep.subr.bf16.mxu0 %v1807
        %2298 = vmatpush1.bf16.msra.mxu0 %v1806
        %2299 = vmatprep.subr.bf16.mxu0 %v1816
        %2300 = vmatpush1.bf16.msra.mxu0 %v1815
        %2301 = vmatprep.subr.bf16.mxu0 %v1825
        %2302 = vmatpush1.bf16.msra.mxu0 %v1824
        %2303 = vmatprep.subr.bf16.mxu0 %v1834
        %2304 = vmatpush1.bf16.msra.mxu0 %v1833
        %2305 = vmatprep.subr.bf16.mxu0 %v1843
        %2306 = vmatpush1.bf16.msra.mxu0 %v1842
        %2307 = vmatprep.subr.bf16.mxu0 %v1852
        %2308 = vmatpush1.bf16.msra.mxu0 %v1851
        %2309 = vmatprep.subr.bf16.mxu0 0
        %2310 = vmatpush1.bf16.msra.mxu0 0
        %2311 = vmatprep.subr.bf16.mxu0 0
        %2312 = vmatpush1.bf16.msra.mxu0 0
        %2313 = vmatprep.subr.bf16.mxu0 0
        %2314 = vmatpush1.bf16.msra.mxu0 0
        %2315 = vmatprep.subr.bf16.mxu0 0
        %2316 = vmatpush1.bf16.msra.mxu0 0
        %2317 = vmatprep.subr.bf16.mxu0 0
        %2318 = vmatpush1.bf16.msra.mxu0 0
        %2319 = vmatprep.subr.bf16.mxu0 0
        %2320 = vmatpush1.bf16.msra.mxu0 0
        %2321 = vmatprep.subr.bf16.mxu0 0
        %2322 = vmatpush1.bf16.msra.mxu0 0
        %2323 = vmatprep.subr.bf16.mxu0 0
        %2324 = vmatpush1.bf16.msra.mxu0 0
        %2325 = vmatprep.mubr.bf16.mxu0 0
        %2326 = vmatmul.mubr.bf16.gmra.mrb[0].mxu0 %v671
        %v2327 = vpop.f32.mrb[0].mxu0
        %v2328 = vadd.f32 %v2255, %v2327
        %v2329 = vpop.f32.mrb[0].mxu0
        %v2330 = vadd.f32 %v2257, %v2329
        %v2331 = vpop.f32.mrb[0].mxu0
        %v2332 = vadd.f32 %v2259, %v2331
        %v2333 = vpop.f32.mrb[0].mxu0
        %v2334 = vadd.f32 %v2261, %v2333
        %2335 = vmatprep.mubr.bf16.mxu0 0
        %2336 = vmatmul.mubr.bf16.gmra.mrb[0].mxu0 %v674
        %v2337 = vpop.f32.mrb[0].mxu0
        %v2338 = vadd.f32 %v2265, %v2337
        %v2339 = vpop.f32.mrb[0].mxu0
        %v2340 = vadd.f32 %v2267, %v2339
        %v2341 = vpop.f32.mrb[0].mxu0
        %v2342 = vadd.f32 %v2269, %v2341
        %v2343 = vpop.f32.mrb[0].mxu0
        %v2344 = vadd.f32 %v2271, %v2343
        %2345 = vmatprep.mubr.bf16.mxu0 0
        %2346 = vmatmul.mubr.bf16.gmra.mrb[0].mxu0 %v677
        %v2347 = vpop.f32.mrb[0].mxu0
        %v2348 = vadd.f32 %v2275, %v2347
        %v2349 = vpop.f32.mrb[0].mxu0
        %v2350 = vadd.f32 %v2277, %v2349
        %v2351 = vpop.f32.mrb[0].mxu0
        %v2352 = vadd.f32 %v2279, %v2351
        %v2353 = vpop.f32.mrb[0].mxu0
        %v2354 = vadd.f32 %v2281, %v2353
        %2355 = vmatprep.mubr.bf16.mxu0 0
        %2356 = vmatmul.mubr.bf16.gmra.mrb[0].mxu0 %v680
        %v2357 = vpop.f32.mrb[0].mxu0
        %v2358 = vadd.f32 %v2285, %v2357
        %v2359 = vpop.f32.mrb[0].mxu0
        %v2360 = vadd.f32 %v2287, %v2359
        %v2361 = vpop.f32.mrb[0].mxu0
        %v2362 = vadd.f32 %v2289, %v2361
        %v2363 = vpop.f32.mrb[0].mxu0
        %v2364 = vadd.f32 %v2291, %v2363
        %2365 = vdwg.mxu0
        %2366 = vmatprep.subr.bf16.mxu0 %v1647
        %2367 = vmatpush1.bf16.msra.mxu0 %v1646
        %2368 = vmatprep.subr.bf16.mxu0 %v1656
        %2369 = vmatpush1.bf16.msra.mxu0 %v1655
        %2370 = vmatprep.subr.bf16.mxu0 %v1665
        %2371 = vmatpush1.bf16.msra.mxu0 %v1664
        %2372 = vmatprep.subr.bf16.mxu0 %v1674
        %2373 = vmatpush1.bf16.msra.mxu0 %v1673
        %2374 = vmatprep.subr.bf16.mxu0 %v1683
        %2375 = vmatpush1.bf16.msra.mxu0 %v1682
        %2376 = vmatprep.subr.bf16.mxu0 %v1692
        %2377 = vmatpush1.bf16.msra.mxu0 %v1691
        %2378 = vmatprep.subr.bf16.mxu0 %v1701
        %2379 = vmatpush1.bf16.msra.mxu0 %v1700
        %2380 = vmatprep.subr.bf16.mxu0 %v1710
        %2381 = vmatpush1.bf16.msra.mxu0 %v1709
        %2382 = vmatprep.subr.bf16.mxu0 %v1719
        %2383 = vmatpush1.bf16.msra.mxu0 %v1718
        %2384 = vmatprep.subr.bf16.mxu0 %v1728
        %2385 = vmatpush1.bf16.msra.mxu0 %v1727
        %2386 = vmatprep.subr.bf16.mxu0 %v1737
        %2387 = vmatpush1.bf16.msra.mxu0 %v1736
        %2388 = vmatprep.subr.bf16.mxu0 %v1746
        %2389 = vmatpush1.bf16.msra.mxu0 %v1745
        %2390 = vmatprep.subr.bf16.mxu0 %v1755
        %2391 = vmatpush1.bf16.msra.mxu0 %v1754
        %2392 = vmatprep.subr.bf16.mxu0 %v1764
        %2393 = vmatpush1.bf16.msra.mxu0 %v1763
        %2394 = vmatprep.subr.bf16.mxu0 %v1773
        %2395 = vmatpush1.bf16.msra.mxu0 %v1772
        %2396 = vmatprep.subr.bf16.mxu0 %v1782
        %2397 = vmatpush1.bf16.msra.mxu0 %v1781
        %2398 = vmatprep.mubr.bf16.mxu0 %v670
        %2399 = vmatmul.mubr.bf16.gmra.mrb[0].mxu0 %v669
        %v2400 = vpop.f32.mrb[0].mxu0
        %v2401 = vadd.f32 %v944, %v2400
        %v2402 = vpop.f32.mrb[0].mxu0
        %v2403 = vadd.f32 %v948, %v2402
        %v2404 = vpop.f32.mrb[0].mxu0
        %v2405 = vadd.f32 %v944, %v2404
        %v2406 = vpop.f32.mrb[0].mxu0
        %v2407 = vadd.f32 %v948, %v2406
        %2408 = vmatprep.mubr.bf16.mxu0 %v673
        %2409 = vmatmul.mubr.bf16.gmra.mrb[0].mxu0 %v672
        %v2410 = vpop.f32.mrb[0].mxu0
        %v2411 = vadd.f32 %v944, %v2410
        %v2412 = vpop.f32.mrb[0].mxu0
        %v2413 = vadd.f32 %v948, %v2412
        %v2414 = vpop.f32.mrb[0].mxu0
        %v2415 = vadd.f32 %v944, %v2414
        %v2416 = vpop.f32.mrb[0].mxu0
        %v2417 = vadd.f32 %v948, %v2416
        %2418 = vmatprep.mubr.bf16.mxu0 %v676
        %2419 = vmatmul.mubr.bf16.gmra.mrb[0].mxu0 %v675
        %v2420 = vpop.f32.mrb[0].mxu0
        %v2421 = vadd.f32 %v944, %v2420
        %v2422 = vpop.f32.mrb[0].mxu0
        %v2423 = vadd.f32 %v948, %v2422
        %v2424 = vpop.f32.mrb[0].mxu0
        %v2425 = vadd.f32 %v944, %v2424
        %v2426 = vpop.f32.mrb[0].mxu0
        %v2427 = vadd.f32 %v948, %v2426
        %2428 = vmatprep.mubr.bf16.mxu0 %v679
        %2429 = vmatmul.mubr.bf16.gmra.mrb[0].mxu0 %v678
        %v2430 = vpop.f32.mrb[0].mxu0
        %v2431 = vadd.f32 %v944, %v2430
        %v2432 = vpop.f32.mrb[0].mxu0
        %v2433 = vadd.f32 %v948, %v2432
        %v2434 = vpop.f32.mrb[0].mxu0
        %v2435 = vadd.f32 %v944, %v2434
        %v2436 = vpop.f32.mrb[0].mxu0
        %v2437 = vadd.f32 %v948, %v2436
        %2438 = vdwg.mxu0
        %2439 = vmatprep.subr.bf16.mxu0 %v1791
        %2440 = vmatpush1.bf16.msra.mxu0 %v1790
        %2441 = vmatprep.subr.bf16.mxu0 %v1800
        %2442 = vmatpush1.bf16.msra.mxu0 %v1799
        %2443 = vmatprep.subr.bf16.mxu0 %v1809
        %2444 = vmatpush1.bf16.msra.mxu0 %v1808
        %2445 = vmatprep.subr.bf16.mxu0 %v1818
        %2446 = vmatpush1.bf16.msra.mxu0 %v1817
        %2447 = vmatprep.subr.bf16.mxu0 %v1827
        %2448 = vmatpush1.bf16.msra.mxu0 %v1826
        %2449 = vmatprep.subr.bf16.mxu0 %v1836
        %2450 = vmatpush1.bf16.msra.mxu0 %v1835
        %2451 = vmatprep.subr.bf16.mxu0 %v1845
        %2452 = vmatpush1.bf16.msra.mxu0 %v1844
        %2453 = vmatprep.subr.bf16.mxu0 %v1854
        %2454 = vmatpush1.bf16.msra.mxu0 %v1853
        %2455 = vmatprep.subr.bf16.mxu0 0
        %2456 = vmatpush1.bf16.msra.mxu0 0
        %2457 = vmatprep.subr.bf16.mxu0 0
        %2458 = vmatpush1.bf16.msra.mxu0 0
        %2459 = vmatprep.subr.bf16.mxu0 0
        %2460 = vmatpush1.bf16.msra.mxu0 0
        %2461 = vmatprep.subr.bf16.mxu0 0
        %2462 = vmatpush1.bf16.msra.mxu0 0
        %2463 = vmatprep.subr.bf16.mxu0 0
        %2464 = vmatpush1.bf16.msra.mxu0 0
        %2465 = vmatprep.subr.bf16.mxu0 0
        %2466 = vmatpush1.bf16.msra.mxu0 0
        %2467 = vmatprep.subr.bf16.mxu0 0
        %2468 = vmatpush1.bf16.msra.mxu0 0
        %2469 = vmatprep.subr.bf16.mxu0 0
        %2470 = vmatpush1.bf16.msra.mxu0 0
        %2471 = vmatprep.mubr.bf16.mxu0 0
        %2472 = vmatmul.mubr.bf16.gmra.mrb[0].mxu0 %v671
        %v2473 = vpop.f32.mrb[0].mxu0
        %v2474 = vadd.f32 %v2401, %v2473
        %v2475 = vpop.f32.mrb[0].mxu0
        %v2476 = vadd.f32 %v2403, %v2475
        %v2477 = vpop.f32.mrb[0].mxu0
        %v2478 = vadd.f32 %v2405, %v2477
        %v2479 = vpop.f32.mrb[0].mxu0
        %v2480 = vadd.f32 %v2407, %v2479
        %2481 = vmatprep.mubr.bf16.mxu0 0
        %2482 = vmatmul.mubr.bf16.gmra.mrb[0].mxu0 %v674
        %v2483 = vpop.f32.mrb[0].mxu0
        %v2484 = vadd.f32 %v2411, %v2483
        %v2485 = vpop.f32.mrb[0].mxu0
        %v2486 = vadd.f32 %v2413, %v2485
        %v2487 = vpop.f32.mrb[0].mxu0
        %v2488 = vadd.f32 %v2415, %v2487
        %v2489 = vpop.f32.mrb[0].mxu0
        %v2490 = vadd.f32 %v2417, %v2489
        %2491 = vmatprep.mubr.bf16.mxu0 0
        %2492 = vmatmul.mubr.bf16.gmra.mrb[0].mxu0 %v677
        %v2493 = vpop.f32.mrb[0].mxu0
        %v2494 = vadd.f32 %v2421, %v2493
        %v2495 = vpop.f32.mrb[0].mxu0
        %v2496 = vadd.f32 %v2423, %v2495
        %v2497 = vpop.f32.mrb[0].mxu0
        %v2498 = vadd.f32 %v2425, %v2497
        %v2499 = vpop.f32.mrb[0].mxu0
        %v2500 = vadd.f32 %v2427, %v2499
        %2501 = vmatprep.mubr.bf16.mxu0 0
        %2502 = vmatmul.mubr.bf16.gmra.mrb[0].mxu0 %v680
        %v2503 = vpop.f32.mrb[0].mxu0
        %v2504 = vadd.f32 %v2431, %v2503
        %v2505 = vpop.f32.mrb[0].mxu0
        %v2506 = vadd.f32 %v2433, %v2505
        %v2507 = vpop.f32.mrb[0].mxu0
        %v2508 = vadd.f32 %v2435, %v2507
        %v2509 = vpop.f32.mrb[0].mxu0
        %v2510 = vadd.f32 %v2437, %v2509
        %2511 = vdwg.mxu0
        %2512 = vmatprep.subr.bf16.mxu0 %v1649
        %2513 = vmatpush1.bf16.msra.mxu0 %v1648
        %2514 = vmatprep.subr.bf16.mxu0 %v1658
        %2515 = vmatpush1.bf16.msra.mxu0 %v1657
        %2516 = vmatprep.subr.bf16.mxu0 %v1667
        %2517 = vmatpush1.bf16.msra.mxu0 %v1666
        %2518 = vmatprep.subr.bf16.mxu0 %v1676
        %2519 = vmatpush1.bf16.msra.mxu0 %v1675
        %2520 = vmatprep.subr.bf16.mxu0 %v1685
        %2521 = vmatpush1.bf16.msra.mxu0 %v1684
        %2522 = vmatprep.subr.bf16.mxu0 %v1694
        %2523 = vmatpush1.bf16.msra.mxu0 %v1693
        %2524 = vmatprep.subr.bf16.mxu0 %v1703
        %2525 = vmatpush1.bf16.msra.mxu0 %v1702
        %2526 = vmatprep.subr.bf16.mxu0 %v1712
        %2527 = vmatpush1.bf16.msra.mxu0 %v1711
        %2528 = vmatprep.subr.bf16.mxu0 %v1721
        %2529 = vmatpush1.bf16.msra.mxu0 %v1720
        %2530 = vmatprep.subr.bf16.mxu0 %v1730
        %2531 = vmatpush1.bf16.msra.mxu0 %v1729
        %2532 = vmatprep.subr.bf16.mxu0 %v1739
        %2533 = vmatpush1.bf16.msra.mxu0 %v1738
        %2534 = vmatprep.subr.bf16.mxu0 %v1748
        %2535 = vmatpush1.bf16.msra.mxu0 %v1747
        %2536 = vmatprep.subr.bf16.mxu0 %v1757
        %2537 = vmatpush1.bf16.msra.mxu0 %v1756
        %2538 = vmatprep.subr.bf16.mxu0 %v1766
        %2539 = vmatpush1.bf16.msra.mxu0 %v1765
        %2540 = vmatprep.subr.bf16.mxu0 %v1775
        %2541 = vmatpush1.bf16.msra.mxu0 %v1774
        %2542 = vmatprep.subr.bf16.mxu0 %v1784
        %2543 = vmatpush1.bf16.msra.mxu0 %v1783
        %2544 = vmatprep.mubr.bf16.mxu0 %v670
        %2545 = vmatmul.mubr.bf16.gmra.mrb[0].mxu0 %v669
        %v2546 = vpop.f32.mrb[0].mxu0
        %v2547 = vadd.f32 %v952, %v2546
        %v2548 = vpop.f32.mrb[0].mxu0
        %v2549 = vadd.f32 %v956, %v2548
        %v2550 = vpop.f32.mrb[0].mxu0
        %v2551 = vadd.f32 %v952, %v2550
        %v2552 = vpop.f32.mrb[0].mxu0
        %v2553 = vadd.f32 %v956, %v2552
        %2554 = vmatprep.mubr.bf16.mxu0 %v673
        %2555 = vmatmul.mubr.bf16.gmra.mrb[0].mxu0 %v672
        %v2556 = vpop.f32.mrb[0].mxu0
        %v2557 = vadd.f32 %v952, %v2556
        %v2558 = vpop.f32.mrb[0].mxu0
        %v2559 = vadd.f32 %v956, %v2558
        %v2560 = vpop.f32.mrb[0].mxu0
        %v2561 = vadd.f32 %v952, %v2560
        %v2562 = vpop.f32.mrb[0].mxu0
        %v2563 = vadd.f32 %v956, %v2562
        %2564 = vmatprep.mubr.bf16.mxu0 %v676
        %2565 = vmatmul.mubr.bf16.gmra.mrb[0].mxu0 %v675
        %v2566 = vpop.f32.mrb[0].mxu0
        %v2567 = vadd.f32 %v952, %v2566
        %v2568 = vpop.f32.mrb[0].mxu0
        %v2569 = vadd.f32 %v956, %v2568
        %v2570 = vpop.f32.mrb[0].mxu0
        %v2571 = vadd.f32 %v952, %v2570
        %v2572 = vpop.f32.mrb[0].mxu0
        %v2573 = vadd.f32 %v956, %v2572
        %2574 = vmatprep.mubr.bf16.mxu0 %v679
        %2575 = vmatmul.mubr.bf16.gmra.mrb[0].mxu0 %v678
        %v2576 = vpop.f32.mrb[0].mxu0
        %v2577 = vadd.f32 %v952, %v2576
        %v2578 = vpop.f32.mrb[0].mxu0
        %v2579 = vadd.f32 %v956, %v2578
        %v2580 = vpop.f32.mrb[0].mxu0
        %v2581 = vadd.f32 %v952, %v2580
        %v2582 = vpop.f32.mrb[0].mxu0
        %v2583 = vadd.f32 %v956, %v2582
        %2584 = vdwg.mxu0
        %2585 = vmatprep.subr.bf16.mxu0 %v1793
        %2586 = vmatpush1.bf16.msra.mxu0 %v1792
        %2587 = vmatprep.subr.bf16.mxu0 %v1802
        %2588 = vmatpush1.bf16.msra.mxu0 %v1801
        %2589 = vmatprep.subr.bf16.mxu0 %v1811
        %2590 = vmatpush1.bf16.msra.mxu0 %v1810
        %2591 = vmatprep.subr.bf16.mxu0 %v1820
        %2592 = vmatpush1.bf16.msra.mxu0 %v1819
        %2593 = vmatprep.subr.bf16.mxu0 %v1829
        %2594 = vmatpush1.bf16.msra.mxu0 %v1828
        %2595 = vmatprep.subr.bf16.mxu0 %v1838
        %2596 = vmatpush1.bf16.msra.mxu0 %v1837
        %2597 = vmatprep.subr.bf16.mxu0 %v1847
        %2598 = vmatpush1.bf16.msra.mxu0 %v1846
        %2599 = vmatprep.subr.bf16.mxu0 %v1856
        %2600 = vmatpush1.bf16.msra.mxu0 %v1855
        %2601 = vmatprep.subr.bf16.mxu0 0
        %2602 = vmatpush1.bf16.msra.mxu0 0
        %2603 = vmatprep.subr.bf16.mxu0 0
        %2604 = vmatpush1.bf16.msra.mxu0 0
        %2605 = vmatprep.subr.bf16.mxu0 0
        %2606 = vmatpush1.bf16.msra.mxu0 0
        %2607 = vmatprep.subr.bf16.mxu0 0
        %2608 = vmatpush1.bf16.msra.mxu0 0
        %2609 = vmatprep.subr.bf16.mxu0 0
        %2610 = vmatpush1.bf16.msra.mxu0 0
        %2611 = vmatprep.subr.bf16.mxu0 0
        %2612 = vmatpush1.bf16.msra.mxu0 0
        %2613 = vmatprep.subr.bf16.mxu0 0
        %2614 = vmatpush1.bf16.msra.mxu0 0
        %2615 = vmatprep.subr.bf16.mxu0 0
        %2616 = vmatpush1.bf16.msra.mxu0 0
        %2617 = vmatprep.mubr.bf16.mxu0 0
        %2618 = vmatmul.mubr.bf16.gmra.mrb[0].mxu0 %v671
        %v2619 = vpop.f32.mrb[0].mxu0
        %v2620 = vadd.f32 %v2547, %v2619
        %v2621 = vpop.f32.mrb[0].mxu0
        %v2622 = vadd.f32 %v2549, %v2621
        %v2623 = vpop.f32.mrb[0].mxu0
        %v2624 = vadd.f32 %v2551, %v2623
        %v2625 = vpop.f32.mrb[0].mxu0
        %v2626 = vadd.f32 %v2553, %v2625
        %2627 = vmatprep.mubr.bf16.mxu0 0
        %2628 = vmatmul.mubr.bf16.gmra.mrb[0].mxu0 %v674
        %v2629 = vpop.f32.mrb[0].mxu0
        %v2630 = vadd.f32 %v2557, %v2629
        %v2631 = vpop.f32.mrb[0].mxu0
        %v2632 = vadd.f32 %v2559, %v2631
        %v2633 = vpop.f32.mrb[0].mxu0
        %v2634 = vadd.f32 %v2561, %v2633
        %v2635 = vpop.f32.mrb[0].mxu0
        %v2636 = vadd.f32 %v2563, %v2635
        %2637 = vmatprep.mubr.bf16.mxu0 0
        %2638 = vmatmul.mubr.bf16.gmra.mrb[0].mxu0 %v677
        %v2639 = vpop.f32.mrb[0].mxu0
        %v2640 = vadd.f32 %v2567, %v2639
        %v2641 = vpop.f32.mrb[0].mxu0
        %v2642 = vadd.f32 %v2569, %v2641
        %v2643 = vpop.f32.mrb[0].mxu0
        %v2644 = vadd.f32 %v2571, %v2643
        %v2645 = vpop.f32.mrb[0].mxu0
        %v2646 = vadd.f32 %v2573, %v2645
        %2647 = vmatprep.mubr.bf16.mxu0 0
        %2648 = vmatmul.mubr.bf16.gmra.mrb[0].mxu0 %v680
        %v2649 = vpop.f32.mrb[0].mxu0
        %v2650 = vadd.f32 %v2577, %v2649
        %v2651 = vpop.f32.mrb[0].mxu0
        %v2652 = vadd.f32 %v2579, %v2651
        %v2653 = vpop.f32.mrb[0].mxu0
        %v2654 = vadd.f32 %v2581, %v2653
        %v2655 = vpop.f32.mrb[0].mxu0
        %v2656 = vadd.f32 %v2583, %v2655
        %2657 = vdwg.mxu0
        %2658 = vmatprep.subr.bf16.mxu0 0
        %2659 = vmatpush1.bf16.msra.mxu0 %v1650
        %2660 = vmatprep.subr.bf16.mxu0 0
        %2661 = vmatpush1.bf16.msra.mxu0 %v1659
        %2662 = vmatprep.subr.bf16.mxu0 0
        %2663 = vmatpush1.bf16.msra.mxu0 %v1668
        %2664 = vmatprep.subr.bf16.mxu0 0
        %2665 = vmatpush1.bf16.msra.mxu0 %v1677
        %2666 = vmatprep.subr.bf16.mxu0 0
        %2667 = vmatpush1.bf16.msra.mxu0 %v1686
        %2668 = vmatprep.subr.bf16.mxu0 0
        %2669 = vmatpush1.bf16.msra.mxu0 %v1695
        %2670 = vmatprep.subr.bf16.mxu0 0
        %2671 = vmatpush1.bf16.msra.mxu0 %v1704
        %2672 = vmatprep.subr.bf16.mxu0 0
        %2673 = vmatpush1.bf16.msra.mxu0 %v1713
        %2674 = vmatprep.subr.bf16.mxu0 0
        %2675 = vmatpush1.bf16.msra.mxu0 %v1722
        %2676 = vmatprep.subr.bf16.mxu0 0
        %2677 = vmatpush1.bf16.msra.mxu0 %v1731
        %2678 = vmatprep.subr.bf16.mxu0 0
        %2679 = vmatpush1.bf16.msra.mxu0 %v1740
        %2680 = vmatprep.subr.bf16.mxu0 0
        %2681 = vmatpush1.bf16.msra.mxu0 %v1749
        %2682 = vmatprep.subr.bf16.mxu0 0
        %2683 = vmatpush1.bf16.msra.mxu0 %v1758
        %2684 = vmatprep.subr.bf16.mxu0 0
        %2685 = vmatpush1.bf16.msra.mxu0 %v1767
        %2686 = vmatprep.subr.bf16.mxu0 0
        %2687 = vmatpush1.bf16.msra.mxu0 %v1776
        %2688 = vmatprep.subr.bf16.mxu0 0
        %2689 = vmatpush1.bf16.msra.mxu0 %v1785
        %2690 = vmatprep.mubr.bf16.mxu0 %v670
        %2691 = vmatmul.mubr.bf16.gmra.mrb[0].mxu0 %v669
        %v2692 = vpop.f32.mrb[0].mxu0
        %v2693 = vadd.f32 %v960, %v2692
        %v2694 = vpop.f32.mrb[0].mxu0
        %v2695 = vpop.f32.mrb[0].mxu0
        %v2696 = vadd.f32 %v960, %v2695
        %v2697 = vpop.f32.mrb[0].mxu0
        %2698 = vmatprep.mubr.bf16.mxu0 %v673
        %2699 = vmatmul.mubr.bf16.gmra.mrb[0].mxu0 %v672
        %v2700 = vpop.f32.mrb[0].mxu0
        %v2701 = vadd.f32 %v960, %v2700
        %v2702 = vpop.f32.mrb[0].mxu0
        %v2703 = vpop.f32.mrb[0].mxu0
        %v2704 = vadd.f32 %v960, %v2703
        %v2705 = vpop.f32.mrb[0].mxu0
        %2706 = vmatprep.mubr.bf16.mxu0 %v676
        %2707 = vmatmul.mubr.bf16.gmra.mrb[0].mxu0 %v675
        %v2708 = vpop.f32.mrb[0].mxu0
        %v2709 = vadd.f32 %v960, %v2708
        %v2710 = vpop.f32.mrb[0].mxu0
        %v2711 = vpop.f32.mrb[0].mxu0
        %v2712 = vadd.f32 %v960, %v2711
        %v2713 = vpop.f32.mrb[0].mxu0
        %2714 = vmatprep.mubr.bf16.mxu0 %v679
        %2715 = vmatmul.mubr.bf16.gmra.mrb[0].mxu0 %v678
        %v2716 = vpop.f32.mrb[0].mxu0
        %v2717 = vadd.f32 %v960, %v2716
        %v2718 = vpop.f32.mrb[0].mxu0
        %v2719 = vpop.f32.mrb[0].mxu0
        %v2720 = vadd.f32 %v960, %v2719
        %v2721 = vpop.f32.mrb[0].mxu0
        %2722 = vdwg.mxu0
        %2723 = vmatprep.subr.bf16.mxu0 0
        %2724 = vmatpush1.bf16.msra.mxu0 %v1794
        %2725 = vmatprep.subr.bf16.mxu0 0
        %2726 = vmatpush1.bf16.msra.mxu0 %v1803
        %2727 = vmatprep.subr.bf16.mxu0 0
        %2728 = vmatpush1.bf16.msra.mxu0 %v1812
        %2729 = vmatprep.subr.bf16.mxu0 0
        %2730 = vmatpush1.bf16.msra.mxu0 %v1821
        %2731 = vmatprep.subr.bf16.mxu0 0
        %2732 = vmatpush1.bf16.msra.mxu0 %v1830
        %2733 = vmatprep.subr.bf16.mxu0 0
        %2734 = vmatpush1.bf16.msra.mxu0 %v1839
        %2735 = vmatprep.subr.bf16.mxu0 0
        %2736 = vmatpush1.bf16.msra.mxu0 %v1848
        %2737 = vmatprep.subr.bf16.mxu0 0
        %2738 = vmatpush1.bf16.msra.mxu0 %v1857
        %2739 = vmatprep.subr.bf16.mxu0 0
        %2740 = vmatpush1.bf16.msra.mxu0 0
        %2741 = vmatprep.subr.bf16.mxu0 0
        %2742 = vmatpush1.bf16.msra.mxu0 0
        %2743 = vmatprep.subr.bf16.mxu0 0
        %2744 = vmatpush1.bf16.msra.mxu0 0
        %2745 = vmatprep.subr.bf16.mxu0 0
        %2746 = vmatpush1.bf16.msra.mxu0 0
        %2747 = vmatprep.subr.bf16.mxu0 0
        %2748 = vmatpush1.bf16.msra.mxu0 0
        %2749 = vmatprep.subr.bf16.mxu0 0
        %2750 = vmatpush1.bf16.msra.mxu0 0
        %2751 = vmatprep.subr.bf16.mxu0 0
        %2752 = vmatpush1.bf16.msra.mxu0 0
        %2753 = vmatprep.subr.bf16.mxu0 0
        %2754 = vmatpush1.bf16.msra.mxu0 0
        %2755 = vmatprep.mubr.bf16.mxu0 0
        %2756 = vmatmul.mubr.bf16.gmra.mrb[0].mxu0 %v671
        %v2757 = vpop.f32.mrb[0].mxu0
        %v2758 = vadd.f32 %v2693, %v2757
        %v2759 = vpop.f32.mrb[0].mxu0
        %v2760 = vpop.f32.mrb[0].mxu0
        %v2761 = vadd.f32 %v2696, %v2760
        %v2762 = vpop.f32.mrb[0].mxu0
        %2763 = vmatprep.mubr.bf16.mxu0 0
        %2764 = vmatmul.mubr.bf16.gmra.mrb[0].mxu0 %v674
        %v2765 = vpop.f32.mrb[0].mxu0
        %v2766 = vadd.f32 %v2701, %v2765
        %v2767 = vpop.f32.mrb[0].mxu0
        %v2768 = vpop.f32.mrb[0].mxu0
        %v2769 = vadd.f32 %v2704, %v2768
        %v2770 = vpop.f32.mrb[0].mxu0
        %2771 = vmatprep.mubr.bf16.mxu0 0
        %2772 = vmatmul.mubr.bf16.gmra.mrb[0].mxu0 %v677
        %v2773 = vpop.f32.mrb[0].mxu0
        %v2774 = vadd.f32 %v2709, %v2773
        %v2775 = vpop.f32.mrb[0].mxu0
        %v2776 = vpop.f32.mrb[0].mxu0
        %v2777 = vadd.f32 %v2712, %v2776
        %v2778 = vpop.f32.mrb[0].mxu0
        %2779 = vmatprep.mubr.bf16.mxu0 0
        %2780 = vmatmul.mubr.bf16.gmra.mrb[0].mxu0 %v680
        %v2781 = vpop.f32.mrb[0].mxu0
        %v2782 = vadd.f32 %v2717, %v2781
        %v2783 = vpop.f32.mrb[0].mxu0
        %v2784 = vpop.f32.mrb[0].mxu0
        %v2785 = vadd.f32 %v2720, %v2784
        %v2786 = vpop.f32.mrb[0].mxu0
        %2787 = vdwg.mxu0
        %2788 = vst [vmem:[#allocation2] sm:$0xff] %v2182
        %2789 = vst [vmem:[#allocation2 + $0x8] sm:$0xff] %v2184
        %2790 = vst [vmem:[#allocation2 + $0x10] sm:$0xff] %v2328
        %2791 = vst [vmem:[#allocation2 + $0x18] sm:$0xff] %v2330
        %2792 = vst [vmem:[#allocation2 + $0x20] sm:$0xff] %v2474
        %2793 = vst [vmem:[#allocation2 + $0x28] sm:$0xff] %v2476
        %2794 = vst [vmem:[#allocation2 + $0x30] sm:$0xff] %v2620
        %2795 = vst [vmem:[#allocation2 + $0x38] sm:$0xff] %v2622
        %2796 = vst [vmem:[#allocation2 + $0x40] sm:$0xff] %v2758
        %2797 = vst [vmem:[#allocation2 + $0x48] sm:$0xff] %v2186
        %2798 = vst [vmem:[#allocation2 + $0x50] sm:$0xff] %v2188
        %2799 = vst [vmem:[#allocation2 + $0x58] sm:$0xff] %v2332
        %2800 = vst [vmem:[#allocation2 + $0x60] sm:$0xff] %v2334
        %2801 = vst [vmem:[#allocation2 + $0x68] sm:$0xff] %v2478
        %2802 = vst [vmem:[#allocation2 + $0x70] sm:$0xff] %v2480
        %2803 = vst [vmem:[#allocation2 + $0x78] sm:$0xff] %v2624
        %2804 = vst [vmem:[#allocation2 + $0x80] sm:$0xff] %v2626
        %2805 = vst [vmem:[#allocation2 + $0x88] sm:$0xff] %v2761
        %2806 = vst [vmem:[#allocation2 + $0x90] sm:$0xff] %v2192
        %2807 = vst [vmem:[#allocation2 + $0x98] sm:$0xff] %v2194
        %2808 = vst [vmem:[#allocation2 + $0xa0] sm:$0xff] %v2338
        %2809 = vst [vmem:[#allocation2 + $0xa8] sm:$0xff] %v2340
        %2810 = vst [vmem:[#allocation2 + $0xb0] sm:$0xff] %v2484
        %2811 = vst [vmem:[#allocation2 + $0xb8] sm:$0xff] %v2486
        %2812 = vst [vmem:[#allocation2 + $0xc0] sm:$0xff] %v2630
        %2813 = vst [vmem:[#allocation2 + $0xc8] sm:$0xff] %v2632
        %2814 = vst [vmem:[#allocation2 + $0xd0] sm:$0xff] %v2766
        %2815 = vst [vmem:[#allocation2 + $0xd8] sm:$0xff] %v2196
        %2816 = vst [vmem:[#allocation2 + $0xe0] sm:$0xff] %v2198
        %2817 = vst [vmem:[#allocation2 + $0xe8] sm:$0xff] %v2342
        %2818 = vst [vmem:[#allocation2 + $0xf0] sm:$0xff] %v2344
        %2819 = vst [vmem:[#allocation2 + $0xf8] sm:$0xff] %v2488
        %2820 = vst [vmem:[#allocation2 + $0x100] sm:$0xff] %v2490
        %2821 = vst [vmem:[#allocation2 + $0x108] sm:$0xff] %v2634
        %2822 = vst [vmem:[#allocation2 + $0x110] sm:$0xff] %v2636
        %2823 = vst [vmem:[#allocation2 + $0x118] sm:$0xff] %v2769
        %2824 = vst [vmem:[#allocation2 + $0x120] sm:$0xff] %v2202
        %2825 = vst [vmem:[#allocation2 + $0x128] sm:$0xff] %v2204
        %2826 = vst [vmem:[#allocation2 + $0x130] sm:$0xff] %v2348
        %2827 = vst [vmem:[#allocation2 + $0x138] sm:$0xff] %v2350
        %2828 = vst [vmem:[#allocation2 + $0x140] sm:$0xff] %v2494
        %2829 = vst [vmem:[#allocation2 + $0x148] sm:$0xff] %v2496
        %2830 = vst [vmem:[#allocation2 + $0x150] sm:$0xff] %v2640
        %2831 = vst [vmem:[#allocation2 + $0x158] sm:$0xff] %v2642
        %2832 = vst [vmem:[#allocation2 + $0x160] sm:$0xff] %v2774
        %2833 = vst [vmem:[#allocation2 + $0x168] sm:$0xff] %v2206
        %2834 = vst [vmem:[#allocation2 + $0x170] sm:$0xff] %v2208
        %2835 = vst [vmem:[#allocation2 + $0x178] sm:$0xff] %v2352
        %2836 = vst [vmem:[#allocation2 + $0x180] sm:$0xff] %v2354
        %2837 = vst [vmem:[#allocation2 + $0x188] sm:$0xff] %v2498
        %2838 = vst [vmem:[#allocation2 + $0x190] sm:$0xff] %v2500
        %2839 = vst [vmem:[#allocation2 + $0x198] sm:$0xff] %v2644
        %2840 = vst [vmem:[#allocation2 + $0x1a0] sm:$0xff] %v2646
        %2841 = vst [vmem:[#allocation2 + $0x1a8] sm:$0xff] %v2777
        %2842 = vst [vmem:[#allocation2 + $0x1b0] sm:$0xff] %v2212
        %2843 = vst [vmem:[#allocation2 + $0x1b8] sm:$0xff] %v2214
        %2844 = vst [vmem:[#allocation2 + $0x1c0] sm:$0xff] %v2358
        %2845 = vst [vmem:[#allocation2 + $0x1c8] sm:$0xff] %v2360
        %2846 = vst [vmem:[#allocation2 + $0x1d0] sm:$0xff] %v2504
        %2847 = vst [vmem:[#allocation2 + $0x1d8] sm:$0xff] %v2506
        %2848 = vst [vmem:[#allocation2 + $0x1e0] sm:$0xff] %v2650
        %2849 = vst [vmem:[#allocation2 + $0x1e8] sm:$0xff] %v2652
        %2850 = vst [vmem:[#allocation2 + $0x1f0] sm:$0xff] %v2782
        %2851 = vst [vmem:[#allocation2 + $0x1f8] sm:$0xff] %v2216
        %2852 = vst [vmem:[#allocation2 + $0x200] sm:$0xff] %v2218
        %2853 = vst [vmem:[#allocation2 + $0x208] sm:$0xff] %v2362
        %2854 = vst [vmem:[#allocation2 + $0x210] sm:$0xff] %v2364
        %2855 = vst [vmem:[#allocation2 + $0x218] sm:$0xff] %v2508
        %2856 = vst [vmem:[#allocation2 + $0x220] sm:$0xff] %v2510
        %2857 = vst [vmem:[#allocation2 + $0x228] sm:$0xff] %v2654
        %2858 = vst [vmem:[#allocation2 + $0x230] sm:$0xff] %v2656
        %2859 = vst [vmem:[#allocation2 + $0x238] sm:$0xff] %v2785
        %v2860 = vld [vmem:[%s489] sm:$0xff]
        %v2861 = vld [vmem:[%s489 + $0x8] sm:$0xff]
        %v2862 = vld [vmem:[%s489 + $0x10] sm:$0xff]
        %v2863 = vld [vmem:[%s489 + $0x18] sm:$0xff]
        %v2864 = vld [vmem:[%s489 + $0x20] sm:$0xf]
        %v2865 = vld [vmem:[%s489 + $0x24] sm:$0xff]
        %v2866 = vld [vmem:[%s489 + $0x2c] sm:$0xff]
        %v2867 = vld [vmem:[%s489 + $0x34] sm:$0xff]
        %v2868 = vld [vmem:[%s489 + $0x3c] sm:$0xff]
        %v2869 = vld [vmem:[%s489 + $0x44] sm:$0xf]
        %v2870 = vld [vmem:[%s489 + $0x48] sm:$0xff]
        %v2871 = vld [vmem:[%s489 + $0x50] sm:$0xff]
        %v2872 = vld [vmem:[%s489 + $0x58] sm:$0xff]
        %v2873 = vld [vmem:[%s489 + $0x60] sm:$0xff]
        %v2874 = vld [vmem:[%s489 + $0x68] sm:$0xf]
        %v2875 = vld [vmem:[%s489 + $0x6c] sm:$0xff]
        %v2876 = vld [vmem:[%s489 + $0x74] sm:$0xff]
        %v2877 = vld [vmem:[%s489 + $0x7c] sm:$0xff]
        %v2878 = vld [vmem:[%s489 + $0x84] sm:$0xff]
        %v2879 = vld [vmem:[%s489 + $0x8c] sm:$0xf]
        %v2880 = vld [vmem:[%s489 + $0x90] sm:$0xff]
        %v2881 = vld [vmem:[%s489 + $0x98] sm:$0xff]
        %v2882 = vld [vmem:[%s489 + $0xa0] sm:$0xff]
        %v2883 = vld [vmem:[%s489 + $0xa8] sm:$0xff]
        %v2884 = vld [vmem:[%s489 + $0xb0] sm:$0xf]
        %v2885 = vld [vmem:[%s489 + $0xb4] sm:$0xff]
        %v2886 = vld [vmem:[%s489 + $0xbc] sm:$0xff]
        %v2887 = vld [vmem:[%s489 + $0xc4] sm:$0xff]
        %v2888 = vld [vmem:[%s489 + $0xcc] sm:$0xff]
        %v2889 = vld [vmem:[%s489 + $0xd4] sm:$0xf]
        %v2890 = vld [vmem:[%s489 + $0xd8] sm:$0xff]
        %v2891 = vld [vmem:[%s489 + $0xe0] sm:$0xff]
        %v2892 = vld [vmem:[%s489 + $0xe8] sm:$0xff]
        %v2893 = vld [vmem:[%s489 + $0xf0] sm:$0xff]
        %v2894 = vld [vmem:[%s489 + $0xf8] sm:$0xf]
        %v2895 = vld [vmem:[%s489 + $0xfc] sm:$0xff]
        %v2896 = vld [vmem:[%s489 + $0x104] sm:$0xff]
        %v2897 = vld [vmem:[%s489 + $0x10c] sm:$0xff]
        %v2898 = vld [vmem:[%s489 + $0x114] sm:$0xff]
        %v2899 = vld [vmem:[%s489 + $0x11c] sm:$0xf]
        %v2900 = vld [vmem:[%s489 + $0x120] sm:$0xff]
        %v2901 = vld [vmem:[%s489 + $0x128] sm:$0xff]
        %v2902 = vld [vmem:[%s489 + $0x130] sm:$0xff]
        %v2903 = vld [vmem:[%s489 + $0x138] sm:$0xff]
        %v2904 = vld [vmem:[%s489 + $0x140] sm:$0xf]
        %v2905 = vld [vmem:[%s489 + $0x144] sm:$0xff]
        %v2906 = vld [vmem:[%s489 + $0x14c] sm:$0xff]
        %v2907 = vld [vmem:[%s489 + $0x154] sm:$0xff]
        %v2908 = vld [vmem:[%s489 + $0x15c] sm:$0xff]
        %v2909 = vld [vmem:[%s489 + $0x164] sm:$0xf]
        %v2910 = vld [vmem:[%s489 + $0x168] sm:$0xff]
        %v2911 = vld [vmem:[%s489 + $0x170] sm:$0xff]
        %v2912 = vld [vmem:[%s489 + $0x178] sm:$0xff]
        %v2913 = vld [vmem:[%s489 + $0x180] sm:$0xff]
        %v2914 = vld [vmem:[%s489 + $0x188] sm:$0xf]
        %v2915 = vld [vmem:[%s489 + $0x18c] sm:$0xff]
        %v2916 = vld [vmem:[%s489 + $0x194] sm:$0xff]
        %v2917 = vld [vmem:[%s489 + $0x19c] sm:$0xff]
        %v2918 = vld [vmem:[%s489 + $0x1a4] sm:$0xff]
        %v2919 = vld [vmem:[%s489 + $0x1ac] sm:$0xf]
        %v2920 = vld [vmem:[%s489 + $0x1b0] sm:$0xff]
        %v2921 = vld [vmem:[%s489 + $0x1b8] sm:$0xff]
        %v2922 = vld [vmem:[%s489 + $0x1c0] sm:$0xff]
        %v2923 = vld [vmem:[%s489 + $0x1c8] sm:$0xff]
        %v2924 = vld [vmem:[%s489 + $0x1d0] sm:$0xf]
        %v2925 = vld [vmem:[%s489 + $0x1d4] sm:$0xff]
        %v2926 = vld [vmem:[%s489 + $0x1dc] sm:$0xff]
        %v2927 = vld [vmem:[%s489 + $0x1e4] sm:$0xff]
        %v2928 = vld [vmem:[%s489 + $0x1ec] sm:$0xff]
        %v2929 = vld [vmem:[%s489 + $0x1f4] sm:$0xf]
        %v2930 = vld [vmem:[%s489 + $0x1f8] sm:$0xff]
        %v2931 = vld [vmem:[%s489 + $0x200] sm:$0xff]
        %v2932 = vld [vmem:[%s489 + $0x208] sm:$0xff]
        %v2933 = vld [vmem:[%s489 + $0x210] sm:$0xff]
        %v2934 = vld [vmem:[%s489 + $0x218] sm:$0xf]
        %v2935 = vld [vmem:[%s489 + $0x21c] sm:$0xff]
        %v2936 = vld [vmem:[%s489 + $0x224] sm:$0xff]
        %v2937 = vld [vmem:[%s489 + $0x22c] sm:$0xff]
        %v2938 = vld [vmem:[%s489 + $0x234] sm:$0xff]
        %v2939 = vld [vmem:[%s489 + $0x23c] sm:$0xf]
        %v2940 = vld [vmem:[%s489 + $0x240] sm:$0xff]
        %v2941 = vld [vmem:[%s489 + $0x248] sm:$0xff]
        %v2942 = vld [vmem:[%s489 + $0x250] sm:$0xff]
        %v2943 = vld [vmem:[%s489 + $0x258] sm:$0xff]
        %v2944 = vld [vmem:[%s489 + $0x260] sm:$0xf]
        %v2945 = vld [vmem:[%s489 + $0x264] sm:$0xff]
        %v2946 = vld [vmem:[%s489 + $0x26c] sm:$0xff]
        %v2947 = vld [vmem:[%s489 + $0x274] sm:$0xff]
        %v2948 = vld [vmem:[%s489 + $0x27c] sm:$0xff]
        %v2949 = vld [vmem:[%s489 + $0x284] sm:$0xf]
        %v2950 = vld [vmem:[%s489 + $0x288] sm:$0xff]
        %v2951 = vld [vmem:[%s489 + $0x290] sm:$0xff]
        %v2952 = vld [vmem:[%s489 + $0x298] sm:$0xff]
        %v2953 = vld [vmem:[%s489 + $0x2a0] sm:$0xff]
        %v2954 = vld [vmem:[%s489 + $0x2a8] sm:$0xf]
        %v2955 = vld [vmem:[%s489 + $0x2ac] sm:$0xff]
        %v2956 = vld [vmem:[%s489 + $0x2b4] sm:$0xff]
        %v2957 = vld [vmem:[%s489 + $0x2bc] sm:$0xff]
        %v2958 = vld [vmem:[%s489 + $0x2c4] sm:$0xff]
        %v2959 = vld [vmem:[%s489 + $0x2cc] sm:$0xf]
        %v2960 = vld [vmem:[%s489 + $0x2d0] sm:$0xff]
        %v2961 = vld [vmem:[%s489 + $0x2d8] sm:$0xff]
        %v2962 = vld [vmem:[%s489 + $0x2e0] sm:$0xff]
        %v2963 = vld [vmem:[%s489 + $0x2e8] sm:$0xff]
        %v2964 = vld [vmem:[%s489 + $0x2f0] sm:$0xf]
        %v2965 = vld [vmem:[%s489 + $0x2f4] sm:$0xff]
        %v2966 = vld [vmem:[%s489 + $0x2fc] sm:$0xff]
        %v2967 = vld [vmem:[%s489 + $0x304] sm:$0xff]
        %v2968 = vld [vmem:[%s489 + $0x30c] sm:$0xff]
        %v2969 = vld [vmem:[%s489 + $0x314] sm:$0xf]
        %v2970 = vld [vmem:[%s489 + $0x318] sm:$0xff]
        %v2971 = vld [vmem:[%s489 + $0x320] sm:$0xff]
        %v2972 = vld [vmem:[%s489 + $0x328] sm:$0xff]
        %v2973 = vld [vmem:[%s489 + $0x330] sm:$0xff]
        %v2974 = vld [vmem:[%s489 + $0x338] sm:$0xf]
        %v2975 = vld [vmem:[%s489 + $0x33c] sm:$0xff]
        %v2976 = vld [vmem:[%s489 + $0x344] sm:$0xff]
        %v2977 = vld [vmem:[%s489 + $0x34c] sm:$0xff]
        %v2978 = vld [vmem:[%s489 + $0x354] sm:$0xff]
        %v2979 = vld [vmem:[%s489 + $0x35c] sm:$0xf]
        %v2980 = vld [vmem:[%s489 + $0x360] sm:$0xff]
        %v2981 = vld [vmem:[%s489 + $0x368] sm:$0xff]
        %v2982 = vld [vmem:[%s489 + $0x370] sm:$0xff]
        %v2983 = vld [vmem:[%s489 + $0x378] sm:$0xff]
        %v2984 = vld [vmem:[%s489 + $0x380] sm:$0xf]
        %v2985 = vld [vmem:[%s489 + $0x384] sm:$0xff]
        %v2986 = vld [vmem:[%s489 + $0x38c] sm:$0xff]
        %v2987 = vld [vmem:[%s489 + $0x394] sm:$0xff]
        %v2988 = vld [vmem:[%s489 + $0x39c] sm:$0xff]
        %v2989 = vld [vmem:[%s489 + $0x3a4] sm:$0xf]
        %v2990 = vld [vmem:[%s489 + $0x3a8] sm:$0xff]
        %v2991 = vld [vmem:[%s489 + $0x3b0] sm:$0xff]
        %v2992 = vld [vmem:[%s489 + $0x3b8] sm:$0xff]
        %v2993 = vld [vmem:[%s489 + $0x3c0] sm:$0xff]
        %v2994 = vld [vmem:[%s489 + $0x3c8] sm:$0xf]
        %v2995 = vld [vmem:[%s489 + $0x3cc] sm:$0xff]
        %v2996 = vld [vmem:[%s489 + $0x3d4] sm:$0xff]
        %v2997 = vld [vmem:[%s489 + $0x3dc] sm:$0xff]
        %v2998 = vld [vmem:[%s489 + $0x3e4] sm:$0xff]
        %v2999 = vld [vmem:[%s489 + $0x3ec] sm:$0xf]
        %v3000 = vld [vmem:[%s489 + $0x3f0] sm:$0xff]
        %v3001 = vld [vmem:[%s489 + $0x3f8] sm:$0xff]
        %v3002 = vld [vmem:[%s489 + $0x400] sm:$0xff]
        %v3003 = vld [vmem:[%s489 + $0x408] sm:$0xff]
        %v3004 = vld [vmem:[%s489 + $0x410] sm:$0xf]
        %v3005 = vld [vmem:[%s489 + $0x414] sm:$0xff]
        %v3006 = vld [vmem:[%s489 + $0x41c] sm:$0xff]
        %v3007 = vld [vmem:[%s489 + $0x424] sm:$0xff]
        %v3008 = vld [vmem:[%s489 + $0x42c] sm:$0xff]
        %v3009 = vld [vmem:[%s489 + $0x434] sm:$0xf]
        %v3010 = vld [vmem:[%s489 + $0x438] sm:$0xff]
        %v3011 = vld [vmem:[%s489 + $0x440] sm:$0xff]
        %v3012 = vld [vmem:[%s489 + $0x448] sm:$0xff]
        %v3013 = vld [vmem:[%s489 + $0x450] sm:$0xff]
        %v3014 = vld [vmem:[%s489 + $0x458] sm:$0xf]
        %v3015 = vld [vmem:[%s489 + $0x45c] sm:$0xff]
        %v3016 = vld [vmem:[%s489 + $0x464] sm:$0xff]
        %v3017 = vld [vmem:[%s489 + $0x46c] sm:$0xff]
        %v3018 = vld [vmem:[%s489 + $0x474] sm:$0xff]
        %v3019 = vld [vmem:[%s489 + $0x47c] sm:$0xf]
        %v3020 = vld [vmem:[%s489 + $0x480] sm:$0xff]
        %v3021 = vld [vmem:[%s489 + $0x488] sm:$0xff]
        %v3022 = vld [vmem:[%s489 + $0x490] sm:$0xff]
        %v3023 = vld [vmem:[%s489 + $0x498] sm:$0xff]
        %v3024 = vld [vmem:[%s489 + $0x4a0] sm:$0xf]
        %v3025 = vld [vmem:[%s489 + $0x4a4] sm:$0xff]
        %v3026 = vld [vmem:[%s489 + $0x4ac] sm:$0xff]
        %v3027 = vld [vmem:[%s489 + $0x4b4] sm:$0xff]
        %v3028 = vld [vmem:[%s489 + $0x4bc] sm:$0xff]
        %v3029 = vld [vmem:[%s489 + $0x4c4] sm:$0xf]
        %v3030 = vld [vmem:[%s489 + $0x4c8] sm:$0xff]
        %v3031 = vld [vmem:[%s489 + $0x4d0] sm:$0xff]
        %v3032 = vld [vmem:[%s489 + $0x4d8] sm:$0xff]
        %v3033 = vld [vmem:[%s489 + $0x4e0] sm:$0xff]
        %v3034 = vld [vmem:[%s489 + $0x4e8] sm:$0xf]
        %v3035 = vld [vmem:[%s489 + $0x4ec] sm:$0xff]
        %v3036 = vld [vmem:[%s489 + $0x4f4] sm:$0xff]
        %v3037 = vld [vmem:[%s489 + $0x4fc] sm:$0xff]
        %v3038 = vld [vmem:[%s489 + $0x504] sm:$0xff]
        %v3039 = vld [vmem:[%s489 + $0x50c] sm:$0xf]
        %v3040 = vld [vmem:[%s489 + $0x510] sm:$0xff]
        %v3041 = vld [vmem:[%s489 + $0x518] sm:$0xff]
        %v3042 = vld [vmem:[%s489 + $0x520] sm:$0xff]
        %v3043 = vld [vmem:[%s489 + $0x528] sm:$0xff]
        %v3044 = vld [vmem:[%s489 + $0x530] sm:$0xf]
        %v3045 = vld [vmem:[%s489 + $0x534] sm:$0xff]
        %v3046 = vld [vmem:[%s489 + $0x53c] sm:$0xff]
        %v3047 = vld [vmem:[%s489 + $0x544] sm:$0xff]
        %v3048 = vld [vmem:[%s489 + $0x54c] sm:$0xff]
        %v3049 = vld [vmem:[%s489 + $0x554] sm:$0xf]
        %v3050 = vld [vmem:[%s489 + $0x558] sm:$0xff]
        %v3051 = vld [vmem:[%s489 + $0x560] sm:$0xff]
        %v3052 = vld [vmem:[%s489 + $0x568] sm:$0xff]
        %v3053 = vld [vmem:[%s489 + $0x570] sm:$0xff]
        %v3054 = vld [vmem:[%s489 + $0x578] sm:$0xf]
        %v3055 = vld [vmem:[%s489 + $0x57c] sm:$0xff]
        %v3056 = vld [vmem:[%s489 + $0x584] sm:$0xff]
        %v3057 = vld [vmem:[%s489 + $0x58c] sm:$0xff]
        %v3058 = vld [vmem:[%s489 + $0x594] sm:$0xff]
        %v3059 = vld [vmem:[%s489 + $0x59c] sm:$0xf]
        %v3060 = vld [vmem:[%s489 + $0x5a0] sm:$0xff]
        %v3061 = vld [vmem:[%s489 + $0x5a8] sm:$0xff]
        %v3062 = vld [vmem:[%s489 + $0x5b0] sm:$0xff]
        %v3063 = vld [vmem:[%s489 + $0x5b8] sm:$0xff]
        %v3064 = vld [vmem:[%s489 + $0x5c0] sm:$0xf]
        %v3065 = vld [vmem:[%s489 + $0x5c4] sm:$0xff]
        %v3066 = vld [vmem:[%s489 + $0x5cc] sm:$0xff]
        %v3067 = vld [vmem:[%s489 + $0x5d4] sm:$0xff]
        %v3068 = vld [vmem:[%s489 + $0x5dc] sm:$0xff]
        %v3069 = vld [vmem:[%s489 + $0x5e4] sm:$0xf]
        %v3070 = vld [vmem:[%s489 + $0x5e8] sm:$0xff]
        %v3071 = vld [vmem:[%s489 + $0x5f0] sm:$0xff]
        %v3072 = vld [vmem:[%s489 + $0x5f8] sm:$0xff]
        %v3073 = vld [vmem:[%s489 + $0x600] sm:$0xff]
        %v3074 = vld [vmem:[%s489 + $0x608] sm:$0xf]
        %v3075 = vld [vmem:[%s489 + $0x60c] sm:$0xff]
        %v3076 = vld [vmem:[%s489 + $0x614] sm:$0xff]
        %v3077 = vld [vmem:[%s489 + $0x61c] sm:$0xff]
        %v3078 = vld [vmem:[%s489 + $0x624] sm:$0xff]
        %v3079 = vld [vmem:[%s489 + $0x62c] sm:$0xf]
        %v3080 = vld [vmem:[%s489 + $0x630] sm:$0xff]
        %v3081 = vld [vmem:[%s489 + $0x638] sm:$0xff]
        %v3082 = vld [vmem:[%s489 + $0x640] sm:$0xff]
        %v3083 = vld [vmem:[%s489 + $0x648] sm:$0xff]
        %v3084 = vld [vmem:[%s489 + $0x650] sm:$0xf]
        %v3085 = vld [vmem:[%s489 + $0x654] sm:$0xff]
        %v3086 = vld [vmem:[%s489 + $0x65c] sm:$0xff]
        %v3087 = vld [vmem:[%s489 + $0x664] sm:$0xff]
        %v3088 = vld [vmem:[%s489 + $0x66c] sm:$0xff]
        %v3089 = vld [vmem:[%s489 + $0x674] sm:$0xf]
        %v3090 = vld [vmem:[%s489 + $0x678] sm:$0xff]
        %v3091 = vld [vmem:[%s489 + $0x680] sm:$0xff]
        %v3092 = vld [vmem:[%s489 + $0x688] sm:$0xff]
        %v3093 = vld [vmem:[%s489 + $0x690] sm:$0xff]
        %v3094 = vld [vmem:[%s489 + $0x698] sm:$0xf]
        %v3095 = vld [vmem:[%s489 + $0x69c] sm:$0xff]
        %v3096 = vld [vmem:[%s489 + $0x6a4] sm:$0xff]
        %v3097 = vld [vmem:[%s489 + $0x6ac] sm:$0xff]
        %v3098 = vld [vmem:[%s489 + $0x6b4] sm:$0xff]
        %v3099 = vld [vmem:[%s489 + $0x6bc] sm:$0xf]
        %v3100 = vld [vmem:[%s507] sm:$0xff]
        %v3101 = vld [vmem:[%s507 + $0x8] sm:$0x1]
        %v3102 = vld [vmem:[%s586] sm:$0xff]
        %v3103 = vld [vmem:[%s586 + $0x8] sm:$0xff]
        %v3104 = vld [vmem:[%s586 + $0x10] sm:$0xff]
        %v3105 = vld [vmem:[#allocation2] sm:$0xff]
        %v3106 = vld [vmem:[#allocation2 + $0x8] sm:$0xff]
        %v3107 = vld [vmem:[#allocation2 + $0x10] sm:$0xff]
        %v3108 = vld [vmem:[#allocation2 + $0x18] sm:$0xff]
        %v3109 = vld [vmem:[#allocation2 + $0x20] sm:$0xff]
        %v3110 = vld [vmem:[#allocation2 + $0x28] sm:$0xff]
        %v3111 = vld [vmem:[#allocation2 + $0x30] sm:$0xff]
        %v3112 = vld [vmem:[#allocation2 + $0x38] sm:$0xff]
        %v3113 = vld [vmem:[#allocation2 + $0x40] sm:$0xff]
        %v3114 = vpack.c.bf16 %v3102, %v3102
        %v3115 = vpack.c.bf16 %v3103, %v3103
        %v3116 = vpack.c.bf16 %v3104, %v3104
        %v3119 = vlaneseq
        %v3120 = vshrl.u32 %v3119, 7
        %v3121 = vsub.s32 0, %v3120
        %v3122 = vrot.slane %v3100, %v3121
        %v3123 = vlaneseq
        %v3124 = vshrl.u32 %v3123, 7
        %v3125 = vsub.s32 1, %v3124
        %v3126 = vrot.slane %v3100, %v3125
        %v3127 = vlaneseq
        %v3128 = vshrl.u32 %v3127, 7
        %v3129 = vsub.s32 2, %v3128
        %v3130 = vrot.slane %v3100, %v3129
        %v3131 = vlaneseq
        %v3132 = vshrl.u32 %v3131, 7
        %v3133 = vsub.s32 3, %v3132
        %v3134 = vrot.slane %v3100, %v3133
        %v3135 = vlaneseq
        %v3136 = vshrl.u32 %v3135, 7
        %v3137 = vsub.s32 4, %v3136
        %v3138 = vrot.slane %v3100, %v3137
        %v3139 = vlaneseq
        %v3140 = vshrl.u32 %v3139, 7
        %v3141 = vsub.s32 5, %v3140
        %v3142 = vrot.slane %v3100, %v3141
        %v3143 = vlaneseq
        %v3144 = vshrl.u32 %v3143, 7
        %v3145 = vsub.s32 6, %v3144
        %v3146 = vrot.slane %v3100, %v3145
        %v3147 = vlaneseq
        %v3148 = vshrl.u32 %v3147, 7
        %v3149 = vsub.s32 7, %v3148
        %v3150 = vrot.slane %v3100, %v3149
        %v3151 = vlaneseq
        %v3152 = vshrl.u32 %v3151, 7
        %v3153 = vsub.s32 0, %v3152
        %v3154 = vrot.slane %v3101, %v3153
        %v3404 = vunpack.c.l.b16 %v2860
        %v3405 = vunpack.c.h.b16 %v2860
        %v3406 = vunpack.c.l.b16 %v2861
        %v3407 = vunpack.c.h.b16 %v2861
        %v3408 = vunpack.c.l.b16 %v2862
        %v3409 = vunpack.c.h.b16 %v2862
        %v3410 = vunpack.c.l.b16 %v2863
        %v3411 = vunpack.c.h.b16 %v2863
        %v3412 = vunpack.c.l.b16 %v2864
        %v3413 = vunpack.c.l.b16 %v2865
        %v3414 = vunpack.c.h.b16 %v2865
        %v3415 = vunpack.c.l.b16 %v2866
        %v3416 = vunpack.c.h.b16 %v2866
        %v3417 = vunpack.c.l.b16 %v2867
        %v3418 = vunpack.c.h.b16 %v2867
        %v3419 = vunpack.c.l.b16 %v2868
        %v3420 = vunpack.c.h.b16 %v2868
        %v3421 = vunpack.c.l.b16 %v2869
        %v3422 = vunpack.c.l.b16 %v2870
        %v3423 = vunpack.c.h.b16 %v2870
        %v3424 = vunpack.c.l.b16 %v2871
        %v3425 = vunpack.c.h.b16 %v2871
        %v3426 = vunpack.c.l.b16 %v2872
        %v3427 = vunpack.c.h.b16 %v2872
        %v3428 = vunpack.c.l.b16 %v2873
        %v3429 = vunpack.c.h.b16 %v2873
        %v3430 = vunpack.c.l.b16 %v2874
        %v3431 = vunpack.c.l.b16 %v2875
        %v3432 = vunpack.c.h.b16 %v2875
        %v3433 = vunpack.c.l.b16 %v2876
        %v3434 = vunpack.c.h.b16 %v2876
        %v3435 = vunpack.c.l.b16 %v2877
        %v3436 = vunpack.c.h.b16 %v2877
        %v3437 = vunpack.c.l.b16 %v2878
        %v3438 = vunpack.c.h.b16 %v2878
        %v3439 = vunpack.c.l.b16 %v2879
        %v3440 = vunpack.c.l.b16 %v2880
        %v3441 = vunpack.c.h.b16 %v2880
        %v3442 = vunpack.c.l.b16 %v2881
        %v3443 = vunpack.c.h.b16 %v2881
        %v3444 = vunpack.c.l.b16 %v2882
        %v3445 = vunpack.c.h.b16 %v2882
        %v3446 = vunpack.c.l.b16 %v2883
        %v3447 = vunpack.c.h.b16 %v2883
        %v3448 = vunpack.c.l.b16 %v2884
        %v3449 = vunpack.c.l.b16 %v2885
        %v3450 = vunpack.c.h.b16 %v2885
        %v3451 = vunpack.c.l.b16 %v2886
        %v3452 = vunpack.c.h.b16 %v2886
        %v3453 = vunpack.c.l.b16 %v2887
        %v3454 = vunpack.c.h.b16 %v2887
        %v3455 = vunpack.c.l.b16 %v2888
        %v3456 = vunpack.c.h.b16 %v2888
        %v3457 = vunpack.c.l.b16 %v2889
        %v3458 = vunpack.c.l.b16 %v2890
        %v3459 = vunpack.c.h.b16 %v2890
        %v3460 = vunpack.c.l.b16 %v2891
        %v3461 = vunpack.c.h.b16 %v2891
        %v3462 = vunpack.c.l.b16 %v2892
        %v3463 = vunpack.c.h.b16 %v2892
        %v3464 = vunpack.c.l.b16 %v2893
        %v3465 = vunpack.c.h.b16 %v2893
        %v3466 = vunpack.c.l.b16 %v2894
        %v3467 = vunpack.c.l.b16 %v2895
        %v3468 = vunpack.c.h.b16 %v2895
        %v3469 = vunpack.c.l.b16 %v2896
        %v3470 = vunpack.c.h.b16 %v2896
        %v3471 = vunpack.c.l.b16 %v2897
        %v3472 = vunpack.c.h.b16 %v2897
        %v3473 = vunpack.c.l.b16 %v2898
        %v3474 = vunpack.c.h.b16 %v2898
        %v3475 = vunpack.c.l.b16 %v2899
        %v3476 = vunpack.c.l.b16 %v2900
        %v3477 = vunpack.c.h.b16 %v2900
        %v3478 = vunpack.c.l.b16 %v2901
        %v3479 = vunpack.c.h.b16 %v2901
        %v3480 = vunpack.c.l.b16 %v2902
        %v3481 = vunpack.c.h.b16 %v2902
        %v3482 = vunpack.c.l.b16 %v2903
        %v3483 = vunpack.c.h.b16 %v2903
        %v3484 = vunpack.c.l.b16 %v2904
        %v3485 = vunpack.c.l.b16 %v2905
        %v3486 = vunpack.c.h.b16 %v2905
        %v3487 = vunpack.c.l.b16 %v2906
        %v3488 = vunpack.c.h.b16 %v2906
        %v3489 = vunpack.c.l.b16 %v2907
        %v3490 = vunpack.c.h.b16 %v2907
        %v3491 = vunpack.c.l.b16 %v2908
        %v3492 = vunpack.c.h.b16 %v2908
        %v3493 = vunpack.c.l.b16 %v2909
        %v3494 = vunpack.c.l.b16 %v2910
        %v3495 = vunpack.c.h.b16 %v2910
        %v3496 = vunpack.c.l.b16 %v2911
        %v3497 = vunpack.c.h.b16 %v2911
        %v3498 = vunpack.c.l.b16 %v2912
        %v3499 = vunpack.c.h.b16 %v2912
        %v3500 = vunpack.c.l.b16 %v2913
        %v3501 = vunpack.c.h.b16 %v2913
        %v3502 = vunpack.c.l.b16 %v2914
        %v3503 = vunpack.c.l.b16 %v2915
        %v3504 = vunpack.c.h.b16 %v2915
        %v3505 = vunpack.c.l.b16 %v2916
        %v3506 = vunpack.c.h.b16 %v2916
        %v3507 = vunpack.c.l.b16 %v2917
        %v3508 = vunpack.c.h.b16 %v2917
        %v3509 = vunpack.c.l.b16 %v2918
        %v3510 = vunpack.c.h.b16 %v2918
        %v3511 = vunpack.c.l.b16 %v2919
        %v3512 = vunpack.c.l.b16 %v2920
        %v3513 = vunpack.c.h.b16 %v2920
        %v3514 = vunpack.c.l.b16 %v2921
        %v3515 = vunpack.c.h.b16 %v2921
        %v3516 = vunpack.c.l.b16 %v2922
        %v3517 = vunpack.c.h.b16 %v2922
        %v3518 = vunpack.c.l.b16 %v2923
        %v3519 = vunpack.c.h.b16 %v2923
        %v3520 = vunpack.c.l.b16 %v2924
        %v3521 = vunpack.c.l.b16 %v2925
        %v3522 = vunpack.c.h.b16 %v2925
        %v3523 = vunpack.c.l.b16 %v2926
        %v3524 = vunpack.c.h.b16 %v2926
        %v3525 = vunpack.c.l.b16 %v2927
        %v3526 = vunpack.c.h.b16 %v2927
        %v3527 = vunpack.c.l.b16 %v2928
        %v3528 = vunpack.c.h.b16 %v2928
        %v3529 = vunpack.c.l.b16 %v2929
        %v3530 = vunpack.c.l.b16 %v2930
        %v3531 = vunpack.c.h.b16 %v2930
        %v3532 = vunpack.c.l.b16 %v2931
        %v3533 = vunpack.c.h.b16 %v2931
        %v3534 = vunpack.c.l.b16 %v2932
        %v3535 = vunpack.c.h.b16 %v2932
        %v3536 = vunpack.c.l.b16 %v2933
        %v3537 = vunpack.c.h.b16 %v2933
        %v3538 = vunpack.c.l.b16 %v2934
        %v3539 = vunpack.c.l.b16 %v2935
        %v3540 = vunpack.c.h.b16 %v2935
        %v3541 = vunpack.c.l.b16 %v2936
        %v3542 = vunpack.c.h.b16 %v2936
        %v3543 = vunpack.c.l.b16 %v2937
        %v3544 = vunpack.c.h.b16 %v2937
        %v3545 = vunpack.c.l.b16 %v2938
        %v3546 = vunpack.c.h.b16 %v2938
        %v3547 = vunpack.c.l.b16 %v2939
        %v3548 = vunpack.c.l.b16 %v2940
        %v3549 = vunpack.c.h.b16 %v2940
        %v3550 = vunpack.c.l.b16 %v2941
        %v3551 = vunpack.c.h.b16 %v2941
        %v3552 = vunpack.c.l.b16 %v2942
        %v3553 = vunpack.c.h.b16 %v2942
        %v3554 = vunpack.c.l.b16 %v2943
        %v3555 = vunpack.c.h.b16 %v2943
        %v3556 = vunpack.c.l.b16 %v2944
        %v3557 = vunpack.c.l.b16 %v2945
        %v3558 = vunpack.c.h.b16 %v2945
        %v3559 = vunpack.c.l.b16 %v2946
        %v3560 = vunpack.c.h.b16 %v2946
        %v3561 = vunpack.c.l.b16 %v2947
        %v3562 = vunpack.c.h.b16 %v2947
        %v3563 = vunpack.c.l.b16 %v2948
        %v3564 = vunpack.c.h.b16 %v2948
        %v3565 = vunpack.c.l.b16 %v2949
        %v3566 = vunpack.c.l.b16 %v2950
        %v3567 = vunpack.c.h.b16 %v2950
        %v3568 = vunpack.c.l.b16 %v2951
        %v3569 = vunpack.c.h.b16 %v2951
        %v3570 = vunpack.c.l.b16 %v2952
        %v3571 = vunpack.c.h.b16 %v2952
        %v3572 = vunpack.c.l.b16 %v2953
        %v3573 = vunpack.c.h.b16 %v2953
        %v3574 = vunpack.c.l.b16 %v2954
        %v3575 = vunpack.c.l.b16 %v2955
        %v3576 = vunpack.c.h.b16 %v2955
        %v3577 = vunpack.c.l.b16 %v2956
        %v3578 = vunpack.c.h.b16 %v2956
        %v3579 = vunpack.c.l.b16 %v2957
        %v3580 = vunpack.c.h.b16 %v2957
        %v3581 = vunpack.c.l.b16 %v2958
        %v3582 = vunpack.c.h.b16 %v2958
        %v3583 = vunpack.c.l.b16 %v2959
        %v3584 = vunpack.c.l.b16 %v2960
        %v3585 = vunpack.c.h.b16 %v2960
        %v3586 = vunpack.c.l.b16 %v2961
        %v3587 = vunpack.c.h.b16 %v2961
        %v3588 = vunpack.c.l.b16 %v2962
        %v3589 = vunpack.c.h.b16 %v2962
        %v3590 = vunpack.c.l.b16 %v2963
        %v3591 = vunpack.c.h.b16 %v2963
        %v3592 = vunpack.c.l.b16 %v2964
        %v3593 = vunpack.c.l.b16 %v2965
        %v3594 = vunpack.c.h.b16 %v2965
        %v3595 = vunpack.c.l.b16 %v2966
        %v3596 = vunpack.c.h.b16 %v2966
        %v3597 = vunpack.c.l.b16 %v2967
        %v3598 = vunpack.c.h.b16 %v2967
        %v3599 = vunpack.c.l.b16 %v2968
        %v3600 = vunpack.c.h.b16 %v2968
        %v3601 = vunpack.c.l.b16 %v2969
        %v3602 = vunpack.c.l.b16 %v2970
        %v3603 = vunpack.c.h.b16 %v2970
        %v3604 = vunpack.c.l.b16 %v2971
        %v3605 = vunpack.c.h.b16 %v2971
        %v3606 = vunpack.c.l.b16 %v2972
        %v3607 = vunpack.c.h.b16 %v2972
        %v3608 = vunpack.c.l.b16 %v2973
        %v3609 = vunpack.c.h.b16 %v2973
        %v3610 = vunpack.c.l.b16 %v2974
        %v3611 = vunpack.c.l.b16 %v2975
        %v3612 = vunpack.c.h.b16 %v2975
        %v3613 = vunpack.c.l.b16 %v2976
        %v3614 = vunpack.c.h.b16 %v2976
        %v3615 = vunpack.c.l.b16 %v2977
        %v3616 = vunpack.c.h.b16 %v2977
        %v3617 = vunpack.c.l.b16 %v2978
        %v3618 = vunpack.c.h.b16 %v2978
        %v3619 = vunpack.c.l.b16 %v2979
        %v3620 = vunpack.c.l.b16 %v2980
        %v3621 = vunpack.c.h.b16 %v2980
        %v3622 = vunpack.c.l.b16 %v2981
        %v3623 = vunpack.c.h.b16 %v2981
        %v3624 = vunpack.c.l.b16 %v2982
        %v3625 = vunpack.c.h.b16 %v2982
        %v3626 = vunpack.c.l.b16 %v2983
        %v3627 = vunpack.c.h.b16 %v2983
        %v3628 = vunpack.c.l.b16 %v2984
        %v3629 = vunpack.c.l.b16 %v2985
        %v3630 = vunpack.c.h.b16 %v2985
        %v3631 = vunpack.c.l.b16 %v2986
        %v3632 = vunpack.c.h.b16 %v2986
        %v3633 = vunpack.c.l.b16 %v2987
        %v3634 = vunpack.c.h.b16 %v2987
        %v3635 = vunpack.c.l.b16 %v2988
        %v3636 = vunpack.c.h.b16 %v2988
        %v3637 = vunpack.c.l.b16 %v2989
        %v3638 = vunpack.c.l.b16 %v2990
        %v3639 = vunpack.c.h.b16 %v2990
        %v3640 = vunpack.c.l.b16 %v2991
        %v3641 = vunpack.c.h.b16 %v2991
        %v3642 = vunpack.c.l.b16 %v2992
        %v3643 = vunpack.c.h.b16 %v2992
        %v3644 = vunpack.c.l.b16 %v2993
        %v3645 = vunpack.c.h.b16 %v2993
        %v3646 = vunpack.c.l.b16 %v2994
        %v3647 = vunpack.c.l.b16 %v2995
        %v3648 = vunpack.c.h.b16 %v2995
        %v3649 = vunpack.c.l.b16 %v2996
        %v3650 = vunpack.c.h.b16 %v2996
        %v3651 = vunpack.c.l.b16 %v2997
        %v3652 = vunpack.c.h.b16 %v2997
        %v3653 = vunpack.c.l.b16 %v2998
        %v3654 = vunpack.c.h.b16 %v2998
        %v3655 = vunpack.c.l.b16 %v2999
        %v3656 = vunpack.c.l.b16 %v3000
        %v3657 = vunpack.c.h.b16 %v3000
        %v3658 = vunpack.c.l.b16 %v3001
        %v3659 = vunpack.c.h.b16 %v3001
        %v3660 = vunpack.c.l.b16 %v3002
        %v3661 = vunpack.c.h.b16 %v3002
        %v3662 = vunpack.c.l.b16 %v3003
        %v3663 = vunpack.c.h.b16 %v3003
        %v3664 = vunpack.c.l.b16 %v3004
        %v3665 = vunpack.c.l.b16 %v3005
        %v3666 = vunpack.c.h.b16 %v3005
        %v3667 = vunpack.c.l.b16 %v3006
        %v3668 = vunpack.c.h.b16 %v3006
        %v3669 = vunpack.c.l.b16 %v3007
        %v3670 = vunpack.c.h.b16 %v3007
        %v3671 = vunpack.c.l.b16 %v3008
        %v3672 = vunpack.c.h.b16 %v3008
        %v3673 = vunpack.c.l.b16 %v3009
        %v3674 = vunpack.c.l.b16 %v3010
        %v3675 = vunpack.c.h.b16 %v3010
        %v3676 = vunpack.c.l.b16 %v3011
        %v3677 = vunpack.c.h.b16 %v3011
        %v3678 = vunpack.c.l.b16 %v3012
        %v3679 = vunpack.c.h.b16 %v3012
        %v3680 = vunpack.c.l.b16 %v3013
        %v3681 = vunpack.c.h.b16 %v3013
        %v3682 = vunpack.c.l.b16 %v3014
        %v3683 = vunpack.c.l.b16 %v3015
        %v3684 = vunpack.c.h.b16 %v3015
        %v3685 = vunpack.c.l.b16 %v3016
        %v3686 = vunpack.c.h.b16 %v3016
        %v3687 = vunpack.c.l.b16 %v3017
        %v3688 = vunpack.c.h.b16 %v3017
        %v3689 = vunpack.c.l.b16 %v3018
        %v3690 = vunpack.c.h.b16 %v3018
        %v3691 = vunpack.c.l.b16 %v3019
        %v3692 = vunpack.c.l.b16 %v3020
        %v3693 = vunpack.c.h.b16 %v3020
        %v3694 = vunpack.c.l.b16 %v3021
        %v3695 = vunpack.c.h.b16 %v3021
        %v3696 = vunpack.c.l.b16 %v3022
        %v3697 = vunpack.c.h.b16 %v3022
        %v3698 = vunpack.c.l.b16 %v3023
        %v3699 = vunpack.c.h.b16 %v3023
        %v3700 = vunpack.c.l.b16 %v3024
        %v3701 = vunpack.c.l.b16 %v3025
        %v3702 = vunpack.c.h.b16 %v3025
        %v3703 = vunpack.c.l.b16 %v3026
        %v3704 = vunpack.c.h.b16 %v3026
        %v3705 = vunpack.c.l.b16 %v3027
        %v3706 = vunpack.c.h.b16 %v3027
        %v3707 = vunpack.c.l.b16 %v3028
        %v3708 = vunpack.c.h.b16 %v3028
        %v3709 = vunpack.c.l.b16 %v3029
        %v3710 = vunpack.c.l.b16 %v3030
        %v3711 = vunpack.c.h.b16 %v3030
        %v3712 = vunpack.c.l.b16 %v3031
        %v3713 = vunpack.c.h.b16 %v3031
        %v3714 = vunpack.c.l.b16 %v3032
        %v3715 = vunpack.c.h.b16 %v3032
        %v3716 = vunpack.c.l.b16 %v3033
        %v3717 = vunpack.c.h.b16 %v3033
        %v3718 = vunpack.c.l.b16 %v3034
        %v3719 = vunpack.c.l.b16 %v3035
        %v3720 = vunpack.c.h.b16 %v3035
        %v3721 = vunpack.c.l.b16 %v3036
        %v3722 = vunpack.c.h.b16 %v3036
        %v3723 = vunpack.c.l.b16 %v3037
        %v3724 = vunpack.c.h.b16 %v3037
        %v3725 = vunpack.c.l.b16 %v3038
        %v3726 = vunpack.c.h.b16 %v3038
        %v3727 = vunpack.c.l.b16 %v3039
        %v3728 = vunpack.c.l.b16 %v3040
        %v3729 = vunpack.c.h.b16 %v3040
        %v3730 = vunpack.c.l.b16 %v3041
        %v3731 = vunpack.c.h.b16 %v3041
        %v3732 = vunpack.c.l.b16 %v3042
        %v3733 = vunpack.c.h.b16 %v3042
        %v3734 = vunpack.c.l.b16 %v3043
        %v3735 = vunpack.c.h.b16 %v3043
        %v3736 = vunpack.c.l.b16 %v3044
        %v3737 = vunpack.c.l.b16 %v3045
        %v3738 = vunpack.c.h.b16 %v3045
        %v3739 = vunpack.c.l.b16 %v3046
        %v3740 = vunpack.c.h.b16 %v3046
        %v3741 = vunpack.c.l.b16 %v3047
        %v3742 = vunpack.c.h.b16 %v3047
        %v3743 = vunpack.c.l.b16 %v3048
        %v3744 = vunpack.c.h.b16 %v3048
        %v3745 = vunpack.c.l.b16 %v3049
        %v3746 = vunpack.c.l.b16 %v3050
        %v3747 = vunpack.c.h.b16 %v3050
        %v3748 = vunpack.c.l.b16 %v3051
        %v3749 = vunpack.c.h.b16 %v3051
        %v3750 = vunpack.c.l.b16 %v3052
        %v3751 = vunpack.c.h.b16 %v3052
        %v3752 = vunpack.c.l.b16 %v3053
        %v3753 = vunpack.c.h.b16 %v3053
        %v3754 = vunpack.c.l.b16 %v3054
        %v3755 = vunpack.c.l.b16 %v3055
        %v3756 = vunpack.c.h.b16 %v3055
        %v3757 = vunpack.c.l.b16 %v3056
        %v3758 = vunpack.c.h.b16 %v3056
        %v3759 = vunpack.c.l.b16 %v3057
        %v3760 = vunpack.c.h.b16 %v3057
        %v3761 = vunpack.c.l.b16 %v3058
        %v3762 = vunpack.c.h.b16 %v3058
        %v3763 = vunpack.c.l.b16 %v3059
        %v3764 = vunpack.c.l.b16 %v3060
        %v3765 = vunpack.c.h.b16 %v3060
        %v3766 = vunpack.c.l.b16 %v3061
        %v3767 = vunpack.c.h.b16 %v3061
        %v3768 = vunpack.c.l.b16 %v3062
        %v3769 = vunpack.c.h.b16 %v3062
        %v3770 = vunpack.c.l.b16 %v3063
        %v3771 = vunpack.c.h.b16 %v3063
        %v3772 = vunpack.c.l.b16 %v3064
        %v3773 = vunpack.c.l.b16 %v3065
        %v3774 = vunpack.c.h.b16 %v3065
        %v3775 = vunpack.c.l.b16 %v3066
        %v3776 = vunpack.c.h.b16 %v3066
        %v3777 = vunpack.c.l.b16 %v3067
        %v3778 = vunpack.c.h.b16 %v3067
        %v3779 = vunpack.c.l.b16 %v3068
        %v3780 = vunpack.c.h.b16 %v3068
        %v3781 = vunpack.c.l.b16 %v3069
        %v3782 = vunpack.c.l.b16 %v3070
        %v3783 = vunpack.c.h.b16 %v3070
        %v3784 = vunpack.c.l.b16 %v3071
        %v3785 = vunpack.c.h.b16 %v3071
        %v3786 = vunpack.c.l.b16 %v3072
        %v3787 = vunpack.c.h.b16 %v3072
        %v3788 = vunpack.c.l.b16 %v3073
        %v3789 = vunpack.c.h.b16 %v3073
        %v3790 = vunpack.c.l.b16 %v3074
        %v3791 = vunpack.c.l.b16 %v3075
        %v3792 = vunpack.c.h.b16 %v3075
        %v3793 = vunpack.c.l.b16 %v3076
        %v3794 = vunpack.c.h.b16 %v3076
        %v3795 = vunpack.c.l.b16 %v3077
        %v3796 = vunpack.c.h.b16 %v3077
        %v3797 = vunpack.c.l.b16 %v3078
        %v3798 = vunpack.c.h.b16 %v3078
        %v3799 = vunpack.c.l.b16 %v3079
        %v3800 = vunpack.c.l.b16 %v3080
        %v3801 = vunpack.c.h.b16 %v3080
        %v3802 = vunpack.c.l.b16 %v3081
        %v3803 = vunpack.c.h.b16 %v3081
        %v3804 = vunpack.c.l.b16 %v3082
        %v3805 = vunpack.c.h.b16 %v3082
        %v3806 = vunpack.c.l.b16 %v3083
        %v3807 = vunpack.c.h.b16 %v3083
        %v3808 = vunpack.c.l.b16 %v3084
        %v3809 = vunpack.c.l.b16 %v3085
        %v3810 = vunpack.c.h.b16 %v3085
        %v3811 = vunpack.c.l.b16 %v3086
        %v3812 = vunpack.c.h.b16 %v3086
        %v3813 = vunpack.c.l.b16 %v3087
        %v3814 = vunpack.c.h.b16 %v3087
        %v3815 = vunpack.c.l.b16 %v3088
        %v3816 = vunpack.c.h.b16 %v3088
        %v3817 = vunpack.c.l.b16 %v3089
        %v3818 = vunpack.c.l.b16 %v3090
        %v3819 = vunpack.c.h.b16 %v3090
        %v3820 = vunpack.c.l.b16 %v3091
        %v3821 = vunpack.c.h.b16 %v3091
        %v3822 = vunpack.c.l.b16 %v3092
        %v3823 = vunpack.c.h.b16 %v3092
        %v3824 = vunpack.c.l.b16 %v3093
        %v3825 = vunpack.c.h.b16 %v3093
        %v3826 = vunpack.c.l.b16 %v3094
        %v3827 = vunpack.c.l.b16 %v3095
        %v3828 = vunpack.c.h.b16 %v3095
        %v3829 = vunpack.c.l.b16 %v3096
        %v3830 = vunpack.c.h.b16 %v3096
        %v3831 = vunpack.c.l.b16 %v3097
        %v3832 = vunpack.c.h.b16 %v3097
        %v3833 = vunpack.c.l.b16 %v3098
        %v3834 = vunpack.c.h.b16 %v3098
        %v3835 = vunpack.c.l.b16 %v3099
        %v3836 = vpack.c.b16 %v3413, %v3404
        %v3837 = vpack.c.b16 %v3414, %v3405
        %v3838 = vpack.c.b16 %v3415, %v3406
        %v3839 = vpack.c.b16 %v3416, %v3407
        %v3840 = vpack.c.b16 %v3417, %v3408
        %v3841 = vpack.c.b16 %v3418, %v3409
        %v3842 = vpack.c.b16 %v3419, %v3410
        %v3843 = vpack.c.b16 %v3420, %v3411
        %v3844 = vpack.c.b16 %v3421, %v3412
        %v3845 = vpack.c.b16 %v3431, %v3422
        %v3846 = vpack.c.b16 %v3432, %v3423
        %v3847 = vpack.c.b16 %v3433, %v3424
        %v3848 = vpack.c.b16 %v3434, %v3425
        %v3849 = vpack.c.b16 %v3435, %v3426
        %v3850 = vpack.c.b16 %v3436, %v3427
        %v3851 = vpack.c.b16 %v3437, %v3428
        %v3852 = vpack.c.b16 %v3438, %v3429
        %v3853 = vpack.c.b16 %v3439, %v3430
        %v3854 = vpack.c.b16 %v3449, %v3440
        %v3855 = vpack.c.b16 %v3450, %v3441
        %v3856 = vpack.c.b16 %v3451, %v3442
        %v3857 = vpack.c.b16 %v3452, %v3443
        %v3858 = vpack.c.b16 %v3453, %v3444
        %v3859 = vpack.c.b16 %v3454, %v3445
        %v3860 = vpack.c.b16 %v3455, %v3446
        %v3861 = vpack.c.b16 %v3456, %v3447
        %v3862 = vpack.c.b16 %v3457, %v3448
        %v3863 = vpack.c.b16 %v3467, %v3458
        %v3864 = vpack.c.b16 %v3468, %v3459
        %v3865 = vpack.c.b16 %v3469, %v3460
        %v3866 = vpack.c.b16 %v3470, %v3461
        %v3867 = vpack.c.b16 %v3471, %v3462
        %v3868 = vpack.c.b16 %v3472, %v3463
        %v3869 = vpack.c.b16 %v3473, %v3464
        %v3870 = vpack.c.b16 %v3474, %v3465
        %v3871 = vpack.c.b16 %v3475, %v3466
        %v3872 = vpack.c.b16 %v3485, %v3476
        %v3873 = vpack.c.b16 %v3486, %v3477
        %v3874 = vpack.c.b16 %v3487, %v3478
        %v3875 = vpack.c.b16 %v3488, %v3479
        %v3876 = vpack.c.b16 %v3489, %v3480
        %v3877 = vpack.c.b16 %v3490, %v3481
        %v3878 = vpack.c.b16 %v3491, %v3482
        %v3879 = vpack.c.b16 %v3492, %v3483
        %v3880 = vpack.c.b16 %v3493, %v3484
        %v3881 = vpack.c.b16 %v3503, %v3494
        %v3882 = vpack.c.b16 %v3504, %v3495
        %v3883 = vpack.c.b16 %v3505, %v3496
        %v3884 = vpack.c.b16 %v3506, %v3497
        %v3885 = vpack.c.b16 %v3507, %v3498
        %v3886 = vpack.c.b16 %v3508, %v3499
        %v3887 = vpack.c.b16 %v3509, %v3500
        %v3888 = vpack.c.b16 %v3510, %v3501
        %v3889 = vpack.c.b16 %v3511, %v3502
        %v3890 = vpack.c.b16 %v3521, %v3512
        %v3891 = vpack.c.b16 %v3522, %v3513
        %v3892 = vpack.c.b16 %v3523, %v3514
        %v3893 = vpack.c.b16 %v3524, %v3515
        %v3894 = vpack.c.b16 %v3525, %v3516
        %v3895 = vpack.c.b16 %v3526, %v3517
        %v3896 = vpack.c.b16 %v3527, %v3518
        %v3897 = vpack.c.b16 %v3528, %v3519
        %v3898 = vpack.c.b16 %v3529, %v3520
        %v3899 = vpack.c.b16 %v3539, %v3530
        %v3900 = vpack.c.b16 %v3540, %v3531
        %v3901 = vpack.c.b16 %v3541, %v3532
        %v3902 = vpack.c.b16 %v3542, %v3533
        %v3903 = vpack.c.b16 %v3543, %v3534
        %v3904 = vpack.c.b16 %v3544, %v3535
        %v3905 = vpack.c.b16 %v3545, %v3536
        %v3906 = vpack.c.b16 %v3546, %v3537
        %v3907 = vpack.c.b16 %v3547, %v3538
        %v3908 = vpack.c.b16 %v3557, %v3548
        %v3909 = vpack.c.b16 %v3558, %v3549
        %v3910 = vpack.c.b16 %v3559, %v3550
        %v3911 = vpack.c.b16 %v3560, %v3551
        %v3912 = vpack.c.b16 %v3561, %v3552
        %v3913 = vpack.c.b16 %v3562, %v3553
        %v3914 = vpack.c.b16 %v3563, %v3554
        %v3915 = vpack.c.b16 %v3564, %v3555
        %v3916 = vpack.c.b16 %v3565, %v3556
        %v3917 = vpack.c.b16 %v3575, %v3566
        %v3918 = vpack.c.b16 %v3576, %v3567
        %v3919 = vpack.c.b16 %v3577, %v3568
        %v3920 = vpack.c.b16 %v3578, %v3569
        %v3921 = vpack.c.b16 %v3579, %v3570
        %v3922 = vpack.c.b16 %v3580, %v3571
        %v3923 = vpack.c.b16 %v3581, %v3572
        %v3924 = vpack.c.b16 %v3582, %v3573
        %v3925 = vpack.c.b16 %v3583, %v3574
        %v3926 = vpack.c.b16 %v3593, %v3584
        %v3927 = vpack.c.b16 %v3594, %v3585
        %v3928 = vpack.c.b16 %v3595, %v3586
        %v3929 = vpack.c.b16 %v3596, %v3587
        %v3930 = vpack.c.b16 %v3597, %v3588
        %v3931 = vpack.c.b16 %v3598, %v3589
        %v3932 = vpack.c.b16 %v3599, %v3590
        %v3933 = vpack.c.b16 %v3600, %v3591
        %v3934 = vpack.c.b16 %v3601, %v3592
        %v3935 = vpack.c.b16 %v3611, %v3602
        %v3936 = vpack.c.b16 %v3612, %v3603
        %v3937 = vpack.c.b16 %v3613, %v3604
        %v3938 = vpack.c.b16 %v3614, %v3605
        %v3939 = vpack.c.b16 %v3615, %v3606
        %v3940 = vpack.c.b16 %v3616, %v3607
        %v3941 = vpack.c.b16 %v3617, %v3608
        %v3942 = vpack.c.b16 %v3618, %v3609
        %v3943 = vpack.c.b16 %v3619, %v3610
        %v3944 = vpack.c.b16 %v3629, %v3620
        %v3945 = vpack.c.b16 %v3630, %v3621
        %v3946 = vpack.c.b16 %v3631, %v3622
        %v3947 = vpack.c.b16 %v3632, %v3623
        %v3948 = vpack.c.b16 %v3633, %v3624
        %v3949 = vpack.c.b16 %v3634, %v3625
        %v3950 = vpack.c.b16 %v3635, %v3626
        %v3951 = vpack.c.b16 %v3636, %v3627
        %v3952 = vpack.c.b16 %v3637, %v3628
        %v3953 = vpack.c.b16 %v3647, %v3638
        %v3954 = vpack.c.b16 %v3648, %v3639
        %v3955 = vpack.c.b16 %v3649, %v3640
        %v3956 = vpack.c.b16 %v3650, %v3641
        %v3957 = vpack.c.b16 %v3651, %v3642
        %v3958 = vpack.c.b16 %v3652, %v3643
        %v3959 = vpack.c.b16 %v3653, %v3644
        %v3960 = vpack.c.b16 %v3654, %v3645
        %v3961 = vpack.c.b16 %v3655, %v3646
        %v3962 = vpack.c.b16 %v3665, %v3656
        %v3963 = vpack.c.b16 %v3666, %v3657
        %v3964 = vpack.c.b16 %v3667, %v3658
        %v3965 = vpack.c.b16 %v3668, %v3659
        %v3966 = vpack.c.b16 %v3669, %v3660
        %v3967 = vpack.c.b16 %v3670, %v3661
        %v3968 = vpack.c.b16 %v3671, %v3662
        %v3969 = vpack.c.b16 %v3672, %v3663
        %v3970 = vpack.c.b16 %v3673, %v3664
        %v3971 = vpack.c.b16 %v3683, %v3674
        %v3972 = vpack.c.b16 %v3684, %v3675
        %v3973 = vpack.c.b16 %v3685, %v3676
        %v3974 = vpack.c.b16 %v3686, %v3677
        %v3975 = vpack.c.b16 %v3687, %v3678
        %v3976 = vpack.c.b16 %v3688, %v3679
        %v3977 = vpack.c.b16 %v3689, %v3680
        %v3978 = vpack.c.b16 %v3690, %v3681
        %v3979 = vpack.c.b16 %v3691, %v3682
        %v3980 = vpack.c.b16 %v3701, %v3692
        %v3981 = vpack.c.b16 %v3702, %v3693
        %v3982 = vpack.c.b16 %v3703, %v3694
        %v3983 = vpack.c.b16 %v3704, %v3695
        %v3984 = vpack.c.b16 %v3705, %v3696
        %v3985 = vpack.c.b16 %v3706, %v3697
        %v3986 = vpack.c.b16 %v3707, %v3698
        %v3987 = vpack.c.b16 %v3708, %v3699
        %v3988 = vpack.c.b16 %v3709, %v3700
        %v3989 = vpack.c.b16 %v3719, %v3710
        %v3990 = vpack.c.b16 %v3720, %v3711
        %v3991 = vpack.c.b16 %v3721, %v3712
        %v3992 = vpack.c.b16 %v3722, %v3713
        %v3993 = vpack.c.b16 %v3723, %v3714
        %v3994 = vpack.c.b16 %v3724, %v3715
        %v3995 = vpack.c.b16 %v3725, %v3716
        %v3996 = vpack.c.b16 %v3726, %v3717
        %v3997 = vpack.c.b16 %v3727, %v3718
        %v3998 = vpack.c.b16 %v3737, %v3728
        %v3999 = vpack.c.b16 %v3738, %v3729
        %v4000 = vpack.c.b16 %v3739, %v3730
        %v4001 = vpack.c.b16 %v3740, %v3731
        %v4002 = vpack.c.b16 %v3741, %v3732
        %v4003 = vpack.c.b16 %v3742, %v3733
        %v4004 = vpack.c.b16 %v3743, %v3734
        %v4005 = vpack.c.b16 %v3744, %v3735
        %v4006 = vpack.c.b16 %v3745, %v3736
        %v4007 = vpack.c.b16 %v3755, %v3746
        %v4008 = vpack.c.b16 %v3756, %v3747
        %v4009 = vpack.c.b16 %v3757, %v3748
        %v4010 = vpack.c.b16 %v3758, %v3749
        %v4011 = vpack.c.b16 %v3759, %v3750
        %v4012 = vpack.c.b16 %v3760, %v3751
        %v4013 = vpack.c.b16 %v3761, %v3752
        %v4014 = vpack.c.b16 %v3762, %v3753
        %v4015 = vpack.c.b16 %v3763, %v3754
        %v4016 = vpack.c.b16 %v3773, %v3764
        %v4017 = vpack.c.b16 %v3774, %v3765
        %v4018 = vpack.c.b16 %v3775, %v3766
        %v4019 = vpack.c.b16 %v3776, %v3767
        %v4020 = vpack.c.b16 %v3777, %v3768
        %v4021 = vpack.c.b16 %v3778, %v3769
        %v4022 = vpack.c.b16 %v3779, %v3770
        %v4023 = vpack.c.b16 %v3780, %v3771
        %v4024 = vpack.c.b16 %v3781, %v3772
        %v4025 = vpack.c.b16 %v3791, %v3782
        %v4026 = vpack.c.b16 %v3792, %v3783
        %v4027 = vpack.c.b16 %v3793, %v3784
        %v4028 = vpack.c.b16 %v3794, %v3785
        %v4029 = vpack.c.b16 %v3795, %v3786
        %v4030 = vpack.c.b16 %v3796, %v3787
        %v4031 = vpack.c.b16 %v3797, %v3788
        %v4032 = vpack.c.b16 %v3798, %v3789
        %v4033 = vpack.c.b16 %v3799, %v3790
        %v4034 = vpack.c.b16 %v3809, %v3800
        %v4035 = vpack.c.b16 %v3810, %v3801
        %v4036 = vpack.c.b16 %v3811, %v3802
        %v4037 = vpack.c.b16 %v3812, %v3803
        %v4038 = vpack.c.b16 %v3813, %v3804
        %v4039 = vpack.c.b16 %v3814, %v3805
        %v4040 = vpack.c.b16 %v3815, %v3806
        %v4041 = vpack.c.b16 %v3816, %v3807
        %v4042 = vpack.c.b16 %v3817, %v3808
        %v4043 = vpack.c.b16 %v3827, %v3818
        %v4044 = vpack.c.b16 %v3828, %v3819
        %v4045 = vpack.c.b16 %v3829, %v3820
        %v4046 = vpack.c.b16 %v3830, %v3821
        %v4047 = vpack.c.b16 %v3831, %v3822
        %v4048 = vpack.c.b16 %v3832, %v3823
        %v4049 = vpack.c.b16 %v3833, %v3824
        %v4050 = vpack.c.b16 %v3834, %v3825
        %v4051 = vpack.c.b16 %v3835, %v3826
        %4268 = vmatprep.subr.bf16.mxu0 %v3837
        %4269 = vmatpush1.bf16.msra.mxu0 %v3836
        %4270 = vmatprep.subr.bf16.mxu0 %v3846
        %4271 = vmatpush1.bf16.msra.mxu0 %v3845
        %4272 = vmatprep.subr.bf16.mxu0 %v3855
        %4273 = vmatpush1.bf16.msra.mxu0 %v3854
        %4274 = vmatprep.subr.bf16.mxu0 %v3864
        %4275 = vmatpush1.bf16.msra.mxu0 %v3863
        %4276 = vmatprep.subr.bf16.mxu0 %v3873
        %4277 = vmatpush1.bf16.msra.mxu0 %v3872
        %4278 = vmatprep.subr.bf16.mxu0 %v3882
        %4279 = vmatpush1.bf16.msra.mxu0 %v3881
        %4280 = vmatprep.subr.bf16.mxu0 %v3891
        %4281 = vmatpush1.bf16.msra.mxu0 %v3890
        %4282 = vmatprep.subr.bf16.mxu0 %v3900
        %4283 = vmatpush1.bf16.msra.mxu0 %v3899
        %4284 = vmatprep.subr.bf16.mxu0 %v3909
        %4285 = vmatpush1.bf16.msra.mxu0 %v3908
        %4286 = vmatprep.subr.bf16.mxu0 %v3918
        %4287 = vmatpush1.bf16.msra.mxu0 %v3917
        %4288 = vmatprep.subr.bf16.mxu0 %v3927
        %4289 = vmatpush1.bf16.msra.mxu0 %v3926
        %4290 = vmatprep.subr.bf16.mxu0 %v3936
        %4291 = vmatpush1.bf16.msra.mxu0 %v3935
        %4292 = vmatprep.subr.bf16.mxu0 %v3945
        %4293 = vmatpush1.bf16.msra.mxu0 %v3944
        %4294 = vmatprep.subr.bf16.mxu0 %v3954
        %4295 = vmatpush1.bf16.msra.mxu0 %v3953
        %4296 = vmatprep.subr.bf16.mxu0 %v3963
        %4297 = vmatpush1.bf16.msra.mxu0 %v3962
        %4298 = vmatprep.subr.bf16.mxu0 %v3972
        %4299 = vmatpush1.bf16.msra.mxu0 %v3971
        %4300 = vmatprep.mubr.bf16.mxu0 %v3115
        %4301 = vmatmul.mubr.bf16.gmra.mrb[0].mxu0 %v3114
        %v4302 = vpop.f32.mrb[0].mxu0
        %v4303 = vadd.f32 %v3122, %v4302
        %v4304 = vpop.f32.mrb[0].mxu0
        %v4305 = vadd.f32 %v3126, %v4304
        %v4306 = vpop.f32.mrb[0].mxu0
        %v4307 = vpop.f32.mrb[0].mxu0
        %4308 = vdwg.mxu0
        %4309 = vmatprep.subr.bf16.mxu0 %v3981
        %4310 = vmatpush1.bf16.msra.mxu0 %v3980
        %4311 = vmatprep.subr.bf16.mxu0 %v3990
        %4312 = vmatpush1.bf16.msra.mxu0 %v3989
        %4313 = vmatprep.subr.bf16.mxu0 %v3999
        %4314 = vmatpush1.bf16.msra.mxu0 %v3998
        %4315 = vmatprep.subr.bf16.mxu0 %v4008
        %4316 = vmatpush1.bf16.msra.mxu0 %v4007
        %4317 = vmatprep.subr.bf16.mxu0 %v4017
        %4318 = vmatpush1.bf16.msra.mxu0 %v4016
        %4319 = vmatprep.subr.bf16.mxu0 %v4026
        %4320 = vmatpush1.bf16.msra.mxu0 %v4025
        %4321 = vmatprep.subr.bf16.mxu0 %v4035
        %4322 = vmatpush1.bf16.msra.mxu0 %v4034
        %4323 = vmatprep.subr.bf16.mxu0 %v4044
        %4324 = vmatpush1.bf16.msra.mxu0 %v4043
        %4325 = vmatprep.subr.bf16.mxu0 0
        %4326 = vmatpush1.bf16.msra.mxu0 0
        %4327 = vmatprep.subr.bf16.mxu0 0
        %4328 = vmatpush1.bf16.msra.mxu0 0
        %4329 = vmatprep.subr.bf16.mxu0 0
        %4330 = vmatpush1.bf16.msra.mxu0 0
        %4331 = vmatprep.subr.bf16.mxu0 0
        %4332 = vmatpush1.bf16.msra.mxu0 0
        %4333 = vmatprep.subr.bf16.mxu0 0
        %4334 = vmatpush1.bf16.msra.mxu0 0
        %4335 = vmatprep.subr.bf16.mxu0 0
        %4336 = vmatpush1.bf16.msra.mxu0 0
        %4337 = vmatprep.subr.bf16.mxu0 0
        %4338 = vmatpush1.bf16.msra.mxu0 0
        %4339 = vmatprep.subr.bf16.mxu0 0
        %4340 = vmatpush1.bf16.msra.mxu0 0
        %4341 = vmatprep.mubr.bf16.mxu0 0
        %4342 = vmatmul.mubr.bf16.gmra.mrb[0].mxu0 %v3116
        %v4343 = vpop.f32.mrb[0].mxu0
        %v4344 = vadd.f32 %v4303, %v4343
        %v4345 = vpop.f32.mrb[0].mxu0
        %v4346 = vadd.f32 %v4305, %v4345
        %v4347 = vpop.f32.mrb[0].mxu0
        %v4348 = vpop.f32.mrb[0].mxu0
        %4349 = vdwg.mxu0
        %4350 = vmatprep.subr.bf16.mxu0 %v3839
        %4351 = vmatpush1.bf16.msra.mxu0 %v3838
        %4352 = vmatprep.subr.bf16.mxu0 %v3848
        %4353 = vmatpush1.bf16.msra.mxu0 %v3847
        %4354 = vmatprep.subr.bf16.mxu0 %v3857
        %4355 = vmatpush1.bf16.msra.mxu0 %v3856
        %4356 = vmatprep.subr.bf16.mxu0 %v3866
        %4357 = vmatpush1.bf16.msra.mxu0 %v3865
        %4358 = vmatprep.subr.bf16.mxu0 %v3875
        %4359 = vmatpush1.bf16.msra.mxu0 %v3874
        %4360 = vmatprep.subr.bf16.mxu0 %v3884
        %4361 = vmatpush1.bf16.msra.mxu0 %v3883
        %4362 = vmatprep.subr.bf16.mxu0 %v3893
        %4363 = vmatpush1.bf16.msra.mxu0 %v3892
        %4364 = vmatprep.subr.bf16.mxu0 %v3902
        %4365 = vmatpush1.bf16.msra.mxu0 %v3901
        %4366 = vmatprep.subr.bf16.mxu0 %v3911
        %4367 = vmatpush1.bf16.msra.mxu0 %v3910
        %4368 = vmatprep.subr.bf16.mxu0 %v3920
        %4369 = vmatpush1.bf16.msra.mxu0 %v3919
        %4370 = vmatprep.subr.bf16.mxu0 %v3929
        %4371 = vmatpush1.bf16.msra.mxu0 %v3928
        %4372 = vmatprep.subr.bf16.mxu0 %v3938
        %4373 = vmatpush1.bf16.msra.mxu0 %v3937
        %4374 = vmatprep.subr.bf16.mxu0 %v3947
        %4375 = vmatpush1.bf16.msra.mxu0 %v3946
        %4376 = vmatprep.subr.bf16.mxu0 %v3956
        %4377 = vmatpush1.bf16.msra.mxu0 %v3955
        %4378 = vmatprep.subr.bf16.mxu0 %v3965
        %4379 = vmatpush1.bf16.msra.mxu0 %v3964
        %4380 = vmatprep.subr.bf16.mxu0 %v3974
        %4381 = vmatpush1.bf16.msra.mxu0 %v3973
        %4382 = vmatprep.mubr.bf16.mxu0 %v3115
        %4383 = vmatmul.mubr.bf16.gmra.mrb[0].mxu0 %v3114
        %v4384 = vpop.f32.mrb[0].mxu0
        %v4385 = vadd.f32 %v3130, %v4384
        %v4386 = vpop.f32.mrb[0].mxu0
        %v4387 = vadd.f32 %v3134, %v4386
        %v4388 = vpop.f32.mrb[0].mxu0
        %v4389 = vpop.f32.mrb[0].mxu0
        %4390 = vdwg.mxu0
        %4391 = vmatprep.subr.bf16.mxu0 %v3983
        %4392 = vmatpush1.bf16.msra.mxu0 %v3982
        %4393 = vmatprep.subr.bf16.mxu0 %v3992
        %4394 = vmatpush1.bf16.msra.mxu0 %v3991
        %4395 = vmatprep.subr.bf16.mxu0 %v4001
        %4396 = vmatpush1.bf16.msra.mxu0 %v4000
        %4397 = vmatprep.subr.bf16.mxu0 %v4010
        %4398 = vmatpush1.bf16.msra.mxu0 %v4009
        %4399 = vmatprep.subr.bf16.mxu0 %v4019
        %4400 = vmatpush1.bf16.msra.mxu0 %v4018
        %4401 = vmatprep.subr.bf16.mxu0 %v4028
        %4402 = vmatpush1.bf16.msra.mxu0 %v4027
        %4403 = vmatprep.subr.bf16.mxu0 %v4037
        %4404 = vmatpush1.bf16.msra.mxu0 %v4036
        %4405 = vmatprep.subr.bf16.mxu0 %v4046
        %4406 = vmatpush1.bf16.msra.mxu0 %v4045
        %4407 = vmatprep.subr.bf16.mxu0 0
        %4408 = vmatpush1.bf16.msra.mxu0 0
        %4409 = vmatprep.subr.bf16.mxu0 0
        %4410 = vmatpush1.bf16.msra.mxu0 0
        %4411 = vmatprep.subr.bf16.mxu0 0
        %4412 = vmatpush1.bf16.msra.mxu0 0
        %4413 = vmatprep.subr.bf16.mxu0 0
        %4414 = vmatpush1.bf16.msra.mxu0 0
        %4415 = vmatprep.subr.bf16.mxu0 0
        %4416 = vmatpush1.bf16.msra.mxu0 0
        %4417 = vmatprep.subr.bf16.mxu0 0
        %4418 = vmatpush1.bf16.msra.mxu0 0
        %4419 = vmatprep.subr.bf16.mxu0 0
        %4420 = vmatpush1.bf16.msra.mxu0 0
        %4421 = vmatprep.subr.bf16.mxu0 0
        %4422 = vmatpush1.bf16.msra.mxu0 0
        %4423 = vmatprep.mubr.bf16.mxu0 0
        %4424 = vmatmul.mubr.bf16.gmra.mrb[0].mxu0 %v3116
        %v4425 = vpop.f32.mrb[0].mxu0
        %v4426 = vadd.f32 %v4385, %v4425
        %v4427 = vpop.f32.mrb[0].mxu0
        %v4428 = vadd.f32 %v4387, %v4427
        %v4429 = vpop.f32.mrb[0].mxu0
        %v4430 = vpop.f32.mrb[0].mxu0
        %4431 = vdwg.mxu0
        %4432 = vmatprep.subr.bf16.mxu0 %v3841
        %4433 = vmatpush1.bf16.msra.mxu0 %v3840
        %4434 = vmatprep.subr.bf16.mxu0 %v3850
        %4435 = vmatpush1.bf16.msra.mxu0 %v3849
        %4436 = vmatprep.subr.bf16.mxu0 %v3859
        %4437 = vmatpush1.bf16.msra.mxu0 %v3858
        %4438 = vmatprep.subr.bf16.mxu0 %v3868
        %4439 = vmatpush1.bf16.msra.mxu0 %v3867
        %4440 = vmatprep.subr.bf16.mxu0 %v3877
        %4441 = vmatpush1.bf16.msra.mxu0 %v3876
        %4442 = vmatprep.subr.bf16.mxu0 %v3886
        %4443 = vmatpush1.bf16.msra.mxu0 %v3885
        %4444 = vmatprep.subr.bf16.mxu0 %v3895
        %4445 = vmatpush1.bf16.msra.mxu0 %v3894
        %4446 = vmatprep.subr.bf16.mxu0 %v3904
        %4447 = vmatpush1.bf16.msra.mxu0 %v3903
        %4448 = vmatprep.subr.bf16.mxu0 %v3913
        %4449 = vmatpush1.bf16.msra.mxu0 %v3912
        %4450 = vmatprep.subr.bf16.mxu0 %v3922
        %4451 = vmatpush1.bf16.msra.mxu0 %v3921
        %4452 = vmatprep.subr.bf16.mxu0 %v3931
        %4453 = vmatpush1.bf16.msra.mxu0 %v3930
        %4454 = vmatprep.subr.bf16.mxu0 %v3940
        %4455 = vmatpush1.bf16.msra.mxu0 %v3939
        %4456 = vmatprep.subr.bf16.mxu0 %v3949
        %4457 = vmatpush1.bf16.msra.mxu0 %v3948
        %4458 = vmatprep.subr.bf16.mxu0 %v3958
        %4459 = vmatpush1.bf16.msra.mxu0 %v3957
        %4460 = vmatprep.subr.bf16.mxu0 %v3967
        %4461 = vmatpush1.bf16.msra.mxu0 %v3966
        %4462 = vmatprep.subr.bf16.mxu0 %v3976
        %4463 = vmatpush1.bf16.msra.mxu0 %v3975
        %4464 = vmatprep.mubr.bf16.mxu0 %v3115
        %4465 = vmatmul.mubr.bf16.gmra.mrb[0].mxu0 %v3114
        %v4466 = vpop.f32.mrb[0].mxu0
        %v4467 = vadd.f32 %v3138, %v4466
        %v4468 = vpop.f32.mrb[0].mxu0
        %v4469 = vadd.f32 %v3142, %v4468
        %v4470 = vpop.f32.mrb[0].mxu0
        %v4471 = vpop.f32.mrb[0].mxu0
        %4472 = vdwg.mxu0
        %4473 = vmatprep.subr.bf16.mxu0 %v3985
        %4474 = vmatpush1.bf16.msra.mxu0 %v3984
        %4475 = vmatprep.subr.bf16.mxu0 %v3994
        %4476 = vmatpush1.bf16.msra.mxu0 %v3993
        %4477 = vmatprep.subr.bf16.mxu0 %v4003
        %4478 = vmatpush1.bf16.msra.mxu0 %v4002
        %4479 = vmatprep.subr.bf16.mxu0 %v4012
        %4480 = vmatpush1.bf16.msra.mxu0 %v4011
        %4481 = vmatprep.subr.bf16.mxu0 %v4021
        %4482 = vmatpush1.bf16.msra.mxu0 %v4020
        %4483 = vmatprep.subr.bf16.mxu0 %v4030
        %4484 = vmatpush1.bf16.msra.mxu0 %v4029
        %4485 = vmatprep.subr.bf16.mxu0 %v4039
        %4486 = vmatpush1.bf16.msra.mxu0 %v4038
        %4487 = vmatprep.subr.bf16.mxu0 %v4048
        %4488 = vmatpush1.bf16.msra.mxu0 %v4047
        %4489 = vmatprep.subr.bf16.mxu0 0
        %4490 = vmatpush1.bf16.msra.mxu0 0
        %4491 = vmatprep.subr.bf16.mxu0 0
        %4492 = vmatpush1.bf16.msra.mxu0 0
        %4493 = vmatprep.subr.bf16.mxu0 0
        %4494 = vmatpush1.bf16.msra.mxu0 0
        %4495 = vmatprep.subr.bf16.mxu0 0
        %4496 = vmatpush1.bf16.msra.mxu0 0
        %4497 = vmatprep.subr.bf16.mxu0 0
        %4498 = vmatpush1.bf16.msra.mxu0 0
        %4499 = vmatprep.subr.bf16.mxu0 0
        %4500 = vmatpush1.bf16.msra.mxu0 0
        %4501 = vmatprep.subr.bf16.mxu0 0
        %4502 = vmatpush1.bf16.msra.mxu0 0
        %4503 = vmatprep.subr.bf16.mxu0 0
        %4504 = vmatpush1.bf16.msra.mxu0 0
        %4505 = vmatprep.mubr.bf16.mxu0 0
        %4506 = vmatmul.mubr.bf16.gmra.mrb[0].mxu0 %v3116
        %v4507 = vpop.f32.mrb[0].mxu0
        %v4508 = vadd.f32 %v4467, %v4507
        %v4509 = vpop.f32.mrb[0].mxu0
        %v4510 = vadd.f32 %v4469, %v4509
        %v4511 = vpop.f32.mrb[0].mxu0
        %v4512 = vpop.f32.mrb[0].mxu0
        %4513 = vdwg.mxu0
        %4514 = vmatprep.subr.bf16.mxu0 %v3843
        %4515 = vmatpush1.bf16.msra.mxu0 %v3842
        %4516 = vmatprep.subr.bf16.mxu0 %v3852
        %4517 = vmatpush1.bf16.msra.mxu0 %v3851
        %4518 = vmatprep.subr.bf16.mxu0 %v3861
        %4519 = vmatpush1.bf16.msra.mxu0 %v3860
        %4520 = vmatprep.subr.bf16.mxu0 %v3870
        %4521 = vmatpush1.bf16.msra.mxu0 %v3869
        %4522 = vmatprep.subr.bf16.mxu0 %v3879
        %4523 = vmatpush1.bf16.msra.mxu0 %v3878
        %4524 = vmatprep.subr.bf16.mxu0 %v3888
        %4525 = vmatpush1.bf16.msra.mxu0 %v3887
        %4526 = vmatprep.subr.bf16.mxu0 %v3897
        %4527 = vmatpush1.bf16.msra.mxu0 %v3896
        %4528 = vmatprep.subr.bf16.mxu0 %v3906
        %4529 = vmatpush1.bf16.msra.mxu0 %v3905
        %4530 = vmatprep.subr.bf16.mxu0 %v3915
        %4531 = vmatpush1.bf16.msra.mxu0 %v3914
        %4532 = vmatprep.subr.bf16.mxu0 %v3924
        %4533 = vmatpush1.bf16.msra.mxu0 %v3923
        %4534 = vmatprep.subr.bf16.mxu0 %v3933
        %4535 = vmatpush1.bf16.msra.mxu0 %v3932
        %4536 = vmatprep.subr.bf16.mxu0 %v3942
        %4537 = vmatpush1.bf16.msra.mxu0 %v3941
        %4538 = vmatprep.subr.bf16.mxu0 %v3951
        %4539 = vmatpush1.bf16.msra.mxu0 %v3950
        %4540 = vmatprep.subr.bf16.mxu0 %v3960
        %4541 = vmatpush1.bf16.msra.mxu0 %v3959
        %4542 = vmatprep.subr.bf16.mxu0 %v3969
        %4543 = vmatpush1.bf16.msra.mxu0 %v3968
        %4544 = vmatprep.subr.bf16.mxu0 %v3978
        %4545 = vmatpush1.bf16.msra.mxu0 %v3977
        %4546 = vmatprep.mubr.bf16.mxu0 %v3115
        %4547 = vmatmul.mubr.bf16.gmra.mrb[0].mxu0 %v3114
        %v4548 = vpop.f32.mrb[0].mxu0
        %v4549 = vadd.f32 %v3146, %v4548
        %v4550 = vpop.f32.mrb[0].mxu0
        %v4551 = vadd.f32 %v3150, %v4550
        %v4552 = vpop.f32.mrb[0].mxu0
        %v4553 = vpop.f32.mrb[0].mxu0
        %4554 = vdwg.mxu0
        %4555 = vmatprep.subr.bf16.mxu0 %v3987
        %4556 = vmatpush1.bf16.msra.mxu0 %v3986
        %4557 = vmatprep.subr.bf16.mxu0 %v3996
        %4558 = vmatpush1.bf16.msra.mxu0 %v3995
        %4559 = vmatprep.subr.bf16.mxu0 %v4005
        %4560 = vmatpush1.bf16.msra.mxu0 %v4004
        %4561 = vmatprep.subr.bf16.mxu0 %v4014
        %4562 = vmatpush1.bf16.msra.mxu0 %v4013
        %4563 = vmatprep.subr.bf16.mxu0 %v4023
        %4564 = vmatpush1.bf16.msra.mxu0 %v4022
        %4565 = vmatprep.subr.bf16.mxu0 %v4032
        %4566 = vmatpush1.bf16.msra.mxu0 %v4031
        %4567 = vmatprep.subr.bf16.mxu0 %v4041
        %4568 = vmatpush1.bf16.msra.mxu0 %v4040
        %4569 = vmatprep.subr.bf16.mxu0 %v4050
        %4570 = vmatpush1.bf16.msra.mxu0 %v4049
        %4571 = vmatprep.subr.bf16.mxu0 0
        %4572 = vmatpush1.bf16.msra.mxu0 0
        %4573 = vmatprep.subr.bf16.mxu0 0
        %4574 = vmatpush1.bf16.msra.mxu0 0
        %4575 = vmatprep.subr.bf16.mxu0 0
        %4576 = vmatpush1.bf16.msra.mxu0 0
        %4577 = vmatprep.subr.bf16.mxu0 0
        %4578 = vmatpush1.bf16.msra.mxu0 0
        %4579 = vmatprep.subr.bf16.mxu0 0
        %4580 = vmatpush1.bf16.msra.mxu0 0
        %4581 = vmatprep.subr.bf16.mxu0 0
        %4582 = vmatpush1.bf16.msra.mxu0 0
        %4583 = vmatprep.subr.bf16.mxu0 0
        %4584 = vmatpush1.bf16.msra.mxu0 0
        %4585 = vmatprep.subr.bf16.mxu0 0
        %4586 = vmatpush1.bf16.msra.mxu0 0
        %4587 = vmatprep.mubr.bf16.mxu0 0
        %4588 = vmatmul.mubr.bf16.gmra.mrb[0].mxu0 %v3116
        %v4589 = vpop.f32.mrb[0].mxu0
        %v4590 = vadd.f32 %v4549, %v4589
        %v4591 = vpop.f32.mrb[0].mxu0
        %v4592 = vadd.f32 %v4551, %v4591
        %v4593 = vpop.f32.mrb[0].mxu0
        %v4594 = vpop.f32.mrb[0].mxu0
        %4595 = vdwg.mxu0
        %4596 = vmatprep.subr.bf16.mxu0 0
        %4597 = vmatpush1.bf16.msra.mxu0 %v3844
        %4598 = vmatprep.subr.bf16.mxu0 0
        %4599 = vmatpush1.bf16.msra.mxu0 %v3853
        %4600 = vmatprep.subr.bf16.mxu0 0
        %4601 = vmatpush1.bf16.msra.mxu0 %v3862
        %4602 = vmatprep.subr.bf16.mxu0 0
        %4603 = vmatpush1.bf16.msra.mxu0 %v3871
        %4604 = vmatprep.subr.bf16.mxu0 0
        %4605 = vmatpush1.bf16.msra.mxu0 %v3880
        %4606 = vmatprep.subr.bf16.mxu0 0
        %4607 = vmatpush1.bf16.msra.mxu0 %v3889
        %4608 = vmatprep.subr.bf16.mxu0 0
        %4609 = vmatpush1.bf16.msra.mxu0 %v3898
        %4610 = vmatprep.subr.bf16.mxu0 0
        %4611 = vmatpush1.bf16.msra.mxu0 %v3907
        %4612 = vmatprep.subr.bf16.mxu0 0
        %4613 = vmatpush1.bf16.msra.mxu0 %v3916
        %4614 = vmatprep.subr.bf16.mxu0 0
        %4615 = vmatpush1.bf16.msra.mxu0 %v3925
        %4616 = vmatprep.subr.bf16.mxu0 0
        %4617 = vmatpush1.bf16.msra.mxu0 %v3934
        %4618 = vmatprep.subr.bf16.mxu0 0
        %4619 = vmatpush1.bf16.msra.mxu0 %v3943
        %4620 = vmatprep.subr.bf16.mxu0 0
        %4621 = vmatpush1.bf16.msra.mxu0 %v3952
        %4622 = vmatprep.subr.bf16.mxu0 0
        %4623 = vmatpush1.bf16.msra.mxu0 %v3961
        %4624 = vmatprep.subr.bf16.mxu0 0
        %4625 = vmatpush1.bf16.msra.mxu0 %v3970
        %4626 = vmatprep.subr.bf16.mxu0 0
        %4627 = vmatpush1.bf16.msra.mxu0 %v3979
        %4628 = vmatprep.mubr.bf16.mxu0 %v3115
        %4629 = vmatmul.mubr.bf16.gmra.mrb[0].mxu0 %v3114
        %v4630 = vpop.f32.mrb[0].mxu0
        %v4631 = vadd.f32 %v3154, %v4630
        %v4632 = vpop.f32.mrb[0].mxu0
        %v4633 = vpop.f32.mrb[0].mxu0
        %v4634 = vpop.f32.mrb[0].mxu0
        %4635 = vdwg.mxu0
        %4636 = vmatprep.subr.bf16.mxu0 0
        %4637 = vmatpush1.bf16.msra.mxu0 %v3988
        %4638 = vmatprep.subr.bf16.mxu0 0
        %4639 = vmatpush1.bf16.msra.mxu0 %v3997
        %4640 = vmatprep.subr.bf16.mxu0 0
        %4641 = vmatpush1.bf16.msra.mxu0 %v4006
        %4642 = vmatprep.subr.bf16.mxu0 0
        %4643 = vmatpush1.bf16.msra.mxu0 %v4015
        %4644 = vmatprep.subr.bf16.mxu0 0
        %4645 = vmatpush1.bf16.msra.mxu0 %v4024
        %4646 = vmatprep.subr.bf16.mxu0 0
        %4647 = vmatpush1.bf16.msra.mxu0 %v4033
        %4648 = vmatprep.subr.bf16.mxu0 0
        %4649 = vmatpush1.bf16.msra.mxu0 %v4042
        %4650 = vmatprep.subr.bf16.mxu0 0
        %4651 = vmatpush1.bf16.msra.mxu0 %v4051
        %4652 = vmatprep.subr.bf16.mxu0 0
        %4653 = vmatpush1.bf16.msra.mxu0 0
        %4654 = vmatprep.subr.bf16.mxu0 0
        %4655 = vmatpush1.bf16.msra.mxu0 0
        %4656 = vmatprep.subr.bf16.mxu0 0
        %4657 = vmatpush1.bf16.msra.mxu0 0
        %4658 = vmatprep.subr.bf16.mxu0 0
        %4659 = vmatpush1.bf16.msra.mxu0 0
        %4660 = vmatprep.subr.bf16.mxu0 0
        %4661 = vmatpush1.bf16.msra.mxu0 0
        %4662 = vmatprep.subr.bf16.mxu0 0
        %4663 = vmatpush1.bf16.msra.mxu0 0
        %4664 = vmatprep.subr.bf16.mxu0 0
        %4665 = vmatpush1.bf16.msra.mxu0 0
        %4666 = vmatprep.subr.bf16.mxu0 0
        %4667 = vmatpush1.bf16.msra.mxu0 0
        %4668 = vmatprep.mubr.bf16.mxu0 0
        %4669 = vmatmul.mubr.bf16.gmra.mrb[0].mxu0 %v3116
        %v4670 = vpop.f32.mrb[0].mxu0
        %v4671 = vadd.f32 %v4631, %v4670
        %v4672 = vpop.f32.mrb[0].mxu0
        %v4673 = vpop.f32.mrb[0].mxu0
        %v4674 = vpop.f32.mrb[0].mxu0
        %4675 = vdwg.mxu0
        %v4676 = vadd.f32 %v3105, %v4344
        %v4677 = vadd.f32 %v3106, %v4346
        %v4678 = vadd.f32 %v3107, %v4426
        %v4679 = vxor.u32 %v4676, 2147483648
        %v4680 = vxor.u32 %v4677, 2147483648
        %v4681 = vxor.u32 %v4678, 2147483648
        %v4682 = vmul.f32 %v4679, 1.442695
        %v4683 = vpow.pop %v4682
        %v4684 = vmul.f32 %v4680, 1.442695
        %v4685 = vpow.pop %v4684
        %v4686 = vmul.f32 %v4681, 1.442695
        %v4687 = vpow.pop %v4686
        %v4688 = vadd.f32 %v4683, 1.0
        %v4689 = vadd.f32 %v4685, 1.0
        %v4690 = vadd.f32 %v4687, 1.0
        %v4691 = vrcp.pop %v4688
        %v4692 = vmul.f32 1.0, %v4691
        %v4693 = vrcp.pop %v4689
        %v4694 = vmul.f32 1.0, %v4693
        %v4695 = vrcp.pop %v4690
        %v4696 = vmul.f32 1.0, %v4695
        %v4697 = vadd.f32 %v3108, %v4428
        %v4698 = vadd.f32 %v3109, %v4508
        %v4699 = vadd.f32 %v3110, %v4510
        %v4700 = vxor.u32 %v4697, 2147483648
        %v4701 = vxor.u32 %v4698, 2147483648
        %v4702 = vxor.u32 %v4699, 2147483648
        %v4703 = vmul.f32 %v4700, 1.442695
        %v4704 = vpow.pop %v4703
        %v4705 = vmul.f32 %v4701, 1.442695
        %v4706 = vpow.pop %v4705
        %v4707 = vmul.f32 %v4702, 1.442695
        %v4708 = vpow.pop %v4707
        %v4709 = vadd.f32 %v4704, 1.0
        %v4710 = vadd.f32 %v4706, 1.0
        %v4711 = vadd.f32 %v4708, 1.0
        %v4712 = vrcp.pop %v4709
        %v4713 = vmul.f32 1.0, %v4712
        %v4714 = vrcp.pop %v4710
        %v4715 = vmul.f32 1.0, %v4714
        %v4716 = vrcp.pop %v4711
        %v4717 = vmul.f32 1.0, %v4716
        %v4718 = vmul.f32 %v4692, %v4590
        %v4719 = vmul.f32 %v4694, %v4592
        %v4720 = vmul.f32 %v4696, %v4671
        %v4721 = vadd.f32 %v3111, %v4718
        %v4722 = vadd.f32 %v3112, %v4719
        %v4723 = vadd.f32 %v3113, %v4720
        %v4724 = vtanh.pop %v4721
        %v4725 = vtanh.pop %v4722
        %v4726 = vtanh.pop %v4723
        %v4727 = vsub.f32 1.0, %v4713
        %v4728 = vsub.f32 1.0, %v4715
        %v4729 = vsub.f32 1.0, %v4717
        %v4730 = vmul.f32 %v4727, %v4724
        %v4731 = vmul.f32 %v4728, %v4725
        %v4732 = vmul.f32 %v4729, %v4726
        %v4733 = vmul.f32 %v4713, %v3102
        %v4734 = vmul.f32 %v4715, %v3103
        %v4735 = vmul.f32 %v4717, %v3104
        %v4736 = vadd.f32 %v4730, %v4733
        %v4737 = vadd.f32 %v4731, %v4734
        %v4738 = vadd.f32 %v4732, %v4735
        %4739 = vst [vmem:[#allocation3] sm:$0xff] %v4736
        %4740 = vst [vmem:[#allocation3 + $0x8] sm:$0xff] %v4737
        %4741 = vst [vmem:[#allocation3 + $0x10] sm:$0xff] %v4738
        %v4742 = vld [vmem:[#allocation2 + $0x48] sm:$0xff]
        %v4743 = vld [vmem:[#allocation2 + $0x50] sm:$0xff]
        %v4744 = vld [vmem:[#allocation2 + $0x58] sm:$0xff]
        %v4745 = vld [vmem:[#allocation2 + $0x60] sm:$0xff]
        %v4746 = vld [vmem:[#allocation2 + $0x68] sm:$0xff]
        %v4747 = vld [vmem:[#allocation2 + $0x70] sm:$0xff]
        %v4748 = vld [vmem:[#allocation2 + $0x78] sm:$0xff]
        %v4749 = vld [vmem:[#allocation2 + $0x80] sm:$0xff]
        %v4750 = vld [vmem:[#allocation2 + $0x88] sm:$0xff]
        %v4751 = vpack.c.bf16 %v4736, %v4736
        %v4752 = vpack.c.bf16 %v4737, %v4737
        %v4753 = vpack.c.bf16 %v4738, %v4738
        %4754 = vmatprep.subr.bf16.mxu0 %v3837
        %4755 = vmatpush1.bf16.msra.mxu0 %v3836
        %4756 = vmatprep.subr.bf16.mxu0 %v3846
        %4757 = vmatpush1.bf16.msra.mxu0 %v3845
        %4758 = vmatprep.subr.bf16.mxu0 %v3855
        %4759 = vmatpush1.bf16.msra.mxu0 %v3854
        %4760 = vmatprep.subr.bf16.mxu0 %v3864
        %4761 = vmatpush1.bf16.msra.mxu0 %v3863
        %4762 = vmatprep.subr.bf16.mxu0 %v3873
        %4763 = vmatpush1.bf16.msra.mxu0 %v3872
        %4764 = vmatprep.subr.bf16.mxu0 %v3882
        %4765 = vmatpush1.bf16.msra.mxu0 %v3881
        %4766 = vmatprep.subr.bf16.mxu0 %v3891
        %4767 = vmatpush1.bf16.msra.mxu0 %v3890
        %4768 = vmatprep.subr.bf16.mxu0 %v3900
        %4769 = vmatpush1.bf16.msra.mxu0 %v3899
        %4770 = vmatprep.subr.bf16.mxu0 %v3909
        %4771 = vmatpush1.bf16.msra.mxu0 %v3908
        %4772 = vmatprep.subr.bf16.mxu0 %v3918
        %4773 = vmatpush1.bf16.msra.mxu0 %v3917
        %4774 = vmatprep.subr.bf16.mxu0 %v3927
        %4775 = vmatpush1.bf16.msra.mxu0 %v3926
        %4776 = vmatprep.subr.bf16.mxu0 %v3936
        %4777 = vmatpush1.bf16.msra.mxu0 %v3935
        %4778 = vmatprep.subr.bf16.mxu0 %v3945
        %4779 = vmatpush1.bf16.msra.mxu0 %v3944
        %4780 = vmatprep.subr.bf16.mxu0 %v3954
        %4781 = vmatpush1.bf16.msra.mxu0 %v3953
        %4782 = vmatprep.subr.bf16.mxu0 %v3963
        %4783 = vmatpush1.bf16.msra.mxu0 %v3962
        %4784 = vmatprep.subr.bf16.mxu0 %v3972
        %4785 = vmatpush1.bf16.msra.mxu0 %v3971
        %4786 = vmatprep.mubr.bf16.mxu0 %v4752
        %4787 = vmatmul.mubr.bf16.gmra.mrb[0].mxu0 %v4751
        %v4788 = vpop.f32.mrb[0].mxu0
        %v4789 = vadd.f32 %v3122, %v4788
        %v4790 = vpop.f32.mrb[0].mxu0
        %v4791 = vadd.f32 %v3126, %v4790
        %v4792 = vpop.f32.mrb[0].mxu0
        %v4793 = vpop.f32.mrb[0].mxu0
        %4794 = vdwg.mxu0
        %4795 = vmatprep.subr.bf16.mxu0 %v3981
        %4796 = vmatpush1.bf16.msra.mxu0 %v3980
        %4797 = vmatprep.subr.bf16.mxu0 %v3990
        %4798 = vmatpush1.bf16.msra.mxu0 %v3989
        %4799 = vmatprep.subr.bf16.mxu0 %v3999
        %4800 = vmatpush1.bf16.msra.mxu0 %v3998
        %4801 = vmatprep.subr.bf16.mxu0 %v4008
        %4802 = vmatpush1.bf16.msra.mxu0 %v4007
        %4803 = vmatprep.subr.bf16.mxu0 %v4017
        %4804 = vmatpush1.bf16.msra.mxu0 %v4016
        %4805 = vmatprep.subr.bf16.mxu0 %v4026
        %4806 = vmatpush1.bf16.msra.mxu0 %v4025
        %4807 = vmatprep.subr.bf16.mxu0 %v4035
        %4808 = vmatpush1.bf16.msra.mxu0 %v4034
        %4809 = vmatprep.subr.bf16.mxu0 %v4044
        %4810 = vmatpush1.bf16.msra.mxu0 %v4043
        %4811 = vmatprep.subr.bf16.mxu0 0
        %4812 = vmatpush1.bf16.msra.mxu0 0
        %4813 = vmatprep.subr.bf16.mxu0 0
        %4814 = vmatpush1.bf16.msra.mxu0 0
        %4815 = vmatprep.subr.bf16.mxu0 0
        %4816 = vmatpush1.bf16.msra.mxu0 0
        %4817 = vmatprep.subr.bf16.mxu0 0
        %4818 = vmatpush1.bf16.msra.mxu0 0
        %4819 = vmatprep.subr.bf16.mxu0 0
        %4820 = vmatpush1.bf16.msra.mxu0 0
        %4821 = vmatprep.subr.bf16.mxu0 0
        %4822 = vmatpush1.bf16.msra.mxu0 0
        %4823 = vmatprep.subr.bf16.mxu0 0
        %4824 = vmatpush1.bf16.msra.mxu0 0
        %4825 = vmatprep.subr.bf16.mxu0 0
        %4826 = vmatpush1.bf16.msra.mxu0 0
        %4827 = vmatprep.mubr.bf16.mxu0 0
        %4828 = vmatmul.mubr.bf16.gmra.mrb[0].mxu0 %v4753
        %v4829 = vpop.f32.mrb[0].mxu0
        %v4830 = vadd.f32 %v4789, %v4829
        %v4831 = vpop.f32.mrb[0].mxu0
        %v4832 = vadd.f32 %v4791, %v4831
        %v4833 = vpop.f32.mrb[0].mxu0
        %v4834 = vpop.f32.mrb[0].mxu0
        %4835 = vdwg.mxu0
        %4836 = vmatprep.subr.bf16.mxu0 %v3839
        %4837 = vmatpush1.bf16.msra.mxu0 %v3838
        %4838 = vmatprep.subr.bf16.mxu0 %v3848
        %4839 = vmatpush1.bf16.msra.mxu0 %v3847
        %4840 = vmatprep.subr.bf16.mxu0 %v3857
        %4841 = vmatpush1.bf16.msra.mxu0 %v3856
        %4842 = vmatprep.subr.bf16.mxu0 %v3866
        %4843 = vmatpush1.bf16.msra.mxu0 %v3865
        %4844 = vmatprep.subr.bf16.mxu0 %v3875
        %4845 = vmatpush1.bf16.msra.mxu0 %v3874
        %4846 = vmatprep.subr.bf16.mxu0 %v3884
        %4847 = vmatpush1.bf16.msra.mxu0 %v3883
        %4848 = vmatprep.subr.bf16.mxu0 %v3893
        %4849 = vmatpush1.bf16.msra.mxu0 %v3892
        %4850 = vmatprep.subr.bf16.mxu0 %v3902
        %4851 = vmatpush1.bf16.msra.mxu0 %v3901
        %4852 = vmatprep.subr.bf16.mxu0 %v3911
        %4853 = vmatpush1.bf16.msra.mxu0 %v3910
        %4854 = vmatprep.subr.bf16.mxu0 %v3920
        %4855 = vmatpush1.bf16.msra.mxu0 %v3919
        %4856 = vmatprep.subr.bf16.mxu0 %v3929
        %4857 = vmatpush1.bf16.msra.mxu0 %v3928
        %4858 = vmatprep.subr.bf16.mxu0 %v3938
        %4859 = vmatpush1.bf16.msra.mxu0 %v3937
        %4860 = vmatprep.subr.bf16.mxu0 %v3947
        %4861 = vmatpush1.bf16.msra.mxu0 %v3946
        %4862 = vmatprep.subr.bf16.mxu0 %v3956
        %4863 = vmatpush1.bf16.msra.mxu0 %v3955
        %4864 = vmatprep.subr.bf16.mxu0 %v3965
        %4865 = vmatpush1.bf16.msra.mxu0 %v3964
        %4866 = vmatprep.subr.bf16.mxu0 %v3974
        %4867 = vmatpush1.bf16.msra.mxu0 %v3973
        %4868 = vmatprep.mubr.bf16.mxu0 %v4752
        %4869 = vmatmul.mubr.bf16.gmra.mrb[0].mxu0 %v4751
        %v4870 = vpop.f32.mrb[0].mxu0
        %v4871 = vadd.f32 %v3130, %v4870
        %v4872 = vpop.f32.mrb[0].mxu0
        %v4873 = vadd.f32 %v3134, %v4872
        %v4874 = vpop.f32.mrb[0].mxu0
        %v4875 = vpop.f32.mrb[0].mxu0
        %4876 = vdwg.mxu0
        %4877 = vmatprep.subr.bf16.mxu0 %v3983
        %4878 = vmatpush1.bf16.msra.mxu0 %v3982
        %4879 = vmatprep.subr.bf16.mxu0 %v3992
        %4880 = vmatpush1.bf16.msra.mxu0 %v3991
        %4881 = vmatprep.subr.bf16.mxu0 %v4001
        %4882 = vmatpush1.bf16.msra.mxu0 %v4000
        %4883 = vmatprep.subr.bf16.mxu0 %v4010
        %4884 = vmatpush1.bf16.msra.mxu0 %v4009
        %4885 = vmatprep.subr.bf16.mxu0 %v4019
        %4886 = vmatpush1.bf16.msra.mxu0 %v4018
        %4887 = vmatprep.subr.bf16.mxu0 %v4028
        %4888 = vmatpush1.bf16.msra.mxu0 %v4027
        %4889 = vmatprep.subr.bf16.mxu0 %v4037
        %4890 = vmatpush1.bf16.msra.mxu0 %v4036
        %4891 = vmatprep.subr.bf16.mxu0 %v4046
        %4892 = vmatpush1.bf16.msra.mxu0 %v4045
        %4893 = vmatprep.subr.bf16.mxu0 0
        %4894 = vmatpush1.bf16.msra.mxu0 0
        %4895 = vmatprep.subr.bf16.mxu0 0
        %4896 = vmatpush1.bf16.msra.mxu0 0
        %4897 = vmatprep.subr.bf16.mxu0 0
        %4898 = vmatpush1.bf16.msra.mxu0 0
        %4899 = vmatprep.subr.bf16.mxu0 0
        %4900 = vmatpush1.bf16.msra.mxu0 0
        %4901 = vmatprep.subr.bf16.mxu0 0
        %4902 = vmatpush1.bf16.msra.mxu0 0
        %4903 = vmatprep.subr.bf16.mxu0 0
        %4904 = vmatpush1.bf16.msra.mxu0 0
        %4905 = vmatprep.subr.bf16.mxu0 0
        %4906 = vmatpush1.bf16.msra.mxu0 0
        %4907 = vmatprep.subr.bf16.mxu0 0
        %4908 = vmatpush1.bf16.msra.mxu0 0
        %4909 = vmatprep.mubr.bf16.mxu0 0
        %4910 = vmatmul.mubr.bf16.gmra.mrb[0].mxu0 %v4753
        %v4911 = vpop.f32.mrb[0].mxu0
        %v4912 = vadd.f32 %v4871, %v4911
        %v4913 = vpop.f32.mrb[0].mxu0
        %v4914 = vadd.f32 %v4873, %v4913
        %v4915 = vpop.f32.mrb[0].mxu0
        %v4916 = vpop.f32.mrb[0].mxu0
        %4917 = vdwg.mxu0
        %4918 = vmatprep.subr.bf16.mxu0 %v3841
        %4919 = vmatpush1.bf16.msra.mxu0 %v3840
        %4920 = vmatprep.subr.bf16.mxu0 %v3850
        %4921 = vmatpush1.bf16.msra.mxu0 %v3849
        %4922 = vmatprep.subr.bf16.mxu0 %v3859
        %4923 = vmatpush1.bf16.msra.mxu0 %v3858
        %4924 = vmatprep.subr.bf16.mxu0 %v3868
        %4925 = vmatpush1.bf16.msra.mxu0 %v3867
        %4926 = vmatprep.subr.bf16.mxu0 %v3877
        %4927 = vmatpush1.bf16.msra.mxu0 %v3876
        %4928 = vmatprep.subr.bf16.mxu0 %v3886
        %4929 = vmatpush1.bf16.msra.mxu0 %v3885
        %4930 = vmatprep.subr.bf16.mxu0 %v3895
        %4931 = vmatpush1.bf16.msra.mxu0 %v3894
        %4932 = vmatprep.subr.bf16.mxu0 %v3904
        %4933 = vmatpush1.bf16.msra.mxu0 %v3903
        %4934 = vmatprep.subr.bf16.mxu0 %v3913
        %4935 = vmatpush1.bf16.msra.mxu0 %v3912
        %4936 = vmatprep.subr.bf16.mxu0 %v3922
        %4937 = vmatpush1.bf16.msra.mxu0 %v3921
        %4938 = vmatprep.subr.bf16.mxu0 %v3931
        %4939 = vmatpush1.bf16.msra.mxu0 %v3930
        %4940 = vmatprep.subr.bf16.mxu0 %v3940
        %4941 = vmatpush1.bf16.msra.mxu0 %v3939
        %4942 = vmatprep.subr.bf16.mxu0 %v3949
        %4943 = vmatpush1.bf16.msra.mxu0 %v3948
        %4944 = vmatprep.subr.bf16.mxu0 %v3958
        %4945 = vmatpush1.bf16.msra.mxu0 %v3957
        %4946 = vmatprep.subr.bf16.mxu0 %v3967
        %4947 = vmatpush1.bf16.msra.mxu0 %v3966
        %4948 = vmatprep.subr.bf16.mxu0 %v3976
        %4949 = vmatpush1.bf16.msra.mxu0 %v3975
        %4950 = vmatprep.mubr.bf16.mxu0 %v4752
        %4951 = vmatmul.mubr.bf16.gmra.mrb[0].mxu0 %v4751
        %v4952 = vpop.f32.mrb[0].mxu0
        %v4953 = vadd.f32 %v3138, %v4952
        %v4954 = vpop.f32.mrb[0].mxu0
        %v4955 = vadd.f32 %v3142, %v4954
        %v4956 = vpop.f32.mrb[0].mxu0
        %v4957 = vpop.f32.mrb[0].mxu0
        %4958 = vdwg.mxu0
        %4959 = vmatprep.subr.bf16.mxu0 %v3985
        %4960 = vmatpush1.bf16.msra.mxu0 %v3984
        %4961 = vmatprep.subr.bf16.mxu0 %v3994
        %4962 = vmatpush1.bf16.msra.mxu0 %v3993
        %4963 = vmatprep.subr.bf16.mxu0 %v4003
        %4964 = vmatpush1.bf16.msra.mxu0 %v4002
        %4965 = vmatprep.subr.bf16.mxu0 %v4012
        %4966 = vmatpush1.bf16.msra.mxu0 %v4011
        %4967 = vmatprep.subr.bf16.mxu0 %v4021
        %4968 = vmatpush1.bf16.msra.mxu0 %v4020
        %4969 = vmatprep.subr.bf16.mxu0 %v4030
        %4970 = vmatpush1.bf16.msra.mxu0 %v4029
        %4971 = vmatprep.subr.bf16.mxu0 %v4039
        %4972 = vmatpush1.bf16.msra.mxu0 %v4038
        %4973 = vmatprep.subr.bf16.mxu0 %v4048
        %4974 = vmatpush1.bf16.msra.mxu0 %v4047
        %4975 = vmatprep.subr.bf16.mxu0 0
        %4976 = vmatpush1.bf16.msra.mxu0 0
        %4977 = vmatprep.subr.bf16.mxu0 0
        %4978 = vmatpush1.bf16.msra.mxu0 0
        %4979 = vmatprep.subr.bf16.mxu0 0
        %4980 = vmatpush1.bf16.msra.mxu0 0
        %4981 = vmatprep.subr.bf16.mxu0 0
        %4982 = vmatpush1.bf16.msra.mxu0 0
        %4983 = vmatprep.subr.bf16.mxu0 0
        %4984 = vmatpush1.bf16.msra.mxu0 0
        %4985 = vmatprep.subr.bf16.mxu0 0
        %4986 = vmatpush1.bf16.msra.mxu0 0
        %4987 = vmatprep.subr.bf16.mxu0 0
        %4988 = vmatpush1.bf16.msra.mxu0 0
        %4989 = vmatprep.subr.bf16.mxu0 0
        %4990 = vmatpush1.bf16.msra.mxu0 0
        %4991 = vmatprep.mubr.bf16.mxu0 0
        %4992 = vmatmul.mubr.bf16.gmra.mrb[0].mxu0 %v4753
        %v4993 = vpop.f32.mrb[0].mxu0
        %v4994 = vadd.f32 %v4953, %v4993
        %v4995 = vpop.f32.mrb[0].mxu0
        %v4996 = vadd.f32 %v4955, %v4995
        %v4997 = vpop.f32.mrb[0].mxu0
        %v4998 = vpop.f32.mrb[0].mxu0
        %4999 = vdwg.mxu0
        %5000 = vmatprep.subr.bf16.mxu0 %v3843
        %5001 = vmatpush1.bf16.msra.mxu0 %v3842
        %5002 = vmatprep.subr.bf16.mxu0 %v3852
        %5003 = vmatpush1.bf16.msra.mxu0 %v3851
        %5004 = vmatprep.subr.bf16.mxu0 %v3861
        %5005 = vmatpush1.bf16.msra.mxu0 %v3860
        %5006 = vmatprep.subr.bf16.mxu0 %v3870
        %5007 = vmatpush1.bf16.msra.mxu0 %v3869
        %5008 = vmatprep.subr.bf16.mxu0 %v3879
        %5009 = vmatpush1.bf16.msra.mxu0 %v3878
        %5010 = vmatprep.subr.bf16.mxu0 %v3888
        %5011 = vmatpush1.bf16.msra.mxu0 %v3887
        %5012 = vmatprep.subr.bf16.mxu0 %v3897
        %5013 = vmatpush1.bf16.msra.mxu0 %v3896
        %5014 = vmatprep.subr.bf16.mxu0 %v3906
        %5015 = vmatpush1.bf16.msra.mxu0 %v3905
        %5016 = vmatprep.subr.bf16.mxu0 %v3915
        %5017 = vmatpush1.bf16.msra.mxu0 %v3914
        %5018 = vmatprep.subr.bf16.mxu0 %v3924
        %5019 = vmatpush1.bf16.msra.mxu0 %v3923
        %5020 = vmatprep.subr.bf16.mxu0 %v3933
        %5021 = vmatpush1.bf16.msra.mxu0 %v3932
        %5022 = vmatprep.subr.bf16.mxu0 %v3942
        %5023 = vmatpush1.bf16.msra.mxu0 %v3941
        %5024 = vmatprep.subr.bf16.mxu0 %v3951
        %5025 = vmatpush1.bf16.msra.mxu0 %v3950
        %5026 = vmatprep.subr.bf16.mxu0 %v3960
        %5027 = vmatpush1.bf16.msra.mxu0 %v3959
        %5028 = vmatprep.subr.bf16.mxu0 %v3969
        %5029 = vmatpush1.bf16.msra.mxu0 %v3968
        %5030 = vmatprep.subr.bf16.mxu0 %v3978
        %5031 = vmatpush1.bf16.msra.mxu0 %v3977
        %5032 = vmatprep.mubr.bf16.mxu0 %v4752
        %5033 = vmatmul.mubr.bf16.gmra.mrb[0].mxu0 %v4751
        %v5034 = vpop.f32.mrb[0].mxu0
        %v5035 = vadd.f32 %v3146, %v5034
        %v5036 = vpop.f32.mrb[0].mxu0
        %v5037 = vadd.f32 %v3150, %v5036
        %v5038 = vpop.f32.mrb[0].mxu0
        %v5039 = vpop.f32.mrb[0].mxu0
        %5040 = vdwg.mxu0
        %5041 = vmatprep.subr.bf16.mxu0 %v3987
        %5042 = vmatpush1.bf16.msra.mxu0 %v3986
        %5043 = vmatprep.subr.bf16.mxu0 %v3996
        %5044 = vmatpush1.bf16.msra.mxu0 %v3995
        %5045 = vmatprep.subr.bf16.mxu0 %v4005
        %5046 = vmatpush1.bf16.msra.mxu0 %v4004
        %5047 = vmatprep.subr.bf16.mxu0 %v4014
        %5048 = vmatpush1.bf16.msra.mxu0 %v4013
        %5049 = vmatprep.subr.bf16.mxu0 %v4023
        %5050 = vmatpush1.bf16.msra.mxu0 %v4022
        %5051 = vmatprep.subr.bf16.mxu0 %v4032
        %5052 = vmatpush1.bf16.msra.mxu0 %v4031
        %5053 = vmatprep.subr.bf16.mxu0 %v4041
        %5054 = vmatpush1.bf16.msra.mxu0 %v4040
        %5055 = vmatprep.subr.bf16.mxu0 %v4050
        %5056 = vmatpush1.bf16.msra.mxu0 %v4049
        %5057 = vmatprep.subr.bf16.mxu0 0
        %5058 = vmatpush1.bf16.msra.mxu0 0
        %5059 = vmatprep.subr.bf16.mxu0 0
        %5060 = vmatpush1.bf16.msra.mxu0 0
        %5061 = vmatprep.subr.bf16.mxu0 0
        %5062 = vmatpush1.bf16.msra.mxu0 0
        %5063 = vmatprep.subr.bf16.mxu0 0
        %5064 = vmatpush1.bf16.msra.mxu0 0
        %5065 = vmatprep.subr.bf16.mxu0 0
        %5066 = vmatpush1.bf16.msra.mxu0 0
        %5067 = vmatprep.subr.bf16.mxu0 0
        %5068 = vmatpush1.bf16.msra.mxu0 0
        %5069 = vmatprep.subr.bf16.mxu0 0
        %5070 = vmatpush1.bf16.msra.mxu0 0
        %5071 = vmatprep.subr.bf16.mxu0 0
        %5072 = vmatpush1.bf16.msra.mxu0 0
        %5073 = vmatprep.mubr.bf16.mxu0 0
        %5074 = vmatmul.mubr.bf16.gmra.mrb[0].mxu0 %v4753
        %v5075 = vpop.f32.mrb[0].mxu0
        %v5076 = vadd.f32 %v5035, %v5075
        %v5077 = vpop.f32.mrb[0].mxu0
        %v5078 = vadd.f32 %v5037, %v5077
        %v5079 = vpop.f32.mrb[0].mxu0
        %v5080 = vpop.f32.mrb[0].mxu0
        %5081 = vdwg.mxu0
        %5082 = vmatprep.subr.bf16.mxu0 0
        %5083 = vmatpush1.bf16.msra.mxu0 %v3844
        %5084 = vmatprep.subr.bf16.mxu0 0
        %5085 = vmatpush1.bf16.msra.mxu0 %v3853
        %5086 = vmatprep.subr.bf16.mxu0 0
        %5087 = vmatpush1.bf16.msra.mxu0 %v3862
        %5088 = vmatprep.subr.bf16.mxu0 0
        %5089 = vmatpush1.bf16.msra.mxu0 %v3871
        %5090 = vmatprep.subr.bf16.mxu0 0
        %5091 = vmatpush1.bf16.msra.mxu0 %v3880
        %5092 = vmatprep.subr.bf16.mxu0 0
        %5093 = vmatpush1.bf16.msra.mxu0 %v3889
        %5094 = vmatprep.subr.bf16.mxu0 0
        %5095 = vmatpush1.bf16.msra.mxu0 %v3898
        %5096 = vmatprep.subr.bf16.mxu0 0
        %5097 = vmatpush1.bf16.msra.mxu0 %v3907
        %5098 = vmatprep.subr.bf16.mxu0 0
        %5099 = vmatpush1.bf16.msra.mxu0 %v3916
        %5100 = vmatprep.subr.bf16.mxu0 0
        %5101 = vmatpush1.bf16.msra.mxu0 %v3925
        %5102 = vmatprep.subr.bf16.mxu0 0
        %5103 = vmatpush1.bf16.msra.mxu0 %v3934
        %5104 = vmatprep.subr.bf16.mxu0 0
        %5105 = vmatpush1.bf16.msra.mxu0 %v3943
        %5106 = vmatprep.subr.bf16.mxu0 0
        %5107 = vmatpush1.bf16.msra.mxu0 %v3952
        %5108 = vmatprep.subr.bf16.mxu0 0
        %5109 = vmatpush1.bf16.msra.mxu0 %v3961
        %5110 = vmatprep.subr.bf16.mxu0 0
        %5111 = vmatpush1.bf16.msra.mxu0 %v3970
        %5112 = vmatprep.subr.bf16.mxu0 0
        %5113 = vmatpush1.bf16.msra.mxu0 %v3979
        %5114 = vmatprep.mubr.bf16.mxu0 %v4752
        %5115 = vmatmul.mubr.bf16.gmra.mrb[0].mxu0 %v4751
        %v5116 = vpop.f32.mrb[0].mxu0
        %v5117 = vadd.f32 %v3154, %v5116
        %v5118 = vpop.f32.mrb[0].mxu0
        %v5119 = vpop.f32.mrb[0].mxu0
        %v5120 = vpop.f32.mrb[0].mxu0
        %5121 = vdwg.mxu0
        %5122 = vmatprep.subr.bf16.mxu0 0
        %5123 = vmatpush1.bf16.msra.mxu0 %v3988
        %5124 = vmatprep.subr.bf16.mxu0 0
        %5125 = vmatpush1.bf16.msra.mxu0 %v3997
        %5126 = vmatprep.subr.bf16.mxu0 0
        %5127 = vmatpush1.bf16.msra.mxu0 %v4006
        %5128 = vmatprep.subr.bf16.mxu0 0
        %5129 = vmatpush1.bf16.msra.mxu0 %v4015
        %5130 = vmatprep.subr.bf16.mxu0 0
        %5131 = vmatpush1.bf16.msra.mxu0 %v4024
        %5132 = vmatprep.subr.bf16.mxu0 0
        %5133 = vmatpush1.bf16.msra.mxu0 %v4033
        %5134 = vmatprep.subr.bf16.mxu0 0
        %5135 = vmatpush1.bf16.msra.mxu0 %v4042
        %5136 = vmatprep.subr.bf16.mxu0 0
        %5137 = vmatpush1.bf16.msra.mxu0 %v4051
        %5138 = vmatprep.subr.bf16.mxu0 0
        %5139 = vmatpush1.bf16.msra.mxu0 0
        %5140 = vmatprep.subr.bf16.mxu0 0
        %5141 = vmatpush1.bf16.msra.mxu0 0
        %5142 = vmatprep.subr.bf16.mxu0 0
        %5143 = vmatpush1.bf16.msra.mxu0 0
        %5144 = vmatprep.subr.bf16.mxu0 0
        %5145 = vmatpush1.bf16.msra.mxu0 0
        %5146 = vmatprep.subr.bf16.mxu0 0
        %5147 = vmatpush1.bf16.msra.mxu0 0
        %5148 = vmatprep.subr.bf16.mxu0 0
        %5149 = vmatpush1.bf16.msra.mxu0 0
        %5150 = vmatprep.subr.bf16.mxu0 0
        %5151 = vmatpush1.bf16.msra.mxu0 0
        %5152 = vmatprep.subr.bf16.mxu0 0
        %5153 = vmatpush1.bf16.msra.mxu0 0
        %5154 = vmatprep.mubr.bf16.mxu0 0
        %5155 = vmatmul.mubr.bf16.gmra.mrb[0].mxu0 %v4753
        %v5156 = vpop.f32.mrb[0].mxu0
        %v5157 = vadd.f32 %v5117, %v5156
        %v5158 = vpop.f32.mrb[0].mxu0
        %v5159 = vpop.f32.mrb[0].mxu0
        %v5160 = vpop.f32.mrb[0].mxu0
        %5161 = vdwg.mxu0
        %v5162 = vadd.f32 %v4742, %v4830
        %v5163 = vadd.f32 %v4743, %v4832
        %v5164 = vadd.f32 %v4744, %v4912
        %v5165 = vxor.u32 %v5162, 2147483648
        %v5166 = vxor.u32 %v5163, 2147483648
        %v5167 = vxor.u32 %v5164, 2147483648
        %v5168 = vmul.f32 %v5165, 1.442695
        %v5169 = vpow.pop %v5168
        %v5170 = vmul.f32 %v5166, 1.442695
        %v5171 = vpow.pop %v5170
        %v5172 = vmul.f32 %v5167, 1.442695
        %v5173 = vpow.pop %v5172
        %v5174 = vadd.f32 %v5169, 1.0
        %v5175 = vadd.f32 %v5171, 1.0
        %v5176 = vadd.f32 %v5173, 1.0
        %v5177 = vrcp.pop %v5174
        %v5178 = vmul.f32 1.0, %v5177
        %v5179 = vrcp.pop %v5175
        %v5180 = vmul.f32 1.0, %v5179
        %v5181 = vrcp.pop %v5176
        %v5182 = vmul.f32 1.0, %v5181
        %v5183 = vadd.f32 %v4745, %v4914
        %v5184 = vadd.f32 %v4746, %v4994
        %v5185 = vadd.f32 %v4747, %v4996
        %v5186 = vxor.u32 %v5183, 2147483648
        %v5187 = vxor.u32 %v5184, 2147483648
        %v5188 = vxor.u32 %v5185, 2147483648
        %v5189 = vmul.f32 %v5186, 1.442695
        %v5190 = vpow.pop %v5189
        %v5191 = vmul.f32 %v5187, 1.442695
        %v5192 = vpow.pop %v5191
        %v5193 = vmul.f32 %v5188, 1.442695
        %v5194 = vpow.pop %v5193
        %v5195 = vadd.f32 %v5190, 1.0
        %v5196 = vadd.f32 %v5192, 1.0
        %v5197 = vadd.f32 %v5194, 1.0
        %v5198 = vrcp.pop %v5195
        %v5199 = vmul.f32 1.0, %v5198
        %v5200 = vrcp.pop %v5196
        %v5201 = vmul.f32 1.0, %v5200
        %v5202 = vrcp.pop %v5197
        %v5203 = vmul.f32 1.0, %v5202
        %v5204 = vmul.f32 %v5178, %v5076
        %v5205 = vmul.f32 %v5180, %v5078
        %v5206 = vmul.f32 %v5182, %v5157
        %v5207 = vadd.f32 %v4748, %v5204
        %v5208 = vadd.f32 %v4749, %v5205
        %v5209 = vadd.f32 %v4750, %v5206
        %v5210 = vtanh.pop %v5207
        %v5211 = vtanh.pop %v5208
        %v5212 = vtanh.pop %v5209
        %v5213 = vsub.f32 1.0, %v5199
        %v5214 = vsub.f32 1.0, %v5201
        %v5215 = vsub.f32 1.0, %v5203
        %v5216 = vmul.f32 %v5213, %v5210
        %v5217 = vmul.f32 %v5214, %v5211
        %v5218 = vmul.f32 %v5215, %v5212
        %v5219 = vmul.f32 %v5199, %v4736
        %v5220 = vmul.f32 %v5201, %v4737
        %v5221 = vmul.f32 %v5203, %v4738
        %v5222 = vadd.f32 %v5216, %v5219
        %v5223 = vadd.f32 %v5217, %v5220
        %v5224 = vadd.f32 %v5218, %v5221
        %5225 = vst [vmem:[#allocation3 + $0x18] sm:$0xff] %v5222
        %5226 = vst [vmem:[#allocation3 + $0x20] sm:$0xff] %v5223
        %5227 = vst [vmem:[#allocation3 + $0x28] sm:$0xff] %v5224
        %v5228 = vld [vmem:[#allocation2 + $0x90] sm:$0xff]
        %v5229 = vld [vmem:[#allocation2 + $0x98] sm:$0xff]
        %v5230 = vld [vmem:[#allocation2 + $0xa0] sm:$0xff]
        %v5231 = vld [vmem:[#allocation2 + $0xa8] sm:$0xff]
        %v5232 = vld [vmem:[#allocation2 + $0xb0] sm:$0xff]
        %v5233 = vld [vmem:[#allocation2 + $0xb8] sm:$0xff]
        %v5234 = vld [vmem:[#allocation2 + $0xc0] sm:$0xff]
        %v5235 = vld [vmem:[#allocation2 + $0xc8] sm:$0xff]
        %v5236 = vld [vmem:[#allocation2 + $0xd0] sm:$0xff]
        %v5237 = vpack.c.bf16 %v5222, %v5222
        %v5238 = vpack.c.bf16 %v5223, %v5223
        %v5239 = vpack.c.bf16 %v5224, %v5224
        %5240 = vmatprep.subr.bf16.mxu0 %v3837
        %5241 = vmatpush1.bf16.msra.mxu0 %v3836
        %5242 = vmatprep.subr.bf16.mxu0 %v3846
        %5243 = vmatpush1.bf16.msra.mxu0 %v3845
        %5244 = vmatprep.subr.bf16.mxu0 %v3855
        %5245 = vmatpush1.bf16.msra.mxu0 %v3854
        %5246 = vmatprep.subr.bf16.mxu0 %v3864
        %5247 = vmatpush1.bf16.msra.mxu0 %v3863
        %5248 = vmatprep.subr.bf16.mxu0 %v3873
        %5249 = vmatpush1.bf16.msra.mxu0 %v3872
        %5250 = vmatprep.subr.bf16.mxu0 %v3882
        %5251 = vmatpush1.bf16.msra.mxu0 %v3881
        %5252 = vmatprep.subr.bf16.mxu0 %v3891
        %5253 = vmatpush1.bf16.msra.mxu0 %v3890
        %5254 = vmatprep.subr.bf16.mxu0 %v3900
        %5255 = vmatpush1.bf16.msra.mxu0 %v3899
        %5256 = vmatprep.subr.bf16.mxu0 %v3909
        %5257 = vmatpush1.bf16.msra.mxu0 %v3908
        %5258 = vmatprep.subr.bf16.mxu0 %v3918
        %5259 = vmatpush1.bf16.msra.mxu0 %v3917
        %5260 = vmatprep.subr.bf16.mxu0 %v3927
        %5261 = vmatpush1.bf16.msra.mxu0 %v3926
        %5262 = vmatprep.subr.bf16.mxu0 %v3936
        %5263 = vmatpush1.bf16.msra.mxu0 %v3935
        %5264 = vmatprep.subr.bf16.mxu0 %v3945
        %5265 = vmatpush1.bf16.msra.mxu0 %v3944
        %5266 = vmatprep.subr.bf16.mxu0 %v3954
        %5267 = vmatpush1.bf16.msra.mxu0 %v3953
        %5268 = vmatprep.subr.bf16.mxu0 %v3963
        %5269 = vmatpush1.bf16.msra.mxu0 %v3962
        %5270 = vmatprep.subr.bf16.mxu0 %v3972
        %5271 = vmatpush1.bf16.msra.mxu0 %v3971
        %5272 = vmatprep.mubr.bf16.mxu0 %v5238
        %5273 = vmatmul.mubr.bf16.gmra.mrb[0].mxu0 %v5237
        %v5274 = vpop.f32.mrb[0].mxu0
        %v5275 = vadd.f32 %v3122, %v5274
        %v5276 = vpop.f32.mrb[0].mxu0
        %v5277 = vadd.f32 %v3126, %v5276
        %v5278 = vpop.f32.mrb[0].mxu0
        %v5279 = vpop.f32.mrb[0].mxu0
        %5280 = vdwg.mxu0
        %5281 = vmatprep.subr.bf16.mxu0 %v3981
        %5282 = vmatpush1.bf16.msra.mxu0 %v3980
        %5283 = vmatprep.subr.bf16.mxu0 %v3990
        %5284 = vmatpush1.bf16.msra.mxu0 %v3989
        %5285 = vmatprep.subr.bf16.mxu0 %v3999
        %5286 = vmatpush1.bf16.msra.mxu0 %v3998
        %5287 = vmatprep.subr.bf16.mxu0 %v4008
        %5288 = vmatpush1.bf16.msra.mxu0 %v4007
        %5289 = vmatprep.subr.bf16.mxu0 %v4017
        %5290 = vmatpush1.bf16.msra.mxu0 %v4016
        %5291 = vmatprep.subr.bf16.mxu0 %v4026
        %5292 = vmatpush1.bf16.msra.mxu0 %v4025
        %5293 = vmatprep.subr.bf16.mxu0 %v4035
        %5294 = vmatpush1.bf16.msra.mxu0 %v4034
        %5295 = vmatprep.subr.bf16.mxu0 %v4044
        %5296 = vmatpush1.bf16.msra.mxu0 %v4043
        %5297 = vmatprep.subr.bf16.mxu0 0
        %5298 = vmatpush1.bf16.msra.mxu0 0
        %5299 = vmatprep.subr.bf16.mxu0 0
        %5300 = vmatpush1.bf16.msra.mxu0 0
        %5301 = vmatprep.subr.bf16.mxu0 0
        %5302 = vmatpush1.bf16.msra.mxu0 0
        %5303 = vmatprep.subr.bf16.mxu0 0
        %5304 = vmatpush1.bf16.msra.mxu0 0
        %5305 = vmatprep.subr.bf16.mxu0 0
        %5306 = vmatpush1.bf16.msra.mxu0 0
        %5307 = vmatprep.subr.bf16.mxu0 0
        %5308 = vmatpush1.bf16.msra.mxu0 0
        %5309 = vmatprep.subr.bf16.mxu0 0
        %5310 = vmatpush1.bf16.msra.mxu0 0
        %5311 = vmatprep.subr.bf16.mxu0 0
        %5312 = vmatpush1.bf16.msra.mxu0 0
        %5313 = vmatprep.mubr.bf16.mxu0 0
        %5314 = vmatmul.mubr.bf16.gmra.mrb[0].mxu0 %v5239
        %v5315 = vpop.f32.mrb[0].mxu0
        %v5316 = vadd.f32 %v5275, %v5315
        %v5317 = vpop.f32.mrb[0].mxu0
        %v5318 = vadd.f32 %v5277, %v5317
        %v5319 = vpop.f32.mrb[0].mxu0
        %v5320 = vpop.f32.mrb[0].mxu0
        %5321 = vdwg.mxu0
        %5322 = vmatprep.subr.bf16.mxu0 %v3839
        %5323 = vmatpush1.bf16.msra.mxu0 %v3838
        %5324 = vmatprep.subr.bf16.mxu0 %v3848
        %5325 = vmatpush1.bf16.msra.mxu0 %v3847
        %5326 = vmatprep.subr.bf16.mxu0 %v3857
        %5327 = vmatpush1.bf16.msra.mxu0 %v3856
        %5328 = vmatprep.subr.bf16.mxu0 %v3866
        %5329 = vmatpush1.bf16.msra.mxu0 %v3865
        %5330 = vmatprep.subr.bf16.mxu0 %v3875
        %5331 = vmatpush1.bf16.msra.mxu0 %v3874
        %5332 = vmatprep.subr.bf16.mxu0 %v3884
        %5333 = vmatpush1.bf16.msra.mxu0 %v3883
        %5334 = vmatprep.subr.bf16.mxu0 %v3893
        %5335 = vmatpush1.bf16.msra.mxu0 %v3892
        %5336 = vmatprep.subr.bf16.mxu0 %v3902
        %5337 = vmatpush1.bf16.msra.mxu0 %v3901
        %5338 = vmatprep.subr.bf16.mxu0 %v3911
        %5339 = vmatpush1.bf16.msra.mxu0 %v3910
        %5340 = vmatprep.subr.bf16.mxu0 %v3920
        %5341 = vmatpush1.bf16.msra.mxu0 %v3919
        %5342 = vmatprep.subr.bf16.mxu0 %v3929
        %5343 = vmatpush1.bf16.msra.mxu0 %v3928
        %5344 = vmatprep.subr.bf16.mxu0 %v3938
        %5345 = vmatpush1.bf16.msra.mxu0 %v3937
        %5346 = vmatprep.subr.bf16.mxu0 %v3947
        %5347 = vmatpush1.bf16.msra.mxu0 %v3946
        %5348 = vmatprep.subr.bf16.mxu0 %v3956
        %5349 = vmatpush1.bf16.msra.mxu0 %v3955
        %5350 = vmatprep.subr.bf16.mxu0 %v3965
        %5351 = vmatpush1.bf16.msra.mxu0 %v3964
        %5352 = vmatprep.subr.bf16.mxu0 %v3974
        %5353 = vmatpush1.bf16.msra.mxu0 %v3973
        %5354 = vmatprep.mubr.bf16.mxu0 %v5238
        %5355 = vmatmul.mubr.bf16.gmra.mrb[0].mxu0 %v5237
        %v5356 = vpop.f32.mrb[0].mxu0
        %v5357 = vadd.f32 %v3130, %v5356
        %v5358 = vpop.f32.mrb[0].mxu0
        %v5359 = vadd.f32 %v3134, %v5358
        %v5360 = vpop.f32.mrb[0].mxu0
        %v5361 = vpop.f32.mrb[0].mxu0
        %5362 = vdwg.mxu0
        %5363 = vmatprep.subr.bf16.mxu0 %v3983
        %5364 = vmatpush1.bf16.msra.mxu0 %v3982
        %5365 = vmatprep.subr.bf16.mxu0 %v3992
        %5366 = vmatpush1.bf16.msra.mxu0 %v3991
        %5367 = vmatprep.subr.bf16.mxu0 %v4001
        %5368 = vmatpush1.bf16.msra.mxu0 %v4000
        %5369 = vmatprep.subr.bf16.mxu0 %v4010
        %5370 = vmatpush1.bf16.msra.mxu0 %v4009
        %5371 = vmatprep.subr.bf16.mxu0 %v4019
        %5372 = vmatpush1.bf16.msra.mxu0 %v4018
        %5373 = vmatprep.subr.bf16.mxu0 %v4028
        %5374 = vmatpush1.bf16.msra.mxu0 %v4027
        %5375 = vmatprep.subr.bf16.mxu0 %v4037
        %5376 = vmatpush1.bf16.msra.mxu0 %v4036
        %5377 = vmatprep.subr.bf16.mxu0 %v4046
        %5378 = vmatpush1.bf16.msra.mxu0 %v4045
        %5379 = vmatprep.subr.bf16.mxu0 0
        %5380 = vmatpush1.bf16.msra.mxu0 0
        %5381 = vmatprep.subr.bf16.mxu0 0
        %5382 = vmatpush1.bf16.msra.mxu0 0
        %5383 = vmatprep.subr.bf16.mxu0 0
        %5384 = vmatpush1.bf16.msra.mxu0 0
        %5385 = vmatprep.subr.bf16.mxu0 0
        %5386 = vmatpush1.bf16.msra.mxu0 0
        %5387 = vmatprep.subr.bf16.mxu0 0
        %5388 = vmatpush1.bf16.msra.mxu0 0
        %5389 = vmatprep.subr.bf16.mxu0 0
        %5390 = vmatpush1.bf16.msra.mxu0 0
        %5391 = vmatprep.subr.bf16.mxu0 0
        %5392 = vmatpush1.bf16.msra.mxu0 0
        %5393 = vmatprep.subr.bf16.mxu0 0
        %5394 = vmatpush1.bf16.msra.mxu0 0
        %5395 = vmatprep.mubr.bf16.mxu0 0
        %5396 = vmatmul.mubr.bf16.gmra.mrb[0].mxu0 %v5239
        %v5397 = vpop.f32.mrb[0].mxu0
        %v5398 = vadd.f32 %v5357, %v5397
        %v5399 = vpop.f32.mrb[0].mxu0
        %v5400 = vadd.f32 %v5359, %v5399
        %v5401 = vpop.f32.mrb[0].mxu0
        %v5402 = vpop.f32.mrb[0].mxu0
        %5403 = vdwg.mxu0
        %5404 = vmatprep.subr.bf16.mxu0 %v3841
        %5405 = vmatpush1.bf16.msra.mxu0 %v3840
        %5406 = vmatprep.subr.bf16.mxu0 %v3850
        %5407 = vmatpush1.bf16.msra.mxu0 %v3849
        %5408 = vmatprep.subr.bf16.mxu0 %v3859
        %5409 = vmatpush1.bf16.msra.mxu0 %v3858
        %5410 = vmatprep.subr.bf16.mxu0 %v3868
        %5411 = vmatpush1.bf16.msra.mxu0 %v3867
        %5412 = vmatprep.subr.bf16.mxu0 %v3877
        %5413 = vmatpush1.bf16.msra.mxu0 %v3876
        %5414 = vmatprep.subr.bf16.mxu0 %v3886
        %5415 = vmatpush1.bf16.msra.mxu0 %v3885
        %5416 = vmatprep.subr.bf16.mxu0 %v3895
        %5417 = vmatpush1.bf16.msra.mxu0 %v3894
        %5418 = vmatprep.subr.bf16.mxu0 %v3904
        %5419 = vmatpush1.bf16.msra.mxu0 %v3903
        %5420 = vmatprep.subr.bf16.mxu0 %v3913
        %5421 = vmatpush1.bf16.msra.mxu0 %v3912
        %5422 = vmatprep.subr.bf16.mxu0 %v3922
        %5423 = vmatpush1.bf16.msra.mxu0 %v3921
        %5424 = vmatprep.subr.bf16.mxu0 %v3931
        %5425 = vmatpush1.bf16.msra.mxu0 %v3930
        %5426 = vmatprep.subr.bf16.mxu0 %v3940
        %5427 = vmatpush1.bf16.msra.mxu0 %v3939
        %5428 = vmatprep.subr.bf16.mxu0 %v3949
        %5429 = vmatpush1.bf16.msra.mxu0 %v3948
        %5430 = vmatprep.subr.bf16.mxu0 %v3958
        %5431 = vmatpush1.bf16.msra.mxu0 %v3957
        %5432 = vmatprep.subr.bf16.mxu0 %v3967
        %5433 = vmatpush1.bf16.msra.mxu0 %v3966
        %5434 = vmatprep.subr.bf16.mxu0 %v3976
        %5435 = vmatpush1.bf16.msra.mxu0 %v3975
        %5436 = vmatprep.mubr.bf16.mxu0 %v5238
        %5437 = vmatmul.mubr.bf16.gmra.mrb[0].mxu0 %v5237
        %v5438 = vpop.f32.mrb[0].mxu0
        %v5439 = vadd.f32 %v3138, %v5438
        %v5440 = vpop.f32.mrb[0].mxu0
        %v5441 = vadd.f32 %v3142, %v5440
        %v5442 = vpop.f32.mrb[0].mxu0
        %v5443 = vpop.f32.mrb[0].mxu0
        %5444 = vdwg.mxu0
        %5445 = vmatprep.subr.bf16.mxu0 %v3985
        %5446 = vmatpush1.bf16.msra.mxu0 %v3984
        %5447 = vmatprep.subr.bf16.mxu0 %v3994
        %5448 = vmatpush1.bf16.msra.mxu0 %v3993
        %5449 = vmatprep.subr.bf16.mxu0 %v4003
        %5450 = vmatpush1.bf16.msra.mxu0 %v4002
        %5451 = vmatprep.subr.bf16.mxu0 %v4012
        %5452 = vmatpush1.bf16.msra.mxu0 %v4011
        %5453 = vmatprep.subr.bf16.mxu0 %v4021
        %5454 = vmatpush1.bf16.msra.mxu0 %v4020
        %5455 = vmatprep.subr.bf16.mxu0 %v4030
        %5456 = vmatpush1.bf16.msra.mxu0 %v4029
        %5457 = vmatprep.subr.bf16.mxu0 %v4039
        %5458 = vmatpush1.bf16.msra.mxu0 %v4038
        %5459 = vmatprep.subr.bf16.mxu0 %v4048
        %5460 = vmatpush1.bf16.msra.mxu0 %v4047
        %5461 = vmatprep.subr.bf16.mxu0 0
        %5462 = vmatpush1.bf16.msra.mxu0 0
        %5463 = vmatprep.subr.bf16.mxu0 0
        %5464 = vmatpush1.bf16.msra.mxu0 0
        %5465 = vmatprep.subr.bf16.mxu0 0
        %5466 = vmatpush1.bf16.msra.mxu0 0
        %5467 = vmatprep.subr.bf16.mxu0 0
        %5468 = vmatpush1.bf16.msra.mxu0 0
        %5469 = vmatprep.subr.bf16.mxu0 0
        %5470 = vmatpush1.bf16.msra.mxu0 0
        %5471 = vmatprep.subr.bf16.mxu0 0
        %5472 = vmatpush1.bf16.msra.mxu0 0
        %5473 = vmatprep.subr.bf16.mxu0 0
        %5474 = vmatpush1.bf16.msra.mxu0 0
        %5475 = vmatprep.subr.bf16.mxu0 0
        %5476 = vmatpush1.bf16.msra.mxu0 0
        %5477 = vmatprep.mubr.bf16.mxu0 0
        %5478 = vmatmul.mubr.bf16.gmra.mrb[0].mxu0 %v5239
        %v5479 = vpop.f32.mrb[0].mxu0
        %v5480 = vadd.f32 %v5439, %v5479
        %v5481 = vpop.f32.mrb[0].mxu0
        %v5482 = vadd.f32 %v5441, %v5481
        %v5483 = vpop.f32.mrb[0].mxu0
        %v5484 = vpop.f32.mrb[0].mxu0
        %5485 = vdwg.mxu0
        %5486 = vmatprep.subr.bf16.mxu0 %v3843
        %5487 = vmatpush1.bf16.msra.mxu0 %v3842
        %5488 = vmatprep.subr.bf16.mxu0 %v3852
        %5489 = vmatpush1.bf16.msra.mxu0 %v3851
        %5490 = vmatprep.subr.bf16.mxu0 %v3861
        %5491 = vmatpush1.bf16.msra.mxu0 %v3860
        %5492 = vmatprep.subr.bf16.mxu0 %v3870
        %5493 = vmatpush1.bf16.msra.mxu0 %v3869
        %5494 = vmatprep.subr.bf16.mxu0 %v3879
        %5495 = vmatpush1.bf16.msra.mxu0 %v3878
        %5496 = vmatprep.subr.bf16.mxu0 %v3888
        %5497 = vmatpush1.bf16.msra.mxu0 %v3887
        %5498 = vmatprep.subr.bf16.mxu0 %v3897
        %5499 = vmatpush1.bf16.msra.mxu0 %v3896
        %5500 = vmatprep.subr.bf16.mxu0 %v3906
        %5501 = vmatpush1.bf16.msra.mxu0 %v3905
        %5502 = vmatprep.subr.bf16.mxu0 %v3915
        %5503 = vmatpush1.bf16.msra.mxu0 %v3914
        %5504 = vmatprep.subr.bf16.mxu0 %v3924
        %5505 = vmatpush1.bf16.msra.mxu0 %v3923
        %5506 = vmatprep.subr.bf16.mxu0 %v3933
        %5507 = vmatpush1.bf16.msra.mxu0 %v3932
        %5508 = vmatprep.subr.bf16.mxu0 %v3942
        %5509 = vmatpush1.bf16.msra.mxu0 %v3941
        %5510 = vmatprep.subr.bf16.mxu0 %v3951
        %5511 = vmatpush1.bf16.msra.mxu0 %v3950
        %5512 = vmatprep.subr.bf16.mxu0 %v3960
        %5513 = vmatpush1.bf16.msra.mxu0 %v3959
        %5514 = vmatprep.subr.bf16.mxu0 %v3969
        %5515 = vmatpush1.bf16.msra.mxu0 %v3968
        %5516 = vmatprep.subr.bf16.mxu0 %v3978
        %5517 = vmatpush1.bf16.msra.mxu0 %v3977
        %5518 = vmatprep.mubr.bf16.mxu0 %v5238
        %5519 = vmatmul.mubr.bf16.gmra.mrb[0].mxu0 %v5237
        %v5520 = vpop.f32.mrb[0].mxu0
        %v5521 = vadd.f32 %v3146, %v5520
        %v5522 = vpop.f32.mrb[0].mxu0
        %v5523 = vadd.f32 %v3150, %v5522
        %v5524 = vpop.f32.mrb[0].mxu0
        %v5525 = vpop.f32.mrb[0].mxu0
        %5526 = vdwg.mxu0
        %5527 = vmatprep.subr.bf16.mxu0 %v3987
        %5528 = vmatpush1.bf16.msra.mxu0 %v3986
        %5529 = vmatprep.subr.bf16.mxu0 %v3996
        %5530 = vmatpush1.bf16.msra.mxu0 %v3995
        %5531 = vmatprep.subr.bf16.mxu0 %v4005
        %5532 = vmatpush1.bf16.msra.mxu0 %v4004
        %5533 = vmatprep.subr.bf16.mxu0 %v4014
        %5534 = vmatpush1.bf16.msra.mxu0 %v4013
        %5535 = vmatprep.subr.bf16.mxu0 %v4023
        %5536 = vmatpush1.bf16.msra.mxu0 %v4022
        %5537 = vmatprep.subr.bf16.mxu0 %v4032
        %5538 = vmatpush1.bf16.msra.mxu0 %v4031
        %5539 = vmatprep.subr.bf16.mxu0 %v4041
        %5540 = vmatpush1.bf16.msra.mxu0 %v4040
        %5541 = vmatprep.subr.bf16.mxu0 %v4050
        %5542 = vmatpush1.bf16.msra.mxu0 %v4049
        %5543 = vmatprep.subr.bf16.mxu0 0
        %5544 = vmatpush1.bf16.msra.mxu0 0
        %5545 = vmatprep.subr.bf16.mxu0 0
        %5546 = vmatpush1.bf16.msra.mxu0 0
        %5547 = vmatprep.subr.bf16.mxu0 0
        %5548 = vmatpush1.bf16.msra.mxu0 0
        %5549 = vmatprep.subr.bf16.mxu0 0
        %5550 = vmatpush1.bf16.msra.mxu0 0
        %5551 = vmatprep.subr.bf16.mxu0 0
        %5552 = vmatpush1.bf16.msra.mxu0 0
        %5553 = vmatprep.subr.bf16.mxu0 0
        %5554 = vmatpush1.bf16.msra.mxu0 0
        %5555 = vmatprep.subr.bf16.mxu0 0
        %5556 = vmatpush1.bf16.msra.mxu0 0
        %5557 = vmatprep.subr.bf16.mxu0 0
        %5558 = vmatpush1.bf16.msra.mxu0 0
        %5559 = vmatprep.mubr.bf16.mxu0 0
        %5560 = vmatmul.mubr.bf16.gmra.mrb[0].mxu0 %v5239
        %v5561 = vpop.f32.mrb[0].mxu0
        %v5562 = vadd.f32 %v5521, %v5561
        %v5563 = vpop.f32.mrb[0].mxu0
        %v5564 = vadd.f32 %v5523, %v5563
        %v5565 = vpop.f32.mrb[0].mxu0
        %v5566 = vpop.f32.mrb[0].mxu0
        %5567 = vdwg.mxu0
        %5568 = vmatprep.subr.bf16.mxu0 0
        %5569 = vmatpush1.bf16.msra.mxu0 %v3844
        %5570 = vmatprep.subr.bf16.mxu0 0
        %5571 = vmatpush1.bf16.msra.mxu0 %v3853
        %5572 = vmatprep.subr.bf16.mxu0 0
        %5573 = vmatpush1.bf16.msra.mxu0 %v3862
        %5574 = vmatprep.subr.bf16.mxu0 0
        %5575 = vmatpush1.bf16.msra.mxu0 %v3871
        %5576 = vmatprep.subr.bf16.mxu0 0
        %5577 = vmatpush1.bf16.msra.mxu0 %v3880
        %5578 = vmatprep.subr.bf16.mxu0 0
        %5579 = vmatpush1.bf16.msra.mxu0 %v3889
        %5580 = vmatprep.subr.bf16.mxu0 0
        %5581 = vmatpush1.bf16.msra.mxu0 %v3898
        %5582 = vmatprep.subr.bf16.mxu0 0
        %5583 = vmatpush1.bf16.msra.mxu0 %v3907
        %5584 = vmatprep.subr.bf16.mxu0 0
        %5585 = vmatpush1.bf16.msra.mxu0 %v3916
        %5586 = vmatprep.subr.bf16.mxu0 0
        %5587 = vmatpush1.bf16.msra.mxu0 %v3925
        %5588 = vmatprep.subr.bf16.mxu0 0
        %5589 = vmatpush1.bf16.msra.mxu0 %v3934
        %5590 = vmatprep.subr.bf16.mxu0 0
        %5591 = vmatpush1.bf16.msra.mxu0 %v3943
        %5592 = vmatprep.subr.bf16.mxu0 0
        %5593 = vmatpush1.bf16.msra.mxu0 %v3952
        %5594 = vmatprep.subr.bf16.mxu0 0
        %5595 = vmatpush1.bf16.msra.mxu0 %v3961
        %5596 = vmatprep.subr.bf16.mxu0 0
        %5597 = vmatpush1.bf16.msra.mxu0 %v3970
        %5598 = vmatprep.subr.bf16.mxu0 0
        %5599 = vmatpush1.bf16.msra.mxu0 %v3979
        %5600 = vmatprep.mubr.bf16.mxu0 %v5238
        %5601 = vmatmul.mubr.bf16.gmra.mrb[0].mxu0 %v5237
        %v5602 = vpop.f32.mrb[0].mxu0
        %v5603 = vadd.f32 %v3154, %v5602
        %v5604 = vpop.f32.mrb[0].mxu0
        %v5605 = vpop.f32.mrb[0].mxu0
        %v5606 = vpop.f32.mrb[0].mxu0
        %5607 = vdwg.mxu0
        %5608 = vmatprep.subr.bf16.mxu0 0
        %5609 = vmatpush1.bf16.msra.mxu0 %v3988
        %5610 = vmatprep.subr.bf16.mxu0 0
        %5611 = vmatpush1.bf16.msra.mxu0 %v3997
        %5612 = vmatprep.subr.bf16.mxu0 0
        %5613 = vmatpush1.bf16.msra.mxu0 %v4006
        %5614 = vmatprep.subr.bf16.mxu0 0
        %5615 = vmatpush1.bf16.msra.mxu0 %v4015
        %5616 = vmatprep.subr.bf16.mxu0 0
        %5617 = vmatpush1.bf16.msra.mxu0 %v4024
        %5618 = vmatprep.subr.bf16.mxu0 0
        %5619 = vmatpush1.bf16.msra.mxu0 %v4033
        %5620 = vmatprep.subr.bf16.mxu0 0
        %5621 = vmatpush1.bf16.msra.mxu0 %v4042
        %5622 = vmatprep.subr.bf16.mxu0 0
        %5623 = vmatpush1.bf16.msra.mxu0 %v4051
        %5624 = vmatprep.subr.bf16.mxu0 0
        %5625 = vmatpush1.bf16.msra.mxu0 0
        %5626 = vmatprep.subr.bf16.mxu0 0
        %5627 = vmatpush1.bf16.msra.mxu0 0
        %5628 = vmatprep.subr.bf16.mxu0 0
        %5629 = vmatpush1.bf16.msra.mxu0 0
        %5630 = vmatprep.subr.bf16.mxu0 0
        %5631 = vmatpush1.bf16.msra.mxu0 0
        %5632 = vmatprep.subr.bf16.mxu0 0
        %5633 = vmatpush1.bf16.msra.mxu0 0
        %5634 = vmatprep.subr.bf16.mxu0 0
        %5635 = vmatpush1.bf16.msra.mxu0 0
        %5636 = vmatprep.subr.bf16.mxu0 0
        %5637 = vmatpush1.bf16.msra.mxu0 0
        %5638 = vmatprep.subr.bf16.mxu0 0
        %5639 = vmatpush1.bf16.msra.mxu0 0
        %5640 = vmatprep.mubr.bf16.mxu0 0
        %5641 = vmatmul.mubr.bf16.gmra.mrb[0].mxu0 %v5239
        %v5642 = vpop.f32.mrb[0].mxu0
        %v5643 = vadd.f32 %v5603, %v5642
        %v5644 = vpop.f32.mrb[0].mxu0
        %v5645 = vpop.f32.mrb[0].mxu0
        %v5646 = vpop.f32.mrb[0].mxu0
        %5647 = vdwg.mxu0
        %v5648 = vadd.f32 %v5228, %v5316
        %v5649 = vadd.f32 %v5229, %v5318
        %v5650 = vadd.f32 %v5230, %v5398
        %v5651 = vxor.u32 %v5648, 2147483648
        %v5652 = vxor.u32 %v5649, 2147483648
        %v5653 = vxor.u32 %v5650, 2147483648
        %v5654 = vmul.f32 %v5651, 1.442695
        %v5655 = vpow.pop %v5654
        %v5656 = vmul.f32 %v5652, 1.442695
        %v5657 = vpow.pop %v5656
        %v5658 = vmul.f32 %v5653, 1.442695
        %v5659 = vpow.pop %v5658
        %v5660 = vadd.f32 %v5655, 1.0
        %v5661 = vadd.f32 %v5657, 1.0
        %v5662 = vadd.f32 %v5659, 1.0
        %v5663 = vrcp.pop %v5660
        %v5664 = vmul.f32 1.0, %v5663
        %v5665 = vrcp.pop %v5661
        %v5666 = vmul.f32 1.0, %v5665
        %v5667 = vrcp.pop %v5662
        %v5668 = vmul.f32 1.0, %v5667
        %v5669 = vadd.f32 %v5231, %v5400
        %v5670 = vadd.f32 %v5232, %v5480
        %v5671 = vadd.f32 %v5233, %v5482
        %v5672 = vxor.u32 %v5669, 2147483648
        %v5673 = vxor.u32 %v5670, 2147483648
        %v5674 = vxor.u32 %v5671, 2147483648
        %v5675 = vmul.f32 %v5672, 1.442695
        %v5676 = vpow.pop %v5675
        %v5677 = vmul.f32 %v5673, 1.442695
        %v5678 = vpow.pop %v5677
        %v5679 = vmul.f32 %v5674, 1.442695
        %v5680 = vpow.pop %v5679
        %v5681 = vadd.f32 %v5676, 1.0
        %v5682 = vadd.f32 %v5678, 1.0
        %v5683 = vadd.f32 %v5680, 1.0
        %v5684 = vrcp.pop %v5681
        %v5685 = vmul.f32 1.0, %v5684
        %v5686 = vrcp.pop %v5682
        %v5687 = vmul.f32 1.0, %v5686
        %v5688 = vrcp.pop %v5683
        %v5689 = vmul.f32 1.0, %v5688
        %v5690 = vmul.f32 %v5664, %v5562
        %v5691 = vmul.f32 %v5666, %v5564
        %v5692 = vmul.f32 %v5668, %v5643
        %v5693 = vadd.f32 %v5234, %v5690
        %v5694 = vadd.f32 %v5235, %v5691
        %v5695 = vadd.f32 %v5236, %v5692
        %v5696 = vtanh.pop %v5693
        %v5697 = vtanh.pop %v5694
        %v5698 = vtanh.pop %v5695
        %v5699 = vsub.f32 1.0, %v5685
        %v5700 = vsub.f32 1.0, %v5687
        %v5701 = vsub.f32 1.0, %v5689
        %v5702 = vmul.f32 %v5699, %v5696
        %v5703 = vmul.f32 %v5700, %v5697
        %v5704 = vmul.f32 %v5701, %v5698
        %v5705 = vmul.f32 %v5685, %v5222
        %v5706 = vmul.f32 %v5687, %v5223
        %v5707 = vmul.f32 %v5689, %v5224
        %v5708 = vadd.f32 %v5702, %v5705
        %v5709 = vadd.f32 %v5703, %v5706
        %v5710 = vadd.f32 %v5704, %v5707
        %5711 = vst [vmem:[#allocation3 + $0x30] sm:$0xff] %v5708
        %5712 = vst [vmem:[#allocation3 + $0x38] sm:$0xff] %v5709
        %5713 = vst [vmem:[#allocation3 + $0x40] sm:$0xff] %v5710
        %v5714 = vld [vmem:[#allocation2 + $0xd8] sm:$0xff]
        %v5715 = vld [vmem:[#allocation2 + $0xe0] sm:$0xff]
        %v5716 = vld [vmem:[#allocation2 + $0xe8] sm:$0xff]
        %v5717 = vld [vmem:[#allocation2 + $0xf0] sm:$0xff]
        %v5718 = vld [vmem:[#allocation2 + $0xf8] sm:$0xff]
        %v5719 = vld [vmem:[#allocation2 + $0x100] sm:$0xff]
        %v5720 = vld [vmem:[#allocation2 + $0x108] sm:$0xff]
        %v5721 = vld [vmem:[#allocation2 + $0x110] sm:$0xff]
        %v5722 = vld [vmem:[#allocation2 + $0x118] sm:$0xff]
        %v5723 = vpack.c.bf16 %v5708, %v5708
        %v5724 = vpack.c.bf16 %v5709, %v5709
        %v5725 = vpack.c.bf16 %v5710, %v5710
        %5726 = vmatprep.subr.bf16.mxu0 %v3837
        %5727 = vmatpush1.bf16.msra.mxu0 %v3836
        %5728 = vmatprep.subr.bf16.mxu0 %v3846
        %5729 = vmatpush1.bf16.msra.mxu0 %v3845
        %5730 = vmatprep.subr.bf16.mxu0 %v3855
        %5731 = vmatpush1.bf16.msra.mxu0 %v3854
        %5732 = vmatprep.subr.bf16.mxu0 %v3864
        %5733 = vmatpush1.bf16.msra.mxu0 %v3863
        %5734 = vmatprep.subr.bf16.mxu0 %v3873
        %5735 = vmatpush1.bf16.msra.mxu0 %v3872
        %5736 = vmatprep.subr.bf16.mxu0 %v3882
        %5737 = vmatpush1.bf16.msra.mxu0 %v3881
        %5738 = vmatprep.subr.bf16.mxu0 %v3891
        %5739 = vmatpush1.bf16.msra.mxu0 %v3890
        %5740 = vmatprep.subr.bf16.mxu0 %v3900
        %5741 = vmatpush1.bf16.msra.mxu0 %v3899
        %5742 = vmatprep.subr.bf16.mxu0 %v3909
        %5743 = vmatpush1.bf16.msra.mxu0 %v3908
        %5744 = vmatprep.subr.bf16.mxu0 %v3918
        %5745 = vmatpush1.bf16.msra.mxu0 %v3917
        %5746 = vmatprep.subr.bf16.mxu0 %v3927
        %5747 = vmatpush1.bf16.msra.mxu0 %v3926
        %5748 = vmatprep.subr.bf16.mxu0 %v3936
        %5749 = vmatpush1.bf16.msra.mxu0 %v3935
        %5750 = vmatprep.subr.bf16.mxu0 %v3945
        %5751 = vmatpush1.bf16.msra.mxu0 %v3944
        %5752 = vmatprep.subr.bf16.mxu0 %v3954
        %5753 = vmatpush1.bf16.msra.mxu0 %v3953
        %5754 = vmatprep.subr.bf16.mxu0 %v3963
        %5755 = vmatpush1.bf16.msra.mxu0 %v3962
        %5756 = vmatprep.subr.bf16.mxu0 %v3972
        %5757 = vmatpush1.bf16.msra.mxu0 %v3971
        %5758 = vmatprep.mubr.bf16.mxu0 %v5724
        %5759 = vmatmul.mubr.bf16.gmra.mrb[0].mxu0 %v5723
        %v5760 = vpop.f32.mrb[0].mxu0
        %v5761 = vadd.f32 %v3122, %v5760
        %v5762 = vpop.f32.mrb[0].mxu0
        %v5763 = vadd.f32 %v3126, %v5762
        %v5764 = vpop.f32.mrb[0].mxu0
        %v5765 = vpop.f32.mrb[0].mxu0
        %5766 = vdwg.mxu0
        %5767 = vmatprep.subr.bf16.mxu0 %v3981
        %5768 = vmatpush1.bf16.msra.mxu0 %v3980
        %5769 = vmatprep.subr.bf16.mxu0 %v3990
        %5770 = vmatpush1.bf16.msra.mxu0 %v3989
        %5771 = vmatprep.subr.bf16.mxu0 %v3999
        %5772 = vmatpush1.bf16.msra.mxu0 %v3998
        %5773 = vmatprep.subr.bf16.mxu0 %v4008
        %5774 = vmatpush1.bf16.msra.mxu0 %v4007
        %5775 = vmatprep.subr.bf16.mxu0 %v4017
        %5776 = vmatpush1.bf16.msra.mxu0 %v4016
        %5777 = vmatprep.subr.bf16.mxu0 %v4026
        %5778 = vmatpush1.bf16.msra.mxu0 %v4025
        %5779 = vmatprep.subr.bf16.mxu0 %v4035
        %5780 = vmatpush1.bf16.msra.mxu0 %v4034
        %5781 = vmatprep.subr.bf16.mxu0 %v4044
        %5782 = vmatpush1.bf16.msra.mxu0 %v4043
        %5783 = vmatprep.subr.bf16.mxu0 0
        %5784 = vmatpush1.bf16.msra.mxu0 0
        %5785 = vmatprep.subr.bf16.mxu0 0
        %5786 = vmatpush1.bf16.msra.mxu0 0
        %5787 = vmatprep.subr.bf16.mxu0 0
        %5788 = vmatpush1.bf16.msra.mxu0 0
        %5789 = vmatprep.subr.bf16.mxu0 0
        %5790 = vmatpush1.bf16.msra.mxu0 0
        %5791 = vmatprep.subr.bf16.mxu0 0
        %5792 = vmatpush1.bf16.msra.mxu0 0
        %5793 = vmatprep.subr.bf16.mxu0 0
        %5794 = vmatpush1.bf16.msra.mxu0 0
        %5795 = vmatprep.subr.bf16.mxu0 0
        %5796 = vmatpush1.bf16.msra.mxu0 0
        %5797 = vmatprep.subr.bf16.mxu0 0
        %5798 = vmatpush1.bf16.msra.mxu0 0
        %5799 = vmatprep.mubr.bf16.mxu0 0
        %5800 = vmatmul.mubr.bf16.gmra.mrb[0].mxu0 %v5725
        %v5801 = vpop.f32.mrb[0].mxu0
        %v5802 = vadd.f32 %v5761, %v5801
        %v5803 = vpop.f32.mrb[0].mxu0
        %v5804 = vadd.f32 %v5763, %v5803
        %v5805 = vpop.f32.mrb[0].mxu0
        %v5806 = vpop.f32.mrb[0].mxu0
        %5807 = vdwg.mxu0
        %5808 = vmatprep.subr.bf16.mxu0 %v3839
        %5809 = vmatpush1.bf16.msra.mxu0 %v3838
        %5810 = vmatprep.subr.bf16.mxu0 %v3848
        %5811 = vmatpush1.bf16.msra.mxu0 %v3847
        %5812 = vmatprep.subr.bf16.mxu0 %v3857
        %5813 = vmatpush1.bf16.msra.mxu0 %v3856
        %5814 = vmatprep.subr.bf16.mxu0 %v3866
        %5815 = vmatpush1.bf16.msra.mxu0 %v3865
        %5816 = vmatprep.subr.bf16.mxu0 %v3875
        %5817 = vmatpush1.bf16.msra.mxu0 %v3874
        %5818 = vmatprep.subr.bf16.mxu0 %v3884
        %5819 = vmatpush1.bf16.msra.mxu0 %v3883
        %5820 = vmatprep.subr.bf16.mxu0 %v3893
        %5821 = vmatpush1.bf16.msra.mxu0 %v3892
        %5822 = vmatprep.subr.bf16.mxu0 %v3902
        %5823 = vmatpush1.bf16.msra.mxu0 %v3901
        %5824 = vmatprep.subr.bf16.mxu0 %v3911
        %5825 = vmatpush1.bf16.msra.mxu0 %v3910
        %5826 = vmatprep.subr.bf16.mxu0 %v3920
        %5827 = vmatpush1.bf16.msra.mxu0 %v3919
        %5828 = vmatprep.subr.bf16.mxu0 %v3929
        %5829 = vmatpush1.bf16.msra.mxu0 %v3928
        %5830 = vmatprep.subr.bf16.mxu0 %v3938
        %5831 = vmatpush1.bf16.msra.mxu0 %v3937
        %5832 = vmatprep.subr.bf16.mxu0 %v3947
        %5833 = vmatpush1.bf16.msra.mxu0 %v3946
        %5834 = vmatprep.subr.bf16.mxu0 %v3956
        %5835 = vmatpush1.bf16.msra.mxu0 %v3955
        %5836 = vmatprep.subr.bf16.mxu0 %v3965
        %5837 = vmatpush1.bf16.msra.mxu0 %v3964
        %5838 = vmatprep.subr.bf16.mxu0 %v3974
        %5839 = vmatpush1.bf16.msra.mxu0 %v3973
        %5840 = vmatprep.mubr.bf16.mxu0 %v5724
        %5841 = vmatmul.mubr.bf16.gmra.mrb[0].mxu0 %v5723
        %v5842 = vpop.f32.mrb[0].mxu0
        %v5843 = vadd.f32 %v3130, %v5842
        %v5844 = vpop.f32.mrb[0].mxu0
        %v5845 = vadd.f32 %v3134, %v5844
        %v5846 = vpop.f32.mrb[0].mxu0
        %v5847 = vpop.f32.mrb[0].mxu0
        %5848 = vdwg.mxu0
        %5849 = vmatprep.subr.bf16.mxu0 %v3983
        %5850 = vmatpush1.bf16.msra.mxu0 %v3982
        %5851 = vmatprep.subr.bf16.mxu0 %v3992
        %5852 = vmatpush1.bf16.msra.mxu0 %v3991
        %5853 = vmatprep.subr.bf16.mxu0 %v4001
        %5854 = vmatpush1.bf16.msra.mxu0 %v4000
        %5855 = vmatprep.subr.bf16.mxu0 %v4010
        %5856 = vmatpush1.bf16.msra.mxu0 %v4009
        %5857 = vmatprep.subr.bf16.mxu0 %v4019
        %5858 = vmatpush1.bf16.msra.mxu0 %v4018
        %5859 = vmatprep.subr.bf16.mxu0 %v4028
        %5860 = vmatpush1.bf16.msra.mxu0 %v4027
        %5861 = vmatprep.subr.bf16.mxu0 %v4037
        %5862 = vmatpush1.bf16.msra.mxu0 %v4036
        %5863 = vmatprep.subr.bf16.mxu0 %v4046
        %5864 = vmatpush1.bf16.msra.mxu0 %v4045
        %5865 = vmatprep.subr.bf16.mxu0 0
        %5866 = vmatpush1.bf16.msra.mxu0 0
        %5867 = vmatprep.subr.bf16.mxu0 0
        %5868 = vmatpush1.bf16.msra.mxu0 0
        %5869 = vmatprep.subr.bf16.mxu0 0
        %5870 = vmatpush1.bf16.msra.mxu0 0
        %5871 = vmatprep.subr.bf16.mxu0 0
        %5872 = vmatpush1.bf16.msra.mxu0 0
        %5873 = vmatprep.subr.bf16.mxu0 0
        %5874 = vmatpush1.bf16.msra.mxu0 0
        %5875 = vmatprep.subr.bf16.mxu0 0
        %5876 = vmatpush1.bf16.msra.mxu0 0
        %5877 = vmatprep.subr.bf16.mxu0 0
        %5878 = vmatpush1.bf16.msra.mxu0 0
        %5879 = vmatprep.subr.bf16.mxu0 0
        %5880 = vmatpush1.bf16.msra.mxu0 0
        %5881 = vmatprep.mubr.bf16.mxu0 0
        %5882 = vmatmul.mubr.bf16.gmra.mrb[0].mxu0 %v5725
        %v5883 = vpop.f32.mrb[0].mxu0
        %v5884 = vadd.f32 %v5843, %v5883
        %v5885 = vpop.f32.mrb[0].mxu0
        %v5886 = vadd.f32 %v5845, %v5885
        %v5887 = vpop.f32.mrb[0].mxu0
        %v5888 = vpop.f32.mrb[0].mxu0
        %5889 = vdwg.mxu0
        %5890 = vmatprep.subr.bf16.mxu0 %v3841
        %5891 = vmatpush1.bf16.msra.mxu0 %v3840
        %5892 = vmatprep.subr.bf16.mxu0 %v3850
        %5893 = vmatpush1.bf16.msra.mxu0 %v3849
        %5894 = vmatprep.subr.bf16.mxu0 %v3859
        %5895 = vmatpush1.bf16.msra.mxu0 %v3858
        %5896 = vmatprep.subr.bf16.mxu0 %v3868
        %5897 = vmatpush1.bf16.msra.mxu0 %v3867
        %5898 = vmatprep.subr.bf16.mxu0 %v3877
        %5899 = vmatpush1.bf16.msra.mxu0 %v3876
        %5900 = vmatprep.subr.bf16.mxu0 %v3886
        %5901 = vmatpush1.bf16.msra.mxu0 %v3885
        %5902 = vmatprep.subr.bf16.mxu0 %v3895
        %5903 = vmatpush1.bf16.msra.mxu0 %v3894
        %5904 = vmatprep.subr.bf16.mxu0 %v3904
        %5905 = vmatpush1.bf16.msra.mxu0 %v3903
        %5906 = vmatprep.subr.bf16.mxu0 %v3913
        %5907 = vmatpush1.bf16.msra.mxu0 %v3912
        %5908 = vmatprep.subr.bf16.mxu0 %v3922
        %5909 = vmatpush1.bf16.msra.mxu0 %v3921
        %5910 = vmatprep.subr.bf16.mxu0 %v3931
        %5911 = vmatpush1.bf16.msra.mxu0 %v3930
        %5912 = vmatprep.subr.bf16.mxu0 %v3940
        %5913 = vmatpush1.bf16.msra.mxu0 %v3939
        %5914 = vmatprep.subr.bf16.mxu0 %v3949
        %5915 = vmatpush1.bf16.msra.mxu0 %v3948
        %5916 = vmatprep.subr.bf16.mxu0 %v3958
        %5917 = vmatpush1.bf16.msra.mxu0 %v3957
        %5918 = vmatprep.subr.bf16.mxu0 %v3967
        %5919 = vmatpush1.bf16.msra.mxu0 %v3966
        %5920 = vmatprep.subr.bf16.mxu0 %v3976
        %5921 = vmatpush1.bf16.msra.mxu0 %v3975
        %5922 = vmatprep.mubr.bf16.mxu0 %v5724
        %5923 = vmatmul.mubr.bf16.gmra.mrb[0].mxu0 %v5723
        %v5924 = vpop.f32.mrb[0].mxu0
        %v5925 = vadd.f32 %v3138, %v5924
        %v5926 = vpop.f32.mrb[0].mxu0
        %v5927 = vadd.f32 %v3142, %v5926
        %v5928 = vpop.f32.mrb[0].mxu0
        %v5929 = vpop.f32.mrb[0].mxu0
        %5930 = vdwg.mxu0
        %5931 = vmatprep.subr.bf16.mxu0 %v3985
        %5932 = vmatpush1.bf16.msra.mxu0 %v3984
        %5933 = vmatprep.subr.bf16.mxu0 %v3994
        %5934 = vmatpush1.bf16.msra.mxu0 %v3993
        %5935 = vmatprep.subr.bf16.mxu0 %v4003
        %5936 = vmatpush1.bf16.msra.mxu0 %v4002
        %5937 = vmatprep.subr.bf16.mxu0 %v4012
        %5938 = vmatpush1.bf16.msra.mxu0 %v4011
        %5939 = vmatprep.subr.bf16.mxu0 %v4021
        %5940 = vmatpush1.bf16.msra.mxu0 %v4020
        %5941 = vmatprep.subr.bf16.mxu0 %v4030
        %5942 = vmatpush1.bf16.msra.mxu0 %v4029
        %5943 = vmatprep.subr.bf16.mxu0 %v4039
        %5944 = vmatpush1.bf16.msra.mxu0 %v4038
        %5945 = vmatprep.subr.bf16.mxu0 %v4048
        %5946 = vmatpush1.bf16.msra.mxu0 %v4047
        %5947 = vmatprep.subr.bf16.mxu0 0
        %5948 = vmatpush1.bf16.msra.mxu0 0
        %5949 = vmatprep.subr.bf16.mxu0 0
        %5950 = vmatpush1.bf16.msra.mxu0 0
        %5951 = vmatprep.subr.bf16.mxu0 0
        %5952 = vmatpush1.bf16.msra.mxu0 0
        %5953 = vmatprep.subr.bf16.mxu0 0
        %5954 = vmatpush1.bf16.msra.mxu0 0
        %5955 = vmatprep.subr.bf16.mxu0 0
        %5956 = vmatpush1.bf16.msra.mxu0 0
        %5957 = vmatprep.subr.bf16.mxu0 0
        %5958 = vmatpush1.bf16.msra.mxu0 0
        %5959 = vmatprep.subr.bf16.mxu0 0
        %5960 = vmatpush1.bf16.msra.mxu0 0
        %5961 = vmatprep.subr.bf16.mxu0 0
        %5962 = vmatpush1.bf16.msra.mxu0 0
        %5963 = vmatprep.mubr.bf16.mxu0 0
        %5964 = vmatmul.mubr.bf16.gmra.mrb[0].mxu0 %v5725
        %v5965 = vpop.f32.mrb[0].mxu0
        %v5966 = vadd.f32 %v5925, %v5965
        %v5967 = vpop.f32.mrb[0].mxu0
        %v5968 = vadd.f32 %v5927, %v5967
        %v5969 = vpop.f32.mrb[0].mxu0
        %v5970 = vpop.f32.mrb[0].mxu0
        %5971 = vdwg.mxu0
        %5972 = vmatprep.subr.bf16.mxu0 %v3843
        %5973 = vmatpush1.bf16.msra.mxu0 %v3842
        %5974 = vmatprep.subr.bf16.mxu0 %v3852
        %5975 = vmatpush1.bf16.msra.mxu0 %v3851
        %5976 = vmatprep.subr.bf16.mxu0 %v3861
        %5977 = vmatpush1.bf16.msra.mxu0 %v3860
        %5978 = vmatprep.subr.bf16.mxu0 %v3870
        %5979 = vmatpush1.bf16.msra.mxu0 %v3869
        %5980 = vmatprep.subr.bf16.mxu0 %v3879
        %5981 = vmatpush1.bf16.msra.mxu0 %v3878
        %5982 = vmatprep.subr.bf16.mxu0 %v3888
        %5983 = vmatpush1.bf16.msra.mxu0 %v3887
        %5984 = vmatprep.subr.bf16.mxu0 %v3897
        %5985 = vmatpush1.bf16.msra.mxu0 %v3896
        %5986 = vmatprep.subr.bf16.mxu0 %v3906
        %5987 = vmatpush1.bf16.msra.mxu0 %v3905
        %5988 = vmatprep.subr.bf16.mxu0 %v3915
        %5989 = vmatpush1.bf16.msra.mxu0 %v3914
        %5990 = vmatprep.subr.bf16.mxu0 %v3924
        %5991 = vmatpush1.bf16.msra.mxu0 %v3923
        %5992 = vmatprep.subr.bf16.mxu0 %v3933
        %5993 = vmatpush1.bf16.msra.mxu0 %v3932
        %5994 = vmatprep.subr.bf16.mxu0 %v3942
        %5995 = vmatpush1.bf16.msra.mxu0 %v3941
        %5996 = vmatprep.subr.bf16.mxu0 %v3951
        %5997 = vmatpush1.bf16.msra.mxu0 %v3950
        %5998 = vmatprep.subr.bf16.mxu0 %v3960
        %5999 = vmatpush1.bf16.msra.mxu0 %v3959
        %6000 = vmatprep.subr.bf16.mxu0 %v3969
        %6001 = vmatpush1.bf16.msra.mxu0 %v3968
        %6002 = vmatprep.subr.bf16.mxu0 %v3978
        %6003 = vmatpush1.bf16.msra.mxu0 %v3977
        %6004 = vmatprep.mubr.bf16.mxu0 %v5724
        %6005 = vmatmul.mubr.bf16.gmra.mrb[0].mxu0 %v5723
        %v6006 = vpop.f32.mrb[0].mxu0
        %v6007 = vadd.f32 %v3146, %v6006
        %v6008 = vpop.f32.mrb[0].mxu0
        %v6009 = vadd.f32 %v3150, %v6008
        %v6010 = vpop.f32.mrb[0].mxu0
        %v6011 = vpop.f32.mrb[0].mxu0
        %6012 = vdwg.mxu0
        %6013 = vmatprep.subr.bf16.mxu0 %v3987
        %6014 = vmatpush1.bf16.msra.mxu0 %v3986
        %6015 = vmatprep.subr.bf16.mxu0 %v3996
        %6016 = vmatpush1.bf16.msra.mxu0 %v3995
        %6017 = vmatprep.subr.bf16.mxu0 %v4005
        %6018 = vmatpush1.bf16.msra.mxu0 %v4004
        %6019 = vmatprep.subr.bf16.mxu0 %v4014
        %6020 = vmatpush1.bf16.msra.mxu0 %v4013
        %6021 = vmatprep.subr.bf16.mxu0 %v4023
        %6022 = vmatpush1.bf16.msra.mxu0 %v4022
        %6023 = vmatprep.subr.bf16.mxu0 %v4032
        %6024 = vmatpush1.bf16.msra.mxu0 %v4031
        %6025 = vmatprep.subr.bf16.mxu0 %v4041
        %6026 = vmatpush1.bf16.msra.mxu0 %v4040
        %6027 = vmatprep.subr.bf16.mxu0 %v4050
        %6028 = vmatpush1.bf16.msra.mxu0 %v4049
        %6029 = vmatprep.subr.bf16.mxu0 0
        %6030 = vmatpush1.bf16.msra.mxu0 0
        %6031 = vmatprep.subr.bf16.mxu0 0
        %6032 = vmatpush1.bf16.msra.mxu0 0
        %6033 = vmatprep.subr.bf16.mxu0 0
        %6034 = vmatpush1.bf16.msra.mxu0 0
        %6035 = vmatprep.subr.bf16.mxu0 0
        %6036 = vmatpush1.bf16.msra.mxu0 0
        %6037 = vmatprep.subr.bf16.mxu0 0
        %6038 = vmatpush1.bf16.msra.mxu0 0
        %6039 = vmatprep.subr.bf16.mxu0 0
        %6040 = vmatpush1.bf16.msra.mxu0 0
        %6041 = vmatprep.subr.bf16.mxu0 0
        %6042 = vmatpush1.bf16.msra.mxu0 0
        %6043 = vmatprep.subr.bf16.mxu0 0
        %6044 = vmatpush1.bf16.msra.mxu0 0
        %6045 = vmatprep.mubr.bf16.mxu0 0
        %6046 = vmatmul.mubr.bf16.gmra.mrb[0].mxu0 %v5725
        %v6047 = vpop.f32.mrb[0].mxu0
        %v6048 = vadd.f32 %v6007, %v6047
        %v6049 = vpop.f32.mrb[0].mxu0
        %v6050 = vadd.f32 %v6009, %v6049
        %v6051 = vpop.f32.mrb[0].mxu0
        %v6052 = vpop.f32.mrb[0].mxu0
        %6053 = vdwg.mxu0
        %6054 = vmatprep.subr.bf16.mxu0 0
        %6055 = vmatpush1.bf16.msra.mxu0 %v3844
        %6056 = vmatprep.subr.bf16.mxu0 0
        %6057 = vmatpush1.bf16.msra.mxu0 %v3853
        %6058 = vmatprep.subr.bf16.mxu0 0
        %6059 = vmatpush1.bf16.msra.mxu0 %v3862
        %6060 = vmatprep.subr.bf16.mxu0 0
        %6061 = vmatpush1.bf16.msra.mxu0 %v3871
        %6062 = vmatprep.subr.bf16.mxu0 0
        %6063 = vmatpush1.bf16.msra.mxu0 %v3880
        %6064 = vmatprep.subr.bf16.mxu0 0
        %6065 = vmatpush1.bf16.msra.mxu0 %v3889
        %6066 = vmatprep.subr.bf16.mxu0 0
        %6067 = vmatpush1.bf16.msra.mxu0 %v3898
        %6068 = vmatprep.subr.bf16.mxu0 0
        %6069 = vmatpush1.bf16.msra.mxu0 %v3907
        %6070 = vmatprep.subr.bf16.mxu0 0
        %6071 = vmatpush1.bf16.msra.mxu0 %v3916
        %6072 = vmatprep.subr.bf16.mxu0 0
        %6073 = vmatpush1.bf16.msra.mxu0 %v3925
        %6074 = vmatprep.subr.bf16.mxu0 0
        %6075 = vmatpush1.bf16.msra.mxu0 %v3934
        %6076 = vmatprep.subr.bf16.mxu0 0
        %6077 = vmatpush1.bf16.msra.mxu0 %v3943
        %6078 = vmatprep.subr.bf16.mxu0 0
        %6079 = vmatpush1.bf16.msra.mxu0 %v3952
        %6080 = vmatprep.subr.bf16.mxu0 0
        %6081 = vmatpush1.bf16.msra.mxu0 %v3961
        %6082 = vmatprep.subr.bf16.mxu0 0
        %6083 = vmatpush1.bf16.msra.mxu0 %v3970
        %6084 = vmatprep.subr.bf16.mxu0 0
        %6085 = vmatpush1.bf16.msra.mxu0 %v3979
        %6086 = vmatprep.mubr.bf16.mxu0 %v5724
        %6087 = vmatmul.mubr.bf16.gmra.mrb[0].mxu0 %v5723
        %v6088 = vpop.f32.mrb[0].mxu0
        %v6089 = vadd.f32 %v3154, %v6088
        %v6090 = vpop.f32.mrb[0].mxu0
        %v6091 = vpop.f32.mrb[0].mxu0
        %v6092 = vpop.f32.mrb[0].mxu0
        %6093 = vdwg.mxu0
        %6094 = vmatprep.subr.bf16.mxu0 0
        %6095 = vmatpush1.bf16.msra.mxu0 %v3988
        %6096 = vmatprep.subr.bf16.mxu0 0
        %6097 = vmatpush1.bf16.msra.mxu0 %v3997
        %6098 = vmatprep.subr.bf16.mxu0 0
        %6099 = vmatpush1.bf16.msra.mxu0 %v4006
        %6100 = vmatprep.subr.bf16.mxu0 0
        %6101 = vmatpush1.bf16.msra.mxu0 %v4015
        %6102 = vmatprep.subr.bf16.mxu0 0
        %6103 = vmatpush1.bf16.msra.mxu0 %v4024
        %6104 = vmatprep.subr.bf16.mxu0 0
        %6105 = vmatpush1.bf16.msra.mxu0 %v4033
        %6106 = vmatprep.subr.bf16.mxu0 0
        %6107 = vmatpush1.bf16.msra.mxu0 %v4042
        %6108 = vmatprep.subr.bf16.mxu0 0
        %6109 = vmatpush1.bf16.msra.mxu0 %v4051
        %6110 = vmatprep.subr.bf16.mxu0 0
        %6111 = vmatpush1.bf16.msra.mxu0 0
        %6112 = vmatprep.subr.bf16.mxu0 0
        %6113 = vmatpush1.bf16.msra.mxu0 0
        %6114 = vmatprep.subr.bf16.mxu0 0
        %6115 = vmatpush1.bf16.msra.mxu0 0
        %6116 = vmatprep.subr.bf16.mxu0 0
        %6117 = vmatpush1.bf16.msra.mxu0 0
        %6118 = vmatprep.subr.bf16.mxu0 0
        %6119 = vmatpush1.bf16.msra.mxu0 0
        %6120 = vmatprep.subr.bf16.mxu0 0
        %6121 = vmatpush1.bf16.msra.mxu0 0
        %6122 = vmatprep.subr.bf16.mxu0 0
        %6123 = vmatpush1.bf16.msra.mxu0 0
        %6124 = vmatprep.subr.bf16.mxu0 0
        %6125 = vmatpush1.bf16.msra.mxu0 0
        %6126 = vmatprep.mubr.bf16.mxu0 0
        %6127 = vmatmul.mubr.bf16.gmra.mrb[0].mxu0 %v5725
        %v6128 = vpop.f32.mrb[0].mxu0
        %v6129 = vadd.f32 %v6089, %v6128
        %v6130 = vpop.f32.mrb[0].mxu0
        %v6131 = vpop.f32.mrb[0].mxu0
        %v6132 = vpop.f32.mrb[0].mxu0
        %6133 = vdwg.mxu0
        %v6134 = vadd.f32 %v5714, %v5802
        %v6135 = vadd.f32 %v5715, %v5804
        %v6136 = vadd.f32 %v5716, %v5884
        %v6137 = vxor.u32 %v6134, 2147483648
        %v6138 = vxor.u32 %v6135, 2147483648
        %v6139 = vxor.u32 %v6136, 2147483648
        %v6140 = vmul.f32 %v6137, 1.442695
        %v6141 = vpow.pop %v6140
        %v6142 = vmul.f32 %v6138, 1.442695
        %v6143 = vpow.pop %v6142
        %v6144 = vmul.f32 %v6139, 1.442695
        %v6145 = vpow.pop %v6144
        %v6146 = vadd.f32 %v6141, 1.0
        %v6147 = vadd.f32 %v6143, 1.0
        %v6148 = vadd.f32 %v6145, 1.0
        %v6149 = vrcp.pop %v6146
        %v6150 = vmul.f32 1.0, %v6149
        %v6151 = vrcp.pop %v6147
        %v6152 = vmul.f32 1.0, %v6151
        %v6153 = vrcp.pop %v6148
        %v6154 = vmul.f32 1.0, %v6153
        %v6155 = vadd.f32 %v5717, %v5886
        %v6156 = vadd.f32 %v5718, %v5966
        %v6157 = vadd.f32 %v5719, %v5968
        %v6158 = vxor.u32 %v6155, 2147483648
        %v6159 = vxor.u32 %v6156, 2147483648
        %v6160 = vxor.u32 %v6157, 2147483648
        %v6161 = vmul.f32 %v6158, 1.442695
        %v6162 = vpow.pop %v6161
        %v6163 = vmul.f32 %v6159, 1.442695
        %v6164 = vpow.pop %v6163
        %v6165 = vmul.f32 %v6160, 1.442695
        %v6166 = vpow.pop %v6165
        %v6167 = vadd.f32 %v6162, 1.0
        %v6168 = vadd.f32 %v6164, 1.0
        %v6169 = vadd.f32 %v6166, 1.0
        %v6170 = vrcp.pop %v6167
        %v6171 = vmul.f32 1.0, %v6170
        %v6172 = vrcp.pop %v6168
        %v6173 = vmul.f32 1.0, %v6172
        %v6174 = vrcp.pop %v6169
        %v6175 = vmul.f32 1.0, %v6174
        %v6176 = vmul.f32 %v6150, %v6048
        %v6177 = vmul.f32 %v6152, %v6050
        %v6178 = vmul.f32 %v6154, %v6129
        %v6179 = vadd.f32 %v5720, %v6176
        %v6180 = vadd.f32 %v5721, %v6177
        %v6181 = vadd.f32 %v5722, %v6178
        %v6182 = vtanh.pop %v6179
        %v6183 = vtanh.pop %v6180
        %v6184 = vtanh.pop %v6181
        %v6185 = vsub.f32 1.0, %v6171
        %v6186 = vsub.f32 1.0, %v6173
        %v6187 = vsub.f32 1.0, %v6175
        %v6188 = vmul.f32 %v6185, %v6182
        %v6189 = vmul.f32 %v6186, %v6183
        %v6190 = vmul.f32 %v6187, %v6184
        %v6191 = vmul.f32 %v6171, %v5708
        %v6192 = vmul.f32 %v6173, %v5709
        %v6193 = vmul.f32 %v6175, %v5710
        %v6194 = vadd.f32 %v6188, %v6191
        %v6195 = vadd.f32 %v6189, %v6192
        %v6196 = vadd.f32 %v6190, %v6193
        %6197 = vst [vmem:[#allocation3 + $0x48] sm:$0xff] %v6194
        %6198 = vst [vmem:[#allocation3 + $0x50] sm:$0xff] %v6195
        %6199 = vst [vmem:[#allocation3 + $0x58] sm:$0xff] %v6196
        %v6200 = vld [vmem:[#allocation2 + $0x120] sm:$0xff]
        %v6201 = vld [vmem:[#allocation2 + $0x128] sm:$0xff]
        %v6202 = vld [vmem:[#allocation2 + $0x130] sm:$0xff]
        %v6203 = vld [vmem:[#allocation2 + $0x138] sm:$0xff]
        %v6204 = vld [vmem:[#allocation2 + $0x140] sm:$0xff]
        %v6205 = vld [vmem:[#allocation2 + $0x148] sm:$0xff]
        %v6206 = vld [vmem:[#allocation2 + $0x150] sm:$0xff]
        %v6207 = vld [vmem:[#allocation2 + $0x158] sm:$0xff]
        %v6208 = vld [vmem:[#allocation2 + $0x160] sm:$0xff]
        %v6209 = vpack.c.bf16 %v6194, %v6194
        %v6210 = vpack.c.bf16 %v6195, %v6195
        %v6211 = vpack.c.bf16 %v6196, %v6196
        %6212 = vmatprep.subr.bf16.mxu0 %v3837
        %6213 = vmatpush1.bf16.msra.mxu0 %v3836
        %6214 = vmatprep.subr.bf16.mxu0 %v3846
        %6215 = vmatpush1.bf16.msra.mxu0 %v3845
        %6216 = vmatprep.subr.bf16.mxu0 %v3855
        %6217 = vmatpush1.bf16.msra.mxu0 %v3854
        %6218 = vmatprep.subr.bf16.mxu0 %v3864
        %6219 = vmatpush1.bf16.msra.mxu0 %v3863
        %6220 = vmatprep.subr.bf16.mxu0 %v3873
        %6221 = vmatpush1.bf16.msra.mxu0 %v3872
        %6222 = vmatprep.subr.bf16.mxu0 %v3882
        %6223 = vmatpush1.bf16.msra.mxu0 %v3881
        %6224 = vmatprep.subr.bf16.mxu0 %v3891
        %6225 = vmatpush1.bf16.msra.mxu0 %v3890
        %6226 = vmatprep.subr.bf16.mxu0 %v3900
        %6227 = vmatpush1.bf16.msra.mxu0 %v3899
        %6228 = vmatprep.subr.bf16.mxu0 %v3909
        %6229 = vmatpush1.bf16.msra.mxu0 %v3908
        %6230 = vmatprep.subr.bf16.mxu0 %v3918
        %6231 = vmatpush1.bf16.msra.mxu0 %v3917
        %6232 = vmatprep.subr.bf16.mxu0 %v3927
        %6233 = vmatpush1.bf16.msra.mxu0 %v3926
        %6234 = vmatprep.subr.bf16.mxu0 %v3936
        %6235 = vmatpush1.bf16.msra.mxu0 %v3935
        %6236 = vmatprep.subr.bf16.mxu0 %v3945
        %6237 = vmatpush1.bf16.msra.mxu0 %v3944
        %6238 = vmatprep.subr.bf16.mxu0 %v3954
        %6239 = vmatpush1.bf16.msra.mxu0 %v3953
        %6240 = vmatprep.subr.bf16.mxu0 %v3963
        %6241 = vmatpush1.bf16.msra.mxu0 %v3962
        %6242 = vmatprep.subr.bf16.mxu0 %v3972
        %6243 = vmatpush1.bf16.msra.mxu0 %v3971
        %6244 = vmatprep.mubr.bf16.mxu0 %v6210
        %6245 = vmatmul.mubr.bf16.gmra.mrb[0].mxu0 %v6209
        %v6246 = vpop.f32.mrb[0].mxu0
        %v6247 = vadd.f32 %v3122, %v6246
        %v6248 = vpop.f32.mrb[0].mxu0
        %v6249 = vadd.f32 %v3126, %v6248
        %v6250 = vpop.f32.mrb[0].mxu0
        %v6251 = vpop.f32.mrb[0].mxu0
        %6252 = vdwg.mxu0
        %6253 = vmatprep.subr.bf16.mxu0 %v3981
        %6254 = vmatpush1.bf16.msra.mxu0 %v3980
        %6255 = vmatprep.subr.bf16.mxu0 %v3990
        %6256 = vmatpush1.bf16.msra.mxu0 %v3989
        %6257 = vmatprep.subr.bf16.mxu0 %v3999
        %6258 = vmatpush1.bf16.msra.mxu0 %v3998
        %6259 = vmatprep.subr.bf16.mxu0 %v4008
        %6260 = vmatpush1.bf16.msra.mxu0 %v4007
        %6261 = vmatprep.subr.bf16.mxu0 %v4017
        %6262 = vmatpush1.bf16.msra.mxu0 %v4016
        %6263 = vmatprep.subr.bf16.mxu0 %v4026
        %6264 = vmatpush1.bf16.msra.mxu0 %v4025
        %6265 = vmatprep.subr.bf16.mxu0 %v4035
        %6266 = vmatpush1.bf16.msra.mxu0 %v4034
        %6267 = vmatprep.subr.bf16.mxu0 %v4044
        %6268 = vmatpush1.bf16.msra.mxu0 %v4043
        %6269 = vmatprep.subr.bf16.mxu0 0
        %6270 = vmatpush1.bf16.msra.mxu0 0
        %6271 = vmatprep.subr.bf16.mxu0 0
        %6272 = vmatpush1.bf16.msra.mxu0 0
        %6273 = vmatprep.subr.bf16.mxu0 0
        %6274 = vmatpush1.bf16.msra.mxu0 0
        %6275 = vmatprep.subr.bf16.mxu0 0
        %6276 = vmatpush1.bf16.msra.mxu0 0
        %6277 = vmatprep.subr.bf16.mxu0 0
        %6278 = vmatpush1.bf16.msra.mxu0 0
        %6279 = vmatprep.subr.bf16.mxu0 0
        %6280 = vmatpush1.bf16.msra.mxu0 0
        %6281 = vmatprep.subr.bf16.mxu0 0
        %6282 = vmatpush1.bf16.msra.mxu0 0
        %6283 = vmatprep.subr.bf16.mxu0 0
        %6284 = vmatpush1.bf16.msra.mxu0 0
        %6285 = vmatprep.mubr.bf16.mxu0 0
        %6286 = vmatmul.mubr.bf16.gmra.mrb[0].mxu0 %v6211
        %v6287 = vpop.f32.mrb[0].mxu0
        %v6288 = vadd.f32 %v6247, %v6287
        %v6289 = vpop.f32.mrb[0].mxu0
        %v6290 = vadd.f32 %v6249, %v6289
        %v6291 = vpop.f32.mrb[0].mxu0
        %v6292 = vpop.f32.mrb[0].mxu0
        %6293 = vdwg.mxu0
        %6294 = vmatprep.subr.bf16.mxu0 %v3839
        %6295 = vmatpush1.bf16.msra.mxu0 %v3838
        %6296 = vmatprep.subr.bf16.mxu0 %v3848
        %6297 = vmatpush1.bf16.msra.mxu0 %v3847
        %6298 = vmatprep.subr.bf16.mxu0 %v3857
        %6299 = vmatpush1.bf16.msra.mxu0 %v3856
        %6300 = vmatprep.subr.bf16.mxu0 %v3866
        %6301 = vmatpush1.bf16.msra.mxu0 %v3865
        %6302 = vmatprep.subr.bf16.mxu0 %v3875
        %6303 = vmatpush1.bf16.msra.mxu0 %v3874
        %6304 = vmatprep.subr.bf16.mxu0 %v3884
        %6305 = vmatpush1.bf16.msra.mxu0 %v3883
        %6306 = vmatprep.subr.bf16.mxu0 %v3893
        %6307 = vmatpush1.bf16.msra.mxu0 %v3892
        %6308 = vmatprep.subr.bf16.mxu0 %v3902
        %6309 = vmatpush1.bf16.msra.mxu0 %v3901
        %6310 = vmatprep.subr.bf16.mxu0 %v3911
        %6311 = vmatpush1.bf16.msra.mxu0 %v3910
        %6312 = vmatprep.subr.bf16.mxu0 %v3920
        %6313 = vmatpush1.bf16.msra.mxu0 %v3919
        %6314 = vmatprep.subr.bf16.mxu0 %v3929
        %6315 = vmatpush1.bf16.msra.mxu0 %v3928
        %6316 = vmatprep.subr.bf16.mxu0 %v3938
        %6317 = vmatpush1.bf16.msra.mxu0 %v3937
        %6318 = vmatprep.subr.bf16.mxu0 %v3947
        %6319 = vmatpush1.bf16.msra.mxu0 %v3946
        %6320 = vmatprep.subr.bf16.mxu0 %v3956
        %6321 = vmatpush1.bf16.msra.mxu0 %v3955
        %6322 = vmatprep.subr.bf16.mxu0 %v3965
        %6323 = vmatpush1.bf16.msra.mxu0 %v3964
        %6324 = vmatprep.subr.bf16.mxu0 %v3974
        %6325 = vmatpush1.bf16.msra.mxu0 %v3973
        %6326 = vmatprep.mubr.bf16.mxu0 %v6210
        %6327 = vmatmul.mubr.bf16.gmra.mrb[0].mxu0 %v6209
        %v6328 = vpop.f32.mrb[0].mxu0
        %v6329 = vadd.f32 %v3130, %v6328
        %v6330 = vpop.f32.mrb[0].mxu0
        %v6331 = vadd.f32 %v3134, %v6330
        %v6332 = vpop.f32.mrb[0].mxu0
        %v6333 = vpop.f32.mrb[0].mxu0
        %6334 = vdwg.mxu0
        %6335 = vmatprep.subr.bf16.mxu0 %v3983
        %6336 = vmatpush1.bf16.msra.mxu0 %v3982
        %6337 = vmatprep.subr.bf16.mxu0 %v3992
        %6338 = vmatpush1.bf16.msra.mxu0 %v3991
        %6339 = vmatprep.subr.bf16.mxu0 %v4001
        %6340 = vmatpush1.bf16.msra.mxu0 %v4000
        %6341 = vmatprep.subr.bf16.mxu0 %v4010
        %6342 = vmatpush1.bf16.msra.mxu0 %v4009
        %6343 = vmatprep.subr.bf16.mxu0 %v4019
        %6344 = vmatpush1.bf16.msra.mxu0 %v4018
        %6345 = vmatprep.subr.bf16.mxu0 %v4028
        %6346 = vmatpush1.bf16.msra.mxu0 %v4027
        %6347 = vmatprep.subr.bf16.mxu0 %v4037
        %6348 = vmatpush1.bf16.msra.mxu0 %v4036
        %6349 = vmatprep.subr.bf16.mxu0 %v4046
        %6350 = vmatpush1.bf16.msra.mxu0 %v4045
        %6351 = vmatprep.subr.bf16.mxu0 0
        %6352 = vmatpush1.bf16.msra.mxu0 0
        %6353 = vmatprep.subr.bf16.mxu0 0
        %6354 = vmatpush1.bf16.msra.mxu0 0
        %6355 = vmatprep.subr.bf16.mxu0 0
        %6356 = vmatpush1.bf16.msra.mxu0 0
        %6357 = vmatprep.subr.bf16.mxu0 0
        %6358 = vmatpush1.bf16.msra.mxu0 0
        %6359 = vmatprep.subr.bf16.mxu0 0
        %6360 = vmatpush1.bf16.msra.mxu0 0
        %6361 = vmatprep.subr.bf16.mxu0 0
        %6362 = vmatpush1.bf16.msra.mxu0 0
        %6363 = vmatprep.subr.bf16.mxu0 0
        %6364 = vmatpush1.bf16.msra.mxu0 0
        %6365 = vmatprep.subr.bf16.mxu0 0
        %6366 = vmatpush1.bf16.msra.mxu0 0
        %6367 = vmatprep.mubr.bf16.mxu0 0
        %6368 = vmatmul.mubr.bf16.gmra.mrb[0].mxu0 %v6211
        %v6369 = vpop.f32.mrb[0].mxu0
        %v6370 = vadd.f32 %v6329, %v6369
        %v6371 = vpop.f32.mrb[0].mxu0
        %v6372 = vadd.f32 %v6331, %v6371
        %v6373 = vpop.f32.mrb[0].mxu0
        %v6374 = vpop.f32.mrb[0].mxu0
        %6375 = vdwg.mxu0
        %6376 = vmatprep.subr.bf16.mxu0 %v3841
        %6377 = vmatpush1.bf16.msra.mxu0 %v3840
        %6378 = vmatprep.subr.bf16.mxu0 %v3850
        %6379 = vmatpush1.bf16.msra.mxu0 %v3849
        %6380 = vmatprep.subr.bf16.mxu0 %v3859
        %6381 = vmatpush1.bf16.msra.mxu0 %v3858
        %6382 = vmatprep.subr.bf16.mxu0 %v3868
        %6383 = vmatpush1.bf16.msra.mxu0 %v3867
        %6384 = vmatprep.subr.bf16.mxu0 %v3877
        %6385 = vmatpush1.bf16.msra.mxu0 %v3876
        %6386 = vmatprep.subr.bf16.mxu0 %v3886
        %6387 = vmatpush1.bf16.msra.mxu0 %v3885
        %6388 = vmatprep.subr.bf16.mxu0 %v3895
        %6389 = vmatpush1.bf16.msra.mxu0 %v3894
        %6390 = vmatprep.subr.bf16.mxu0 %v3904
        %6391 = vmatpush1.bf16.msra.mxu0 %v3903
        %6392 = vmatprep.subr.bf16.mxu0 %v3913
        %6393 = vmatpush1.bf16.msra.mxu0 %v3912
        %6394 = vmatprep.subr.bf16.mxu0 %v3922
        %6395 = vmatpush1.bf16.msra.mxu0 %v3921
        %6396 = vmatprep.subr.bf16.mxu0 %v3931
        %6397 = vmatpush1.bf16.msra.mxu0 %v3930
        %6398 = vmatprep.subr.bf16.mxu0 %v3940
        %6399 = vmatpush1.bf16.msra.mxu0 %v3939
        %6400 = vmatprep.subr.bf16.mxu0 %v3949
        %6401 = vmatpush1.bf16.msra.mxu0 %v3948
        %6402 = vmatprep.subr.bf16.mxu0 %v3958
        %6403 = vmatpush1.bf16.msra.mxu0 %v3957
        %6404 = vmatprep.subr.bf16.mxu0 %v3967
        %6405 = vmatpush1.bf16.msra.mxu0 %v3966
        %6406 = vmatprep.subr.bf16.mxu0 %v3976
        %6407 = vmatpush1.bf16.msra.mxu0 %v3975
        %6408 = vmatprep.mubr.bf16.mxu0 %v6210
        %6409 = vmatmul.mubr.bf16.gmra.mrb[0].mxu0 %v6209
        %v6410 = vpop.f32.mrb[0].mxu0
        %v6411 = vadd.f32 %v3138, %v6410
        %v6412 = vpop.f32.mrb[0].mxu0
        %v6413 = vadd.f32 %v3142, %v6412
        %v6414 = vpop.f32.mrb[0].mxu0
        %v6415 = vpop.f32.mrb[0].mxu0
        %6416 = vdwg.mxu0
        %6417 = vmatprep.subr.bf16.mxu0 %v3985
        %6418 = vmatpush1.bf16.msra.mxu0 %v3984
        %6419 = vmatprep.subr.bf16.mxu0 %v3994
        %6420 = vmatpush1.bf16.msra.mxu0 %v3993
        %6421 = vmatprep.subr.bf16.mxu0 %v4003
        %6422 = vmatpush1.bf16.msra.mxu0 %v4002
        %6423 = vmatprep.subr.bf16.mxu0 %v4012
        %6424 = vmatpush1.bf16.msra.mxu0 %v4011
        %6425 = vmatprep.subr.bf16.mxu0 %v4021
        %6426 = vmatpush1.bf16.msra.mxu0 %v4020
        %6427 = vmatprep.subr.bf16.mxu0 %v4030
        %6428 = vmatpush1.bf16.msra.mxu0 %v4029
        %6429 = vmatprep.subr.bf16.mxu0 %v4039
        %6430 = vmatpush1.bf16.msra.mxu0 %v4038
        %6431 = vmatprep.subr.bf16.mxu0 %v4048
        %6432 = vmatpush1.bf16.msra.mxu0 %v4047
        %6433 = vmatprep.subr.bf16.mxu0 0
        %6434 = vmatpush1.bf16.msra.mxu0 0
        %6435 = vmatprep.subr.bf16.mxu0 0
        %6436 = vmatpush1.bf16.msra.mxu0 0
        %6437 = vmatprep.subr.bf16.mxu0 0
        %6438 = vmatpush1.bf16.msra.mxu0 0
        %6439 = vmatprep.subr.bf16.mxu0 0
        %6440 = vmatpush1.bf16.msra.mxu0 0
        %6441 = vmatprep.subr.bf16.mxu0 0
        %6442 = vmatpush1.bf16.msra.mxu0 0
        %6443 = vmatprep.subr.bf16.mxu0 0
        %6444 = vmatpush1.bf16.msra.mxu0 0
        %6445 = vmatprep.subr.bf16.mxu0 0
        %6446 = vmatpush1.bf16.msra.mxu0 0
        %6447 = vmatprep.subr.bf16.mxu0 0
        %6448 = vmatpush1.bf16.msra.mxu0 0
        %6449 = vmatprep.mubr.bf16.mxu0 0
        %6450 = vmatmul.mubr.bf16.gmra.mrb[0].mxu0 %v6211
        %v6451 = vpop.f32.mrb[0].mxu0
        %v6452 = vadd.f32 %v6411, %v6451
        %v6453 = vpop.f32.mrb[0].mxu0
        %v6454 = vadd.f32 %v6413, %v6453
        %v6455 = vpop.f32.mrb[0].mxu0
        %v6456 = vpop.f32.mrb[0].mxu0
        %6457 = vdwg.mxu0
        %6458 = vmatprep.subr.bf16.mxu0 %v3843
        %6459 = vmatpush1.bf16.msra.mxu0 %v3842
        %6460 = vmatprep.subr.bf16.mxu0 %v3852
        %6461 = vmatpush1.bf16.msra.mxu0 %v3851
        %6462 = vmatprep.subr.bf16.mxu0 %v3861
        %6463 = vmatpush1.bf16.msra.mxu0 %v3860
        %6464 = vmatprep.subr.bf16.mxu0 %v3870
        %6465 = vmatpush1.bf16.msra.mxu0 %v3869
        %6466 = vmatprep.subr.bf16.mxu0 %v3879
        %6467 = vmatpush1.bf16.msra.mxu0 %v3878
        %6468 = vmatprep.subr.bf16.mxu0 %v3888
        %6469 = vmatpush1.bf16.msra.mxu0 %v3887
        %6470 = vmatprep.subr.bf16.mxu0 %v3897
        %6471 = vmatpush1.bf16.msra.mxu0 %v3896
        %6472 = vmatprep.subr.bf16.mxu0 %v3906
        %6473 = vmatpush1.bf16.msra.mxu0 %v3905
        %6474 = vmatprep.subr.bf16.mxu0 %v3915
        %6475 = vmatpush1.bf16.msra.mxu0 %v3914
        %6476 = vmatprep.subr.bf16.mxu0 %v3924
        %6477 = vmatpush1.bf16.msra.mxu0 %v3923
        %6478 = vmatprep.subr.bf16.mxu0 %v3933
        %6479 = vmatpush1.bf16.msra.mxu0 %v3932
        %6480 = vmatprep.subr.bf16.mxu0 %v3942
        %6481 = vmatpush1.bf16.msra.mxu0 %v3941
        %6482 = vmatprep.subr.bf16.mxu0 %v3951
        %6483 = vmatpush1.bf16.msra.mxu0 %v3950
        %6484 = vmatprep.subr.bf16.mxu0 %v3960
        %6485 = vmatpush1.bf16.msra.mxu0 %v3959
        %6486 = vmatprep.subr.bf16.mxu0 %v3969
        %6487 = vmatpush1.bf16.msra.mxu0 %v3968
        %6488 = vmatprep.subr.bf16.mxu0 %v3978
        %6489 = vmatpush1.bf16.msra.mxu0 %v3977
        %6490 = vmatprep.mubr.bf16.mxu0 %v6210
        %6491 = vmatmul.mubr.bf16.gmra.mrb[0].mxu0 %v6209
        %v6492 = vpop.f32.mrb[0].mxu0
        %v6493 = vadd.f32 %v3146, %v6492
        %v6494 = vpop.f32.mrb[0].mxu0
        %v6495 = vadd.f32 %v3150, %v6494
        %v6496 = vpop.f32.mrb[0].mxu0
        %v6497 = vpop.f32.mrb[0].mxu0
        %6498 = vdwg.mxu0
        %6499 = vmatprep.subr.bf16.mxu0 %v3987
        %6500 = vmatpush1.bf16.msra.mxu0 %v3986
        %6501 = vmatprep.subr.bf16.mxu0 %v3996
        %6502 = vmatpush1.bf16.msra.mxu0 %v3995
        %6503 = vmatprep.subr.bf16.mxu0 %v4005
        %6504 = vmatpush1.bf16.msra.mxu0 %v4004
        %6505 = vmatprep.subr.bf16.mxu0 %v4014
        %6506 = vmatpush1.bf16.msra.mxu0 %v4013
        %6507 = vmatprep.subr.bf16.mxu0 %v4023
        %6508 = vmatpush1.bf16.msra.mxu0 %v4022
        %6509 = vmatprep.subr.bf16.mxu0 %v4032
        %6510 = vmatpush1.bf16.msra.mxu0 %v4031
        %6511 = vmatprep.subr.bf16.mxu0 %v4041
        %6512 = vmatpush1.bf16.msra.mxu0 %v4040
        %6513 = vmatprep.subr.bf16.mxu0 %v4050
        %6514 = vmatpush1.bf16.msra.mxu0 %v4049
        %6515 = vmatprep.subr.bf16.mxu0 0
        %6516 = vmatpush1.bf16.msra.mxu0 0
        %6517 = vmatprep.subr.bf16.mxu0 0
        %6518 = vmatpush1.bf16.msra.mxu0 0
        %6519 = vmatprep.subr.bf16.mxu0 0
        %6520 = vmatpush1.bf16.msra.mxu0 0
        %6521 = vmatprep.subr.bf16.mxu0 0
        %6522 = vmatpush1.bf16.msra.mxu0 0
        %6523 = vmatprep.subr.bf16.mxu0 0
        %6524 = vmatpush1.bf16.msra.mxu0 0
        %6525 = vmatprep.subr.bf16.mxu0 0
        %6526 = vmatpush1.bf16.msra.mxu0 0
        %6527 = vmatprep.subr.bf16.mxu0 0
        %6528 = vmatpush1.bf16.msra.mxu0 0
        %6529 = vmatprep.subr.bf16.mxu0 0
        %6530 = vmatpush1.bf16.msra.mxu0 0
        %6531 = vmatprep.mubr.bf16.mxu0 0
        %6532 = vmatmul.mubr.bf16.gmra.mrb[0].mxu0 %v6211
        %v6533 = vpop.f32.mrb[0].mxu0
        %v6534 = vadd.f32 %v6493, %v6533
        %v6535 = vpop.f32.mrb[0].mxu0
        %v6536 = vadd.f32 %v6495, %v6535
        %v6537 = vpop.f32.mrb[0].mxu0
        %v6538 = vpop.f32.mrb[0].mxu0
        %6539 = vdwg.mxu0
        %6540 = vmatprep.subr.bf16.mxu0 0
        %6541 = vmatpush1.bf16.msra.mxu0 %v3844
        %6542 = vmatprep.subr.bf16.mxu0 0
        %6543 = vmatpush1.bf16.msra.mxu0 %v3853
        %6544 = vmatprep.subr.bf16.mxu0 0
        %6545 = vmatpush1.bf16.msra.mxu0 %v3862
        %6546 = vmatprep.subr.bf16.mxu0 0
        %6547 = vmatpush1.bf16.msra.mxu0 %v3871
        %6548 = vmatprep.subr.bf16.mxu0 0
        %6549 = vmatpush1.bf16.msra.mxu0 %v3880
        %6550 = vmatprep.subr.bf16.mxu0 0
        %6551 = vmatpush1.bf16.msra.mxu0 %v3889
        %6552 = vmatprep.subr.bf16.mxu0 0
        %6553 = vmatpush1.bf16.msra.mxu0 %v3898
        %6554 = vmatprep.subr.bf16.mxu0 0
        %6555 = vmatpush1.bf16.msra.mxu0 %v3907
        %6556 = vmatprep.subr.bf16.mxu0 0
        %6557 = vmatpush1.bf16.msra.mxu0 %v3916
        %6558 = vmatprep.subr.bf16.mxu0 0
        %6559 = vmatpush1.bf16.msra.mxu0 %v3925
        %6560 = vmatprep.subr.bf16.mxu0 0
        %6561 = vmatpush1.bf16.msra.mxu0 %v3934
        %6562 = vmatprep.subr.bf16.mxu0 0
        %6563 = vmatpush1.bf16.msra.mxu0 %v3943
        %6564 = vmatprep.subr.bf16.mxu0 0
        %6565 = vmatpush1.bf16.msra.mxu0 %v3952
        %6566 = vmatprep.subr.bf16.mxu0 0
        %6567 = vmatpush1.bf16.msra.mxu0 %v3961
        %6568 = vmatprep.subr.bf16.mxu0 0
        %6569 = vmatpush1.bf16.msra.mxu0 %v3970
        %6570 = vmatprep.subr.bf16.mxu0 0
        %6571 = vmatpush1.bf16.msra.mxu0 %v3979
        %6572 = vmatprep.mubr.bf16.mxu0 %v6210
        %6573 = vmatmul.mubr.bf16.gmra.mrb[0].mxu0 %v6209
        %v6574 = vpop.f32.mrb[0].mxu0
        %v6575 = vadd.f32 %v3154, %v6574
        %v6576 = vpop.f32.mrb[0].mxu0
        %v6577 = vpop.f32.mrb[0].mxu0
        %v6578 = vpop.f32.mrb[0].mxu0
        %6579 = vdwg.mxu0
        %6580 = vmatprep.subr.bf16.mxu0 0
        %6581 = vmatpush1.bf16.msra.mxu0 %v3988
        %6582 = vmatprep.subr.bf16.mxu0 0
        %6583 = vmatpush1.bf16.msra.mxu0 %v3997
        %6584 = vmatprep.subr.bf16.mxu0 0
        %6585 = vmatpush1.bf16.msra.mxu0 %v4006
        %6586 = vmatprep.subr.bf16.mxu0 0
        %6587 = vmatpush1.bf16.msra.mxu0 %v4015
        %6588 = vmatprep.subr.bf16.mxu0 0
        %6589 = vmatpush1.bf16.msra.mxu0 %v4024
        %6590 = vmatprep.subr.bf16.mxu0 0
        %6591 = vmatpush1.bf16.msra.mxu0 %v4033
        %6592 = vmatprep.subr.bf16.mxu0 0
        %6593 = vmatpush1.bf16.msra.mxu0 %v4042
        %6594 = vmatprep.subr.bf16.mxu0 0
        %6595 = vmatpush1.bf16.msra.mxu0 %v4051
        %6596 = vmatprep.subr.bf16.mxu0 0
        %6597 = vmatpush1.bf16.msra.mxu0 0
        %6598 = vmatprep.subr.bf16.mxu0 0
        %6599 = vmatpush1.bf16.msra.mxu0 0
        %6600 = vmatprep.subr.bf16.mxu0 0
        %6601 = vmatpush1.bf16.msra.mxu0 0
        %6602 = vmatprep.subr.bf16.mxu0 0
        %6603 = vmatpush1.bf16.msra.mxu0 0
        %6604 = vmatprep.subr.bf16.mxu0 0
        %6605 = vmatpush1.bf16.msra.mxu0 0
        %6606 = vmatprep.subr.bf16.mxu0 0
        %6607 = vmatpush1.bf16.msra.mxu0 0
        %6608 = vmatprep.subr.bf16.mxu0 0
        %6609 = vmatpush1.bf16.msra.mxu0 0
        %6610 = vmatprep.subr.bf16.mxu0 0
        %6611 = vmatpush1.bf16.msra.mxu0 0
        %6612 = vmatprep.mubr.bf16.mxu0 0
        %6613 = vmatmul.mubr.bf16.gmra.mrb[0].mxu0 %v6211
        %v6614 = vpop.f32.mrb[0].mxu0
        %v6615 = vadd.f32 %v6575, %v6614
        %v6616 = vpop.f32.mrb[0].mxu0
        %v6617 = vpop.f32.mrb[0].mxu0
        %v6618 = vpop.f32.mrb[0].mxu0
        %6619 = vdwg.mxu0
        %v6620 = vadd.f32 %v6200, %v6288
        %v6621 = vadd.f32 %v6201, %v6290
        %v6622 = vadd.f32 %v6202, %v6370
        %v6623 = vxor.u32 %v6620, 2147483648
        %v6624 = vxor.u32 %v6621, 2147483648
        %v6625 = vxor.u32 %v6622, 2147483648
        %v6626 = vmul.f32 %v6623, 1.442695
        %v6627 = vpow.pop %v6626
        %v6628 = vmul.f32 %v6624, 1.442695
        %v6629 = vpow.pop %v6628
        %v6630 = vmul.f32 %v6625, 1.442695
        %v6631 = vpow.pop %v6630
        %v6632 = vadd.f32 %v6627, 1.0
        %v6633 = vadd.f32 %v6629, 1.0
        %v6634 = vadd.f32 %v6631, 1.0
        %v6635 = vrcp.pop %v6632
        %v6636 = vmul.f32 1.0, %v6635
        %v6637 = vrcp.pop %v6633
        %v6638 = vmul.f32 1.0, %v6637
        %v6639 = vrcp.pop %v6634
        %v6640 = vmul.f32 1.0, %v6639
        %v6641 = vadd.f32 %v6203, %v6372
        %v6642 = vadd.f32 %v6204, %v6452
        %v6643 = vadd.f32 %v6205, %v6454
        %v6644 = vxor.u32 %v6641, 2147483648
        %v6645 = vxor.u32 %v6642, 2147483648
        %v6646 = vxor.u32 %v6643, 2147483648
        %v6647 = vmul.f32 %v6644, 1.442695
        %v6648 = vpow.pop %v6647
        %v6649 = vmul.f32 %v6645, 1.442695
        %v6650 = vpow.pop %v6649
        %v6651 = vmul.f32 %v6646, 1.442695
        %v6652 = vpow.pop %v6651
        %v6653 = vadd.f32 %v6648, 1.0
        %v6654 = vadd.f32 %v6650, 1.0
        %v6655 = vadd.f32 %v6652, 1.0
        %v6656 = vrcp.pop %v6653
        %v6657 = vmul.f32 1.0, %v6656
        %v6658 = vrcp.pop %v6654
        %v6659 = vmul.f32 1.0, %v6658
        %v6660 = vrcp.pop %v6655
        %v6661 = vmul.f32 1.0, %v6660
        %v6662 = vmul.f32 %v6636, %v6534
        %v6663 = vmul.f32 %v6638, %v6536
        %v6664 = vmul.f32 %v6640, %v6615
        %v6665 = vadd.f32 %v6206, %v6662
        %v6666 = vadd.f32 %v6207, %v6663
        %v6667 = vadd.f32 %v6208, %v6664
        %v6668 = vtanh.pop %v6665
        %v6669 = vtanh.pop %v6666
        %v6670 = vtanh.pop %v6667
        %v6671 = vsub.f32 1.0, %v6657
        %v6672 = vsub.f32 1.0, %v6659
        %v6673 = vsub.f32 1.0, %v6661
        %v6674 = vmul.f32 %v6671, %v6668
        %v6675 = vmul.f32 %v6672, %v6669
        %v6676 = vmul.f32 %v6673, %v6670
        %v6677 = vmul.f32 %v6657, %v6194
        %v6678 = vmul.f32 %v6659, %v6195
        %v6679 = vmul.f32 %v6661, %v6196
        %v6680 = vadd.f32 %v6674, %v6677
        %v6681 = vadd.f32 %v6675, %v6678
        %v6682 = vadd.f32 %v6676, %v6679
        %6683 = vst [vmem:[#allocation3 + $0x60] sm:$0xff] %v6680
        %6684 = vst [vmem:[#allocation3 + $0x68] sm:$0xff] %v6681
        %6685 = vst [vmem:[#allocation3 + $0x70] sm:$0xff] %v6682
        %v6686 = vld [vmem:[#allocation2 + $0x168] sm:$0xff]
        %v6687 = vld [vmem:[#allocation2 + $0x170] sm:$0xff]
        %v6688 = vld [vmem:[#allocation2 + $0x178] sm:$0xff]
        %v6689 = vld [vmem:[#allocation2 + $0x180] sm:$0xff]
        %v6690 = vld [vmem:[#allocation2 + $0x188] sm:$0xff]
        %v6691 = vld [vmem:[#allocation2 + $0x190] sm:$0xff]
        %v6692 = vld [vmem:[#allocation2 + $0x198] sm:$0xff]
        %v6693 = vld [vmem:[#allocation2 + $0x1a0] sm:$0xff]
        %v6694 = vld [vmem:[#allocation2 + $0x1a8] sm:$0xff]
        %v6695 = vpack.c.bf16 %v6680, %v6680
        %v6696 = vpack.c.bf16 %v6681, %v6681
        %v6697 = vpack.c.bf16 %v6682, %v6682
        %6698 = vmatprep.subr.bf16.mxu0 %v3837
        %6699 = vmatpush1.bf16.msra.mxu0 %v3836
        %6700 = vmatprep.subr.bf16.mxu0 %v3846
        %6701 = vmatpush1.bf16.msra.mxu0 %v3845
        %6702 = vmatprep.subr.bf16.mxu0 %v3855
        %6703 = vmatpush1.bf16.msra.mxu0 %v3854
        %6704 = vmatprep.subr.bf16.mxu0 %v3864
        %6705 = vmatpush1.bf16.msra.mxu0 %v3863
        %6706 = vmatprep.subr.bf16.mxu0 %v3873
        %6707 = vmatpush1.bf16.msra.mxu0 %v3872
        %6708 = vmatprep.subr.bf16.mxu0 %v3882
        %6709 = vmatpush1.bf16.msra.mxu0 %v3881
        %6710 = vmatprep.subr.bf16.mxu0 %v3891
        %6711 = vmatpush1.bf16.msra.mxu0 %v3890
        %6712 = vmatprep.subr.bf16.mxu0 %v3900
        %6713 = vmatpush1.bf16.msra.mxu0 %v3899
        %6714 = vmatprep.subr.bf16.mxu0 %v3909
        %6715 = vmatpush1.bf16.msra.mxu0 %v3908
        %6716 = vmatprep.subr.bf16.mxu0 %v3918
        %6717 = vmatpush1.bf16.msra.mxu0 %v3917
        %6718 = vmatprep.subr.bf16.mxu0 %v3927
        %6719 = vmatpush1.bf16.msra.mxu0 %v3926
        %6720 = vmatprep.subr.bf16.mxu0 %v3936
        %6721 = vmatpush1.bf16.msra.mxu0 %v3935
        %6722 = vmatprep.subr.bf16.mxu0 %v3945
        %6723 = vmatpush1.bf16.msra.mxu0 %v3944
        %6724 = vmatprep.subr.bf16.mxu0 %v3954
        %6725 = vmatpush1.bf16.msra.mxu0 %v3953
        %6726 = vmatprep.subr.bf16.mxu0 %v3963
        %6727 = vmatpush1.bf16.msra.mxu0 %v3962
        %6728 = vmatprep.subr.bf16.mxu0 %v3972
        %6729 = vmatpush1.bf16.msra.mxu0 %v3971
        %6730 = vmatprep.mubr.bf16.mxu0 %v6696
        %6731 = vmatmul.mubr.bf16.gmra.mrb[0].mxu0 %v6695
        %v6732 = vpop.f32.mrb[0].mxu0
        %v6733 = vadd.f32 %v3122, %v6732
        %v6734 = vpop.f32.mrb[0].mxu0
        %v6735 = vadd.f32 %v3126, %v6734
        %v6736 = vpop.f32.mrb[0].mxu0
        %v6737 = vpop.f32.mrb[0].mxu0
        %6738 = vdwg.mxu0
        %6739 = vmatprep.subr.bf16.mxu0 %v3981
        %6740 = vmatpush1.bf16.msra.mxu0 %v3980
        %6741 = vmatprep.subr.bf16.mxu0 %v3990
        %6742 = vmatpush1.bf16.msra.mxu0 %v3989
        %6743 = vmatprep.subr.bf16.mxu0 %v3999
        %6744 = vmatpush1.bf16.msra.mxu0 %v3998
        %6745 = vmatprep.subr.bf16.mxu0 %v4008
        %6746 = vmatpush1.bf16.msra.mxu0 %v4007
        %6747 = vmatprep.subr.bf16.mxu0 %v4017
        %6748 = vmatpush1.bf16.msra.mxu0 %v4016
        %6749 = vmatprep.subr.bf16.mxu0 %v4026
        %6750 = vmatpush1.bf16.msra.mxu0 %v4025
        %6751 = vmatprep.subr.bf16.mxu0 %v4035
        %6752 = vmatpush1.bf16.msra.mxu0 %v4034
        %6753 = vmatprep.subr.bf16.mxu0 %v4044
        %6754 = vmatpush1.bf16.msra.mxu0 %v4043
        %6755 = vmatprep.subr.bf16.mxu0 0
        %6756 = vmatpush1.bf16.msra.mxu0 0
        %6757 = vmatprep.subr.bf16.mxu0 0
        %6758 = vmatpush1.bf16.msra.mxu0 0
        %6759 = vmatprep.subr.bf16.mxu0 0
        %6760 = vmatpush1.bf16.msra.mxu0 0
        %6761 = vmatprep.subr.bf16.mxu0 0
        %6762 = vmatpush1.bf16.msra.mxu0 0
        %6763 = vmatprep.subr.bf16.mxu0 0
        %6764 = vmatpush1.bf16.msra.mxu0 0
        %6765 = vmatprep.subr.bf16.mxu0 0
        %6766 = vmatpush1.bf16.msra.mxu0 0
        %6767 = vmatprep.subr.bf16.mxu0 0
        %6768 = vmatpush1.bf16.msra.mxu0 0
        %6769 = vmatprep.subr.bf16.mxu0 0
        %6770 = vmatpush1.bf16.msra.mxu0 0
        %6771 = vmatprep.mubr.bf16.mxu0 0
        %6772 = vmatmul.mubr.bf16.gmra.mrb[0].mxu0 %v6697
        %v6773 = vpop.f32.mrb[0].mxu0
        %v6774 = vadd.f32 %v6733, %v6773
        %v6775 = vpop.f32.mrb[0].mxu0
        %v6776 = vadd.f32 %v6735, %v6775
        %v6777 = vpop.f32.mrb[0].mxu0
        %v6778 = vpop.f32.mrb[0].mxu0
        %6779 = vdwg.mxu0
        %6780 = vmatprep.subr.bf16.mxu0 %v3839
        %6781 = vmatpush1.bf16.msra.mxu0 %v3838
        %6782 = vmatprep.subr.bf16.mxu0 %v3848
        %6783 = vmatpush1.bf16.msra.mxu0 %v3847
        %6784 = vmatprep.subr.bf16.mxu0 %v3857
        %6785 = vmatpush1.bf16.msra.mxu0 %v3856
        %6786 = vmatprep.subr.bf16.mxu0 %v3866
        %6787 = vmatpush1.bf16.msra.mxu0 %v3865
        %6788 = vmatprep.subr.bf16.mxu0 %v3875
        %6789 = vmatpush1.bf16.msra.mxu0 %v3874
        %6790 = vmatprep.subr.bf16.mxu0 %v3884
        %6791 = vmatpush1.bf16.msra.mxu0 %v3883
        %6792 = vmatprep.subr.bf16.mxu0 %v3893
        %6793 = vmatpush1.bf16.msra.mxu0 %v3892
        %6794 = vmatprep.subr.bf16.mxu0 %v3902
        %6795 = vmatpush1.bf16.msra.mxu0 %v3901
        %6796 = vmatprep.subr.bf16.mxu0 %v3911
        %6797 = vmatpush1.bf16.msra.mxu0 %v3910
        %6798 = vmatprep.subr.bf16.mxu0 %v3920
        %6799 = vmatpush1.bf16.msra.mxu0 %v3919
        %6800 = vmatprep.subr.bf16.mxu0 %v3929
        %6801 = vmatpush1.bf16.msra.mxu0 %v3928
        %6802 = vmatprep.subr.bf16.mxu0 %v3938
        %6803 = vmatpush1.bf16.msra.mxu0 %v3937
        %6804 = vmatprep.subr.bf16.mxu0 %v3947
        %6805 = vmatpush1.bf16.msra.mxu0 %v3946
        %6806 = vmatprep.subr.bf16.mxu0 %v3956
        %6807 = vmatpush1.bf16.msra.mxu0 %v3955
        %6808 = vmatprep.subr.bf16.mxu0 %v3965
        %6809 = vmatpush1.bf16.msra.mxu0 %v3964
        %6810 = vmatprep.subr.bf16.mxu0 %v3974
        %6811 = vmatpush1.bf16.msra.mxu0 %v3973
        %6812 = vmatprep.mubr.bf16.mxu0 %v6696
        %6813 = vmatmul.mubr.bf16.gmra.mrb[0].mxu0 %v6695
        %v6814 = vpop.f32.mrb[0].mxu0
        %v6815 = vadd.f32 %v3130, %v6814
        %v6816 = vpop.f32.mrb[0].mxu0
        %v6817 = vadd.f32 %v3134, %v6816
        %v6818 = vpop.f32.mrb[0].mxu0
        %v6819 = vpop.f32.mrb[0].mxu0
        %6820 = vdwg.mxu0
        %6821 = vmatprep.subr.bf16.mxu0 %v3983
        %6822 = vmatpush1.bf16.msra.mxu0 %v3982
        %6823 = vmatprep.subr.bf16.mxu0 %v3992
        %6824 = vmatpush1.bf16.msra.mxu0 %v3991
        %6825 = vmatprep.subr.bf16.mxu0 %v4001
        %6826 = vmatpush1.bf16.msra.mxu0 %v4000
        %6827 = vmatprep.subr.bf16.mxu0 %v4010
        %6828 = vmatpush1.bf16.msra.mxu0 %v4009
        %6829 = vmatprep.subr.bf16.mxu0 %v4019
        %6830 = vmatpush1.bf16.msra.mxu0 %v4018
        %6831 = vmatprep.subr.bf16.mxu0 %v4028
        %6832 = vmatpush1.bf16.msra.mxu0 %v4027
        %6833 = vmatprep.subr.bf16.mxu0 %v4037
        %6834 = vmatpush1.bf16.msra.mxu0 %v4036
        %6835 = vmatprep.subr.bf16.mxu0 %v4046
        %6836 = vmatpush1.bf16.msra.mxu0 %v4045
        %6837 = vmatprep.subr.bf16.mxu0 0
        %6838 = vmatpush1.bf16.msra.mxu0 0
        %6839 = vmatprep.subr.bf16.mxu0 0
        %6840 = vmatpush1.bf16.msra.mxu0 0
        %6841 = vmatprep.subr.bf16.mxu0 0
        %6842 = vmatpush1.bf16.msra.mxu0 0
        %6843 = vmatprep.subr.bf16.mxu0 0
        %6844 = vmatpush1.bf16.msra.mxu0 0
        %6845 = vmatprep.subr.bf16.mxu0 0
        %6846 = vmatpush1.bf16.msra.mxu0 0
        %6847 = vmatprep.subr.bf16.mxu0 0
        %6848 = vmatpush1.bf16.msra.mxu0 0
        %6849 = vmatprep.subr.bf16.mxu0 0
        %6850 = vmatpush1.bf16.msra.mxu0 0
        %6851 = vmatprep.subr.bf16.mxu0 0
        %6852 = vmatpush1.bf16.msra.mxu0 0
        %6853 = vmatprep.mubr.bf16.mxu0 0
        %6854 = vmatmul.mubr.bf16.gmra.mrb[0].mxu0 %v6697
        %v6855 = vpop.f32.mrb[0].mxu0
        %v6856 = vadd.f32 %v6815, %v6855
        %v6857 = vpop.f32.mrb[0].mxu0
        %v6858 = vadd.f32 %v6817, %v6857
        %v6859 = vpop.f32.mrb[0].mxu0
        %v6860 = vpop.f32.mrb[0].mxu0
        %6861 = vdwg.mxu0
        %6862 = vmatprep.subr.bf16.mxu0 %v3841
        %6863 = vmatpush1.bf16.msra.mxu0 %v3840
        %6864 = vmatprep.subr.bf16.mxu0 %v3850
        %6865 = vmatpush1.bf16.msra.mxu0 %v3849
        %6866 = vmatprep.subr.bf16.mxu0 %v3859
        %6867 = vmatpush1.bf16.msra.mxu0 %v3858
        %6868 = vmatprep.subr.bf16.mxu0 %v3868
        %6869 = vmatpush1.bf16.msra.mxu0 %v3867
        %6870 = vmatprep.subr.bf16.mxu0 %v3877
        %6871 = vmatpush1.bf16.msra.mxu0 %v3876
        %6872 = vmatprep.subr.bf16.mxu0 %v3886
        %6873 = vmatpush1.bf16.msra.mxu0 %v3885
        %6874 = vmatprep.subr.bf16.mxu0 %v3895
        %6875 = vmatpush1.bf16.msra.mxu0 %v3894
        %6876 = vmatprep.subr.bf16.mxu0 %v3904
        %6877 = vmatpush1.bf16.msra.mxu0 %v3903
        %6878 = vmatprep.subr.bf16.mxu0 %v3913
        %6879 = vmatpush1.bf16.msra.mxu0 %v3912
        %6880 = vmatprep.subr.bf16.mxu0 %v3922
        %6881 = vmatpush1.bf16.msra.mxu0 %v3921
        %6882 = vmatprep.subr.bf16.mxu0 %v3931
        %6883 = vmatpush1.bf16.msra.mxu0 %v3930
        %6884 = vmatprep.subr.bf16.mxu0 %v3940
        %6885 = vmatpush1.bf16.msra.mxu0 %v3939
        %6886 = vmatprep.subr.bf16.mxu0 %v3949
        %6887 = vmatpush1.bf16.msra.mxu0 %v3948
        %6888 = vmatprep.subr.bf16.mxu0 %v3958
        %6889 = vmatpush1.bf16.msra.mxu0 %v3957
        %6890 = vmatprep.subr.bf16.mxu0 %v3967
        %6891 = vmatpush1.bf16.msra.mxu0 %v3966
        %6892 = vmatprep.subr.bf16.mxu0 %v3976
        %6893 = vmatpush1.bf16.msra.mxu0 %v3975
        %6894 = vmatprep.mubr.bf16.mxu0 %v6696
        %6895 = vmatmul.mubr.bf16.gmra.mrb[0].mxu0 %v6695
        %v6896 = vpop.f32.mrb[0].mxu0
        %v6897 = vadd.f32 %v3138, %v6896
        %v6898 = vpop.f32.mrb[0].mxu0
        %v6899 = vadd.f32 %v3142, %v6898
        %v6900 = vpop.f32.mrb[0].mxu0
        %v6901 = vpop.f32.mrb[0].mxu0
        %6902 = vdwg.mxu0
        %6903 = vmatprep.subr.bf16.mxu0 %v3985
        %6904 = vmatpush1.bf16.msra.mxu0 %v3984
        %6905 = vmatprep.subr.bf16.mxu0 %v3994
        %6906 = vmatpush1.bf16.msra.mxu0 %v3993
        %6907 = vmatprep.subr.bf16.mxu0 %v4003
        %6908 = vmatpush1.bf16.msra.mxu0 %v4002
        %6909 = vmatprep.subr.bf16.mxu0 %v4012
        %6910 = vmatpush1.bf16.msra.mxu0 %v4011
        %6911 = vmatprep.subr.bf16.mxu0 %v4021
        %6912 = vmatpush1.bf16.msra.mxu0 %v4020
        %6913 = vmatprep.subr.bf16.mxu0 %v4030
        %6914 = vmatpush1.bf16.msra.mxu0 %v4029
        %6915 = vmatprep.subr.bf16.mxu0 %v4039
        %6916 = vmatpush1.bf16.msra.mxu0 %v4038
        %6917 = vmatprep.subr.bf16.mxu0 %v4048
        %6918 = vmatpush1.bf16.msra.mxu0 %v4047
        %6919 = vmatprep.subr.bf16.mxu0 0
        %6920 = vmatpush1.bf16.msra.mxu0 0
        %6921 = vmatprep.subr.bf16.mxu0 0
        %6922 = vmatpush1.bf16.msra.mxu0 0
        %6923 = vmatprep.subr.bf16.mxu0 0
        %6924 = vmatpush1.bf16.msra.mxu0 0
        %6925 = vmatprep.subr.bf16.mxu0 0
        %6926 = vmatpush1.bf16.msra.mxu0 0
        %6927 = vmatprep.subr.bf16.mxu0 0
        %6928 = vmatpush1.bf16.msra.mxu0 0
        %6929 = vmatprep.subr.bf16.mxu0 0
        %6930 = vmatpush1.bf16.msra.mxu0 0
        %6931 = vmatprep.subr.bf16.mxu0 0
        %6932 = vmatpush1.bf16.msra.mxu0 0
        %6933 = vmatprep.subr.bf16.mxu0 0
        %6934 = vmatpush1.bf16.msra.mxu0 0
        %6935 = vmatprep.mubr.bf16.mxu0 0
        %6936 = vmatmul.mubr.bf16.gmra.mrb[0].mxu0 %v6697
        %v6937 = vpop.f32.mrb[0].mxu0
        %v6938 = vadd.f32 %v6897, %v6937
        %v6939 = vpop.f32.mrb[0].mxu0
        %v6940 = vadd.f32 %v6899, %v6939
        %v6941 = vpop.f32.mrb[0].mxu0
        %v6942 = vpop.f32.mrb[0].mxu0
        %6943 = vdwg.mxu0
        %6944 = vmatprep.subr.bf16.mxu0 %v3843
        %6945 = vmatpush1.bf16.msra.mxu0 %v3842
        %6946 = vmatprep.subr.bf16.mxu0 %v3852
        %6947 = vmatpush1.bf16.msra.mxu0 %v3851
        %6948 = vmatprep.subr.bf16.mxu0 %v3861
        %6949 = vmatpush1.bf16.msra.mxu0 %v3860
        %6950 = vmatprep.subr.bf16.mxu0 %v3870
        %6951 = vmatpush1.bf16.msra.mxu0 %v3869
        %6952 = vmatprep.subr.bf16.mxu0 %v3879
        %6953 = vmatpush1.bf16.msra.mxu0 %v3878
        %6954 = vmatprep.subr.bf16.mxu0 %v3888
        %6955 = vmatpush1.bf16.msra.mxu0 %v3887
        %6956 = vmatprep.subr.bf16.mxu0 %v3897
        %6957 = vmatpush1.bf16.msra.mxu0 %v3896
        %6958 = vmatprep.subr.bf16.mxu0 %v3906
        %6959 = vmatpush1.bf16.msra.mxu0 %v3905
        %6960 = vmatprep.subr.bf16.mxu0 %v3915
        %6961 = vmatpush1.bf16.msra.mxu0 %v3914
        %6962 = vmatprep.subr.bf16.mxu0 %v3924
        %6963 = vmatpush1.bf16.msra.mxu0 %v3923
        %6964 = vmatprep.subr.bf16.mxu0 %v3933
        %6965 = vmatpush1.bf16.msra.mxu0 %v3932
        %6966 = vmatprep.subr.bf16.mxu0 %v3942
        %6967 = vmatpush1.bf16.msra.mxu0 %v3941
        %6968 = vmatprep.subr.bf16.mxu0 %v3951
        %6969 = vmatpush1.bf16.msra.mxu0 %v3950
        %6970 = vmatprep.subr.bf16.mxu0 %v3960
        %6971 = vmatpush1.bf16.msra.mxu0 %v3959
        %6972 = vmatprep.subr.bf16.mxu0 %v3969
        %6973 = vmatpush1.bf16.msra.mxu0 %v3968
        %6974 = vmatprep.subr.bf16.mxu0 %v3978
        %6975 = vmatpush1.bf16.msra.mxu0 %v3977
        %6976 = vmatprep.mubr.bf16.mxu0 %v6696
        %6977 = vmatmul.mubr.bf16.gmra.mrb[0].mxu0 %v6695
        %v6978 = vpop.f32.mrb[0].mxu0
        %v6979 = vadd.f32 %v3146, %v6978
        %v6980 = vpop.f32.mrb[0].mxu0
        %v6981 = vadd.f32 %v3150, %v6980
        %v6982 = vpop.f32.mrb[0].mxu0
        %v6983 = vpop.f32.mrb[0].mxu0
        %6984 = vdwg.mxu0
        %6985 = vmatprep.subr.bf16.mxu0 %v3987
        %6986 = vmatpush1.bf16.msra.mxu0 %v3986
        %6987 = vmatprep.subr.bf16.mxu0 %v3996
        %6988 = vmatpush1.bf16.msra.mxu0 %v3995
        %6989 = vmatprep.subr.bf16.mxu0 %v4005
        %6990 = vmatpush1.bf16.msra.mxu0 %v4004
        %6991 = vmatprep.subr.bf16.mxu0 %v4014
        %6992 = vmatpush1.bf16.msra.mxu0 %v4013
        %6993 = vmatprep.subr.bf16.mxu0 %v4023
        %6994 = vmatpush1.bf16.msra.mxu0 %v4022
        %6995 = vmatprep.subr.bf16.mxu0 %v4032
        %6996 = vmatpush1.bf16.msra.mxu0 %v4031
        %6997 = vmatprep.subr.bf16.mxu0 %v4041
        %6998 = vmatpush1.bf16.msra.mxu0 %v4040
        %6999 = vmatprep.subr.bf16.mxu0 %v4050
        %7000 = vmatpush1.bf16.msra.mxu0 %v4049
        %7001 = vmatprep.subr.bf16.mxu0 0
        %7002 = vmatpush1.bf16.msra.mxu0 0
        %7003 = vmatprep.subr.bf16.mxu0 0
        %7004 = vmatpush1.bf16.msra.mxu0 0
        %7005 = vmatprep.subr.bf16.mxu0 0
        %7006 = vmatpush1.bf16.msra.mxu0 0
        %7007 = vmatprep.subr.bf16.mxu0 0
        %7008 = vmatpush1.bf16.msra.mxu0 0
        %7009 = vmatprep.subr.bf16.mxu0 0
        %7010 = vmatpush1.bf16.msra.mxu0 0
        %7011 = vmatprep.subr.bf16.mxu0 0
        %7012 = vmatpush1.bf16.msra.mxu0 0
        %7013 = vmatprep.subr.bf16.mxu0 0
        %7014 = vmatpush1.bf16.msra.mxu0 0
        %7015 = vmatprep.subr.bf16.mxu0 0
        %7016 = vmatpush1.bf16.msra.mxu0 0
        %7017 = vmatprep.mubr.bf16.mxu0 0
        %7018 = vmatmul.mubr.bf16.gmra.mrb[0].mxu0 %v6697
        %v7019 = vpop.f32.mrb[0].mxu0
        %v7020 = vadd.f32 %v6979, %v7019
        %v7021 = vpop.f32.mrb[0].mxu0
        %v7022 = vadd.f32 %v6981, %v7021
        %v7023 = vpop.f32.mrb[0].mxu0
        %v7024 = vpop.f32.mrb[0].mxu0
        %7025 = vdwg.mxu0
        %7026 = vmatprep.subr.bf16.mxu0 0
        %7027 = vmatpush1.bf16.msra.mxu0 %v3844
        %7028 = vmatprep.subr.bf16.mxu0 0
        %7029 = vmatpush1.bf16.msra.mxu0 %v3853
        %7030 = vmatprep.subr.bf16.mxu0 0
        %7031 = vmatpush1.bf16.msra.mxu0 %v3862
        %7032 = vmatprep.subr.bf16.mxu0 0
        %7033 = vmatpush1.bf16.msra.mxu0 %v3871
        %7034 = vmatprep.subr.bf16.mxu0 0
        %7035 = vmatpush1.bf16.msra.mxu0 %v3880
        %7036 = vmatprep.subr.bf16.mxu0 0
        %7037 = vmatpush1.bf16.msra.mxu0 %v3889
        %7038 = vmatprep.subr.bf16.mxu0 0
        %7039 = vmatpush1.bf16.msra.mxu0 %v3898
        %7040 = vmatprep.subr.bf16.mxu0 0
        %7041 = vmatpush1.bf16.msra.mxu0 %v3907
        %7042 = vmatprep.subr.bf16.mxu0 0
        %7043 = vmatpush1.bf16.msra.mxu0 %v3916
        %7044 = vmatprep.subr.bf16.mxu0 0
        %7045 = vmatpush1.bf16.msra.mxu0 %v3925
        %7046 = vmatprep.subr.bf16.mxu0 0
        %7047 = vmatpush1.bf16.msra.mxu0 %v3934
        %7048 = vmatprep.subr.bf16.mxu0 0
        %7049 = vmatpush1.bf16.msra.mxu0 %v3943
        %7050 = vmatprep.subr.bf16.mxu0 0
        %7051 = vmatpush1.bf16.msra.mxu0 %v3952
        %7052 = vmatprep.subr.bf16.mxu0 0
        %7053 = vmatpush1.bf16.msra.mxu0 %v3961
        %7054 = vmatprep.subr.bf16.mxu0 0
        %7055 = vmatpush1.bf16.msra.mxu0 %v3970
        %7056 = vmatprep.subr.bf16.mxu0 0
        %7057 = vmatpush1.bf16.msra.mxu0 %v3979
        %7058 = vmatprep.mubr.bf16.mxu0 %v6696
        %7059 = vmatmul.mubr.bf16.gmra.mrb[0].mxu0 %v6695
        %v7060 = vpop.f32.mrb[0].mxu0
        %v7061 = vadd.f32 %v3154, %v7060
        %v7062 = vpop.f32.mrb[0].mxu0
        %v7063 = vpop.f32.mrb[0].mxu0
        %v7064 = vpop.f32.mrb[0].mxu0
        %7065 = vdwg.mxu0
        %7066 = vmatprep.subr.bf16.mxu0 0
        %7067 = vmatpush1.bf16.msra.mxu0 %v3988
        %7068 = vmatprep.subr.bf16.mxu0 0
        %7069 = vmatpush1.bf16.msra.mxu0 %v3997
        %7070 = vmatprep.subr.bf16.mxu0 0
        %7071 = vmatpush1.bf16.msra.mxu0 %v4006
        %7072 = vmatprep.subr.bf16.mxu0 0
        %7073 = vmatpush1.bf16.msra.mxu0 %v4015
        %7074 = vmatprep.subr.bf16.mxu0 0
        %7075 = vmatpush1.bf16.msra.mxu0 %v4024
        %7076 = vmatprep.subr.bf16.mxu0 0
        %7077 = vmatpush1.bf16.msra.mxu0 %v4033
        %7078 = vmatprep.subr.bf16.mxu0 0
        %7079 = vmatpush1.bf16.msra.mxu0 %v4042
        %7080 = vmatprep.subr.bf16.mxu0 0
        %7081 = vmatpush1.bf16.msra.mxu0 %v4051
        %7082 = vmatprep.subr.bf16.mxu0 0
        %7083 = vmatpush1.bf16.msra.mxu0 0
        %7084 = vmatprep.subr.bf16.mxu0 0
        %7085 = vmatpush1.bf16.msra.mxu0 0
        %7086 = vmatprep.subr.bf16.mxu0 0
        %7087 = vmatpush1.bf16.msra.mxu0 0
        %7088 = vmatprep.subr.bf16.mxu0 0
        %7089 = vmatpush1.bf16.msra.mxu0 0
        %7090 = vmatprep.subr.bf16.mxu0 0
        %7091 = vmatpush1.bf16.msra.mxu0 0
        %7092 = vmatprep.subr.bf16.mxu0 0
        %7093 = vmatpush1.bf16.msra.mxu0 0
        %7094 = vmatprep.subr.bf16.mxu0 0
        %7095 = vmatpush1.bf16.msra.mxu0 0
        %7096 = vmatprep.subr.bf16.mxu0 0
        %7097 = vmatpush1.bf16.msra.mxu0 0
        %7098 = vmatprep.mubr.bf16.mxu0 0
        %7099 = vmatmul.mubr.bf16.gmra.mrb[0].mxu0 %v6697
        %v7100 = vpop.f32.mrb[0].mxu0
        %v7101 = vadd.f32 %v7061, %v7100
        %v7102 = vpop.f32.mrb[0].mxu0
        %v7103 = vpop.f32.mrb[0].mxu0
        %v7104 = vpop.f32.mrb[0].mxu0
        %7105 = vdwg.mxu0
        %v7106 = vadd.f32 %v6686, %v6774
        %v7107 = vadd.f32 %v6687, %v6776
        %v7108 = vadd.f32 %v6688, %v6856
        %v7109 = vxor.u32 %v7106, 2147483648
        %v7110 = vxor.u32 %v7107, 2147483648
        %v7111 = vxor.u32 %v7108, 2147483648
        %v7112 = vmul.f32 %v7109, 1.442695
        %v7113 = vpow.pop %v7112
        %v7114 = vmul.f32 %v7110, 1.442695
        %v7115 = vpow.pop %v7114
        %v7116 = vmul.f32 %v7111, 1.442695
        %v7117 = vpow.pop %v7116
        %v7118 = vadd.f32 %v7113, 1.0
        %v7119 = vadd.f32 %v7115, 1.0
        %v7120 = vadd.f32 %v7117, 1.0
        %v7121 = vrcp.pop %v7118
        %v7122 = vmul.f32 1.0, %v7121
        %v7123 = vrcp.pop %v7119
        %v7124 = vmul.f32 1.0, %v7123
        %v7125 = vrcp.pop %v7120
        %v7126 = vmul.f32 1.0, %v7125
        %v7127 = vadd.f32 %v6689, %v6858
        %v7128 = vadd.f32 %v6690, %v6938
        %v7129 = vadd.f32 %v6691, %v6940
        %v7130 = vxor.u32 %v7127, 2147483648
        %v7131 = vxor.u32 %v7128, 2147483648
        %v7132 = vxor.u32 %v7129, 2147483648
        %v7133 = vmul.f32 %v7130, 1.442695
        %v7134 = vpow.pop %v7133
        %v7135 = vmul.f32 %v7131, 1.442695
        %v7136 = vpow.pop %v7135
        %v7137 = vmul.f32 %v7132, 1.442695
        %v7138 = vpow.pop %v7137
        %v7139 = vadd.f32 %v7134, 1.0
        %v7140 = vadd.f32 %v7136, 1.0
        %v7141 = vadd.f32 %v7138, 1.0
        %v7142 = vrcp.pop %v7139
        %v7143 = vmul.f32 1.0, %v7142
        %v7144 = vrcp.pop %v7140
        %v7145 = vmul.f32 1.0, %v7144
        %v7146 = vrcp.pop %v7141
        %v7147 = vmul.f32 1.0, %v7146
        %v7148 = vmul.f32 %v7122, %v7020
        %v7149 = vmul.f32 %v7124, %v7022
        %v7150 = vmul.f32 %v7126, %v7101
        %v7151 = vadd.f32 %v6692, %v7148
        %v7152 = vadd.f32 %v6693, %v7149
        %v7153 = vadd.f32 %v6694, %v7150
        %v7154 = vtanh.pop %v7151
        %v7155 = vtanh.pop %v7152
        %v7156 = vtanh.pop %v7153
        %v7157 = vsub.f32 1.0, %v7143
        %v7158 = vsub.f32 1.0, %v7145
        %v7159 = vsub.f32 1.0, %v7147
        %v7160 = vmul.f32 %v7157, %v7154
        %v7161 = vmul.f32 %v7158, %v7155
        %v7162 = vmul.f32 %v7159, %v7156
        %v7163 = vmul.f32 %v7143, %v6680
        %v7164 = vmul.f32 %v7145, %v6681
        %v7165 = vmul.f32 %v7147, %v6682
        %v7166 = vadd.f32 %v7160, %v7163
        %v7167 = vadd.f32 %v7161, %v7164
        %v7168 = vadd.f32 %v7162, %v7165
        %7169 = vst [vmem:[#allocation3 + $0x78] sm:$0xff] %v7166
        %7170 = vst [vmem:[#allocation3 + $0x80] sm:$0xff] %v7167
        %7171 = vst [vmem:[#allocation3 + $0x88] sm:$0xff] %v7168
        %v7172 = vld [vmem:[#allocation2 + $0x1b0] sm:$0xff]
        %v7173 = vld [vmem:[#allocation2 + $0x1b8] sm:$0xff]
        %v7174 = vld [vmem:[#allocation2 + $0x1c0] sm:$0xff]
        %v7175 = vld [vmem:[#allocation2 + $0x1c8] sm:$0xff]
        %v7176 = vld [vmem:[#allocation2 + $0x1d0] sm:$0xff]
        %v7177 = vld [vmem:[#allocation2 + $0x1d8] sm:$0xff]
        %v7178 = vld [vmem:[#allocation2 + $0x1e0] sm:$0xff]
        %v7179 = vld [vmem:[#allocation2 + $0x1e8] sm:$0xff]
        %v7180 = vld [vmem:[#allocation2 + $0x1f0] sm:$0xff]
        %v7181 = vpack.c.bf16 %v7166, %v7166
        %v7182 = vpack.c.bf16 %v7167, %v7167
        %v7183 = vpack.c.bf16 %v7168, %v7168
        %7184 = vmatprep.subr.bf16.mxu0 %v3837
        %7185 = vmatpush1.bf16.msra.mxu0 %v3836
        %7186 = vmatprep.subr.bf16.mxu0 %v3846
        %7187 = vmatpush1.bf16.msra.mxu0 %v3845
        %7188 = vmatprep.subr.bf16.mxu0 %v3855
        %7189 = vmatpush1.bf16.msra.mxu0 %v3854
        %7190 = vmatprep.subr.bf16.mxu0 %v3864
        %7191 = vmatpush1.bf16.msra.mxu0 %v3863
        %7192 = vmatprep.subr.bf16.mxu0 %v3873
        %7193 = vmatpush1.bf16.msra.mxu0 %v3872
        %7194 = vmatprep.subr.bf16.mxu0 %v3882
        %7195 = vmatpush1.bf16.msra.mxu0 %v3881
        %7196 = vmatprep.subr.bf16.mxu0 %v3891
        %7197 = vmatpush1.bf16.msra.mxu0 %v3890
        %7198 = vmatprep.subr.bf16.mxu0 %v3900
        %7199 = vmatpush1.bf16.msra.mxu0 %v3899
        %7200 = vmatprep.subr.bf16.mxu0 %v3909
        %7201 = vmatpush1.bf16.msra.mxu0 %v3908
        %7202 = vmatprep.subr.bf16.mxu0 %v3918
        %7203 = vmatpush1.bf16.msra.mxu0 %v3917
        %7204 = vmatprep.subr.bf16.mxu0 %v3927
        %7205 = vmatpush1.bf16.msra.mxu0 %v3926
        %7206 = vmatprep.subr.bf16.mxu0 %v3936
        %7207 = vmatpush1.bf16.msra.mxu0 %v3935
        %7208 = vmatprep.subr.bf16.mxu0 %v3945
        %7209 = vmatpush1.bf16.msra.mxu0 %v3944
        %7210 = vmatprep.subr.bf16.mxu0 %v3954
        %7211 = vmatpush1.bf16.msra.mxu0 %v3953
        %7212 = vmatprep.subr.bf16.mxu0 %v3963
        %7213 = vmatpush1.bf16.msra.mxu0 %v3962
        %7214 = vmatprep.subr.bf16.mxu0 %v3972
        %7215 = vmatpush1.bf16.msra.mxu0 %v3971
        %7216 = vmatprep.mubr.bf16.mxu0 %v7182
        %7217 = vmatmul.mubr.bf16.gmra.mrb[0].mxu0 %v7181
        %v7218 = vpop.f32.mrb[0].mxu0
        %v7219 = vadd.f32 %v3122, %v7218
        %v7220 = vpop.f32.mrb[0].mxu0
        %v7221 = vadd.f32 %v3126, %v7220
        %v7222 = vpop.f32.mrb[0].mxu0
        %v7223 = vpop.f32.mrb[0].mxu0
        %7224 = vdwg.mxu0
        %7225 = vmatprep.subr.bf16.mxu0 %v3981
        %7226 = vmatpush1.bf16.msra.mxu0 %v3980
        %7227 = vmatprep.subr.bf16.mxu0 %v3990
        %7228 = vmatpush1.bf16.msra.mxu0 %v3989
        %7229 = vmatprep.subr.bf16.mxu0 %v3999
        %7230 = vmatpush1.bf16.msra.mxu0 %v3998
        %7231 = vmatprep.subr.bf16.mxu0 %v4008
        %7232 = vmatpush1.bf16.msra.mxu0 %v4007
        %7233 = vmatprep.subr.bf16.mxu0 %v4017
        %7234 = vmatpush1.bf16.msra.mxu0 %v4016
        %7235 = vmatprep.subr.bf16.mxu0 %v4026
        %7236 = vmatpush1.bf16.msra.mxu0 %v4025
        %7237 = vmatprep.subr.bf16.mxu0 %v4035
        %7238 = vmatpush1.bf16.msra.mxu0 %v4034
        %7239 = vmatprep.subr.bf16.mxu0 %v4044
        %7240 = vmatpush1.bf16.msra.mxu0 %v4043
        %7241 = vmatprep.subr.bf16.mxu0 0
        %7242 = vmatpush1.bf16.msra.mxu0 0
        %7243 = vmatprep.subr.bf16.mxu0 0
        %7244 = vmatpush1.bf16.msra.mxu0 0
        %7245 = vmatprep.subr.bf16.mxu0 0
        %7246 = vmatpush1.bf16.msra.mxu0 0
        %7247 = vmatprep.subr.bf16.mxu0 0
        %7248 = vmatpush1.bf16.msra.mxu0 0
        %7249 = vmatprep.subr.bf16.mxu0 0
        %7250 = vmatpush1.bf16.msra.mxu0 0
        %7251 = vmatprep.subr.bf16.mxu0 0
        %7252 = vmatpush1.bf16.msra.mxu0 0
        %7253 = vmatprep.subr.bf16.mxu0 0
        %7254 = vmatpush1.bf16.msra.mxu0 0
        %7255 = vmatprep.subr.bf16.mxu0 0
        %7256 = vmatpush1.bf16.msra.mxu0 0
        %7257 = vmatprep.mubr.bf16.mxu0 0
        %7258 = vmatmul.mubr.bf16.gmra.mrb[0].mxu0 %v7183
        %v7259 = vpop.f32.mrb[0].mxu0
        %v7260 = vadd.f32 %v7219, %v7259
        %v7261 = vpop.f32.mrb[0].mxu0
        %v7262 = vadd.f32 %v7221, %v7261
        %v7263 = vpop.f32.mrb[0].mxu0
        %v7264 = vpop.f32.mrb[0].mxu0
        %7265 = vdwg.mxu0
        %7266 = vmatprep.subr.bf16.mxu0 %v3839
        %7267 = vmatpush1.bf16.msra.mxu0 %v3838
        %7268 = vmatprep.subr.bf16.mxu0 %v3848
        %7269 = vmatpush1.bf16.msra.mxu0 %v3847
        %7270 = vmatprep.subr.bf16.mxu0 %v3857
        %7271 = vmatpush1.bf16.msra.mxu0 %v3856
        %7272 = vmatprep.subr.bf16.mxu0 %v3866
        %7273 = vmatpush1.bf16.msra.mxu0 %v3865
        %7274 = vmatprep.subr.bf16.mxu0 %v3875
        %7275 = vmatpush1.bf16.msra.mxu0 %v3874
        %7276 = vmatprep.subr.bf16.mxu0 %v3884
        %7277 = vmatpush1.bf16.msra.mxu0 %v3883
        %7278 = vmatprep.subr.bf16.mxu0 %v3893
        %7279 = vmatpush1.bf16.msra.mxu0 %v3892
        %7280 = vmatprep.subr.bf16.mxu0 %v3902
        %7281 = vmatpush1.bf16.msra.mxu0 %v3901
        %7282 = vmatprep.subr.bf16.mxu0 %v3911
        %7283 = vmatpush1.bf16.msra.mxu0 %v3910
        %7284 = vmatprep.subr.bf16.mxu0 %v3920
        %7285 = vmatpush1.bf16.msra.mxu0 %v3919
        %7286 = vmatprep.subr.bf16.mxu0 %v3929
        %7287 = vmatpush1.bf16.msra.mxu0 %v3928
        %7288 = vmatprep.subr.bf16.mxu0 %v3938
        %7289 = vmatpush1.bf16.msra.mxu0 %v3937
        %7290 = vmatprep.subr.bf16.mxu0 %v3947
        %7291 = vmatpush1.bf16.msra.mxu0 %v3946
        %7292 = vmatprep.subr.bf16.mxu0 %v3956
        %7293 = vmatpush1.bf16.msra.mxu0 %v3955
        %7294 = vmatprep.subr.bf16.mxu0 %v3965
        %7295 = vmatpush1.bf16.msra.mxu0 %v3964
        %7296 = vmatprep.subr.bf16.mxu0 %v3974
        %7297 = vmatpush1.bf16.msra.mxu0 %v3973
        %7298 = vmatprep.mubr.bf16.mxu0 %v7182
        %7299 = vmatmul.mubr.bf16.gmra.mrb[0].mxu0 %v7181
        %v7300 = vpop.f32.mrb[0].mxu0
        %v7301 = vadd.f32 %v3130, %v7300
        %v7302 = vpop.f32.mrb[0].mxu0
        %v7303 = vadd.f32 %v3134, %v7302
        %v7304 = vpop.f32.mrb[0].mxu0
        %v7305 = vpop.f32.mrb[0].mxu0
        %7306 = vdwg.mxu0
        %7307 = vmatprep.subr.bf16.mxu0 %v3983
        %7308 = vmatpush1.bf16.msra.mxu0 %v3982
        %7309 = vmatprep.subr.bf16.mxu0 %v3992
        %7310 = vmatpush1.bf16.msra.mxu0 %v3991
        %7311 = vmatprep.subr.bf16.mxu0 %v4001
        %7312 = vmatpush1.bf16.msra.mxu0 %v4000
        %7313 = vmatprep.subr.bf16.mxu0 %v4010
        %7314 = vmatpush1.bf16.msra.mxu0 %v4009
        %7315 = vmatprep.subr.bf16.mxu0 %v4019
        %7316 = vmatpush1.bf16.msra.mxu0 %v4018
        %7317 = vmatprep.subr.bf16.mxu0 %v4028
        %7318 = vmatpush1.bf16.msra.mxu0 %v4027
        %7319 = vmatprep.subr.bf16.mxu0 %v4037
        %7320 = vmatpush1.bf16.msra.mxu0 %v4036
        %7321 = vmatprep.subr.bf16.mxu0 %v4046
        %7322 = vmatpush1.bf16.msra.mxu0 %v4045
        %7323 = vmatprep.subr.bf16.mxu0 0
        %7324 = vmatpush1.bf16.msra.mxu0 0
        %7325 = vmatprep.subr.bf16.mxu0 0
        %7326 = vmatpush1.bf16.msra.mxu0 0
        %7327 = vmatprep.subr.bf16.mxu0 0
        %7328 = vmatpush1.bf16.msra.mxu0 0
        %7329 = vmatprep.subr.bf16.mxu0 0
        %7330 = vmatpush1.bf16.msra.mxu0 0
        %7331 = vmatprep.subr.bf16.mxu0 0
        %7332 = vmatpush1.bf16.msra.mxu0 0
        %7333 = vmatprep.subr.bf16.mxu0 0
        %7334 = vmatpush1.bf16.msra.mxu0 0
        %7335 = vmatprep.subr.bf16.mxu0 0
        %7336 = vmatpush1.bf16.msra.mxu0 0
        %7337 = vmatprep.subr.bf16.mxu0 0
        %7338 = vmatpush1.bf16.msra.mxu0 0
        %7339 = vmatprep.mubr.bf16.mxu0 0
        %7340 = vmatmul.mubr.bf16.gmra.mrb[0].mxu0 %v7183
        %v7341 = vpop.f32.mrb[0].mxu0
        %v7342 = vadd.f32 %v7301, %v7341
        %v7343 = vpop.f32.mrb[0].mxu0
        %v7344 = vadd.f32 %v7303, %v7343
        %v7345 = vpop.f32.mrb[0].mxu0
        %v7346 = vpop.f32.mrb[0].mxu0
        %7347 = vdwg.mxu0
        %7348 = vmatprep.subr.bf16.mxu0 %v3841
        %7349 = vmatpush1.bf16.msra.mxu0 %v3840
        %7350 = vmatprep.subr.bf16.mxu0 %v3850
        %7351 = vmatpush1.bf16.msra.mxu0 %v3849
        %7352 = vmatprep.subr.bf16.mxu0 %v3859
        %7353 = vmatpush1.bf16.msra.mxu0 %v3858
        %7354 = vmatprep.subr.bf16.mxu0 %v3868
        %7355 = vmatpush1.bf16.msra.mxu0 %v3867
        %7356 = vmatprep.subr.bf16.mxu0 %v3877
        %7357 = vmatpush1.bf16.msra.mxu0 %v3876
        %7358 = vmatprep.subr.bf16.mxu0 %v3886
        %7359 = vmatpush1.bf16.msra.mxu0 %v3885
        %7360 = vmatprep.subr.bf16.mxu0 %v3895
        %7361 = vmatpush1.bf16.msra.mxu0 %v3894
        %7362 = vmatprep.subr.bf16.mxu0 %v3904
        %7363 = vmatpush1.bf16.msra.mxu0 %v3903
        %7364 = vmatprep.subr.bf16.mxu0 %v3913
        %7365 = vmatpush1.bf16.msra.mxu0 %v3912
        %7366 = vmatprep.subr.bf16.mxu0 %v3922
        %7367 = vmatpush1.bf16.msra.mxu0 %v3921
        %7368 = vmatprep.subr.bf16.mxu0 %v3931
        %7369 = vmatpush1.bf16.msra.mxu0 %v3930
        %7370 = vmatprep.subr.bf16.mxu0 %v3940
        %7371 = vmatpush1.bf16.msra.mxu0 %v3939
        %7372 = vmatprep.subr.bf16.mxu0 %v3949
        %7373 = vmatpush1.bf16.msra.mxu0 %v3948
        %7374 = vmatprep.subr.bf16.mxu0 %v3958
        %7375 = vmatpush1.bf16.msra.mxu0 %v3957
        %7376 = vmatprep.subr.bf16.mxu0 %v3967
        %7377 = vmatpush1.bf16.msra.mxu0 %v3966
        %7378 = vmatprep.subr.bf16.mxu0 %v3976
        %7379 = vmatpush1.bf16.msra.mxu0 %v3975
        %7380 = vmatprep.mubr.bf16.mxu0 %v7182
        %7381 = vmatmul.mubr.bf16.gmra.mrb[0].mxu0 %v7181
        %v7382 = vpop.f32.mrb[0].mxu0
        %v7383 = vadd.f32 %v3138, %v7382
        %v7384 = vpop.f32.mrb[0].mxu0
        %v7385 = vadd.f32 %v3142, %v7384
        %v7386 = vpop.f32.mrb[0].mxu0
        %v7387 = vpop.f32.mrb[0].mxu0
        %7388 = vdwg.mxu0
        %7389 = vmatprep.subr.bf16.mxu0 %v3985
        %7390 = vmatpush1.bf16.msra.mxu0 %v3984
        %7391 = vmatprep.subr.bf16.mxu0 %v3994
        %7392 = vmatpush1.bf16.msra.mxu0 %v3993
        %7393 = vmatprep.subr.bf16.mxu0 %v4003
        %7394 = vmatpush1.bf16.msra.mxu0 %v4002
        %7395 = vmatprep.subr.bf16.mxu0 %v4012
        %7396 = vmatpush1.bf16.msra.mxu0 %v4011
        %7397 = vmatprep.subr.bf16.mxu0 %v4021
        %7398 = vmatpush1.bf16.msra.mxu0 %v4020
        %7399 = vmatprep.subr.bf16.mxu0 %v4030
        %7400 = vmatpush1.bf16.msra.mxu0 %v4029
        %7401 = vmatprep.subr.bf16.mxu0 %v4039
        %7402 = vmatpush1.bf16.msra.mxu0 %v4038
        %7403 = vmatprep.subr.bf16.mxu0 %v4048
        %7404 = vmatpush1.bf16.msra.mxu0 %v4047
        %7405 = vmatprep.subr.bf16.mxu0 0
        %7406 = vmatpush1.bf16.msra.mxu0 0
        %7407 = vmatprep.subr.bf16.mxu0 0
        %7408 = vmatpush1.bf16.msra.mxu0 0
        %7409 = vmatprep.subr.bf16.mxu0 0
        %7410 = vmatpush1.bf16.msra.mxu0 0
        %7411 = vmatprep.subr.bf16.mxu0 0
        %7412 = vmatpush1.bf16.msra.mxu0 0
        %7413 = vmatprep.subr.bf16.mxu0 0
        %7414 = vmatpush1.bf16.msra.mxu0 0
        %7415 = vmatprep.subr.bf16.mxu0 0
        %7416 = vmatpush1.bf16.msra.mxu0 0
        %7417 = vmatprep.subr.bf16.mxu0 0
        %7418 = vmatpush1.bf16.msra.mxu0 0
        %7419 = vmatprep.subr.bf16.mxu0 0
        %7420 = vmatpush1.bf16.msra.mxu0 0
        %7421 = vmatprep.mubr.bf16.mxu0 0
        %7422 = vmatmul.mubr.bf16.gmra.mrb[0].mxu0 %v7183
        %v7423 = vpop.f32.mrb[0].mxu0
        %v7424 = vadd.f32 %v7383, %v7423
        %v7425 = vpop.f32.mrb[0].mxu0
        %v7426 = vadd.f32 %v7385, %v7425
        %v7427 = vpop.f32.mrb[0].mxu0
        %v7428 = vpop.f32.mrb[0].mxu0
        %7429 = vdwg.mxu0
        %7430 = vmatprep.subr.bf16.mxu0 %v3843
        %7431 = vmatpush1.bf16.msra.mxu0 %v3842
        %7432 = vmatprep.subr.bf16.mxu0 %v3852
        %7433 = vmatpush1.bf16.msra.mxu0 %v3851
        %7434 = vmatprep.subr.bf16.mxu0 %v3861
        %7435 = vmatpush1.bf16.msra.mxu0 %v3860
        %7436 = vmatprep.subr.bf16.mxu0 %v3870
        %7437 = vmatpush1.bf16.msra.mxu0 %v3869
        %7438 = vmatprep.subr.bf16.mxu0 %v3879
        %7439 = vmatpush1.bf16.msra.mxu0 %v3878
        %7440 = vmatprep.subr.bf16.mxu0 %v3888
        %7441 = vmatpush1.bf16.msra.mxu0 %v3887
        %7442 = vmatprep.subr.bf16.mxu0 %v3897
        %7443 = vmatpush1.bf16.msra.mxu0 %v3896
        %7444 = vmatprep.subr.bf16.mxu0 %v3906
        %7445 = vmatpush1.bf16.msra.mxu0 %v3905
        %7446 = vmatprep.subr.bf16.mxu0 %v3915
        %7447 = vmatpush1.bf16.msra.mxu0 %v3914
        %7448 = vmatprep.subr.bf16.mxu0 %v3924
        %7449 = vmatpush1.bf16.msra.mxu0 %v3923
        %7450 = vmatprep.subr.bf16.mxu0 %v3933
        %7451 = vmatpush1.bf16.msra.mxu0 %v3932
        %7452 = vmatprep.subr.bf16.mxu0 %v3942
        %7453 = vmatpush1.bf16.msra.mxu0 %v3941
        %7454 = vmatprep.subr.bf16.mxu0 %v3951
        %7455 = vmatpush1.bf16.msra.mxu0 %v3950
        %7456 = vmatprep.subr.bf16.mxu0 %v3960
        %7457 = vmatpush1.bf16.msra.mxu0 %v3959
        %7458 = vmatprep.subr.bf16.mxu0 %v3969
        %7459 = vmatpush1.bf16.msra.mxu0 %v3968
        %7460 = vmatprep.subr.bf16.mxu0 %v3978
        %7461 = vmatpush1.bf16.msra.mxu0 %v3977
        %7462 = vmatprep.mubr.bf16.mxu0 %v7182
        %7463 = vmatmul.mubr.bf16.gmra.mrb[0].mxu0 %v7181
        %v7464 = vpop.f32.mrb[0].mxu0
        %v7465 = vadd.f32 %v3146, %v7464
        %v7466 = vpop.f32.mrb[0].mxu0
        %v7467 = vadd.f32 %v3150, %v7466
        %v7468 = vpop.f32.mrb[0].mxu0
        %v7469 = vpop.f32.mrb[0].mxu0
        %7470 = vdwg.mxu0
        %7471 = vmatprep.subr.bf16.mxu0 %v3987
        %7472 = vmatpush1.bf16.msra.mxu0 %v3986
        %7473 = vmatprep.subr.bf16.mxu0 %v3996
        %7474 = vmatpush1.bf16.msra.mxu0 %v3995
        %7475 = vmatprep.subr.bf16.mxu0 %v4005
        %7476 = vmatpush1.bf16.msra.mxu0 %v4004
        %7477 = vmatprep.subr.bf16.mxu0 %v4014
        %7478 = vmatpush1.bf16.msra.mxu0 %v4013
        %7479 = vmatprep.subr.bf16.mxu0 %v4023
        %7480 = vmatpush1.bf16.msra.mxu0 %v4022
        %7481 = vmatprep.subr.bf16.mxu0 %v4032
        %7482 = vmatpush1.bf16.msra.mxu0 %v4031
        %7483 = vmatprep.subr.bf16.mxu0 %v4041
        %7484 = vmatpush1.bf16.msra.mxu0 %v4040
        %7485 = vmatprep.subr.bf16.mxu0 %v4050
        %7486 = vmatpush1.bf16.msra.mxu0 %v4049
        %7487 = vmatprep.subr.bf16.mxu0 0
        %7488 = vmatpush1.bf16.msra.mxu0 0
        %7489 = vmatprep.subr.bf16.mxu0 0
        %7490 = vmatpush1.bf16.msra.mxu0 0
        %7491 = vmatprep.subr.bf16.mxu0 0
        %7492 = vmatpush1.bf16.msra.mxu0 0
        %7493 = vmatprep.subr.bf16.mxu0 0
        %7494 = vmatpush1.bf16.msra.mxu0 0
        %7495 = vmatprep.subr.bf16.mxu0 0
        %7496 = vmatpush1.bf16.msra.mxu0 0
        %7497 = vmatprep.subr.bf16.mxu0 0
        %7498 = vmatpush1.bf16.msra.mxu0 0
        %7499 = vmatprep.subr.bf16.mxu0 0
        %7500 = vmatpush1.bf16.msra.mxu0 0
        %7501 = vmatprep.subr.bf16.mxu0 0
        %7502 = vmatpush1.bf16.msra.mxu0 0
        %7503 = vmatprep.mubr.bf16.mxu0 0
        %7504 = vmatmul.mubr.bf16.gmra.mrb[0].mxu0 %v7183
        %v7505 = vpop.f32.mrb[0].mxu0
        %v7506 = vadd.f32 %v7465, %v7505
        %v7507 = vpop.f32.mrb[0].mxu0
        %v7508 = vadd.f32 %v7467, %v7507
        %v7509 = vpop.f32.mrb[0].mxu0
        %v7510 = vpop.f32.mrb[0].mxu0
        %7511 = vdwg.mxu0
        %7512 = vmatprep.subr.bf16.mxu0 0
        %7513 = vmatpush1.bf16.msra.mxu0 %v3844
        %7514 = vmatprep.subr.bf16.mxu0 0
        %7515 = vmatpush1.bf16.msra.mxu0 %v3853
        %7516 = vmatprep.subr.bf16.mxu0 0
        %7517 = vmatpush1.bf16.msra.mxu0 %v3862
        %7518 = vmatprep.subr.bf16.mxu0 0
        %7519 = vmatpush1.bf16.msra.mxu0 %v3871
        %7520 = vmatprep.subr.bf16.mxu0 0
        %7521 = vmatpush1.bf16.msra.mxu0 %v3880
        %7522 = vmatprep.subr.bf16.mxu0 0
        %7523 = vmatpush1.bf16.msra.mxu0 %v3889
        %7524 = vmatprep.subr.bf16.mxu0 0
        %7525 = vmatpush1.bf16.msra.mxu0 %v3898
        %7526 = vmatprep.subr.bf16.mxu0 0
        %7527 = vmatpush1.bf16.msra.mxu0 %v3907
        %7528 = vmatprep.subr.bf16.mxu0 0
        %7529 = vmatpush1.bf16.msra.mxu0 %v3916
        %7530 = vmatprep.subr.bf16.mxu0 0
        %7531 = vmatpush1.bf16.msra.mxu0 %v3925
        %7532 = vmatprep.subr.bf16.mxu0 0
        %7533 = vmatpush1.bf16.msra.mxu0 %v3934
        %7534 = vmatprep.subr.bf16.mxu0 0
        %7535 = vmatpush1.bf16.msra.mxu0 %v3943
        %7536 = vmatprep.subr.bf16.mxu0 0
        %7537 = vmatpush1.bf16.msra.mxu0 %v3952
        %7538 = vmatprep.subr.bf16.mxu0 0
        %7539 = vmatpush1.bf16.msra.mxu0 %v3961
        %7540 = vmatprep.subr.bf16.mxu0 0
        %7541 = vmatpush1.bf16.msra.mxu0 %v3970
        %7542 = vmatprep.subr.bf16.mxu0 0
        %7543 = vmatpush1.bf16.msra.mxu0 %v3979
        %7544 = vmatprep.mubr.bf16.mxu0 %v7182
        %7545 = vmatmul.mubr.bf16.gmra.mrb[0].mxu0 %v7181
        %v7546 = vpop.f32.mrb[0].mxu0
        %v7547 = vadd.f32 %v3154, %v7546
        %v7548 = vpop.f32.mrb[0].mxu0
        %v7549 = vpop.f32.mrb[0].mxu0
        %v7550 = vpop.f32.mrb[0].mxu0
        %7551 = vdwg.mxu0
        %7552 = vmatprep.subr.bf16.mxu0 0
        %7553 = vmatpush1.bf16.msra.mxu0 %v3988
        %7554 = vmatprep.subr.bf16.mxu0 0
        %7555 = vmatpush1.bf16.msra.mxu0 %v3997
        %7556 = vmatprep.subr.bf16.mxu0 0
        %7557 = vmatpush1.bf16.msra.mxu0 %v4006
        %7558 = vmatprep.subr.bf16.mxu0 0
        %7559 = vmatpush1.bf16.msra.mxu0 %v4015
        %7560 = vmatprep.subr.bf16.mxu0 0
        %7561 = vmatpush1.bf16.msra.mxu0 %v4024
        %7562 = vmatprep.subr.bf16.mxu0 0
        %7563 = vmatpush1.bf16.msra.mxu0 %v4033
        %7564 = vmatprep.subr.bf16.mxu0 0
        %7565 = vmatpush1.bf16.msra.mxu0 %v4042
        %7566 = vmatprep.subr.bf16.mxu0 0
        %7567 = vmatpush1.bf16.msra.mxu0 %v4051
        %7568 = vmatprep.subr.bf16.mxu0 0
        %7569 = vmatpush1.bf16.msra.mxu0 0
        %7570 = vmatprep.subr.bf16.mxu0 0
        %7571 = vmatpush1.bf16.msra.mxu0 0
        %7572 = vmatprep.subr.bf16.mxu0 0
        %7573 = vmatpush1.bf16.msra.mxu0 0
        %7574 = vmatprep.subr.bf16.mxu0 0
        %7575 = vmatpush1.bf16.msra.mxu0 0
        %7576 = vmatprep.subr.bf16.mxu0 0
        %7577 = vmatpush1.bf16.msra.mxu0 0
        %7578 = vmatprep.subr.bf16.mxu0 0
        %7579 = vmatpush1.bf16.msra.mxu0 0
        %7580 = vmatprep.subr.bf16.mxu0 0
        %7581 = vmatpush1.bf16.msra.mxu0 0
        %7582 = vmatprep.subr.bf16.mxu0 0
        %7583 = vmatpush1.bf16.msra.mxu0 0
        %7584 = vmatprep.mubr.bf16.mxu0 0
        %7585 = vmatmul.mubr.bf16.gmra.mrb[0].mxu0 %v7183
        %v7586 = vpop.f32.mrb[0].mxu0
        %v7587 = vadd.f32 %v7547, %v7586
        %v7588 = vpop.f32.mrb[0].mxu0
        %v7589 = vpop.f32.mrb[0].mxu0
        %v7590 = vpop.f32.mrb[0].mxu0
        %7591 = vdwg.mxu0
        %v7592 = vadd.f32 %v7172, %v7260
        %v7593 = vadd.f32 %v7173, %v7262
        %v7594 = vadd.f32 %v7174, %v7342
        %v7595 = vxor.u32 %v7592, 2147483648
        %v7596 = vxor.u32 %v7593, 2147483648
        %v7597 = vxor.u32 %v7594, 2147483648
        %v7598 = vmul.f32 %v7595, 1.442695
        %v7599 = vpow.pop %v7598
        %v7600 = vmul.f32 %v7596, 1.442695
        %v7601 = vpow.pop %v7600
        %v7602 = vmul.f32 %v7597, 1.442695
        %v7603 = vpow.pop %v7602
        %v7604 = vadd.f32 %v7599, 1.0
        %v7605 = vadd.f32 %v7601, 1.0
        %v7606 = vadd.f32 %v7603, 1.0
        %v7607 = vrcp.pop %v7604
        %v7608 = vmul.f32 1.0, %v7607
        %v7609 = vrcp.pop %v7605
        %v7610 = vmul.f32 1.0, %v7609
        %v7611 = vrcp.pop %v7606
        %v7612 = vmul.f32 1.0, %v7611
        %v7613 = vadd.f32 %v7175, %v7344
        %v7614 = vadd.f32 %v7176, %v7424
        %v7615 = vadd.f32 %v7177, %v7426
        %v7616 = vxor.u32 %v7613, 2147483648
        %v7617 = vxor.u32 %v7614, 2147483648
        %v7618 = vxor.u32 %v7615, 2147483648
        %v7619 = vmul.f32 %v7616, 1.442695
        %v7620 = vpow.pop %v7619
        %v7621 = vmul.f32 %v7617, 1.442695
        %v7622 = vpow.pop %v7621
        %v7623 = vmul.f32 %v7618, 1.442695
        %v7624 = vpow.pop %v7623
        %v7625 = vadd.f32 %v7620, 1.0
        %v7626 = vadd.f32 %v7622, 1.0
        %v7627 = vadd.f32 %v7624, 1.0
        %v7628 = vrcp.pop %v7625
        %v7629 = vmul.f32 1.0, %v7628
        %v7630 = vrcp.pop %v7626
        %v7631 = vmul.f32 1.0, %v7630
        %v7632 = vrcp.pop %v7627
        %v7633 = vmul.f32 1.0, %v7632
        %v7634 = vmul.f32 %v7608, %v7506
        %v7635 = vmul.f32 %v7610, %v7508
        %v7636 = vmul.f32 %v7612, %v7587
        %v7637 = vadd.f32 %v7178, %v7634
        %v7638 = vadd.f32 %v7179, %v7635
        %v7639 = vadd.f32 %v7180, %v7636
        %v7640 = vtanh.pop %v7637
        %v7641 = vtanh.pop %v7638
        %v7642 = vtanh.pop %v7639
        %v7643 = vsub.f32 1.0, %v7629
        %v7644 = vsub.f32 1.0, %v7631
        %v7645 = vsub.f32 1.0, %v7633
        %v7646 = vmul.f32 %v7643, %v7640
        %v7647 = vmul.f32 %v7644, %v7641
        %v7648 = vmul.f32 %v7645, %v7642
        %v7649 = vmul.f32 %v7629, %v7166
        %v7650 = vmul.f32 %v7631, %v7167
        %v7651 = vmul.f32 %v7633, %v7168
        %v7652 = vadd.f32 %v7646, %v7649
        %v7653 = vadd.f32 %v7647, %v7650
        %v7654 = vadd.f32 %v7648, %v7651
        %7655 = vst [vmem:[#allocation3 + $0x90] sm:$0xff] %v7652
        %7656 = vst [vmem:[#allocation3 + $0x98] sm:$0xff] %v7653
        %7657 = vst [vmem:[#allocation3 + $0xa0] sm:$0xff] %v7654
        %v7658 = vld [vmem:[#allocation2 + $0x1f8] sm:$0xff]
        %v7659 = vld [vmem:[#allocation2 + $0x200] sm:$0xff]
        %v7660 = vld [vmem:[#allocation2 + $0x208] sm:$0xff]
        %v7661 = vld [vmem:[#allocation2 + $0x210] sm:$0xff]
        %v7662 = vld [vmem:[#allocation2 + $0x218] sm:$0xff]
        %v7663 = vld [vmem:[#allocation2 + $0x220] sm:$0xff]
        %v7664 = vld [vmem:[#allocation2 + $0x228] sm:$0xff]
        %v7665 = vld [vmem:[#allocation2 + $0x230] sm:$0xff]
        %v7666 = vld [vmem:[#allocation2 + $0x238] sm:$0xff]
        %v7667 = vpack.c.bf16 %v7652, %v7652
        %v7668 = vpack.c.bf16 %v7653, %v7653
        %v7669 = vpack.c.bf16 %v7654, %v7654
        %7670 = vmatprep.subr.bf16.mxu0 %v3837
        %7671 = vmatpush1.bf16.msra.mxu0 %v3836
        %7672 = vmatprep.subr.bf16.mxu0 %v3846
        %7673 = vmatpush1.bf16.msra.mxu0 %v3845
        %7674 = vmatprep.subr.bf16.mxu0 %v3855
        %7675 = vmatpush1.bf16.msra.mxu0 %v3854
        %7676 = vmatprep.subr.bf16.mxu0 %v3864
        %7677 = vmatpush1.bf16.msra.mxu0 %v3863
        %7678 = vmatprep.subr.bf16.mxu0 %v3873
        %7679 = vmatpush1.bf16.msra.mxu0 %v3872
        %7680 = vmatprep.subr.bf16.mxu0 %v3882
        %7681 = vmatpush1.bf16.msra.mxu0 %v3881
        %7682 = vmatprep.subr.bf16.mxu0 %v3891
        %7683 = vmatpush1.bf16.msra.mxu0 %v3890
        %7684 = vmatprep.subr.bf16.mxu0 %v3900
        %7685 = vmatpush1.bf16.msra.mxu0 %v3899
        %7686 = vmatprep.subr.bf16.mxu0 %v3909
        %7687 = vmatpush1.bf16.msra.mxu0 %v3908
        %7688 = vmatprep.subr.bf16.mxu0 %v3918
        %7689 = vmatpush1.bf16.msra.mxu0 %v3917
        %7690 = vmatprep.subr.bf16.mxu0 %v3927
        %7691 = vmatpush1.bf16.msra.mxu0 %v3926
        %7692 = vmatprep.subr.bf16.mxu0 %v3936
        %7693 = vmatpush1.bf16.msra.mxu0 %v3935
        %7694 = vmatprep.subr.bf16.mxu0 %v3945
        %7695 = vmatpush1.bf16.msra.mxu0 %v3944
        %7696 = vmatprep.subr.bf16.mxu0 %v3954
        %7697 = vmatpush1.bf16.msra.mxu0 %v3953
        %7698 = vmatprep.subr.bf16.mxu0 %v3963
        %7699 = vmatpush1.bf16.msra.mxu0 %v3962
        %7700 = vmatprep.subr.bf16.mxu0 %v3972
        %7701 = vmatpush1.bf16.msra.mxu0 %v3971
        %7702 = vmatprep.mubr.bf16.mxu0 %v7668
        %7703 = vmatmul.mubr.bf16.gmra.mrb[0].mxu0 %v7667
        %v7704 = vpop.f32.mrb[0].mxu0
        %v7705 = vadd.f32 %v3122, %v7704
        %v7706 = vpop.f32.mrb[0].mxu0
        %v7707 = vadd.f32 %v3126, %v7706
        %v7708 = vpop.f32.mrb[0].mxu0
        %v7709 = vpop.f32.mrb[0].mxu0
        %7710 = vdwg.mxu0
        %7711 = vmatprep.subr.bf16.mxu0 %v3981
        %7712 = vmatpush1.bf16.msra.mxu0 %v3980
        %7713 = vmatprep.subr.bf16.mxu0 %v3990
        %7714 = vmatpush1.bf16.msra.mxu0 %v3989
        %7715 = vmatprep.subr.bf16.mxu0 %v3999
        %7716 = vmatpush1.bf16.msra.mxu0 %v3998
        %7717 = vmatprep.subr.bf16.mxu0 %v4008
        %7718 = vmatpush1.bf16.msra.mxu0 %v4007
        %7719 = vmatprep.subr.bf16.mxu0 %v4017
        %7720 = vmatpush1.bf16.msra.mxu0 %v4016
        %7721 = vmatprep.subr.bf16.mxu0 %v4026
        %7722 = vmatpush1.bf16.msra.mxu0 %v4025
        %7723 = vmatprep.subr.bf16.mxu0 %v4035
        %7724 = vmatpush1.bf16.msra.mxu0 %v4034
        %7725 = vmatprep.subr.bf16.mxu0 %v4044
        %7726 = vmatpush1.bf16.msra.mxu0 %v4043
        %7727 = vmatprep.subr.bf16.mxu0 0
        %7728 = vmatpush1.bf16.msra.mxu0 0
        %7729 = vmatprep.subr.bf16.mxu0 0
        %7730 = vmatpush1.bf16.msra.mxu0 0
        %7731 = vmatprep.subr.bf16.mxu0 0
        %7732 = vmatpush1.bf16.msra.mxu0 0
        %7733 = vmatprep.subr.bf16.mxu0 0
        %7734 = vmatpush1.bf16.msra.mxu0 0
        %7735 = vmatprep.subr.bf16.mxu0 0
        %7736 = vmatpush1.bf16.msra.mxu0 0
        %7737 = vmatprep.subr.bf16.mxu0 0
        %7738 = vmatpush1.bf16.msra.mxu0 0
        %7739 = vmatprep.subr.bf16.mxu0 0
        %7740 = vmatpush1.bf16.msra.mxu0 0
        %7741 = vmatprep.subr.bf16.mxu0 0
        %7742 = vmatpush1.bf16.msra.mxu0 0
        %7743 = vmatprep.mubr.bf16.mxu0 0
        %7744 = vmatmul.mubr.bf16.gmra.mrb[0].mxu0 %v7669
        %v7745 = vpop.f32.mrb[0].mxu0
        %v7746 = vadd.f32 %v7705, %v7745
        %v7747 = vpop.f32.mrb[0].mxu0
        %v7748 = vadd.f32 %v7707, %v7747
        %v7749 = vpop.f32.mrb[0].mxu0
        %v7750 = vpop.f32.mrb[0].mxu0
        %7751 = vdwg.mxu0
        %7752 = vmatprep.subr.bf16.mxu0 %v3839
        %7753 = vmatpush1.bf16.msra.mxu0 %v3838
        %7754 = vmatprep.subr.bf16.mxu0 %v3848
        %7755 = vmatpush1.bf16.msra.mxu0 %v3847
        %7756 = vmatprep.subr.bf16.mxu0 %v3857
        %7757 = vmatpush1.bf16.msra.mxu0 %v3856
        %7758 = vmatprep.subr.bf16.mxu0 %v3866
        %7759 = vmatpush1.bf16.msra.mxu0 %v3865
        %7760 = vmatprep.subr.bf16.mxu0 %v3875
        %7761 = vmatpush1.bf16.msra.mxu0 %v3874
        %7762 = vmatprep.subr.bf16.mxu0 %v3884
        %7763 = vmatpush1.bf16.msra.mxu0 %v3883
        %7764 = vmatprep.subr.bf16.mxu0 %v3893
        %7765 = vmatpush1.bf16.msra.mxu0 %v3892
        %7766 = vmatprep.subr.bf16.mxu0 %v3902
        %7767 = vmatpush1.bf16.msra.mxu0 %v3901
        %7768 = vmatprep.subr.bf16.mxu0 %v3911
        %7769 = vmatpush1.bf16.msra.mxu0 %v3910
        %7770 = vmatprep.subr.bf16.mxu0 %v3920
        %7771 = vmatpush1.bf16.msra.mxu0 %v3919
        %7772 = vmatprep.subr.bf16.mxu0 %v3929
        %7773 = vmatpush1.bf16.msra.mxu0 %v3928
        %7774 = vmatprep.subr.bf16.mxu0 %v3938
        %7775 = vmatpush1.bf16.msra.mxu0 %v3937
        %7776 = vmatprep.subr.bf16.mxu0 %v3947
        %7777 = vmatpush1.bf16.msra.mxu0 %v3946
        %7778 = vmatprep.subr.bf16.mxu0 %v3956
        %7779 = vmatpush1.bf16.msra.mxu0 %v3955
        %7780 = vmatprep.subr.bf16.mxu0 %v3965
        %7781 = vmatpush1.bf16.msra.mxu0 %v3964
        %7782 = vmatprep.subr.bf16.mxu0 %v3974
        %7783 = vmatpush1.bf16.msra.mxu0 %v3973
        %7784 = vmatprep.mubr.bf16.mxu0 %v7668
        %7785 = vmatmul.mubr.bf16.gmra.mrb[0].mxu0 %v7667
        %v7786 = vpop.f32.mrb[0].mxu0
        %v7787 = vadd.f32 %v3130, %v7786
        %v7788 = vpop.f32.mrb[0].mxu0
        %v7789 = vadd.f32 %v3134, %v7788
        %v7790 = vpop.f32.mrb[0].mxu0
        %v7791 = vpop.f32.mrb[0].mxu0
        %7792 = vdwg.mxu0
        %7793 = vmatprep.subr.bf16.mxu0 %v3983
        %7794 = vmatpush1.bf16.msra.mxu0 %v3982
        %7795 = vmatprep.subr.bf16.mxu0 %v3992
        %7796 = vmatpush1.bf16.msra.mxu0 %v3991
        %7797 = vmatprep.subr.bf16.mxu0 %v4001
        %7798 = vmatpush1.bf16.msra.mxu0 %v4000
        %7799 = vmatprep.subr.bf16.mxu0 %v4010
        %7800 = vmatpush1.bf16.msra.mxu0 %v4009
        %7801 = vmatprep.subr.bf16.mxu0 %v4019
        %7802 = vmatpush1.bf16.msra.mxu0 %v4018
        %7803 = vmatprep.subr.bf16.mxu0 %v4028
        %7804 = vmatpush1.bf16.msra.mxu0 %v4027
        %7805 = vmatprep.subr.bf16.mxu0 %v4037
        %7806 = vmatpush1.bf16.msra.mxu0 %v4036
        %7807 = vmatprep.subr.bf16.mxu0 %v4046
        %7808 = vmatpush1.bf16.msra.mxu0 %v4045
        %7809 = vmatprep.subr.bf16.mxu0 0
        %7810 = vmatpush1.bf16.msra.mxu0 0
        %7811 = vmatprep.subr.bf16.mxu0 0
        %7812 = vmatpush1.bf16.msra.mxu0 0
        %7813 = vmatprep.subr.bf16.mxu0 0
        %7814 = vmatpush1.bf16.msra.mxu0 0
        %7815 = vmatprep.subr.bf16.mxu0 0
        %7816 = vmatpush1.bf16.msra.mxu0 0
        %7817 = vmatprep.subr.bf16.mxu0 0
        %7818 = vmatpush1.bf16.msra.mxu0 0
        %7819 = vmatprep.subr.bf16.mxu0 0
        %7820 = vmatpush1.bf16.msra.mxu0 0
        %7821 = vmatprep.subr.bf16.mxu0 0
        %7822 = vmatpush1.bf16.msra.mxu0 0
        %7823 = vmatprep.subr.bf16.mxu0 0
        %7824 = vmatpush1.bf16.msra.mxu0 0
        %7825 = vmatprep.mubr.bf16.mxu0 0
        %7826 = vmatmul.mubr.bf16.gmra.mrb[0].mxu0 %v7669
        %v7827 = vpop.f32.mrb[0].mxu0
        %v7828 = vadd.f32 %v7787, %v7827
        %v7829 = vpop.f32.mrb[0].mxu0
        %v7830 = vadd.f32 %v7789, %v7829
        %v7831 = vpop.f32.mrb[0].mxu0
        %v7832 = vpop.f32.mrb[0].mxu0
        %7833 = vdwg.mxu0
        %7834 = vmatprep.subr.bf16.mxu0 %v3841
        %7835 = vmatpush1.bf16.msra.mxu0 %v3840
        %7836 = vmatprep.subr.bf16.mxu0 %v3850
        %7837 = vmatpush1.bf16.msra.mxu0 %v3849
        %7838 = vmatprep.subr.bf16.mxu0 %v3859
        %7839 = vmatpush1.bf16.msra.mxu0 %v3858
        %7840 = vmatprep.subr.bf16.mxu0 %v3868
        %7841 = vmatpush1.bf16.msra.mxu0 %v3867
        %7842 = vmatprep.subr.bf16.mxu0 %v3877
        %7843 = vmatpush1.bf16.msra.mxu0 %v3876
        %7844 = vmatprep.subr.bf16.mxu0 %v3886
        %7845 = vmatpush1.bf16.msra.mxu0 %v3885
        %7846 = vmatprep.subr.bf16.mxu0 %v3895
        %7847 = vmatpush1.bf16.msra.mxu0 %v3894
        %7848 = vmatprep.subr.bf16.mxu0 %v3904
        %7849 = vmatpush1.bf16.msra.mxu0 %v3903
        %7850 = vmatprep.subr.bf16.mxu0 %v3913
        %7851 = vmatpush1.bf16.msra.mxu0 %v3912
        %7852 = vmatprep.subr.bf16.mxu0 %v3922
        %7853 = vmatpush1.bf16.msra.mxu0 %v3921
        %7854 = vmatprep.subr.bf16.mxu0 %v3931
        %7855 = vmatpush1.bf16.msra.mxu0 %v3930
        %7856 = vmatprep.subr.bf16.mxu0 %v3940
        %7857 = vmatpush1.bf16.msra.mxu0 %v3939
        %7858 = vmatprep.subr.bf16.mxu0 %v3949
        %7859 = vmatpush1.bf16.msra.mxu0 %v3948
        %7860 = vmatprep.subr.bf16.mxu0 %v3958
        %7861 = vmatpush1.bf16.msra.mxu0 %v3957
        %7862 = vmatprep.subr.bf16.mxu0 %v3967
        %7863 = vmatpush1.bf16.msra.mxu0 %v3966
        %7864 = vmatprep.subr.bf16.mxu0 %v3976
        %7865 = vmatpush1.bf16.msra.mxu0 %v3975
        %7866 = vmatprep.mubr.bf16.mxu0 %v7668
        %7867 = vmatmul.mubr.bf16.gmra.mrb[0].mxu0 %v7667
        %v7868 = vpop.f32.mrb[0].mxu0
        %v7869 = vadd.f32 %v3138, %v7868
        %v7870 = vpop.f32.mrb[0].mxu0
        %v7871 = vadd.f32 %v3142, %v7870
        %v7872 = vpop.f32.mrb[0].mxu0
        %v7873 = vpop.f32.mrb[0].mxu0
        %7874 = vdwg.mxu0
        %7875 = vmatprep.subr.bf16.mxu0 %v3985
        %7876 = vmatpush1.bf16.msra.mxu0 %v3984
        %7877 = vmatprep.subr.bf16.mxu0 %v3994
        %7878 = vmatpush1.bf16.msra.mxu0 %v3993
        %7879 = vmatprep.subr.bf16.mxu0 %v4003
        %7880 = vmatpush1.bf16.msra.mxu0 %v4002
        %7881 = vmatprep.subr.bf16.mxu0 %v4012
        %7882 = vmatpush1.bf16.msra.mxu0 %v4011
        %7883 = vmatprep.subr.bf16.mxu0 %v4021
        %7884 = vmatpush1.bf16.msra.mxu0 %v4020
        %7885 = vmatprep.subr.bf16.mxu0 %v4030
        %7886 = vmatpush1.bf16.msra.mxu0 %v4029
        %7887 = vmatprep.subr.bf16.mxu0 %v4039
        %7888 = vmatpush1.bf16.msra.mxu0 %v4038
        %7889 = vmatprep.subr.bf16.mxu0 %v4048
        %7890 = vmatpush1.bf16.msra.mxu0 %v4047
        %7891 = vmatprep.subr.bf16.mxu0 0
        %7892 = vmatpush1.bf16.msra.mxu0 0
        %7893 = vmatprep.subr.bf16.mxu0 0
        %7894 = vmatpush1.bf16.msra.mxu0 0
        %7895 = vmatprep.subr.bf16.mxu0 0
        %7896 = vmatpush1.bf16.msra.mxu0 0
        %7897 = vmatprep.subr.bf16.mxu0 0
        %7898 = vmatpush1.bf16.msra.mxu0 0
        %7899 = vmatprep.subr.bf16.mxu0 0
        %7900 = vmatpush1.bf16.msra.mxu0 0
        %7901 = vmatprep.subr.bf16.mxu0 0
        %7902 = vmatpush1.bf16.msra.mxu0 0
        %7903 = vmatprep.subr.bf16.mxu0 0
        %7904 = vmatpush1.bf16.msra.mxu0 0
        %7905 = vmatprep.subr.bf16.mxu0 0
        %7906 = vmatpush1.bf16.msra.mxu0 0
        %7907 = vmatprep.mubr.bf16.mxu0 0
        %7908 = vmatmul.mubr.bf16.gmra.mrb[0].mxu0 %v7669
        %v7909 = vpop.f32.mrb[0].mxu0
        %v7910 = vadd.f32 %v7869, %v7909
        %v7911 = vpop.f32.mrb[0].mxu0
        %v7912 = vadd.f32 %v7871, %v7911
        %v7913 = vpop.f32.mrb[0].mxu0
        %v7914 = vpop.f32.mrb[0].mxu0
        %7915 = vdwg.mxu0
        %7916 = vmatprep.subr.bf16.mxu0 %v3843
        %7917 = vmatpush1.bf16.msra.mxu0 %v3842
        %7918 = vmatprep.subr.bf16.mxu0 %v3852
        %7919 = vmatpush1.bf16.msra.mxu0 %v3851
        %7920 = vmatprep.subr.bf16.mxu0 %v3861
        %7921 = vmatpush1.bf16.msra.mxu0 %v3860
        %7922 = vmatprep.subr.bf16.mxu0 %v3870
        %7923 = vmatpush1.bf16.msra.mxu0 %v3869
        %7924 = vmatprep.subr.bf16.mxu0 %v3879
        %7925 = vmatpush1.bf16.msra.mxu0 %v3878
        %7926 = vmatprep.subr.bf16.mxu0 %v3888
        %7927 = vmatpush1.bf16.msra.mxu0 %v3887
        %7928 = vmatprep.subr.bf16.mxu0 %v3897
        %7929 = vmatpush1.bf16.msra.mxu0 %v3896
        %7930 = vmatprep.subr.bf16.mxu0 %v3906
        %7931 = vmatpush1.bf16.msra.mxu0 %v3905
        %7932 = vmatprep.subr.bf16.mxu0 %v3915
        %7933 = vmatpush1.bf16.msra.mxu0 %v3914
        %7934 = vmatprep.subr.bf16.mxu0 %v3924
        %7935 = vmatpush1.bf16.msra.mxu0 %v3923
        %7936 = vmatprep.subr.bf16.mxu0 %v3933
        %7937 = vmatpush1.bf16.msra.mxu0 %v3932
        %7938 = vmatprep.subr.bf16.mxu0 %v3942
        %7939 = vmatpush1.bf16.msra.mxu0 %v3941
        %7940 = vmatprep.subr.bf16.mxu0 %v3951
        %7941 = vmatpush1.bf16.msra.mxu0 %v3950
        %7942 = vmatprep.subr.bf16.mxu0 %v3960
        %7943 = vmatpush1.bf16.msra.mxu0 %v3959
        %7944 = vmatprep.subr.bf16.mxu0 %v3969
        %7945 = vmatpush1.bf16.msra.mxu0 %v3968
        %7946 = vmatprep.subr.bf16.mxu0 %v3978
        %7947 = vmatpush1.bf16.msra.mxu0 %v3977
        %7948 = vmatprep.mubr.bf16.mxu0 %v7668
        %7949 = vmatmul.mubr.bf16.gmra.mrb[0].mxu0 %v7667
        %v7950 = vpop.f32.mrb[0].mxu0
        %v7951 = vadd.f32 %v3146, %v7950
        %v7952 = vpop.f32.mrb[0].mxu0
        %v7953 = vadd.f32 %v3150, %v7952
        %v7954 = vpop.f32.mrb[0].mxu0
        %v7955 = vpop.f32.mrb[0].mxu0
        %7956 = vdwg.mxu0
        %7957 = vmatprep.subr.bf16.mxu0 %v3987
        %7958 = vmatpush1.bf16.msra.mxu0 %v3986
        %7959 = vmatprep.subr.bf16.mxu0 %v3996
        %7960 = vmatpush1.bf16.msra.mxu0 %v3995
        %7961 = vmatprep.subr.bf16.mxu0 %v4005
        %7962 = vmatpush1.bf16.msra.mxu0 %v4004
        %7963 = vmatprep.subr.bf16.mxu0 %v4014
        %7964 = vmatpush1.bf16.msra.mxu0 %v4013
        %7965 = vmatprep.subr.bf16.mxu0 %v4023
        %7966 = vmatpush1.bf16.msra.mxu0 %v4022
        %7967 = vmatprep.subr.bf16.mxu0 %v4032
        %7968 = vmatpush1.bf16.msra.mxu0 %v4031
        %7969 = vmatprep.subr.bf16.mxu0 %v4041
        %7970 = vmatpush1.bf16.msra.mxu0 %v4040
        %7971 = vmatprep.subr.bf16.mxu0 %v4050
        %7972 = vmatpush1.bf16.msra.mxu0 %v4049
        %7973 = vmatprep.subr.bf16.mxu0 0
        %7974 = vmatpush1.bf16.msra.mxu0 0
        %7975 = vmatprep.subr.bf16.mxu0 0
        %7976 = vmatpush1.bf16.msra.mxu0 0
        %7977 = vmatprep.subr.bf16.mxu0 0
        %7978 = vmatpush1.bf16.msra.mxu0 0
        %7979 = vmatprep.subr.bf16.mxu0 0
        %7980 = vmatpush1.bf16.msra.mxu0 0
        %7981 = vmatprep.subr.bf16.mxu0 0
        %7982 = vmatpush1.bf16.msra.mxu0 0
        %7983 = vmatprep.subr.bf16.mxu0 0
        %7984 = vmatpush1.bf16.msra.mxu0 0
        %7985 = vmatprep.subr.bf16.mxu0 0
        %7986 = vmatpush1.bf16.msra.mxu0 0
        %7987 = vmatprep.subr.bf16.mxu0 0
        %7988 = vmatpush1.bf16.msra.mxu0 0
        %7989 = vmatprep.mubr.bf16.mxu0 0
        %7990 = vmatmul.mubr.bf16.gmra.mrb[0].mxu0 %v7669
        %v7991 = vpop.f32.mrb[0].mxu0
        %v7992 = vadd.f32 %v7951, %v7991
        %v7993 = vpop.f32.mrb[0].mxu0
        %v7994 = vadd.f32 %v7953, %v7993
        %v7995 = vpop.f32.mrb[0].mxu0
        %v7996 = vpop.f32.mrb[0].mxu0
        %7997 = vdwg.mxu0
        %7998 = vmatprep.subr.bf16.mxu0 0
        %7999 = vmatpush1.bf16.msra.mxu0 %v3844
        %8000 = vmatprep.subr.bf16.mxu0 0
        %8001 = vmatpush1.bf16.msra.mxu0 %v3853
        %8002 = vmatprep.subr.bf16.mxu0 0
        %8003 = vmatpush1.bf16.msra.mxu0 %v3862
        %8004 = vmatprep.subr.bf16.mxu0 0
        %8005 = vmatpush1.bf16.msra.mxu0 %v3871
        %8006 = vmatprep.subr.bf16.mxu0 0
        %8007 = vmatpush1.bf16.msra.mxu0 %v3880
        %8008 = vmatprep.subr.bf16.mxu0 0
        %8009 = vmatpush1.bf16.msra.mxu0 %v3889
        %8010 = vmatprep.subr.bf16.mxu0 0
        %8011 = vmatpush1.bf16.msra.mxu0 %v3898
        %8012 = vmatprep.subr.bf16.mxu0 0
        %8013 = vmatpush1.bf16.msra.mxu0 %v3907
        %8014 = vmatprep.subr.bf16.mxu0 0
        %8015 = vmatpush1.bf16.msra.mxu0 %v3916
        %8016 = vmatprep.subr.bf16.mxu0 0
        %8017 = vmatpush1.bf16.msra.mxu0 %v3925
        %8018 = vmatprep.subr.bf16.mxu0 0
        %8019 = vmatpush1.bf16.msra.mxu0 %v3934
        %8020 = vmatprep.subr.bf16.mxu0 0
        %8021 = vmatpush1.bf16.msra.mxu0 %v3943
        %8022 = vmatprep.subr.bf16.mxu0 0
        %8023 = vmatpush1.bf16.msra.mxu0 %v3952
        %8024 = vmatprep.subr.bf16.mxu0 0
        %8025 = vmatpush1.bf16.msra.mxu0 %v3961
        %8026 = vmatprep.subr.bf16.mxu0 0
        %8027 = vmatpush1.bf16.msra.mxu0 %v3970
        %8028 = vmatprep.subr.bf16.mxu0 0
        %8029 = vmatpush1.bf16.msra.mxu0 %v3979
        %8030 = vmatprep.mubr.bf16.mxu0 %v7668
        %8031 = vmatmul.mubr.bf16.gmra.mrb[0].mxu0 %v7667
        %v8032 = vpop.f32.mrb[0].mxu0
        %v8033 = vadd.f32 %v3154, %v8032
        %v8034 = vpop.f32.mrb[0].mxu0
        %v8035 = vpop.f32.mrb[0].mxu0
        %v8036 = vpop.f32.mrb[0].mxu0
        %8037 = vdwg.mxu0
        %8038 = vmatprep.subr.bf16.mxu0 0
        %8039 = vmatpush1.bf16.msra.mxu0 %v3988
        %8040 = vmatprep.subr.bf16.mxu0 0
        %8041 = vmatpush1.bf16.msra.mxu0 %v3997
        %8042 = vmatprep.subr.bf16.mxu0 0
        %8043 = vmatpush1.bf16.msra.mxu0 %v4006
        %8044 = vmatprep.subr.bf16.mxu0 0
        %8045 = vmatpush1.bf16.msra.mxu0 %v4015
        %8046 = vmatprep.subr.bf16.mxu0 0
        %8047 = vmatpush1.bf16.msra.mxu0 %v4024
        %8048 = vmatprep.subr.bf16.mxu0 0
        %8049 = vmatpush1.bf16.msra.mxu0 %v4033
        %8050 = vmatprep.subr.bf16.mxu0 0
        %8051 = vmatpush1.bf16.msra.mxu0 %v4042
        %8052 = vmatprep.subr.bf16.mxu0 0
        %8053 = vmatpush1.bf16.msra.mxu0 %v4051
        %8054 = vmatprep.subr.bf16.mxu0 0
        %8055 = vmatpush1.bf16.msra.mxu0 0
        %8056 = vmatprep.subr.bf16.mxu0 0
        %8057 = vmatpush1.bf16.msra.mxu0 0
        %8058 = vmatprep.subr.bf16.mxu0 0
        %8059 = vmatpush1.bf16.msra.mxu0 0
        %8060 = vmatprep.subr.bf16.mxu0 0
        %8061 = vmatpush1.bf16.msra.mxu0 0
        %8062 = vmatprep.subr.bf16.mxu0 0
        %8063 = vmatpush1.bf16.msra.mxu0 0
        %8064 = vmatprep.subr.bf16.mxu0 0
        %8065 = vmatpush1.bf16.msra.mxu0 0
        %8066 = vmatprep.subr.bf16.mxu0 0
        %8067 = vmatpush1.bf16.msra.mxu0 0
        %8068 = vmatprep.subr.bf16.mxu0 0
        %8069 = vmatpush1.bf16.msra.mxu0 0
        %8070 = vmatprep.mubr.bf16.mxu0 0
        %8071 = vmatmul.mubr.bf16.gmra.mrb[0].mxu0 %v7669
        %v8072 = vpop.f32.mrb[0].mxu0
        %v8073 = vadd.f32 %v8033, %v8072
        %v8074 = vpop.f32.mrb[0].mxu0
        %v8075 = vpop.f32.mrb[0].mxu0
        %v8076 = vpop.f32.mrb[0].mxu0
        %8077 = vdwg.mxu0
        %v8078 = vadd.f32 %v7658, %v7746
        %v8079 = vadd.f32 %v7659, %v7748
        %v8080 = vadd.f32 %v7660, %v7828
        %v8081 = vxor.u32 %v8078, 2147483648
        %v8082 = vxor.u32 %v8079, 2147483648
        %v8083 = vxor.u32 %v8080, 2147483648
        %v8084 = vmul.f32 %v8081, 1.442695
        %v8085 = vpow.pop %v8084
        %v8086 = vmul.f32 %v8082, 1.442695
        %v8087 = vpow.pop %v8086
        %v8088 = vmul.f32 %v8083, 1.442695
        %v8089 = vpow.pop %v8088
        %v8090 = vadd.f32 %v8085, 1.0
        %v8091 = vadd.f32 %v8087, 1.0
        %v8092 = vadd.f32 %v8089, 1.0
        %v8093 = vrcp.pop %v8090
        %v8094 = vmul.f32 1.0, %v8093
        %v8095 = vrcp.pop %v8091
        %v8096 = vmul.f32 1.0, %v8095
        %v8097 = vrcp.pop %v8092
        %v8098 = vmul.f32 1.0, %v8097
        %v8099 = vadd.f32 %v7661, %v7830
        %v8100 = vadd.f32 %v7662, %v7910
        %v8101 = vadd.f32 %v7663, %v7912
        %v8102 = vxor.u32 %v8099, 2147483648
        %v8103 = vxor.u32 %v8100, 2147483648
        %v8104 = vxor.u32 %v8101, 2147483648
        %v8105 = vmul.f32 %v8102, 1.442695
        %v8106 = vpow.pop %v8105
        %v8107 = vmul.f32 %v8103, 1.442695
        %v8108 = vpow.pop %v8107
        %v8109 = vmul.f32 %v8104, 1.442695
        %v8110 = vpow.pop %v8109
        %v8111 = vadd.f32 %v8106, 1.0
        %v8112 = vadd.f32 %v8108, 1.0
        %v8113 = vadd.f32 %v8110, 1.0
        %v8114 = vrcp.pop %v8111
        %v8115 = vmul.f32 1.0, %v8114
        %v8116 = vrcp.pop %v8112
        %v8117 = vmul.f32 1.0, %v8116
        %v8118 = vrcp.pop %v8113
        %v8119 = vmul.f32 1.0, %v8118
        %v8120 = vmul.f32 %v8094, %v7992
        %v8121 = vmul.f32 %v8096, %v7994
        %v8122 = vmul.f32 %v8098, %v8073
        %v8123 = vadd.f32 %v7664, %v8120
        %v8124 = vadd.f32 %v7665, %v8121
        %v8125 = vadd.f32 %v7666, %v8122
        %v8126 = vtanh.pop %v8123
        %v8127 = vtanh.pop %v8124
        %v8128 = vtanh.pop %v8125
        %v8129 = vsub.f32 1.0, %v8115
        %v8130 = vsub.f32 1.0, %v8117
        %v8131 = vsub.f32 1.0, %v8119
        %v8132 = vmul.f32 %v8129, %v8126
        %v8133 = vmul.f32 %v8130, %v8127
        %v8134 = vmul.f32 %v8131, %v8128
        %v8135 = vmul.f32 %v8115, %v7652
        %v8136 = vmul.f32 %v8117, %v7653
        %v8137 = vmul.f32 %v8119, %v7654
        %v8138 = vadd.f32 %v8132, %v8135
        %v8139 = vadd.f32 %v8133, %v8136
        %v8140 = vadd.f32 %v8134, %v8137
        %8141 = vst [vmem:[#allocation3 + $0xa8] sm:$0xff] %v8138
        %8142 = vst [vmem:[#allocation3 + $0xb0] sm:$0xff] %v8139
        %8143 = vst [vmem:[#allocation3 + $0xb8] sm:$0xff] %v8140
        %8144 = vst [vmem:[%s591] sm:$0xff] %v8138
        %8145 = vst [vmem:[%s591 + $0x8] sm:$0xff] %v8139
        %8146 = vst [vmem:[%s591 + $0x10] sm:$0xff] %v8140
        %p8147 = scmp.eq.s32.totalorder %s34, 2
        // Predicated region
        $region97: #{rnn_spp_contain_rever_forward.1} parent=59 // pred_check
          %p8148 = pneg %p8147
        $region98: #{rnn_spp_contain_rever_forward.1} parent=59 // pred_check_branch
          %8150 = sbr.rel (%p8148) target = $region100
        $region99: #{rnn_spp_contain_rever_forward.1} parent=59 // pred_region
          %v8151 = vld [vmem:[#allocation3] sm:$0xff]
          %v8152 = vld [vmem:[#allocation3 + $0x8] sm:$0xff]
          %v8153 = vld [vmem:[#allocation3 + $0x10] sm:$0xff]
          %v8154 = vld [vmem:[#allocation3 + $0x18] sm:$0xff]
          %v8155 = vld [vmem:[#allocation3 + $0x20] sm:$0xff]
          %v8156 = vld [vmem:[#allocation3 + $0x28] sm:$0xff]
          %v8157 = vld [vmem:[#allocation3 + $0x30] sm:$0xff]
          %v8158 = vld [vmem:[#allocation3 + $0x38] sm:$0xff]
          %v8159 = vld [vmem:[#allocation3 + $0x40] sm:$0xff]
          %v8160 = vld [vmem:[#allocation3 + $0x48] sm:$0xff]
          %v8161 = vld [vmem:[#allocation3 + $0x50] sm:$0xff]
          %v8162 = vld [vmem:[#allocation3 + $0x58] sm:$0xff]
          %v8163 = vld [vmem:[#allocation3 + $0x60] sm:$0xff]
          %v8164 = vld [vmem:[#allocation3 + $0x68] sm:$0xff]
          %v8165 = vld [vmem:[#allocation3 + $0x70] sm:$0xff]
          %v8166 = vld [vmem:[#allocation3 + $0x78] sm:$0xff]
          %v8167 = vld [vmem:[#allocation3 + $0x80] sm:$0xff]
          %v8168 = vld [vmem:[#allocation3 + $0x88] sm:$0xff]
          %v8169 = vld [vmem:[#allocation3 + $0x90] sm:$0xff]
          %v8170 = vld [vmem:[#allocation3 + $0x98] sm:$0xff]
          %v8171 = vld [vmem:[#allocation3 + $0xa0] sm:$0xff]
          %v8172 = vld [vmem:[#allocation3 + $0xa8] sm:$0xff]
          %v8173 = vld [vmem:[#allocation3 + $0xb0] sm:$0xff]
          %v8174 = vld [vmem:[#allocation3 + $0xb8] sm:$0xff]
          %v8175 = vpack.c.bf16 %v8154, %v8151
          %v8176 = vpack.c.bf16 %v8155, %v8152
          %v8177 = vpack.c.bf16 %v8156, %v8153
          %v8178 = vpack.c.bf16 %v8160, %v8157
          %v8179 = vpack.c.bf16 %v8161, %v8158
          %v8180 = vpack.c.bf16 %v8162, %v8159
          %v8181 = vpack.c.bf16 %v8166, %v8163
          %v8182 = vpack.c.bf16 %v8167, %v8164
          %v8183 = vpack.c.bf16 %v8168, %v8165
          %v8184 = vpack.c.bf16 %v8172, %v8169
          %v8185 = vpack.c.bf16 %v8173, %v8170
          %v8186 = vpack.c.bf16 %v8174, %v8171
          %v8187 = vld [vmem:[#allocation11] sm:$0xff]
          %v8188 = vld [vmem:[#allocation11 + $0x8] sm:$0xf]
          %v8189 = vld [vmem:[#allocation11 + $0xc] sm:$0xff]
          %v8190 = vld [vmem:[#allocation11 + $0x14] sm:$0xf]
          %v8191 = vld [vmem:[#allocation11 + $0x18] sm:$0xff]
          %v8192 = vld [vmem:[#allocation11 + $0x20] sm:$0xf]
          %v8193 = vld [vmem:[#allocation11 + $0x24] sm:$0xff]
          %v8194 = vld [vmem:[#allocation11 + $0x2c] sm:$0xf]
          %v8195 = vld [vmem:[#allocation11 + $0x30] sm:$0xff]
          %v8196 = vld [vmem:[#allocation11 + $0x38] sm:$0xf]
          %v8197 = vld [vmem:[#allocation11 + $0x3c] sm:$0xff]
          %v8198 = vld [vmem:[#allocation11 + $0x44] sm:$0xf]
          %v8199 = vld [vmem:[#allocation11 + $0x48] sm:$0xff]
          %v8200 = vld [vmem:[#allocation11 + $0x50] sm:$0xf]
          %v8201 = vld [vmem:[#allocation11 + $0x54] sm:$0xff]
          %v8202 = vld [vmem:[#allocation11 + $0x5c] sm:$0xf]
          %v8203 = vld [vmem:[#allocation11 + $0x60] sm:$0xff]
          %v8204 = vld [vmem:[#allocation11 + $0x68] sm:$0xf]
          %v8205 = vld [vmem:[#allocation11 + $0x6c] sm:$0xff]
          %v8206 = vld [vmem:[#allocation11 + $0x74] sm:$0xf]
          %v8207 = vld [vmem:[#allocation11 + $0x78] sm:$0xff]
          %v8208 = vld [vmem:[#allocation11 + $0x80] sm:$0xf]
          %v8209 = vld [vmem:[#allocation11 + $0x84] sm:$0xff]
          %v8210 = vld [vmem:[#allocation11 + $0x8c] sm:$0xf]
          %v8211 = vld [vmem:[#allocation11 + $0x90] sm:$0xff]
          %v8212 = vld [vmem:[#allocation11 + $0x98] sm:$0xf]
          %v8213 = vld [vmem:[#allocation11 + $0x9c] sm:$0xff]
          %v8214 = vld [vmem:[#allocation11 + $0xa4] sm:$0xf]
          %v8215 = vld [vmem:[#allocation11 + $0xa8] sm:$0xff]
          %v8216 = vld [vmem:[#allocation11 + $0xb0] sm:$0xf]
          %v8217 = vld [vmem:[#allocation11 + $0xb4] sm:$0xff]
          %v8218 = vld [vmem:[#allocation11 + $0xbc] sm:$0xf]
          %v8219 = vld [vmem:[#allocation11 + $0xc0] sm:$0xff]
          %v8220 = vld [vmem:[#allocation11 + $0xc8] sm:$0xf]
          %v8221 = vld [vmem:[#allocation11 + $0xcc] sm:$0xff]
          %v8222 = vld [vmem:[#allocation11 + $0xd4] sm:$0xf]
          %v8223 = vld [vmem:[#allocation11 + $0xd8] sm:$0xff]
          %v8224 = vld [vmem:[#allocation11 + $0xe0] sm:$0xf]
          %v8225 = vld [vmem:[#allocation11 + $0xe4] sm:$0xff]
          %v8226 = vld [vmem:[#allocation11 + $0xec] sm:$0xf]
          %v8227 = vld [vmem:[#allocation11 + $0xf0] sm:$0xff]
          %v8228 = vld [vmem:[#allocation11 + $0xf8] sm:$0xf]
          %v8229 = vld [vmem:[#allocation11 + $0xfc] sm:$0xff]
          %v8230 = vld [vmem:[#allocation11 + $0x104] sm:$0xf]
          %v8231 = vld [vmem:[#allocation11 + $0x108] sm:$0xff]
          %v8232 = vld [vmem:[#allocation11 + $0x110] sm:$0xf]
          %v8233 = vld [vmem:[#allocation11 + $0x114] sm:$0xff]
          %v8234 = vld [vmem:[#allocation11 + $0x11c] sm:$0xf]
          %v8235 = vld [vmem:[#allocation11 + $0x120] sm:$0xff]
          %v8236 = vld [vmem:[#allocation11 + $0x128] sm:$0xf]
          %v8237 = vld [vmem:[#allocation11 + $0x12c] sm:$0xff]
          %v8238 = vld [vmem:[#allocation11 + $0x134] sm:$0xf]
          %v8239 = vld [vmem:[#allocation11 + $0x138] sm:$0xff]
          %v8240 = vld [vmem:[#allocation11 + $0x140] sm:$0xf]
          %v8241 = vld [vmem:[#allocation11 + $0x144] sm:$0xff]
          %v8242 = vld [vmem:[#allocation11 + $0x14c] sm:$0xf]
          %v8243 = vld [vmem:[#allocation11 + $0x150] sm:$0xff]
          %v8244 = vld [vmem:[#allocation11 + $0x158] sm:$0xf]
          %v8245 = vld [vmem:[#allocation11 + $0x15c] sm:$0xff]
          %v8246 = vld [vmem:[#allocation11 + $0x164] sm:$0xf]
          %v8247 = vld [vmem:[#allocation11 + $0x168] sm:$0xff]
          %v8248 = vld [vmem:[#allocation11 + $0x170] sm:$0xf]
          %v8249 = vld [vmem:[#allocation11 + $0x174] sm:$0xff]
          %v8250 = vld [vmem:[#allocation11 + $0x17c] sm:$0xf]
          %v8251 = vld [vmem:[#allocation11 + $0x180] sm:$0xff]
          %v8252 = vld [vmem:[#allocation11 + $0x188] sm:$0xf]
          %v8253 = vld [vmem:[#allocation11 + $0x18c] sm:$0xff]
          %v8254 = vld [vmem:[#allocation11 + $0x194] sm:$0xf]
          %v8255 = vld [vmem:[#allocation11 + $0x198] sm:$0xff]
          %v8256 = vld [vmem:[#allocation11 + $0x1a0] sm:$0xf]
          %v8257 = vld [vmem:[#allocation11 + $0x1a4] sm:$0xff]
          %v8258 = vld [vmem:[#allocation11 + $0x1ac] sm:$0xf]
          %v8259 = vld [vmem:[#allocation11 + $0x1b0] sm:$0xff]
          %v8260 = vld [vmem:[#allocation11 + $0x1b8] sm:$0xf]
          %v8261 = vld [vmem:[#allocation11 + $0x1bc] sm:$0xff]
          %v8262 = vld [vmem:[#allocation11 + $0x1c4] sm:$0xf]
          %v8263 = vld [vmem:[#allocation11 + $0x1c8] sm:$0xff]
          %v8264 = vld [vmem:[#allocation11 + $0x1d0] sm:$0xf]
          %v8265 = vld [vmem:[#allocation11 + $0x1d4] sm:$0xff]
          %v8266 = vld [vmem:[#allocation11 + $0x1dc] sm:$0xf]
          %v8267 = vld [vmem:[#allocation11 + $0x1e0] sm:$0xff]
          %v8268 = vld [vmem:[#allocation11 + $0x1e8] sm:$0xf]
          %v8269 = vld [vmem:[#allocation11 + $0x1ec] sm:$0xff]
          %v8270 = vld [vmem:[#allocation11 + $0x1f4] sm:$0xf]
          %v8271 = vld [vmem:[#allocation11 + $0x1f8] sm:$0xff]
          %v8272 = vld [vmem:[#allocation11 + $0x200] sm:$0xf]
          %v8273 = vld [vmem:[#allocation11 + $0x204] sm:$0xff]
          %v8274 = vld [vmem:[#allocation11 + $0x20c] sm:$0xf]
          %v8275 = vld [vmem:[#allocation11 + $0x210] sm:$0xff]
          %v8276 = vld [vmem:[#allocation11 + $0x218] sm:$0xf]
          %v8277 = vld [vmem:[#allocation11 + $0x21c] sm:$0xff]
          %v8278 = vld [vmem:[#allocation11 + $0x224] sm:$0xf]
          %v8279 = vld [vmem:[#allocation11 + $0x228] sm:$0xff]
          %v8280 = vld [vmem:[#allocation11 + $0x230] sm:$0xf]
          %v8281 = vld [vmem:[#allocation11 + $0x234] sm:$0xff]
          %v8282 = vld [vmem:[#allocation11 + $0x23c] sm:$0xf]
          %v8283 = vld [vmem:[#allocation12] sm:$0x7]
          %v8285 = vlaneseq
          %v8286 = vshrl.u32 %v8285, 7
          %v8287 = vsub.s32 0, %v8286
          %v8288 = vrot.slane %v8283, %v8287
          %v8289 = vlaneseq
          %v8290 = vshrl.u32 %v8289, 7
          %v8291 = vsub.s32 1, %v8290
          %v8292 = vrot.slane %v8283, %v8291
          %v8293 = vlaneseq
          %v8294 = vshrl.u32 %v8293, 7
          %v8295 = vsub.s32 2, %v8294
          %v8296 = vrot.slane %v8283, %v8295
          %v8396 = vunpack.c.l.b16 %v8187
          %v8397 = vunpack.c.h.b16 %v8187
          %v8398 = vunpack.c.l.b16 %v8188
          %v8399 = vunpack.c.l.b16 %v8189
          %v8400 = vunpack.c.h.b16 %v8189
          %v8401 = vunpack.c.l.b16 %v8190
          %v8402 = vunpack.c.l.b16 %v8191
          %v8403 = vunpack.c.h.b16 %v8191
          %v8404 = vunpack.c.l.b16 %v8192
          %v8405 = vunpack.c.l.b16 %v8193
          %v8406 = vunpack.c.h.b16 %v8193
          %v8407 = vunpack.c.l.b16 %v8194
          %v8408 = vunpack.c.l.b16 %v8195
          %v8409 = vunpack.c.h.b16 %v8195
          %v8410 = vunpack.c.l.b16 %v8196
          %v8411 = vunpack.c.l.b16 %v8197
          %v8412 = vunpack.c.h.b16 %v8197
          %v8413 = vunpack.c.l.b16 %v8198
          %v8414 = vunpack.c.l.b16 %v8199
          %v8415 = vunpack.c.h.b16 %v8199
          %v8416 = vunpack.c.l.b16 %v8200
          %v8417 = vunpack.c.l.b16 %v8201
          %v8418 = vunpack.c.h.b16 %v8201
          %v8419 = vunpack.c.l.b16 %v8202
          %v8420 = vunpack.c.l.b16 %v8203
          %v8421 = vunpack.c.h.b16 %v8203
          %v8422 = vunpack.c.l.b16 %v8204
          %v8423 = vunpack.c.l.b16 %v8205
          %v8424 = vunpack.c.h.b16 %v8205
          %v8425 = vunpack.c.l.b16 %v8206
          %v8426 = vunpack.c.l.b16 %v8207
          %v8427 = vunpack.c.h.b16 %v8207
          %v8428 = vunpack.c.l.b16 %v8208
          %v8429 = vunpack.c.l.b16 %v8209
          %v8430 = vunpack.c.h.b16 %v8209
          %v8431 = vunpack.c.l.b16 %v8210
          %v8432 = vunpack.c.l.b16 %v8211
          %v8433 = vunpack.c.h.b16 %v8211
          %v8434 = vunpack.c.l.b16 %v8212
          %v8435 = vunpack.c.l.b16 %v8213
          %v8436 = vunpack.c.h.b16 %v8213
          %v8437 = vunpack.c.l.b16 %v8214
          %v8438 = vunpack.c.l.b16 %v8215
          %v8439 = vunpack.c.h.b16 %v8215
          %v8440 = vunpack.c.l.b16 %v8216
          %v8441 = vunpack.c.l.b16 %v8217
          %v8442 = vunpack.c.h.b16 %v8217
          %v8443 = vunpack.c.l.b16 %v8218
          %v8444 = vunpack.c.l.b16 %v8219
          %v8445 = vunpack.c.h.b16 %v8219
          %v8446 = vunpack.c.l.b16 %v8220
          %v8447 = vunpack.c.l.b16 %v8221
          %v8448 = vunpack.c.h.b16 %v8221
          %v8449 = vunpack.c.l.b16 %v8222
          %v8450 = vunpack.c.l.b16 %v8223
          %v8451 = vunpack.c.h.b16 %v8223
          %v8452 = vunpack.c.l.b16 %v8224
          %v8453 = vunpack.c.l.b16 %v8225
          %v8454 = vunpack.c.h.b16 %v8225
          %v8455 = vunpack.c.l.b16 %v8226
          %v8456 = vunpack.c.l.b16 %v8227
          %v8457 = vunpack.c.h.b16 %v8227
          %v8458 = vunpack.c.l.b16 %v8228
          %v8459 = vunpack.c.l.b16 %v8229
          %v8460 = vunpack.c.h.b16 %v8229
          %v8461 = vunpack.c.l.b16 %v8230
          %v8462 = vunpack.c.l.b16 %v8231
          %v8463 = vunpack.c.h.b16 %v8231
          %v8464 = vunpack.c.l.b16 %v8232
          %v8465 = vunpack.c.l.b16 %v8233
          %v8466 = vunpack.c.h.b16 %v8233
          %v8467 = vunpack.c.l.b16 %v8234
          %v8468 = vunpack.c.l.b16 %v8235
          %v8469 = vunpack.c.h.b16 %v8235
          %v8470 = vunpack.c.l.b16 %v8236
          %v8471 = vunpack.c.l.b16 %v8237
          %v8472 = vunpack.c.h.b16 %v8237
          %v8473 = vunpack.c.l.b16 %v8238
          %v8474 = vunpack.c.l.b16 %v8239
          %v8475 = vunpack.c.h.b16 %v8239
          %v8476 = vunpack.c.l.b16 %v8240
          %v8477 = vunpack.c.l.b16 %v8241
          %v8478 = vunpack.c.h.b16 %v8241
          %v8479 = vunpack.c.l.b16 %v8242
          %v8480 = vunpack.c.l.b16 %v8243
          %v8481 = vunpack.c.h.b16 %v8243
          %v8482 = vunpack.c.l.b16 %v8244
          %v8483 = vunpack.c.l.b16 %v8245
          %v8484 = vunpack.c.h.b16 %v8245
          %v8485 = vunpack.c.l.b16 %v8246
          %v8486 = vunpack.c.l.b16 %v8247
          %v8487 = vunpack.c.h.b16 %v8247
          %v8488 = vunpack.c.l.b16 %v8248
          %v8489 = vunpack.c.l.b16 %v8249
          %v8490 = vunpack.c.h.b16 %v8249
          %v8491 = vunpack.c.l.b16 %v8250
          %v8492 = vunpack.c.l.b16 %v8251
          %v8493 = vunpack.c.h.b16 %v8251
          %v8494 = vunpack.c.l.b16 %v8252
          %v8495 = vunpack.c.l.b16 %v8253
          %v8496 = vunpack.c.h.b16 %v8253
          %v8497 = vunpack.c.l.b16 %v8254
          %v8498 = vunpack.c.l.b16 %v8255
          %v8499 = vunpack.c.h.b16 %v8255
          %v8500 = vunpack.c.l.b16 %v8256
          %v8501 = vunpack.c.l.b16 %v8257
          %v8502 = vunpack.c.h.b16 %v8257
          %v8503 = vunpack.c.l.b16 %v8258
          %v8504 = vunpack.c.l.b16 %v8259
          %v8505 = vunpack.c.h.b16 %v8259
          %v8506 = vunpack.c.l.b16 %v8260
          %v8507 = vunpack.c.l.b16 %v8261
          %v8508 = vunpack.c.h.b16 %v8261
          %v8509 = vunpack.c.l.b16 %v8262
          %v8510 = vunpack.c.l.b16 %v8263
          %v8511 = vunpack.c.h.b16 %v8263
          %v8512 = vunpack.c.l.b16 %v8264
          %v8513 = vunpack.c.l.b16 %v8265
          %v8514 = vunpack.c.h.b16 %v8265
          %v8515 = vunpack.c.l.b16 %v8266
          %v8516 = vunpack.c.l.b16 %v8267
          %v8517 = vunpack.c.h.b16 %v8267
          %v8518 = vunpack.c.l.b16 %v8268
          %v8519 = vunpack.c.l.b16 %v8269
          %v8520 = vunpack.c.h.b16 %v8269
          %v8521 = vunpack.c.l.b16 %v8270
          %v8522 = vunpack.c.l.b16 %v8271
          %v8523 = vunpack.c.h.b16 %v8271
          %v8524 = vunpack.c.l.b16 %v8272
          %v8525 = vunpack.c.l.b16 %v8273
          %v8526 = vunpack.c.h.b16 %v8273
          %v8527 = vunpack.c.l.b16 %v8274
          %v8528 = vunpack.c.l.b16 %v8275
          %v8529 = vunpack.c.h.b16 %v8275
          %v8530 = vunpack.c.l.b16 %v8276
          %v8531 = vunpack.c.l.b16 %v8277
          %v8532 = vunpack.c.h.b16 %v8277
          %v8533 = vunpack.c.l.b16 %v8278
          %v8534 = vunpack.c.l.b16 %v8279
          %v8535 = vunpack.c.h.b16 %v8279
          %v8536 = vunpack.c.l.b16 %v8280
          %v8537 = vunpack.c.l.b16 %v8281
          %v8538 = vunpack.c.h.b16 %v8281
          %v8539 = vunpack.c.l.b16 %v8282
          %v8540 = vpack.c.b16 %v8399, %v8396
          %v8541 = vpack.c.b16 %v8400, %v8397
          %v8542 = vpack.c.b16 %v8401, %v8398
          %v8543 = vpack.c.b16 %v8405, %v8402
          %v8544 = vpack.c.b16 %v8406, %v8403
          %v8545 = vpack.c.b16 %v8407, %v8404
          %v8546 = vpack.c.b16 %v8411, %v8408
          %v8547 = vpack.c.b16 %v8412, %v8409
          %v8548 = vpack.c.b16 %v8413, %v8410
          %v8549 = vpack.c.b16 %v8417, %v8414
          %v8550 = vpack.c.b16 %v8418, %v8415
          %v8551 = vpack.c.b16 %v8419, %v8416
          %v8552 = vpack.c.b16 %v8423, %v8420
          %v8553 = vpack.c.b16 %v8424, %v8421
          %v8554 = vpack.c.b16 %v8425, %v8422
          %v8555 = vpack.c.b16 %v8429, %v8426
          %v8556 = vpack.c.b16 %v8430, %v8427
          %v8557 = vpack.c.b16 %v8431, %v8428
          %v8558 = vpack.c.b16 %v8435, %v8432
          %v8559 = vpack.c.b16 %v8436, %v8433
          %v8560 = vpack.c.b16 %v8437, %v8434
          %v8561 = vpack.c.b16 %v8441, %v8438
          %v8562 = vpack.c.b16 %v8442, %v8439
          %v8563 = vpack.c.b16 %v8443, %v8440
          %v8564 = vpack.c.b16 %v8447, %v8444
          %v8565 = vpack.c.b16 %v8448, %v8445
          %v8566 = vpack.c.b16 %v8449, %v8446
          %v8567 = vpack.c.b16 %v8453, %v8450
          %v8568 = vpack.c.b16 %v8454, %v8451
          %v8569 = vpack.c.b16 %v8455, %v8452
          %v8570 = vpack.c.b16 %v8459, %v8456
          %v8571 = vpack.c.b16 %v8460, %v8457
          %v8572 = vpack.c.b16 %v8461, %v8458
          %v8573 = vpack.c.b16 %v8465, %v8462
          %v8574 = vpack.c.b16 %v8466, %v8463
          %v8575 = vpack.c.b16 %v8467, %v8464
          %v8576 = vpack.c.b16 %v8471, %v8468
          %v8577 = vpack.c.b16 %v8472, %v8469
          %v8578 = vpack.c.b16 %v8473, %v8470
          %v8579 = vpack.c.b16 %v8477, %v8474
          %v8580 = vpack.c.b16 %v8478, %v8475
          %v8581 = vpack.c.b16 %v8479, %v8476
          %v8582 = vpack.c.b16 %v8483, %v8480
          %v8583 = vpack.c.b16 %v8484, %v8481
          %v8584 = vpack.c.b16 %v8485, %v8482
          %v8585 = vpack.c.b16 %v8489, %v8486
          %v8586 = vpack.c.b16 %v8490, %v8487
          %v8587 = vpack.c.b16 %v8491, %v8488
          %v8588 = vpack.c.b16 %v8495, %v8492
          %v8589 = vpack.c.b16 %v8496, %v8493
          %v8590 = vpack.c.b16 %v8497, %v8494
          %v8591 = vpack.c.b16 %v8501, %v8498
          %v8592 = vpack.c.b16 %v8502, %v8499
          %v8593 = vpack.c.b16 %v8503, %v8500
          %v8594 = vpack.c.b16 %v8507, %v8504
          %v8595 = vpack.c.b16 %v8508, %v8505
          %v8596 = vpack.c.b16 %v8509, %v8506
          %v8597 = vpack.c.b16 %v8513, %v8510
          %v8598 = vpack.c.b16 %v8514, %v8511
          %v8599 = vpack.c.b16 %v8515, %v8512
          %v8600 = vpack.c.b16 %v8519, %v8516
          %v8601 = vpack.c.b16 %v8520, %v8517
          %v8602 = vpack.c.b16 %v8521, %v8518
          %v8603 = vpack.c.b16 %v8525, %v8522
          %v8604 = vpack.c.b16 %v8526, %v8523
          %v8605 = vpack.c.b16 %v8527, %v8524
          %v8606 = vpack.c.b16 %v8531, %v8528
          %v8607 = vpack.c.b16 %v8532, %v8529
          %v8608 = vpack.c.b16 %v8533, %v8530
          %v8609 = vpack.c.b16 %v8537, %v8534
          %v8610 = vpack.c.b16 %v8538, %v8535
          %v8611 = vpack.c.b16 %v8539, %v8536
          %8684 = vmatprep.subr.bf16.mxu0 %v8541
          %8685 = vmatpush1.bf16.msra.mxu0 %v8540
          %8686 = vmatprep.subr.bf16.mxu0 %v8544
          %8687 = vmatpush1.bf16.msra.mxu0 %v8543
          %8688 = vmatprep.subr.bf16.mxu0 %v8547
          %8689 = vmatpush1.bf16.msra.mxu0 %v8546
          %8690 = vmatprep.subr.bf16.mxu0 %v8550
          %8691 = vmatpush1.bf16.msra.mxu0 %v8549
          %8692 = vmatprep.subr.bf16.mxu0 %v8553
          %8693 = vmatpush1.bf16.msra.mxu0 %v8552
          %8694 = vmatprep.subr.bf16.mxu0 %v8556
          %8695 = vmatpush1.bf16.msra.mxu0 %v8555
          %8696 = vmatprep.subr.bf16.mxu0 %v8559
          %8697 = vmatpush1.bf16.msra.mxu0 %v8558
          %8698 = vmatprep.subr.bf16.mxu0 %v8562
          %8699 = vmatpush1.bf16.msra.mxu0 %v8561
          %8700 = vmatprep.subr.bf16.mxu0 %v8565
          %8701 = vmatpush1.bf16.msra.mxu0 %v8564
          %8702 = vmatprep.subr.bf16.mxu0 %v8568
          %8703 = vmatpush1.bf16.msra.mxu0 %v8567
          %8704 = vmatprep.subr.bf16.mxu0 %v8571
          %8705 = vmatpush1.bf16.msra.mxu0 %v8570
          %8706 = vmatprep.subr.bf16.mxu0 %v8574
          %8707 = vmatpush1.bf16.msra.mxu0 %v8573
          %8708 = vmatprep.subr.bf16.mxu0 %v8577
          %8709 = vmatpush1.bf16.msra.mxu0 %v8576
          %8710 = vmatprep.subr.bf16.mxu0 %v8580
          %8711 = vmatpush1.bf16.msra.mxu0 %v8579
          %8712 = vmatprep.subr.bf16.mxu0 %v8583
          %8713 = vmatpush1.bf16.msra.mxu0 %v8582
          %8714 = vmatprep.subr.bf16.mxu0 %v8586
          %8715 = vmatpush1.bf16.msra.mxu0 %v8585
          %8716 = vmatprep.mubr.bf16.mxu0 %v8176
          %8717 = vmatmul.mubr.bf16.gmra.mrb[0].mxu0 %v8175
          %v8718 = vpop.f32.mrb[0].mxu0
          %v8719 = vadd.f32 %v8288, %v8718
          %v8720 = vpop.f32.mrb[0].mxu0
          %v8721 = vadd.f32 %v8292, %v8720
          %v8722 = vpop.f32.mrb[0].mxu0
          %v8723 = vadd.f32 %v8288, %v8722
          %v8724 = vpop.f32.mrb[0].mxu0
          %v8725 = vadd.f32 %v8292, %v8724
          %8726 = vmatprep.mubr.bf16.mxu0 %v8179
          %8727 = vmatmul.mubr.bf16.gmra.mrb[0].mxu0 %v8178
          %v8728 = vpop.f32.mrb[0].mxu0
          %v8729 = vadd.f32 %v8288, %v8728
          %v8730 = vpop.f32.mrb[0].mxu0
          %v8731 = vadd.f32 %v8292, %v8730
          %v8732 = vpop.f32.mrb[0].mxu0
          %v8733 = vadd.f32 %v8288, %v8732
          %v8734 = vpop.f32.mrb[0].mxu0
          %v8735 = vadd.f32 %v8292, %v8734
          %8736 = vmatprep.mubr.bf16.mxu0 %v8182
          %8737 = vmatmul.mubr.bf16.gmra.mrb[0].mxu0 %v8181
          %v8738 = vpop.f32.mrb[0].mxu0
          %v8739 = vadd.f32 %v8288, %v8738
          %v8740 = vpop.f32.mrb[0].mxu0
          %v8741 = vadd.f32 %v8292, %v8740
          %v8742 = vpop.f32.mrb[0].mxu0
          %v8743 = vadd.f32 %v8288, %v8742
          %v8744 = vpop.f32.mrb[0].mxu0
          %v8745 = vadd.f32 %v8292, %v8744
          %8746 = vmatprep.mubr.bf16.mxu0 %v8185
          %8747 = vmatmul.mubr.bf16.gmra.mrb[0].mxu0 %v8184
          %v8748 = vpop.f32.mrb[0].mxu0
          %v8749 = vadd.f32 %v8288, %v8748
          %v8750 = vpop.f32.mrb[0].mxu0
          %v8751 = vadd.f32 %v8292, %v8750
          %v8752 = vpop.f32.mrb[0].mxu0
          %v8753 = vadd.f32 %v8288, %v8752
          %v8754 = vpop.f32.mrb[0].mxu0
          %v8755 = vadd.f32 %v8292, %v8754
          %8756 = vdwg.mxu0
          %8757 = vmatprep.subr.bf16.mxu0 %v8589
          %8758 = vmatpush1.bf16.msra.mxu0 %v8588
          %8759 = vmatprep.subr.bf16.mxu0 %v8592
          %8760 = vmatpush1.bf16.msra.mxu0 %v8591
          %8761 = vmatprep.subr.bf16.mxu0 %v8595
          %8762 = vmatpush1.bf16.msra.mxu0 %v8594
          %8763 = vmatprep.subr.bf16.mxu0 %v8598
          %8764 = vmatpush1.bf16.msra.mxu0 %v8597
          %8765 = vmatprep.subr.bf16.mxu0 %v8601
          %8766 = vmatpush1.bf16.msra.mxu0 %v8600
          %8767 = vmatprep.subr.bf16.mxu0 %v8604
          %8768 = vmatpush1.bf16.msra.mxu0 %v8603
          %8769 = vmatprep.subr.bf16.mxu0 %v8607
          %8770 = vmatpush1.bf16.msra.mxu0 %v8606
          %8771 = vmatprep.subr.bf16.mxu0 %v8610
          %8772 = vmatpush1.bf16.msra.mxu0 %v8609
          %8773 = vmatprep.subr.bf16.mxu0 0
          %8774 = vmatpush1.bf16.msra.mxu0 0
          %8775 = vmatprep.subr.bf16.mxu0 0
          %8776 = vmatpush1.bf16.msra.mxu0 0
          %8777 = vmatprep.subr.bf16.mxu0 0
          %8778 = vmatpush1.bf16.msra.mxu0 0
          %8779 = vmatprep.subr.bf16.mxu0 0
          %8780 = vmatpush1.bf16.msra.mxu0 0
          %8781 = vmatprep.subr.bf16.mxu0 0
          %8782 = vmatpush1.bf16.msra.mxu0 0
          %8783 = vmatprep.subr.bf16.mxu0 0
          %8784 = vmatpush1.bf16.msra.mxu0 0
          %8785 = vmatprep.subr.bf16.mxu0 0
          %8786 = vmatpush1.bf16.msra.mxu0 0
          %8787 = vmatprep.subr.bf16.mxu0 0
          %8788 = vmatpush1.bf16.msra.mxu0 0
          %8789 = vmatprep.mubr.bf16.mxu0 0
          %8790 = vmatmul.mubr.bf16.gmra.mrb[0].mxu0 %v8177
          %v8791 = vpop.f32.mrb[0].mxu0
          %v8792 = vadd.f32 %v8719, %v8791
          %v8793 = vpop.f32.mrb[0].mxu0
          %v8794 = vadd.f32 %v8721, %v8793
          %v8795 = vpop.f32.mrb[0].mxu0
          %v8796 = vadd.f32 %v8723, %v8795
          %v8797 = vpop.f32.mrb[0].mxu0
          %v8798 = vadd.f32 %v8725, %v8797
          %8799 = vmatprep.mubr.bf16.mxu0 0
          %8800 = vmatmul.mubr.bf16.gmra.mrb[0].mxu0 %v8180
          %v8801 = vpop.f32.mrb[0].mxu0
          %v8802 = vadd.f32 %v8729, %v8801
          %v8803 = vpop.f32.mrb[0].mxu0
          %v8804 = vadd.f32 %v8731, %v8803
          %v8805 = vpop.f32.mrb[0].mxu0
          %v8806 = vadd.f32 %v8733, %v8805
          %v8807 = vpop.f32.mrb[0].mxu0
          %v8808 = vadd.f32 %v8735, %v8807
          %8809 = vmatprep.mubr.bf16.mxu0 0
          %8810 = vmatmul.mubr.bf16.gmra.mrb[0].mxu0 %v8183
          %v8811 = vpop.f32.mrb[0].mxu0
          %v8812 = vadd.f32 %v8739, %v8811
          %v8813 = vpop.f32.mrb[0].mxu0
          %v8814 = vadd.f32 %v8741, %v8813
          %v8815 = vpop.f32.mrb[0].mxu0
          %v8816 = vadd.f32 %v8743, %v8815
          %v8817 = vpop.f32.mrb[0].mxu0
          %v8818 = vadd.f32 %v8745, %v8817
          %8819 = vmatprep.mubr.bf16.mxu0 0
          %8820 = vmatmul.mubr.bf16.gmra.mrb[0].mxu0 %v8186
          %v8821 = vpop.f32.mrb[0].mxu0
          %v8822 = vadd.f32 %v8749, %v8821
          %v8823 = vpop.f32.mrb[0].mxu0
          %v8824 = vadd.f32 %v8751, %v8823
          %v8825 = vpop.f32.mrb[0].mxu0
          %v8826 = vadd.f32 %v8753, %v8825
          %v8827 = vpop.f32.mrb[0].mxu0
          %v8828 = vadd.f32 %v8755, %v8827
          %8829 = vdwg.mxu0
          %8830 = vmatprep.subr.bf16.mxu0 0
          %8831 = vmatpush1.bf16.msra.mxu0 %v8542
          %8832 = vmatprep.subr.bf16.mxu0 0
          %8833 = vmatpush1.bf16.msra.mxu0 %v8545
          %8834 = vmatprep.subr.bf16.mxu0 0
          %8835 = vmatpush1.bf16.msra.mxu0 %v8548
          %8836 = vmatprep.subr.bf16.mxu0 0
          %8837 = vmatpush1.bf16.msra.mxu0 %v8551
          %8838 = vmatprep.subr.bf16.mxu0 0
          %8839 = vmatpush1.bf16.msra.mxu0 %v8554
          %8840 = vmatprep.subr.bf16.mxu0 0
          %8841 = vmatpush1.bf16.msra.mxu0 %v8557
          %8842 = vmatprep.subr.bf16.mxu0 0
          %8843 = vmatpush1.bf16.msra.mxu0 %v8560
          %8844 = vmatprep.subr.bf16.mxu0 0
          %8845 = vmatpush1.bf16.msra.mxu0 %v8563
          %8846 = vmatprep.subr.bf16.mxu0 0
          %8847 = vmatpush1.bf16.msra.mxu0 %v8566
          %8848 = vmatprep.subr.bf16.mxu0 0
          %8849 = vmatpush1.bf16.msra.mxu0 %v8569
          %8850 = vmatprep.subr.bf16.mxu0 0
          %8851 = vmatpush1.bf16.msra.mxu0 %v8572
          %8852 = vmatprep.subr.bf16.mxu0 0
          %8853 = vmatpush1.bf16.msra.mxu0 %v8575
          %8854 = vmatprep.subr.bf16.mxu0 0
          %8855 = vmatpush1.bf16.msra.mxu0 %v8578
          %8856 = vmatprep.subr.bf16.mxu0 0
          %8857 = vmatpush1.bf16.msra.mxu0 %v8581
          %8858 = vmatprep.subr.bf16.mxu0 0
          %8859 = vmatpush1.bf16.msra.mxu0 %v8584
          %8860 = vmatprep.subr.bf16.mxu0 0
          %8861 = vmatpush1.bf16.msra.mxu0 %v8587
          %8862 = vmatprep.mubr.bf16.mxu0 %v8176
          %8863 = vmatmul.mubr.bf16.gmra.mrb[0].mxu0 %v8175
          %v8864 = vpop.f32.mrb[0].mxu0
          %v8865 = vadd.f32 %v8296, %v8864
          %v8866 = vpop.f32.mrb[0].mxu0
          %v8867 = vpop.f32.mrb[0].mxu0
          %v8868 = vadd.f32 %v8296, %v8867
          %v8869 = vpop.f32.mrb[0].mxu0
          %8870 = vmatprep.mubr.bf16.mxu0 %v8179
          %8871 = vmatmul.mubr.bf16.gmra.mrb[0].mxu0 %v8178
          %v8872 = vpop.f32.mrb[0].mxu0
          %v8873 = vadd.f32 %v8296, %v8872
          %v8874 = vpop.f32.mrb[0].mxu0
          %v8875 = vpop.f32.mrb[0].mxu0
          %v8876 = vadd.f32 %v8296, %v8875
          %v8877 = vpop.f32.mrb[0].mxu0
          %8878 = vmatprep.mubr.bf16.mxu0 %v8182
          %8879 = vmatmul.mubr.bf16.gmra.mrb[0].mxu0 %v8181
          %v8880 = vpop.f32.mrb[0].mxu0
          %v8881 = vadd.f32 %v8296, %v8880
          %v8882 = vpop.f32.mrb[0].mxu0
          %v8883 = vpop.f32.mrb[0].mxu0
          %v8884 = vadd.f32 %v8296, %v8883
          %v8885 = vpop.f32.mrb[0].mxu0
          %8886 = vmatprep.mubr.bf16.mxu0 %v8185
          %8887 = vmatmul.mubr.bf16.gmra.mrb[0].mxu0 %v8184
          %v8888 = vpop.f32.mrb[0].mxu0
          %v8889 = vadd.f32 %v8296, %v8888
          %v8890 = vpop.f32.mrb[0].mxu0
          %v8891 = vpop.f32.mrb[0].mxu0
          %v8892 = vadd.f32 %v8296, %v8891
          %v8893 = vpop.f32.mrb[0].mxu0
          %8894 = vdwg.mxu0
          %8895 = vmatprep.subr.bf16.mxu0 0
          %8896 = vmatpush1.bf16.msra.mxu0 %v8590
          %8897 = vmatprep.subr.bf16.mxu0 0
          %8898 = vmatpush1.bf16.msra.mxu0 %v8593
          %8899 = vmatprep.subr.bf16.mxu0 0
          %8900 = vmatpush1.bf16.msra.mxu0 %v8596
          %8901 = vmatprep.subr.bf16.mxu0 0
          %8902 = vmatpush1.bf16.msra.mxu0 %v8599
          %8903 = vmatprep.subr.bf16.mxu0 0
          %8904 = vmatpush1.bf16.msra.mxu0 %v8602
          %8905 = vmatprep.subr.bf16.mxu0 0
          %8906 = vmatpush1.bf16.msra.mxu0 %v8605
          %8907 = vmatprep.subr.bf16.mxu0 0
          %8908 = vmatpush1.bf16.msra.mxu0 %v8608
          %8909 = vmatprep.subr.bf16.mxu0 0
          %8910 = vmatpush1.bf16.msra.mxu0 %v8611
          %8911 = vmatprep.subr.bf16.mxu0 0
          %8912 = vmatpush1.bf16.msra.mxu0 0
          %8913 = vmatprep.subr.bf16.mxu0 0
          %8914 = vmatpush1.bf16.msra.mxu0 0
          %8915 = vmatprep.subr.bf16.mxu0 0
          %8916 = vmatpush1.bf16.msra.mxu0 0
          %8917 = vmatprep.subr.bf16.mxu0 0
          %8918 = vmatpush1.bf16.msra.mxu0 0
          %8919 = vmatprep.subr.bf16.mxu0 0
          %8920 = vmatpush1.bf16.msra.mxu0 0
          %8921 = vmatprep.subr.bf16.mxu0 0
          %8922 = vmatpush1.bf16.msra.mxu0 0
          %8923 = vmatprep.subr.bf16.mxu0 0
          %8924 = vmatpush1.bf16.msra.mxu0 0
          %8925 = vmatprep.subr.bf16.mxu0 0
          %8926 = vmatpush1.bf16.msra.mxu0 0
          %8927 = vmatprep.mubr.bf16.mxu0 0
          %8928 = vmatmul.mubr.bf16.gmra.mrb[0].mxu0 %v8177
          %v8929 = vpop.f32.mrb[0].mxu0
          %v8930 = vadd.f32 %v8865, %v8929
          %v8931 = vpop.f32.mrb[0].mxu0
          %v8932 = vpop.f32.mrb[0].mxu0
          %v8933 = vadd.f32 %v8868, %v8932
          %v8934 = vpop.f32.mrb[0].mxu0
          %8935 = vmatprep.mubr.bf16.mxu0 0
          %8936 = vmatmul.mubr.bf16.gmra.mrb[0].mxu0 %v8180
          %v8937 = vpop.f32.mrb[0].mxu0
          %v8938 = vadd.f32 %v8873, %v8937
          %v8939 = vpop.f32.mrb[0].mxu0
          %v8940 = vpop.f32.mrb[0].mxu0
          %v8941 = vadd.f32 %v8876, %v8940
          %v8942 = vpop.f32.mrb[0].mxu0
          %8943 = vmatprep.mubr.bf16.mxu0 0
          %8944 = vmatmul.mubr.bf16.gmra.mrb[0].mxu0 %v8183
          %v8945 = vpop.f32.mrb[0].mxu0
          %v8946 = vadd.f32 %v8881, %v8945
          %v8947 = vpop.f32.mrb[0].mxu0
          %v8948 = vpop.f32.mrb[0].mxu0
          %v8949 = vadd.f32 %v8884, %v8948
          %v8950 = vpop.f32.mrb[0].mxu0
          %8951 = vmatprep.mubr.bf16.mxu0 0
          %8952 = vmatmul.mubr.bf16.gmra.mrb[0].mxu0 %v8186
          %v8953 = vpop.f32.mrb[0].mxu0
          %v8954 = vadd.f32 %v8889, %v8953
          %v8955 = vpop.f32.mrb[0].mxu0
          %v8956 = vpop.f32.mrb[0].mxu0
          %v8957 = vadd.f32 %v8892, %v8956
          %v8958 = vpop.f32.mrb[0].mxu0
          %8959 = vdwg.mxu0
          %v8960 = vmax.f32 %v8792, 0.0
          %v8961 = vmax.f32 %v8794, 0.0
          %v8962 = vmax.f32 %v8930, 0.0
          %v8963 = vmax.f32 %v8796, 0.0
          %v8964 = vmax.f32 %v8798, 0.0
          %v8965 = vmax.f32 %v8933, 0.0
          %v8966 = vmax.f32 %v8802, 0.0
          %v8967 = vmax.f32 %v8804, 0.0
          %v8968 = vmax.f32 %v8938, 0.0
          %v8969 = vmax.f32 %v8806, 0.0
          %v8970 = vmax.f32 %v8808, 0.0
          %v8971 = vmax.f32 %v8941, 0.0
          %v8972 = vmax.f32 %v8812, 0.0
          %v8973 = vmax.f32 %v8814, 0.0
          %v8974 = vmax.f32 %v8946, 0.0
          %v8975 = vmax.f32 %v8816, 0.0
          %v8976 = vmax.f32 %v8818, 0.0
          %v8977 = vmax.f32 %v8949, 0.0
          %v8978 = vmax.f32 %v8822, 0.0
          %v8979 = vmax.f32 %v8824, 0.0
          %v8980 = vmax.f32 %v8954, 0.0
          %v8981 = vmax.f32 %v8826, 0.0
          %v8982 = vmax.f32 %v8828, 0.0
          %v8983 = vmax.f32 %v8957, 0.0
          %v8984 = vpack.c.bf16 %v8963, %v8960
          %v8985 = vpack.c.bf16 %v8964, %v8961
          %v8986 = vpack.c.bf16 %v8965, %v8962
          %v8987 = vpack.c.bf16 %v8969, %v8966
          %v8988 = vpack.c.bf16 %v8970, %v8967
          %v8989 = vpack.c.bf16 %v8971, %v8968
          %v8990 = vpack.c.bf16 %v8975, %v8972
          %v8991 = vpack.c.bf16 %v8976, %v8973
          %v8992 = vpack.c.bf16 %v8977, %v8974
          %v8993 = vpack.c.bf16 %v8981, %v8978
          %v8994 = vpack.c.bf16 %v8982, %v8979
          %v8995 = vpack.c.bf16 %v8983, %v8980
          %v8996 = vld [vmem:[#allocation14] sm:$0xff]
          %v8997 = vld [vmem:[#allocation14 + $0x8] sm:$0xf]
          %v8998 = vld [vmem:[#allocation14 + $0xc] sm:$0xff]
          %v8999 = vld [vmem:[#allocation14 + $0x14] sm:$0xf]
          %v9000 = vld [vmem:[#allocation14 + $0x18] sm:$0xff]
          %v9001 = vld [vmem:[#allocation14 + $0x20] sm:$0xf]
          %v9002 = vld [vmem:[#allocation14 + $0x24] sm:$0xff]
          %v9003 = vld [vmem:[#allocation14 + $0x2c] sm:$0xf]
          %v9004 = vld [vmem:[#allocation14 + $0x30] sm:$0xff]
          %v9005 = vld [vmem:[#allocation14 + $0x38] sm:$0xf]
          %v9006 = vld [vmem:[#allocation14 + $0x3c] sm:$0xff]
          %v9007 = vld [vmem:[#allocation14 + $0x44] sm:$0xf]
          %v9008 = vld [vmem:[#allocation14 + $0x48] sm:$0xff]
          %v9009 = vld [vmem:[#allocation14 + $0x50] sm:$0xf]
          %v9010 = vld [vmem:[#allocation14 + $0x54] sm:$0xff]
          %v9011 = vld [vmem:[#allocation14 + $0x5c] sm:$0xf]
          %v9012 = vld [vmem:[#allocation14 + $0x60] sm:$0xff]
          %v9013 = vld [vmem:[#allocation14 + $0x68] sm:$0xf]
          %v9014 = vld [vmem:[#allocation14 + $0x6c] sm:$0xff]
          %v9015 = vld [vmem:[#allocation14 + $0x74] sm:$0xf]
          %v9016 = vld [vmem:[#allocation14 + $0x78] sm:$0xff]
          %v9017 = vld [vmem:[#allocation14 + $0x80] sm:$0xf]
          %v9018 = vld [vmem:[#allocation14 + $0x84] sm:$0xff]
          %v9019 = vld [vmem:[#allocation14 + $0x8c] sm:$0xf]
          %v9020 = vld [vmem:[#allocation14 + $0x90] sm:$0xff]
          %v9021 = vld [vmem:[#allocation14 + $0x98] sm:$0xf]
          %v9022 = vld [vmem:[#allocation14 + $0x9c] sm:$0xff]
          %v9023 = vld [vmem:[#allocation14 + $0xa4] sm:$0xf]
          %v9024 = vld [vmem:[#allocation14 + $0xa8] sm:$0xff]
          %v9025 = vld [vmem:[#allocation14 + $0xb0] sm:$0xf]
          %v9026 = vld [vmem:[#allocation14 + $0xb4] sm:$0xff]
          %v9027 = vld [vmem:[#allocation14 + $0xbc] sm:$0xf]
          %v9028 = vld [vmem:[#allocation14 + $0xc0] sm:$0xff]
          %v9029 = vld [vmem:[#allocation14 + $0xc8] sm:$0xf]
          %v9030 = vld [vmem:[#allocation14 + $0xcc] sm:$0xff]
          %v9031 = vld [vmem:[#allocation14 + $0xd4] sm:$0xf]
          %v9032 = vld [vmem:[#allocation14 + $0xd8] sm:$0xff]
          %v9033 = vld [vmem:[#allocation14 + $0xe0] sm:$0xf]
          %v9034 = vld [vmem:[#allocation14 + $0xe4] sm:$0xff]
          %v9035 = vld [vmem:[#allocation14 + $0xec] sm:$0xf]
          %v9036 = vld [vmem:[#allocation14 + $0xf0] sm:$0xff]
          %v9037 = vld [vmem:[#allocation14 + $0xf8] sm:$0xf]
          %v9038 = vld [vmem:[#allocation14 + $0xfc] sm:$0xff]
          %v9039 = vld [vmem:[#allocation14 + $0x104] sm:$0xf]
          %v9040 = vld [vmem:[#allocation14 + $0x108] sm:$0xff]
          %v9041 = vld [vmem:[#allocation14 + $0x110] sm:$0xf]
          %v9042 = vld [vmem:[#allocation14 + $0x114] sm:$0xff]
          %v9043 = vld [vmem:[#allocation14 + $0x11c] sm:$0xf]
          %v9044 = vld [vmem:[#allocation14 + $0x120] sm:$0xff]
          %v9045 = vld [vmem:[#allocation14 + $0x128] sm:$0xf]
          %v9046 = vld [vmem:[#allocation14 + $0x12c] sm:$0xff]
          %v9047 = vld [vmem:[#allocation14 + $0x134] sm:$0xf]
          %v9048 = vld [vmem:[#allocation14 + $0x138] sm:$0xff]
          %v9049 = vld [vmem:[#allocation14 + $0x140] sm:$0xf]
          %v9050 = vld [vmem:[#allocation14 + $0x144] sm:$0xff]
          %v9051 = vld [vmem:[#allocation14 + $0x14c] sm:$0xf]
          %v9052 = vld [vmem:[#allocation14 + $0x150] sm:$0xff]
          %v9053 = vld [vmem:[#allocation14 + $0x158] sm:$0xf]
          %v9054 = vld [vmem:[#allocation14 + $0x15c] sm:$0xff]
          %v9055 = vld [vmem:[#allocation14 + $0x164] sm:$0xf]
          %v9056 = vld [vmem:[#allocation14 + $0x168] sm:$0xff]
          %v9057 = vld [vmem:[#allocation14 + $0x170] sm:$0xf]
          %v9058 = vld [vmem:[#allocation14 + $0x174] sm:$0xff]
          %v9059 = vld [vmem:[#allocation14 + $0x17c] sm:$0xf]
          %v9060 = vld [vmem:[#allocation14 + $0x180] sm:$0xff]
          %v9061 = vld [vmem:[#allocation14 + $0x188] sm:$0xf]
          %v9062 = vld [vmem:[#allocation14 + $0x18c] sm:$0xff]
          %v9063 = vld [vmem:[#allocation14 + $0x194] sm:$0xf]
          %v9064 = vld [vmem:[#allocation14 + $0x198] sm:$0xff]
          %v9065 = vld [vmem:[#allocation14 + $0x1a0] sm:$0xf]
          %v9066 = vld [vmem:[#allocation14 + $0x1a4] sm:$0xff]
          %v9067 = vld [vmem:[#allocation14 + $0x1ac] sm:$0xf]
          %v9068 = vld [vmem:[#allocation14 + $0x1b0] sm:$0xff]
          %v9069 = vld [vmem:[#allocation14 + $0x1b8] sm:$0xf]
          %v9070 = vld [vmem:[#allocation14 + $0x1bc] sm:$0xff]
          %v9071 = vld [vmem:[#allocation14 + $0x1c4] sm:$0xf]
          %v9072 = vld [vmem:[#allocation14 + $0x1c8] sm:$0xff]
          %v9073 = vld [vmem:[#allocation14 + $0x1d0] sm:$0xf]
          %v9074 = vld [vmem:[#allocation14 + $0x1d4] sm:$0xff]
          %v9075 = vld [vmem:[#allocation14 + $0x1dc] sm:$0xf]
          %v9076 = vld [vmem:[#allocation14 + $0x1e0] sm:$0xff]
          %v9077 = vld [vmem:[#allocation14 + $0x1e8] sm:$0xf]
          %v9078 = vld [vmem:[#allocation14 + $0x1ec] sm:$0xff]
          %v9079 = vld [vmem:[#allocation14 + $0x1f4] sm:$0xf]
          %v9080 = vld [vmem:[#allocation14 + $0x1f8] sm:$0xff]
          %v9081 = vld [vmem:[#allocation14 + $0x200] sm:$0xf]
          %v9082 = vld [vmem:[#allocation14 + $0x204] sm:$0xff]
          %v9083 = vld [vmem:[#allocation14 + $0x20c] sm:$0xf]
          %v9084 = vld [vmem:[#allocation14 + $0x210] sm:$0xff]
          %v9085 = vld [vmem:[#allocation14 + $0x218] sm:$0xf]
          %v9086 = vld [vmem:[#allocation14 + $0x21c] sm:$0xff]
          %v9087 = vld [vmem:[#allocation14 + $0x224] sm:$0xf]
          %v9088 = vld [vmem:[#allocation14 + $0x228] sm:$0xff]
          %v9089 = vld [vmem:[#allocation14 + $0x230] sm:$0xf]
          %v9090 = vld [vmem:[#allocation14 + $0x234] sm:$0xff]
          %v9091 = vld [vmem:[#allocation14 + $0x23c] sm:$0xf]
          %v9092 = vld [vmem:[#allocation15] sm:$0x7]
          %v9094 = vlaneseq
          %v9095 = vshrl.u32 %v9094, 7
          %v9096 = vsub.s32 0, %v9095
          %v9097 = vrot.slane %v9092, %v9096
          %v9098 = vlaneseq
          %v9099 = vshrl.u32 %v9098, 7
          %v9100 = vsub.s32 1, %v9099
          %v9101 = vrot.slane %v9092, %v9100
          %v9102 = vlaneseq
          %v9103 = vshrl.u32 %v9102, 7
          %v9104 = vsub.s32 2, %v9103
          %v9105 = vrot.slane %v9092, %v9104
          %v9205 = vunpack.c.l.b16 %v8996
          %v9206 = vunpack.c.h.b16 %v8996
          %v9207 = vunpack.c.l.b16 %v8997
          %v9208 = vunpack.c.l.b16 %v8998
          %v9209 = vunpack.c.h.b16 %v8998
          %v9210 = vunpack.c.l.b16 %v8999
          %v9211 = vunpack.c.l.b16 %v9000
          %v9212 = vunpack.c.h.b16 %v9000
          %v9213 = vunpack.c.l.b16 %v9001
          %v9214 = vunpack.c.l.b16 %v9002
          %v9215 = vunpack.c.h.b16 %v9002
          %v9216 = vunpack.c.l.b16 %v9003
          %v9217 = vunpack.c.l.b16 %v9004
          %v9218 = vunpack.c.h.b16 %v9004
          %v9219 = vunpack.c.l.b16 %v9005
          %v9220 = vunpack.c.l.b16 %v9006
          %v9221 = vunpack.c.h.b16 %v9006
          %v9222 = vunpack.c.l.b16 %v9007
          %v9223 = vunpack.c.l.b16 %v9008
          %v9224 = vunpack.c.h.b16 %v9008
          %v9225 = vunpack.c.l.b16 %v9009
          %v9226 = vunpack.c.l.b16 %v9010
          %v9227 = vunpack.c.h.b16 %v9010
          %v9228 = vunpack.c.l.b16 %v9011
          %v9229 = vunpack.c.l.b16 %v9012
          %v9230 = vunpack.c.h.b16 %v9012
          %v9231 = vunpack.c.l.b16 %v9013
          %v9232 = vunpack.c.l.b16 %v9014
          %v9233 = vunpack.c.h.b16 %v9014
          %v9234 = vunpack.c.l.b16 %v9015
          %v9235 = vunpack.c.l.b16 %v9016
          %v9236 = vunpack.c.h.b16 %v9016
          %v9237 = vunpack.c.l.b16 %v9017
          %v9238 = vunpack.c.l.b16 %v9018
          %v9239 = vunpack.c.h.b16 %v9018
          %v9240 = vunpack.c.l.b16 %v9019
          %v9241 = vunpack.c.l.b16 %v9020
          %v9242 = vunpack.c.h.b16 %v9020
          %v9243 = vunpack.c.l.b16 %v9021
          %v9244 = vunpack.c.l.b16 %v9022
          %v9245 = vunpack.c.h.b16 %v9022
          %v9246 = vunpack.c.l.b16 %v9023
          %v9247 = vunpack.c.l.b16 %v9024
          %v9248 = vunpack.c.h.b16 %v9024
          %v9249 = vunpack.c.l.b16 %v9025
          %v9250 = vunpack.c.l.b16 %v9026
          %v9251 = vunpack.c.h.b16 %v9026
          %v9252 = vunpack.c.l.b16 %v9027
          %v9253 = vunpack.c.l.b16 %v9028
          %v9254 = vunpack.c.h.b16 %v9028
          %v9255 = vunpack.c.l.b16 %v9029
          %v9256 = vunpack.c.l.b16 %v9030
          %v9257 = vunpack.c.h.b16 %v9030
          %v9258 = vunpack.c.l.b16 %v9031
          %v9259 = vunpack.c.l.b16 %v9032
          %v9260 = vunpack.c.h.b16 %v9032
          %v9261 = vunpack.c.l.b16 %v9033
          %v9262 = vunpack.c.l.b16 %v9034
          %v9263 = vunpack.c.h.b16 %v9034
          %v9264 = vunpack.c.l.b16 %v9035
          %v9265 = vunpack.c.l.b16 %v9036
          %v9266 = vunpack.c.h.b16 %v9036
          %v9267 = vunpack.c.l.b16 %v9037
          %v9268 = vunpack.c.l.b16 %v9038
          %v9269 = vunpack.c.h.b16 %v9038
          %v9270 = vunpack.c.l.b16 %v9039
          %v9271 = vunpack.c.l.b16 %v9040
          %v9272 = vunpack.c.h.b16 %v9040
          %v9273 = vunpack.c.l.b16 %v9041
          %v9274 = vunpack.c.l.b16 %v9042
          %v9275 = vunpack.c.h.b16 %v9042
          %v9276 = vunpack.c.l.b16 %v9043
          %v9277 = vunpack.c.l.b16 %v9044
          %v9278 = vunpack.c.h.b16 %v9044
          %v9279 = vunpack.c.l.b16 %v9045
          %v9280 = vunpack.c.l.b16 %v9046
          %v9281 = vunpack.c.h.b16 %v9046
          %v9282 = vunpack.c.l.b16 %v9047
          %v9283 = vunpack.c.l.b16 %v9048
          %v9284 = vunpack.c.h.b16 %v9048
          %v9285 = vunpack.c.l.b16 %v9049
          %v9286 = vunpack.c.l.b16 %v9050
          %v9287 = vunpack.c.h.b16 %v9050
          %v9288 = vunpack.c.l.b16 %v9051
          %v9289 = vunpack.c.l.b16 %v9052
          %v9290 = vunpack.c.h.b16 %v9052
          %v9291 = vunpack.c.l.b16 %v9053
          %v9292 = vunpack.c.l.b16 %v9054
          %v9293 = vunpack.c.h.b16 %v9054
          %v9294 = vunpack.c.l.b16 %v9055
          %v9295 = vunpack.c.l.b16 %v9056
          %v9296 = vunpack.c.h.b16 %v9056
          %v9297 = vunpack.c.l.b16 %v9057
          %v9298 = vunpack.c.l.b16 %v9058
          %v9299 = vunpack.c.h.b16 %v9058
          %v9300 = vunpack.c.l.b16 %v9059
          %v9301 = vunpack.c.l.b16 %v9060
          %v9302 = vunpack.c.h.b16 %v9060
          %v9303 = vunpack.c.l.b16 %v9061
          %v9304 = vunpack.c.l.b16 %v9062
          %v9305 = vunpack.c.h.b16 %v9062
          %v9306 = vunpack.c.l.b16 %v9063
          %v9307 = vunpack.c.l.b16 %v9064
          %v9308 = vunpack.c.h.b16 %v9064
          %v9309 = vunpack.c.l.b16 %v9065
          %v9310 = vunpack.c.l.b16 %v9066
          %v9311 = vunpack.c.h.b16 %v9066
          %v9312 = vunpack.c.l.b16 %v9067
          %v9313 = vunpack.c.l.b16 %v9068
          %v9314 = vunpack.c.h.b16 %v9068
          %v9315 = vunpack.c.l.b16 %v9069
          %v9316 = vunpack.c.l.b16 %v9070
          %v9317 = vunpack.c.h.b16 %v9070
          %v9318 = vunpack.c.l.b16 %v9071
          %v9319 = vunpack.c.l.b16 %v9072
          %v9320 = vunpack.c.h.b16 %v9072
          %v9321 = vunpack.c.l.b16 %v9073
          %v9322 = vunpack.c.l.b16 %v9074
          %v9323 = vunpack.c.h.b16 %v9074
          %v9324 = vunpack.c.l.b16 %v9075
          %v9325 = vunpack.c.l.b16 %v9076
          %v9326 = vunpack.c.h.b16 %v9076
          %v9327 = vunpack.c.l.b16 %v9077
          %v9328 = vunpack.c.l.b16 %v9078
          %v9329 = vunpack.c.h.b16 %v9078
          %v9330 = vunpack.c.l.b16 %v9079
          %v9331 = vunpack.c.l.b16 %v9080
          %v9332 = vunpack.c.h.b16 %v9080
          %v9333 = vunpack.c.l.b16 %v9081
          %v9334 = vunpack.c.l.b16 %v9082
          %v9335 = vunpack.c.h.b16 %v9082
          %v9336 = vunpack.c.l.b16 %v9083
          %v9337 = vunpack.c.l.b16 %v9084
          %v9338 = vunpack.c.h.b16 %v9084
          %v9339 = vunpack.c.l.b16 %v9085
          %v9340 = vunpack.c.l.b16 %v9086
          %v9341 = vunpack.c.h.b16 %v9086
          %v9342 = vunpack.c.l.b16 %v9087
          %v9343 = vunpack.c.l.b16 %v9088
          %v9344 = vunpack.c.h.b16 %v9088
          %v9345 = vunpack.c.l.b16 %v9089
          %v9346 = vunpack.c.l.b16 %v9090
          %v9347 = vunpack.c.h.b16 %v9090
          %v9348 = vunpack.c.l.b16 %v9091
          %v9349 = vpack.c.b16 %v9208, %v9205
          %v9350 = vpack.c.b16 %v9209, %v9206
          %v9351 = vpack.c.b16 %v9210, %v9207
          %v9352 = vpack.c.b16 %v9214, %v9211
          %v9353 = vpack.c.b16 %v9215, %v9212
          %v9354 = vpack.c.b16 %v9216, %v9213
          %v9355 = vpack.c.b16 %v9220, %v9217
          %v9356 = vpack.c.b16 %v9221, %v9218
          %v9357 = vpack.c.b16 %v9222, %v9219
          %v9358 = vpack.c.b16 %v9226, %v9223
          %v9359 = vpack.c.b16 %v9227, %v9224
          %v9360 = vpack.c.b16 %v9228, %v9225
          %v9361 = vpack.c.b16 %v9232, %v9229
          %v9362 = vpack.c.b16 %v9233, %v9230
          %v9363 = vpack.c.b16 %v9234, %v9231
          %v9364 = vpack.c.b16 %v9238, %v9235
          %v9365 = vpack.c.b16 %v9239, %v9236
          %v9366 = vpack.c.b16 %v9240, %v9237
          %v9367 = vpack.c.b16 %v9244, %v9241
          %v9368 = vpack.c.b16 %v9245, %v9242
          %v9369 = vpack.c.b16 %v9246, %v9243
          %v9370 = vpack.c.b16 %v9250, %v9247
          %v9371 = vpack.c.b16 %v9251, %v9248
          %v9372 = vpack.c.b16 %v9252, %v9249
          %v9373 = vpack.c.b16 %v9256, %v9253
          %v9374 = vpack.c.b16 %v9257, %v9254
          %v9375 = vpack.c.b16 %v9258, %v9255
          %v9376 = vpack.c.b16 %v9262, %v9259
          %v9377 = vpack.c.b16 %v9263, %v9260
          %v9378 = vpack.c.b16 %v9264, %v9261
          %v9379 = vpack.c.b16 %v9268, %v9265
          %v9380 = vpack.c.b16 %v9269, %v9266
          %v9381 = vpack.c.b16 %v9270, %v9267
          %v9382 = vpack.c.b16 %v9274, %v9271
          %v9383 = vpack.c.b16 %v9275, %v9272
          %v9384 = vpack.c.b16 %v9276, %v9273
          %v9385 = vpack.c.b16 %v9280, %v9277
          %v9386 = vpack.c.b16 %v9281, %v9278
          %v9387 = vpack.c.b16 %v9282, %v9279
          %v9388 = vpack.c.b16 %v9286, %v9283
          %v9389 = vpack.c.b16 %v9287, %v9284
          %v9390 = vpack.c.b16 %v9288, %v9285
          %v9391 = vpack.c.b16 %v9292, %v9289
          %v9392 = vpack.c.b16 %v9293, %v9290
          %v9393 = vpack.c.b16 %v9294, %v9291
          %v9394 = vpack.c.b16 %v9298, %v9295
          %v9395 = vpack.c.b16 %v9299, %v9296
          %v9396 = vpack.c.b16 %v9300, %v9297
          %v9397 = vpack.c.b16 %v9304, %v9301
          %v9398 = vpack.c.b16 %v9305, %v9302
          %v9399 = vpack.c.b16 %v9306, %v9303
          %v9400 = vpack.c.b16 %v9310, %v9307
          %v9401 = vpack.c.b16 %v9311, %v9308
          %v9402 = vpack.c.b16 %v9312, %v9309
          %v9403 = vpack.c.b16 %v9316, %v9313
          %v9404 = vpack.c.b16 %v9317, %v9314
          %v9405 = vpack.c.b16 %v9318, %v9315
          %v9406 = vpack.c.b16 %v9322, %v9319
          %v9407 = vpack.c.b16 %v9323, %v9320
          %v9408 = vpack.c.b16 %v9324, %v9321
          %v9409 = vpack.c.b16 %v9328, %v9325
          %v9410 = vpack.c.b16 %v9329, %v9326
          %v9411 = vpack.c.b16 %v9330, %v9327
          %v9412 = vpack.c.b16 %v9334, %v9331
          %v9413 = vpack.c.b16 %v9335, %v9332
          %v9414 = vpack.c.b16 %v9336, %v9333
          %v9415 = vpack.c.b16 %v9340, %v9337
          %v9416 = vpack.c.b16 %v9341, %v9338
          %v9417 = vpack.c.b16 %v9342, %v9339
          %v9418 = vpack.c.b16 %v9346, %v9343
          %v9419 = vpack.c.b16 %v9347, %v9344
          %v9420 = vpack.c.b16 %v9348, %v9345
          %9493 = vmatprep.subr.bf16.mxu0 %v9350
          %9494 = vmatpush1.bf16.msra.mxu0 %v9349
          %9495 = vmatprep.subr.bf16.mxu0 %v9353
          %9496 = vmatpush1.bf16.msra.mxu0 %v9352
          %9497 = vmatprep.subr.bf16.mxu0 %v9356
          %9498 = vmatpush1.bf16.msra.mxu0 %v9355
          %9499 = vmatprep.subr.bf16.mxu0 %v9359
          %9500 = vmatpush1.bf16.msra.mxu0 %v9358
          %9501 = vmatprep.subr.bf16.mxu0 %v9362
          %9502 = vmatpush1.bf16.msra.mxu0 %v9361
          %9503 = vmatprep.subr.bf16.mxu0 %v9365
          %9504 = vmatpush1.bf16.msra.mxu0 %v9364
          %9505 = vmatprep.subr.bf16.mxu0 %v9368
          %9506 = vmatpush1.bf16.msra.mxu0 %v9367
          %9507 = vmatprep.subr.bf16.mxu0 %v9371
          %9508 = vmatpush1.bf16.msra.mxu0 %v9370
          %9509 = vmatprep.subr.bf16.mxu0 %v9374
          %9510 = vmatpush1.bf16.msra.mxu0 %v9373
          %9511 = vmatprep.subr.bf16.mxu0 %v9377
          %9512 = vmatpush1.bf16.msra.mxu0 %v9376
          %9513 = vmatprep.subr.bf16.mxu0 %v9380
          %9514 = vmatpush1.bf16.msra.mxu0 %v9379
          %9515 = vmatprep.subr.bf16.mxu0 %v9383
          %9516 = vmatpush1.bf16.msra.mxu0 %v9382
          %9517 = vmatprep.subr.bf16.mxu0 %v9386
          %9518 = vmatpush1.bf16.msra.mxu0 %v9385
          %9519 = vmatprep.subr.bf16.mxu0 %v9389
          %9520 = vmatpush1.bf16.msra.mxu0 %v9388
          %9521 = vmatprep.subr.bf16.mxu0 %v9392
          %9522 = vmatpush1.bf16.msra.mxu0 %v9391
          %9523 = vmatprep.subr.bf16.mxu0 %v9395
          %9524 = vmatpush1.bf16.msra.mxu0 %v9394
          %9525 = vmatprep.mubr.bf16.mxu0 %v8985
          %9526 = vmatmul.mubr.bf16.gmra.mrb[0].mxu0 %v8984
          %v9527 = vpop.f32.mrb[0].mxu0
          %v9528 = vadd.f32 %v9097, %v9527
          %v9529 = vpop.f32.mrb[0].mxu0
          %v9530 = vadd.f32 %v9101, %v9529
          %v9531 = vpop.f32.mrb[0].mxu0
          %v9532 = vadd.f32 %v9097, %v9531
          %v9533 = vpop.f32.mrb[0].mxu0
          %v9534 = vadd.f32 %v9101, %v9533
          %9535 = vmatprep.mubr.bf16.mxu0 %v8988
          %9536 = vmatmul.mubr.bf16.gmra.mrb[0].mxu0 %v8987
          %v9537 = vpop.f32.mrb[0].mxu0
          %v9538 = vadd.f32 %v9097, %v9537
          %v9539 = vpop.f32.mrb[0].mxu0
          %v9540 = vadd.f32 %v9101, %v9539
          %v9541 = vpop.f32.mrb[0].mxu0
          %v9542 = vadd.f32 %v9097, %v9541
          %v9543 = vpop.f32.mrb[0].mxu0
          %v9544 = vadd.f32 %v9101, %v9543
          %9545 = vmatprep.mubr.bf16.mxu0 %v8991
          %9546 = vmatmul.mubr.bf16.gmra.mrb[0].mxu0 %v8990
          %v9547 = vpop.f32.mrb[0].mxu0
          %v9548 = vadd.f32 %v9097, %v9547
          %v9549 = vpop.f32.mrb[0].mxu0
          %v9550 = vadd.f32 %v9101, %v9549
          %v9551 = vpop.f32.mrb[0].mxu0
          %v9552 = vadd.f32 %v9097, %v9551
          %v9553 = vpop.f32.mrb[0].mxu0
          %v9554 = vadd.f32 %v9101, %v9553
          %9555 = vmatprep.mubr.bf16.mxu0 %v8994
          %9556 = vmatmul.mubr.bf16.gmra.mrb[0].mxu0 %v8993
          %v9557 = vpop.f32.mrb[0].mxu0
          %v9558 = vadd.f32 %v9097, %v9557
          %v9559 = vpop.f32.mrb[0].mxu0
          %v9560 = vadd.f32 %v9101, %v9559
          %v9561 = vpop.f32.mrb[0].mxu0
          %v9562 = vadd.f32 %v9097, %v9561
          %v9563 = vpop.f32.mrb[0].mxu0
          %v9564 = vadd.f32 %v9101, %v9563
          %9565 = vdwg.mxu0
          %9566 = vmatprep.subr.bf16.mxu0 %v9398
          %9567 = vmatpush1.bf16.msra.mxu0 %v9397
          %9568 = vmatprep.subr.bf16.mxu0 %v9401
          %9569 = vmatpush1.bf16.msra.mxu0 %v9400
          %9570 = vmatprep.subr.bf16.mxu0 %v9404
          %9571 = vmatpush1.bf16.msra.mxu0 %v9403
          %9572 = vmatprep.subr.bf16.mxu0 %v9407
          %9573 = vmatpush1.bf16.msra.mxu0 %v9406
          %9574 = vmatprep.subr.bf16.mxu0 %v9410
          %9575 = vmatpush1.bf16.msra.mxu0 %v9409
          %9576 = vmatprep.subr.bf16.mxu0 %v9413
          %9577 = vmatpush1.bf16.msra.mxu0 %v9412
          %9578 = vmatprep.subr.bf16.mxu0 %v9416
          %9579 = vmatpush1.bf16.msra.mxu0 %v9415
          %9580 = vmatprep.subr.bf16.mxu0 %v9419
          %9581 = vmatpush1.bf16.msra.mxu0 %v9418
          %9582 = vmatprep.subr.bf16.mxu0 0
          %9583 = vmatpush1.bf16.msra.mxu0 0
          %9584 = vmatprep.subr.bf16.mxu0 0
          %9585 = vmatpush1.bf16.msra.mxu0 0
          %9586 = vmatprep.subr.bf16.mxu0 0
          %9587 = vmatpush1.bf16.msra.mxu0 0
          %9588 = vmatprep.subr.bf16.mxu0 0
          %9589 = vmatpush1.bf16.msra.mxu0 0
          %9590 = vmatprep.subr.bf16.mxu0 0
          %9591 = vmatpush1.bf16.msra.mxu0 0
          %9592 = vmatprep.subr.bf16.mxu0 0
          %9593 = vmatpush1.bf16.msra.mxu0 0
          %9594 = vmatprep.subr.bf16.mxu0 0
          %9595 = vmatpush1.bf16.msra.mxu0 0
          %9596 = vmatprep.subr.bf16.mxu0 0
          %9597 = vmatpush1.bf16.msra.mxu0 0
          %9598 = vmatprep.mubr.bf16.mxu0 0
          %9599 = vmatmul.mubr.bf16.gmra.mrb[0].mxu0 %v8986
          %v9600 = vpop.f32.mrb[0].mxu0
          %v9601 = vadd.f32 %v9528, %v9600
          %v9602 = vpop.f32.mrb[0].mxu0
          %v9603 = vadd.f32 %v9530, %v9602
          %v9604 = vpop.f32.mrb[0].mxu0
          %v9605 = vadd.f32 %v9532, %v9604
          %v9606 = vpop.f32.mrb[0].mxu0
          %v9607 = vadd.f32 %v9534, %v9606
          %9608 = vmatprep.mubr.bf16.mxu0 0
          %9609 = vmatmul.mubr.bf16.gmra.mrb[0].mxu0 %v8989
          %v9610 = vpop.f32.mrb[0].mxu0
          %v9611 = vadd.f32 %v9538, %v9610
          %v9612 = vpop.f32.mrb[0].mxu0
          %v9613 = vadd.f32 %v9540, %v9612
          %v9614 = vpop.f32.mrb[0].mxu0
          %v9615 = vadd.f32 %v9542, %v9614
          %v9616 = vpop.f32.mrb[0].mxu0
          %v9617 = vadd.f32 %v9544, %v9616
          %9618 = vmatprep.mubr.bf16.mxu0 0
          %9619 = vmatmul.mubr.bf16.gmra.mrb[0].mxu0 %v8992
          %v9620 = vpop.f32.mrb[0].mxu0
          %v9621 = vadd.f32 %v9548, %v9620
          %v9622 = vpop.f32.mrb[0].mxu0
          %v9623 = vadd.f32 %v9550, %v9622
          %v9624 = vpop.f32.mrb[0].mxu0
          %v9625 = vadd.f32 %v9552, %v9624
          %v9626 = vpop.f32.mrb[0].mxu0
          %v9627 = vadd.f32 %v9554, %v9626
          %9628 = vmatprep.mubr.bf16.mxu0 0
          %9629 = vmatmul.mubr.bf16.gmra.mrb[0].mxu0 %v8995
          %v9630 = vpop.f32.mrb[0].mxu0
          %v9631 = vadd.f32 %v9558, %v9630
          %v9632 = vpop.f32.mrb[0].mxu0
          %v9633 = vadd.f32 %v9560, %v9632
          %v9634 = vpop.f32.mrb[0].mxu0
          %v9635 = vadd.f32 %v9562, %v9634
          %v9636 = vpop.f32.mrb[0].mxu0
          %v9637 = vadd.f32 %v9564, %v9636
          %9638 = vdwg.mxu0
          %9639 = vmatprep.subr.bf16.mxu0 0
          %9640 = vmatpush1.bf16.msra.mxu0 %v9351
          %9641 = vmatprep.subr.bf16.mxu0 0
          %9642 = vmatpush1.bf16.msra.mxu0 %v9354
          %9643 = vmatprep.subr.bf16.mxu0 0
          %9644 = vmatpush1.bf16.msra.mxu0 %v9357
          %9645 = vmatprep.subr.bf16.mxu0 0
          %9646 = vmatpush1.bf16.msra.mxu0 %v9360
          %9647 = vmatprep.subr.bf16.mxu0 0
          %9648 = vmatpush1.bf16.msra.mxu0 %v9363
          %9649 = vmatprep.subr.bf16.mxu0 0
          %9650 = vmatpush1.bf16.msra.mxu0 %v9366
          %9651 = vmatprep.subr.bf16.mxu0 0
          %9652 = vmatpush1.bf16.msra.mxu0 %v9369
          %9653 = vmatprep.subr.bf16.mxu0 0
          %9654 = vmatpush1.bf16.msra.mxu0 %v9372
          %9655 = vmatprep.subr.bf16.mxu0 0
          %9656 = vmatpush1.bf16.msra.mxu0 %v9375
          %9657 = vmatprep.subr.bf16.mxu0 0
          %9658 = vmatpush1.bf16.msra.mxu0 %v9378
          %9659 = vmatprep.subr.bf16.mxu0 0
          %9660 = vmatpush1.bf16.msra.mxu0 %v9381
          %9661 = vmatprep.subr.bf16.mxu0 0
          %9662 = vmatpush1.bf16.msra.mxu0 %v9384
          %9663 = vmatprep.subr.bf16.mxu0 0
          %9664 = vmatpush1.bf16.msra.mxu0 %v9387
          %9665 = vmatprep.subr.bf16.mxu0 0
          %9666 = vmatpush1.bf16.msra.mxu0 %v9390
          %9667 = vmatprep.subr.bf16.mxu0 0
          %9668 = vmatpush1.bf16.msra.mxu0 %v9393
          %9669 = vmatprep.subr.bf16.mxu0 0
          %9670 = vmatpush1.bf16.msra.mxu0 %v9396
          %9671 = vmatprep.mubr.bf16.mxu0 %v8985
          %9672 = vmatmul.mubr.bf16.gmra.mrb[0].mxu0 %v8984
          %v9673 = vpop.f32.mrb[0].mxu0
          %v9674 = vadd.f32 %v9105, %v9673
          %v9675 = vpop.f32.mrb[0].mxu0
          %v9676 = vpop.f32.mrb[0].mxu0
          %v9677 = vadd.f32 %v9105, %v9676
          %v9678 = vpop.f32.mrb[0].mxu0
          %9679 = vmatprep.mubr.bf16.mxu0 %v8988
          %9680 = vmatmul.mubr.bf16.gmra.mrb[0].mxu0 %v8987
          %v9681 = vpop.f32.mrb[0].mxu0
          %v9682 = vadd.f32 %v9105, %v9681
          %v9683 = vpop.f32.mrb[0].mxu0
          %v9684 = vpop.f32.mrb[0].mxu0
          %v9685 = vadd.f32 %v9105, %v9684
          %v9686 = vpop.f32.mrb[0].mxu0
          %9687 = vmatprep.mubr.bf16.mxu0 %v8991
          %9688 = vmatmul.mubr.bf16.gmra.mrb[0].mxu0 %v8990
          %v9689 = vpop.f32.mrb[0].mxu0
          %v9690 = vadd.f32 %v9105, %v9689
          %v9691 = vpop.f32.mrb[0].mxu0
          %v9692 = vpop.f32.mrb[0].mxu0
          %v9693 = vadd.f32 %v9105, %v9692
          %v9694 = vpop.f32.mrb[0].mxu0
          %9695 = vmatprep.mubr.bf16.mxu0 %v8994
          %9696 = vmatmul.mubr.bf16.gmra.mrb[0].mxu0 %v8993
          %v9697 = vpop.f32.mrb[0].mxu0
          %v9698 = vadd.f32 %v9105, %v9697
          %v9699 = vpop.f32.mrb[0].mxu0
          %v9700 = vpop.f32.mrb[0].mxu0
          %v9701 = vadd.f32 %v9105, %v9700
          %v9702 = vpop.f32.mrb[0].mxu0
          %9703 = vdwg.mxu0
          %9704 = vmatprep.subr.bf16.mxu0 0
          %9705 = vmatpush1.bf16.msra.mxu0 %v9399
          %9706 = vmatprep.subr.bf16.mxu0 0
          %9707 = vmatpush1.bf16.msra.mxu0 %v9402
          %9708 = vmatprep.subr.bf16.mxu0 0
          %9709 = vmatpush1.bf16.msra.mxu0 %v9405
          %9710 = vmatprep.subr.bf16.mxu0 0
          %9711 = vmatpush1.bf16.msra.mxu0 %v9408
          %9712 = vmatprep.subr.bf16.mxu0 0
          %9713 = vmatpush1.bf16.msra.mxu0 %v9411
          %9714 = vmatprep.subr.bf16.mxu0 0
          %9715 = vmatpush1.bf16.msra.mxu0 %v9414
          %9716 = vmatprep.subr.bf16.mxu0 0
          %9717 = vmatpush1.bf16.msra.mxu0 %v9417
          %9718 = vmatprep.subr.bf16.mxu0 0
          %9719 = vmatpush1.bf16.msra.mxu0 %v9420
          %9720 = vmatprep.subr.bf16.mxu0 0
          %9721 = vmatpush1.bf16.msra.mxu0 0
          %9722 = vmatprep.subr.bf16.mxu0 0
          %9723 = vmatpush1.bf16.msra.mxu0 0
          %9724 = vmatprep.subr.bf16.mxu0 0
          %9725 = vmatpush1.bf16.msra.mxu0 0
          %9726 = vmatprep.subr.bf16.mxu0 0
          %9727 = vmatpush1.bf16.msra.mxu0 0
          %9728 = vmatprep.subr.bf16.mxu0 0
          %9729 = vmatpush1.bf16.msra.mxu0 0
          %9730 = vmatprep.subr.bf16.mxu0 0
          %9731 = vmatpush1.bf16.msra.mxu0 0
          %9732 = vmatprep.subr.bf16.mxu0 0
          %9733 = vmatpush1.bf16.msra.mxu0 0
          %9734 = vmatprep.subr.bf16.mxu0 0
          %9735 = vmatpush1.bf16.msra.mxu0 0
          %9736 = vmatprep.mubr.bf16.mxu0 0
          %9737 = vmatmul.mubr.bf16.gmra.mrb[0].mxu0 %v8986
          %v9738 = vpop.f32.mrb[0].mxu0
          %v9739 = vadd.f32 %v9674, %v9738
          %v9740 = vpop.f32.mrb[0].mxu0
          %v9741 = vpop.f32.mrb[0].mxu0
          %v9742 = vadd.f32 %v9677, %v9741
          %v9743 = vpop.f32.mrb[0].mxu0
          %9744 = vmatprep.mubr.bf16.mxu0 0
          %9745 = vmatmul.mubr.bf16.gmra.mrb[0].mxu0 %v8989
          %v9746 = vpop.f32.mrb[0].mxu0
          %v9747 = vadd.f32 %v9682, %v9746
          %v9748 = vpop.f32.mrb[0].mxu0
          %v9749 = vpop.f32.mrb[0].mxu0
          %v9750 = vadd.f32 %v9685, %v9749
          %v9751 = vpop.f32.mrb[0].mxu0
          %9752 = vmatprep.mubr.bf16.mxu0 0
          %9753 = vmatmul.mubr.bf16.gmra.mrb[0].mxu0 %v8992
          %v9754 = vpop.f32.mrb[0].mxu0
          %v9755 = vadd.f32 %v9690, %v9754
          %v9756 = vpop.f32.mrb[0].mxu0
          %v9757 = vpop.f32.mrb[0].mxu0
          %v9758 = vadd.f32 %v9693, %v9757
          %v9759 = vpop.f32.mrb[0].mxu0
          %9760 = vmatprep.mubr.bf16.mxu0 0
          %9761 = vmatmul.mubr.bf16.gmra.mrb[0].mxu0 %v8995
          %v9762 = vpop.f32.mrb[0].mxu0
          %v9763 = vadd.f32 %v9698, %v9762
          %v9764 = vpop.f32.mrb[0].mxu0
          %v9765 = vpop.f32.mrb[0].mxu0
          %v9766 = vadd.f32 %v9701, %v9765
          %v9767 = vpop.f32.mrb[0].mxu0
          %9768 = vdwg.mxu0
          %v9769 = vxor.u32 %v9601, 2147483648
          %v9770 = vxor.u32 %v9603, 2147483648
          %v9771 = vxor.u32 %v9739, 2147483648
          %v9772 = vxor.u32 %v9605, 2147483648
          %v9773 = vxor.u32 %v9607, 2147483648
          %v9774 = vxor.u32 %v9742, 2147483648
          %v9775 = vxor.u32 %v9611, 2147483648
          %v9776 = vxor.u32 %v9613, 2147483648
          %v9777 = vxor.u32 %v9747, 2147483648
          %v9778 = vxor.u32 %v9615, 2147483648
          %v9779 = vxor.u32 %v9617, 2147483648
          %v9780 = vxor.u32 %v9750, 2147483648
          %v9781 = vxor.u32 %v9621, 2147483648
          %v9782 = vxor.u32 %v9623, 2147483648
          %v9783 = vxor.u32 %v9755, 2147483648
          %v9784 = vxor.u32 %v9625, 2147483648
          %v9785 = vxor.u32 %v9627, 2147483648
          %v9786 = vxor.u32 %v9758, 2147483648
          %v9787 = vxor.u32 %v9631, 2147483648
          %v9788 = vxor.u32 %v9633, 2147483648
          %v9789 = vxor.u32 %v9763, 2147483648
          %v9790 = vxor.u32 %v9635, 2147483648
          %v9791 = vxor.u32 %v9637, 2147483648
          %v9792 = vxor.u32 %v9766, 2147483648
          %v9793 = vmul.f32 %v9769, 1.442695
          %v9794 = vpow.pop %v9793
          %v9795 = vmul.f32 %v9770, 1.442695
          %v9796 = vpow.pop %v9795
          %v9797 = vmul.f32 %v9771, 1.442695
          %v9798 = vpow.pop %v9797
          %v9799 = vmul.f32 %v9772, 1.442695
          %v9800 = vpow.pop %v9799
          %v9801 = vmul.f32 %v9773, 1.442695
          %v9802 = vpow.pop %v9801
          %v9803 = vmul.f32 %v9774, 1.442695
          %v9804 = vpow.pop %v9803
          %v9805 = vmul.f32 %v9775, 1.442695
          %v9806 = vpow.pop %v9805
          %v9807 = vmul.f32 %v9776, 1.442695
          %v9808 = vpow.pop %v9807
          %v9809 = vmul.f32 %v9777, 1.442695
          %v9810 = vpow.pop %v9809
          %v9811 = vmul.f32 %v9778, 1.442695
          %v9812 = vpow.pop %v9811
          %v9813 = vmul.f32 %v9779, 1.442695
          %v9814 = vpow.pop %v9813
          %v9815 = vmul.f32 %v9780, 1.442695
          %v9816 = vpow.pop %v9815
          %v9817 = vmul.f32 %v9781, 1.442695
          %v9818 = vpow.pop %v9817
          %v9819 = vmul.f32 %v9782, 1.442695
          %v9820 = vpow.pop %v9819
          %v9821 = vmul.f32 %v9783, 1.442695
          %v9822 = vpow.pop %v9821
          %v9823 = vmul.f32 %v9784, 1.442695
          %v9824 = vpow.pop %v9823
          %v9825 = vmul.f32 %v9785, 1.442695
          %v9826 = vpow.pop %v9825
          %v9827 = vmul.f32 %v9786, 1.442695
          %v9828 = vpow.pop %v9827
          %v9829 = vmul.f32 %v9787, 1.442695
          %v9830 = vpow.pop %v9829
          %v9831 = vmul.f32 %v9788, 1.442695
          %v9832 = vpow.pop %v9831
          %v9833 = vmul.f32 %v9789, 1.442695
          %v9834 = vpow.pop %v9833
          %v9835 = vmul.f32 %v9790, 1.442695
          %v9836 = vpow.pop %v9835
          %v9837 = vmul.f32 %v9791, 1.442695
          %v9838 = vpow.pop %v9837
          %v9839 = vmul.f32 %v9792, 1.442695
          %v9840 = vpow.pop %v9839
          %v9841 = vadd.f32 %v9794, 1.0
          %v9842 = vadd.f32 %v9796, 1.0
          %v9843 = vadd.f32 %v9798, 1.0
          %v9844 = vadd.f32 %v9800, 1.0
          %v9845 = vadd.f32 %v9802, 1.0
          %v9846 = vadd.f32 %v9804, 1.0
          %v9847 = vadd.f32 %v9806, 1.0
          %v9848 = vadd.f32 %v9808, 1.0
          %v9849 = vadd.f32 %v9810, 1.0
          %v9850 = vadd.f32 %v9812, 1.0
          %v9851 = vadd.f32 %v9814, 1.0
          %v9852 = vadd.f32 %v9816, 1.0
          %v9853 = vadd.f32 %v9818, 1.0
          %v9854 = vadd.f32 %v9820, 1.0
          %v9855 = vadd.f32 %v9822, 1.0
          %v9856 = vadd.f32 %v9824, 1.0
          %v9857 = vadd.f32 %v9826, 1.0
          %v9858 = vadd.f32 %v9828, 1.0
          %v9859 = vadd.f32 %v9830, 1.0
          %v9860 = vadd.f32 %v9832, 1.0
          %v9861 = vadd.f32 %v9834, 1.0
          %v9862 = vadd.f32 %v9836, 1.0
          %v9863 = vadd.f32 %v9838, 1.0
          %v9864 = vadd.f32 %v9840, 1.0
          %v9865 = vrcp.pop %v9841
          %v9866 = vmul.f32 1.0, %v9865
          %v9867 = vrcp.pop %v9842
          %v9868 = vmul.f32 1.0, %v9867
          %v9869 = vrcp.pop %v9843
          %v9870 = vmul.f32 1.0, %v9869
          %v9871 = vrcp.pop %v9844
          %v9872 = vmul.f32 1.0, %v9871
          %v9873 = vrcp.pop %v9845
          %v9874 = vmul.f32 1.0, %v9873
          %v9875 = vrcp.pop %v9846
          %v9876 = vmul.f32 1.0, %v9875
          %v9877 = vrcp.pop %v9847
          %v9878 = vmul.f32 1.0, %v9877
          %v9879 = vrcp.pop %v9848
          %v9880 = vmul.f32 1.0, %v9879
          %v9881 = vrcp.pop %v9849
          %v9882 = vmul.f32 1.0, %v9881
          %v9883 = vrcp.pop %v9850
          %v9884 = vmul.f32 1.0, %v9883
          %v9885 = vrcp.pop %v9851
          %v9886 = vmul.f32 1.0, %v9885
          %v9887 = vrcp.pop %v9852
          %v9888 = vmul.f32 1.0, %v9887
          %v9889 = vrcp.pop %v9853
          %v9890 = vmul.f32 1.0, %v9889
          %v9891 = vrcp.pop %v9854
          %v9892 = vmul.f32 1.0, %v9891
          %v9893 = vrcp.pop %v9855
          %v9894 = vmul.f32 1.0, %v9893
          %v9895 = vrcp.pop %v9856
          %v9896 = vmul.f32 1.0, %v9895
          %v9897 = vrcp.pop %v9857
          %v9898 = vmul.f32 1.0, %v9897
          %v9899 = vrcp.pop %v9858
          %v9900 = vmul.f32 1.0, %v9899
          %v9901 = vrcp.pop %v9859
          %v9902 = vmul.f32 1.0, %v9901
          %v9903 = vrcp.pop %v9860
          %v9904 = vmul.f32 1.0, %v9903
          %v9905 = vrcp.pop %v9861
          %v9906 = vmul.f32 1.0, %v9905
          %v9907 = vrcp.pop %v9862
          %v9908 = vmul.f32 1.0, %v9907
          %v9909 = vrcp.pop %v9863
          %v9910 = vmul.f32 1.0, %v9909
          %v9911 = vrcp.pop %v9864
          %v9912 = vmul.f32 1.0, %v9911
          %9913 = vst [vmem:[%s10] sm:$0xff] %v9866
          %9914 = vst [vmem:[%s10 + $0x8] sm:$0xff] %v9868
          %9915 = vst [vmem:[%s10 + $0x10] sm:$0xff] %v9870
          %9916 = vst [vmem:[%s10 + $0x18] sm:$0xff] %v9872
          %9917 = vst [vmem:[%s10 + $0x20] sm:$0xff] %v9874
          %9918 = vst [vmem:[%s10 + $0x28] sm:$0xff] %v9876
          %9919 = vst [vmem:[%s10 + $0x30] sm:$0xff] %v9878
          %9920 = vst [vmem:[%s10 + $0x38] sm:$0xff] %v9880
          %9921 = vst [vmem:[%s10 + $0x40] sm:$0xff] %v9882
          %9922 = vst [vmem:[%s10 + $0x48] sm:$0xff] %v9884
          %9923 = vst [vmem:[%s10 + $0x50] sm:$0xff] %v9886
          %9924 = vst [vmem:[%s10 + $0x58] sm:$0xff] %v9888
          %9925 = vst [vmem:[%s10 + $0x60] sm:$0xff] %v9890
          %9926 = vst [vmem:[%s10 + $0x68] sm:$0xff] %v9892
          %9927 = vst [vmem:[%s10 + $0x70] sm:$0xff] %v9894
          %9928 = vst [vmem:[%s10 + $0x78] sm:$0xff] %v9896
          %9929 = vst [vmem:[%s10 + $0x80] sm:$0xff] %v9898
          %9930 = vst [vmem:[%s10 + $0x88] sm:$0xff] %v9900
          %9931 = vst [vmem:[%s10 + $0x90] sm:$0xff] %v9902
          %9932 = vst [vmem:[%s10 + $0x98] sm:$0xff] %v9904
          %9933 = vst [vmem:[%s10 + $0xa0] sm:$0xff] %v9906
          %9934 = vst [vmem:[%s10 + $0xa8] sm:$0xff] %v9908
          %9935 = vst [vmem:[%s10 + $0xb0] sm:$0xff] %v9910
          %9936 = vst [vmem:[%s10 + $0xb8] sm:$0xff] %v9912
        $region100: #{rnn_spp_contain_rever_forward.1} parent=59 // pred_fallthru
          _
        %p9937 = scmp.lt.s32.totalorder %s34, 2
        %s9938 = scalar_select %p9937, %s34, 2
        %s9939 = smul.addr %s9938, 3
        %s9940 = smul.addr %s9939, 8
        %s9941 = scalar_lea.vmem %s11, %s9940
        // Predicated region
        $region101: #{rnn_spp_contain_rever_forward.1} parent=59 // pred_check
          %p9942 = pneg %p282
        $region102: #{rnn_spp_contain_rever_forward.1} parent=59 // pred_check_branch
          %9944 = sbr.rel (%p9942) target = $region104
        $region103: #{rnn_spp_contain_rever_forward.1} parent=59 // pred_region
          _
        $region104: #{rnn_spp_contain_rever_forward.1} parent=59 // pred_fallthru
          _
        // Predicated region
        $region105: #{rnn_spp_contain_rever_forward.1} parent=59 // pred_check
          %p9945 = pneg %p308
        $region106: #{rnn_spp_contain_rever_forward.1} parent=59 // pred_check_branch
          %9947 = sbr.rel (%p9945) target = $region108
        $region107: #{rnn_spp_contain_rever_forward.1} parent=59 // pred_region
          _
        $region108: #{rnn_spp_contain_rever_forward.1} parent=59 // pred_fallthru
          _
        // Predicated region
        $region109: #{rnn_spp_contain_rever_forward.1} parent=59 // pred_check
          %p9948 = pneg %p282
        $region110: #{rnn_spp_contain_rever_forward.1} parent=59 // pred_check_branch
          %9950 = sbr.rel (%p9948) target = $region112
        $region111: #{rnn_spp_contain_rever_forward.1} parent=59 // pred_region
          _
        $region112: #{rnn_spp_contain_rever_forward.1} parent=59 // pred_fallthru
          _
      $region60: #{rnn_spp_contain_rever_forward.1} parent=5 // pred_fallthru
        _
      %p9951 = scmp.le.s32.totalorder 2, %s29
      // Predicated region
      $region113: #{rnn_spp_contain_rever_forward.1} parent=5 // pred_check
        %p9952 = pneg %p9951
      $region114: #{rnn_spp_contain_rever_forward.1} parent=5 // pred_check_branch
        %9954 = sbr.rel (%p9952) target = $region116
      $region115: #{rnn_spp_contain_rever_forward.1} parent=5 // pred_region
        %s9955 = ssub.s32 %s29, 2
        // Predicated region
        $region117: #{rnn_spp_contain_rever_forward.1} parent=115 // pred_check
          %p9956 = pneg %p314
        $region118: #{rnn_spp_contain_rever_forward.1} parent=115 // pred_check_branch
          %9958 = sbr.rel (%p9956) target = $region120
        $region119: #{rnn_spp_contain_rever_forward.1} parent=115 // pred_region
          %p9959 = scmp.lt.s32.totalorder %s35, 2
          %s9960 = scalar_select %p9959, %s35, 2
          %s9961 = smul.addr %s9960, 3
          %s9962 = smul.addr %s9961, 8
          %s9963 = scalar_lea.vmem %s11, %s9962
        $region120: #{rnn_spp_contain_rever_forward.1} parent=115 // pred_fallthru
          _
      $region116: #{rnn_spp_contain_rever_forward.1} parent=5 // pred_fallthru
        _
    $region6: #{rnn_spp_contain_rever_forward.1} parent=1 // loop_footer
      %s33 = sadd.s32 1, %s29
    $region7: #{rnn_spp_contain_rever_forward.1} parent=1 // loop_footer_branch
      %28 = sbr.rel target = $region3
    $region8: #{rnn_spp_contain_rever_forward.1} parent=1 // loop_exit
      _
    %9964 = vsyncpa [#allocation5], 1
    %s9965 = scalar_lea.sflag [#allocation5], 1
    %9966 = vsyncpa %s9965, 1
    %9967 = vsyncpa [#allocation7], 1
    %s9968 = scalar_lea.sflag [#allocation7], 1
    %9969 = vsyncpa %s9968, 1
    %9970 = vsyncpa [#allocation10], 1
    %s9971 = scalar_lea.sflag [#allocation10], 1
    %9972 = vsyncpa %s9971, 1
    %9973 = vsyncpa [#allocation13], 1
    %9974 = vsyncpa [#allocation16], 1

</llo_original>
